<compile_context>
chip_gen: v6e
topology: v6e:2x2x1
jax: 0.10.0
libtpu: 0.0.40
codegen_flags: <defaults>
</compile_context>

<pallas_src>
import jax
import jax.numpy as jnp
from jax.experimental import pallas as pl
from jax.experimental.pallas import tpu as pltpu


def _im2col(patch_ref, pad_ref, H, W, Ci, pair_taps):
    """Assemble the (H*W, 9*Ci) im2col operand from the padded scratch.

    Taps are written as 2*Ci-wide slabs (pairs concatenated in registers) when Ci is not a
    multiple of 128, so stores start at wider / better-aligned lane offsets.  Slices are taken
    directly from the scratch ref (no full-buffer load)."""
    group = 2 if pair_taps else 1
    t = 0
    while t < 9:
        n = min(group, 9 - t)
        parts = []
        for j in range(n):
            ky, kx = divmod(t + j, 3)
            tap = pad_ref[ky:ky + H, kx:kx + W, :].reshape(H * W, Ci)
            parts.append(tap.astype(patch_ref.dtype))
        slab = parts[0] if n == 1 else jnp.concatenate(parts, axis=-1)
        patch_ref[:, t * Ci:(t + n) * Ci] = slab
        t += n


def _direct_conv(pad_ref, w_ref, H, W, Ci, C):
    """3x3 conv as 9 direct K=Ci MXU dots accumulated in f32 (no im2col materialization)."""
    acc = None
    for ky in range(3):
        for kx in range(3):
            t = ky * 3 + kx
            tap = pad_ref[ky:ky + H, kx:kx + W, :].reshape(H * W, Ci)
            d = jnp.dot(tap, w_ref[t * Ci:(t + 1) * Ci, :],
                        preferred_element_type=jnp.float32)
            acc = d if acc is None else acc + d
    return acc


def _make_basic_block_kernel(H, W, Cin, C, use_im2col, pair_taps):
    def kernel(x_ref, w1_ref, s1_ref, b1_ref, w2_ref, s2_ref, b2_ref,
               out_ref, pad_ref, *scratch):
        """Fused BasicBlock forward for one image (one grid step).

        x_ref:         (H, W, Cin)       bf16 input tile (NHWC, un-padded)
        w1_ref/w2_ref: (9*Cin, C)/(9*C, C) bf16 tap-fused conv weights
        s*_ref/b*_ref: (1, C)            f32 folded BN scale / shift
        out_ref:       (H*W, C)          bf16 output tile
        pad_ref:       VMEM (H+2, W+2, C) bf16 SHARED padded scratch (conv1 & conv2)
        scratch[0]:    VMEM (H*W, 9*C)   bf16 im2col operand (only when use_im2col)
        """
        patch_ref = scratch[0] if use_im2col else None

        Hp, Wp, Cm = pad_ref.shape

        # Zero only the 1-wide halo border (every step: see megacore note in header).
        zrow = jnp.zeros((1, Wp, Cm), pad_ref.dtype)
        zcol = jnp.zeros((Hp, 1, Cm), pad_ref.dtype)
        pad_ref[0:1, :, :] = zrow
        pad_ref[Hp - 1:Hp, :, :] = zrow
        pad_ref[:, 0:1, :] = zcol
        pad_ref[:, Wp - 1:Wp, :] = zcol

        # ---- conv1: input tile (bf16) straight into the shared pad scratch, no cast ----
        pad_ref[1:H + 1, 1:W + 1, :] = x_ref[...]
        if use_im2col:
            _im2col(patch_ref, pad_ref, H, W, Cin, pair_taps)
            acc1 = jnp.dot(patch_ref[...], w1_ref[...],
                           preferred_element_type=jnp.float32)      # (H*W, C) f32
        else:
            acc1 = _direct_conv(pad_ref, w1_ref, H, W, Cin, C)

        # ---- BN1 (folded scale/shift) + ReLU, f32 ----
        mid = jnp.maximum(acc1 * s1_ref[...] + b1_ref[...], 0.0)

        # ---- conv2: reuse the SAME pad scratch (Cin == C on this path) ----
        pad_ref[1:H + 1, 1:W + 1, :] = mid.reshape(H, W, C).astype(pad_ref.dtype)
        if use_im2col:
            _im2col(patch_ref, pad_ref, H, W, C, pair_taps)
            acc2 = jnp.dot(patch_ref[...], w2_ref[...],
                           preferred_element_type=jnp.float32)      # (H*W, C) f32
        else:
            acc2 = _direct_conv(pad_ref, w2_ref, H, W, C, C)

        # ---- BN2 + residual + ReLU.  Residual re-read from the VMEM input tile here so the
        # full-tile value is not held live across the two MXU contractions. ----
        res = x_ref[...].reshape(H * W, Cin).astype(jnp.float32)
        out = jnp.maximum(acc2 * s2_ref[...] + b2_ref[...] + res, 0.0)
        out_ref[...] = out.astype(out_ref.dtype)

    return kernel


def basic_block_forward(x_nchw, params, eps=1e-5, im2col_max_cin=128):
    """Wrapper: NCHW in / NCHW out (for the PyTorch-style interface; the kernel itself is
    NHWC / bf16).  Requires stride=1 and in_planes == planes (downsample=None path)."""
    (w1, g1, be1, m1, v1, w2, g2, be2, m2, v2) = params
    N, Cin, H, W = x_nchw.shape
    C = w1.shape[0]
    assert Cin == C, "stride=1 / downsample=None path requires in_planes == planes"

    # NCHW -> NHWC; activations in bf16 for the MXU (f32 accumulation inside the kernel).
    x = jnp.transpose(x_nchw, (0, 2, 3, 1)).astype(jnp.bfloat16)

    # PyTorch OIHW -> (ky, kx, Cin, Cout) -> (9*Cin, Cout) tap-fused matmul weights, bf16.
    w1m = jnp.transpose(w1, (2, 3, 1, 0)).reshape(9 * Cin, C).astype(jnp.bfloat16)
    w2m = jnp.transpose(w2, (2, 3, 1, 0)).reshape(9 * C, C).astype(jnp.bfloat16)

    # Eval-mode BN folded to per-channel scale/shift (f32), broadcast over (H*W, C).
    s1 = (g1 / jnp.sqrt(v1 + eps)).reshape(1, C).astype(jnp.float32)
    b1 = (be1 - m1 * g1 / jnp.sqrt(v1 + eps)).reshape(1, C).astype(jnp.float32)
    s2 = (g2 / jnp.sqrt(v2 + eps)).reshape(1, C).astype(jnp.float32)
    b2 = (be2 - m2 * g2 / jnp.sqrt(v2 + eps)).reshape(1, C).astype(jnp.float32)

    # Channel-width-aware conv strategy (skip im2col once per-tap K already fills the MXU).
    use_im2col = Cin < im2col_max_cin
    pair_taps = (Cin % 128) != 0

    scratch_shapes = [pltpu.VMEM((H + 2, W + 2, C), jnp.bfloat16)]   # shared padded scratch
    if use_im2col:
        scratch_shapes.append(pltpu.VMEM((H * W, 9 * C), jnp.bfloat16))

    # ---- generation-aware VMEM budget: per-step footprint + headroom, clamped to HW capacity ----
    bpe = 2  # bf16
    needed = (
        2 * (H * W * Cin * bpe)                                   # double-buffered input tiles
        + 2 * (H * W * C * bpe)                                   # double-buffered output tiles
        + 2 * ((9 * Cin * C + 9 * C * C) * bpe + 4 * C * 4)       # weights + BN params
        + (H + 2) * (W + 2) * C * bpe                             # shared pad scratch
        + (H * W * 9 * C * bpe if use_im2col else 0))             # im2col scratch
    try:
        vmem_cap = int(getattr(pltpu.get_tpu_info(), "vmem_capacity_bytes", 64 << 20))
    except Exception:
        vmem_cap = 64 << 20  # safe minimum across v5e/v6e/v7x
    vmem_limit = max(16 << 20, int(1.5 * needed) + (4 << 20))
    vmem_limit = min(vmem_limit, int(0.9 * vmem_cap))

    # ---- advisory cost estimate (two 3x3 convs + I/O bytes) ----
    flops = int(4 * N * H * W * 9 * Cin * C)                      # 2 convs * 2*M*K*N
    bytes_accessed = int(
        N * H * W * Cin * 2 + N * H * W * C * 2
        + (9 * Cin * C + 9 * C * C) * 2 + 4 * C * 4)
    cost = pl.CostEstimate(flops=flops, transcendentals=0, bytes_accessed=bytes_accessed)

    grid_spec = pltpu.PrefetchScalarGridSpec(
        num_scalar_prefetch=0,
        grid=(N,),                                                # pipelined over images
        in_specs=[
            pl.BlockSpec((None, H, W, Cin), lambda n: (n, 0, 0, 0)),   # per-image input tile
            pl.BlockSpec((9 * Cin, C), lambda n: (0, 0)),              # conv1 weights
            pl.BlockSpec((1, C), lambda n: (0, 0)),                    # bn1 scale
            pl.BlockSpec((1, C), lambda n: (0, 0)),                    # bn1 shift
            pl.BlockSpec((9 * C, C), lambda n: (0, 0)),                # conv2 weights
            pl.BlockSpec((1, C), lambda n: (0, 0)),                    # bn2 scale
            pl.BlockSpec((1, C), lambda n: (0, 0)),                    # bn2 shift
        ],
        out_specs=pl.BlockSpec((None, H * W, C), lambda n: (n, 0, 0)),
        scratch_shapes=scratch_shapes,
    )

    out = pl.pallas_call(
        _make_basic_block_kernel(H, W, Cin, C, use_im2col, pair_taps),
        out_shape=jax.ShapeDtypeStruct((N, H * W, C), jnp.bfloat16),
        grid_spec=grid_spec,
        compiler_params=pltpu.CompilerParams(
            dimension_semantics=("parallel",),   # shard batch grid across v7x's 2 TensorCores
            vmem_limit_bytes=vmem_limit,
        ),
        cost_estimate=cost,
    )(x, w1m, s1, b1, w2m, s2, b2)

    # (N, H*W, C) bf16 -> NCHW f32 (interface only; keep NHWC/bf16 inside a full network).
    return jnp.transpose(out.reshape(N, H, W, C), (0, 3, 1, 2)).astype(jnp.float32)


def basic_block_reference(x, params, eps=1e-5):
    """Plain-JAX reference (NCHW, f32), mirrors the PyTorch forward (BN not absorbed, eval)."""
    (w1, g1, be1, m1, v1, w2, g2, be2, m2, v2) = params

    def conv(x, w):
        return jax.lax.conv_general_dilated(
            x, w, window_strides=(1, 1), padding=((1, 1), (1, 1)),
            dimension_numbers=('NCHW', 'OIHW', 'NCHW'))

    def bn(x, g, b, m, v):
        s = g / jnp.sqrt(v + eps)
        return x * s[None, :, None, None] + (b - m * s)[None, :, None, None]

    out = jnp.maximum(bn(conv(x, w1), g1, be1, m1, v1), 0.0)
    out = bn(conv(out, w2), g2, be2, m2, v2)
    return jnp.maximum(out + x, 0.0)


if __name__ == "__main__":
    # Small shapes consistent with the module: batch=2, planes=in_planes=8, spatial=16
    N, C, H, W = 2, 8, 16, 16

    key = jax.random.PRNGKey(0)
    ks = jax.random.split(key, 11)
    x = jax.random.normal(ks[0], (N, C, H, W), jnp.float32)

    # conv weights (PyTorch layout OIHW), no bias (bias=False in conv3x3)
    w1 = jax.random.normal(ks[1], (C, C, 3, 3), jnp.float32) * 0.1
    w2 = jax.random.normal(ks[2], (C, C, 3, 3), jnp.float32) * 0.1
    # BN1 / BN2 parameters + running stats (deterministic)
    g1 = 1.0 + 0.1 * jax.random.normal(ks[3], (C,), jnp.float32)
    be1 = 0.1 * jax.random.normal(ks[4], (C,), jnp.float32)
    m1 = 0.1 * jax.random.normal(ks[5], (C,), jnp.float32)
    v1 = jnp.abs(jax.random.normal(ks[6], (C,), jnp.float32)) + 0.5
    g2 = 1.0 + 0.1 * jax.random.normal(ks[7], (C,), jnp.float32)
    be2 = 0.1 * jax.random.normal(ks[8], (C,), jnp.float32)
    m2 = 0.1 * jax.random.normal(ks[9], (C,), jnp.float32)
    v2 = jnp.abs(jax.random.normal(ks[10], (C,), jnp.float32)) + 0.5

    params = (w1, g1, be1, m1, v1, w2, g2, be2, m2, v2)

    ref = jax.block_until_ready(basic_block_reference(x, params))

    # Default path (im2col, tap-pairing exercised since C % 128 != 0).
    out = jax.block_until_ready(basic_block_forward(x, params))
    # Direct 9-dot path (what wide-channel stages would use) — force it to keep it tested.
    out_direct = jax.block_until_ready(basic_block_forward(x, params, im2col_max_cin=0))

    assert out.shape == (N, C, H, W)
    assert out_direct.shape == (N, C, H, W)
    # bf16 matmul inputs + bf16 output store (f32 accumulation) -> relaxed tolerance.
    md1 = float(jnp.max(jnp.abs(out - ref)))
    md2 = float(jnp.max(jnp.abs(out_direct - ref)))
    assert jnp.allclose(out, ref, atol=5e-2, rtol=5e-2), f"im2col path max abs diff {md1}"
    assert jnp.allclose(out_direct, ref, atol=5e-2, rtol=5e-2), f"direct path max abs diff {md2}"

    print("KERNEL_OK")
</pallas_src>

<mosaic_0001>
module attributes {stable_mosaic.version = 11 : i64} {
  func.func @kernel(%arg0: i32, %arg1: memref<1x16x16x8xbf16, #tpu.memory_space<vmem>>, %arg2: memref<72x8xbf16, #tpu.memory_space<vmem>>, %arg3: memref<1x8xf32, #tpu.memory_space<vmem>>, %arg4: memref<1x8xf32, #tpu.memory_space<vmem>>, %arg5: memref<72x8xbf16, #tpu.memory_space<vmem>>, %arg6: memref<1x8xf32, #tpu.memory_space<vmem>>, %arg7: memref<1x8xf32, #tpu.memory_space<vmem>>, %arg8: memref<1x256x8xbf16, #tpu.memory_space<vmem>>, %arg9: memref<18x18x8xbf16, #tpu.memory_space<vmem>>, %arg10: memref<256x72xbf16, #tpu.memory_space<vmem>>) attributes {dimension_semantics = [#tpu.dimension_semantics<parallel>], iteration_bounds = array<i64: 2>, scalar_prefetch = 0 : i64, scratch_operands = 2 : i64, tpu.core_type = #tpu.core_type<tc>, window_params = [{transform_indices = @transform_0, window_bounds = array<i64: 1, 16, 16, 8>}, {pipeline_mode = #tpu.pipeline_mode<synchronous>, transform_indices = @transform_1, window_bounds = array<i64: 72, 8>}, {pipeline_mode = #tpu.pipeline_mode<synchronous>, transform_indices = @transform_2, window_bounds = array<i64: 1, 8>}, {pipeline_mode = #tpu.pipeline_mode<synchronous>, transform_indices = @transform_3, window_bounds = array<i64: 1, 8>}, {pipeline_mode = #tpu.pipeline_mode<synchronous>, transform_indices = @transform_4, window_bounds = array<i64: 72, 8>}, {pipeline_mode = #tpu.pipeline_mode<synchronous>, transform_indices = @transform_5, window_bounds = array<i64: 1, 8>}, {pipeline_mode = #tpu.pipeline_mode<synchronous>, transform_indices = @transform_6, window_bounds = array<i64: 1, 8>}, {transform_indices = @transform_7, window_bounds = array<i64: 1, 256, 8>}]} {
    %cst = arith.constant 0.000000e+00 : bf16
    %0 = vector.broadcast %cst : bf16 to vector<1x18x8xbf16>
    %cst_0 = arith.constant 0.000000e+00 : bf16
    %1 = vector.broadcast %cst_0 : bf16 to vector<18x1x8xbf16>
    %c0 = arith.constant 0 : index
    %c0_1 = arith.constant 0 : index
    %c0_2 = arith.constant 0 : index
    %2 = vector.load %arg9[%c0, %c0_1, %c0_2] : memref<18x18x8xbf16, #tpu.memory_space<vmem>>, vector<1x18x8xbf16>
    tpu.vector_store %arg9[%c0, %c0_1, %c0_2], %0 {strides = array<i32>} : memref<18x18x8xbf16, #tpu.memory_space<vmem>>, vector<1x18x8xbf16>,
    %c17 = arith.constant 17 : index
    %c0_3 = arith.constant 0 : index
    %c0_4 = arith.constant 0 : index
    %3 = vector.load %arg9[%c17, %c0_3, %c0_4] : memref<18x18x8xbf16, #tpu.memory_space<vmem>>, vector<1x18x8xbf16>
    tpu.vector_store %arg9[%c17, %c0_3, %c0_4], %0 {strides = array<i32>} : memref<18x18x8xbf16, #tpu.memory_space<vmem>>, vector<1x18x8xbf16>,
    %c0_5 = arith.constant 0 : index
    %c0_6 = arith.constant 0 : index
    %c0_7 = arith.constant 0 : index
    %4 = vector.load %arg9[%c0_5, %c0_6, %c0_7] : memref<18x18x8xbf16, #tpu.memory_space<vmem>>, vector<18x1x8xbf16>
    tpu.vector_store %arg9[%c0_5, %c0_6, %c0_7], %1 {strides = array<i32>} : memref<18x18x8xbf16, #tpu.memory_space<vmem>>, vector<18x1x8xbf16>,
    %c0_8 = arith.constant 0 : index
    %c17_9 = arith.constant 17 : index
    %c0_10 = arith.constant 0 : index
    %5 = vector.load %arg9[%c0_8, %c17_9, %c0_10] : memref<18x18x8xbf16, #tpu.memory_space<vmem>>, vector<18x1x8xbf16>
    tpu.vector_store %arg9[%c0_8, %c17_9, %c0_10], %1 {strides = array<i32>} : memref<18x18x8xbf16, #tpu.memory_space<vmem>>, vector<18x1x8xbf16>,
    %c0_11 = arith.constant 0 : index
    %c0_12 = arith.constant 0 : index
    %c0_13 = arith.constant 0 : index
    %c0_14 = arith.constant 0 : index
    %6 = vector.load %arg1[%c0_11, %c0_12, %c0_13, %c0_14] : memref<1x16x16x8xbf16, #tpu.memory_space<vmem>>, vector<1x16x16x8xbf16>
    %7 = vector.shape_cast %6 : vector<1x16x16x8xbf16> to vector<16x16x8xbf16>
    %c1 = arith.constant 1 : index
    %c1_15 = arith.constant 1 : index
    %c0_16 = arith.constant 0 : index
    %8 = vector.load %arg9[%c1, %c1_15, %c0_16] : memref<18x18x8xbf16, #tpu.memory_space<vmem>>, vector<16x16x8xbf16>
    tpu.vector_store %arg9[%c1, %c1_15, %c0_16], %7 {strides = array<i32>} : memref<18x18x8xbf16, #tpu.memory_space<vmem>>, vector<16x16x8xbf16>,
    %c0_17 = arith.constant 0 : index
    %c0_18 = arith.constant 0 : index
    %c0_19 = arith.constant 0 : index
    %9 = vector.load %arg9[%c0_17, %c0_18, %c0_19] : memref<18x18x8xbf16, #tpu.memory_space<vmem>>, vector<16x16x8xbf16>
    %10 = vector.shape_cast %9 : vector<16x16x8xbf16> to vector<256x8xbf16>
    %c0_20 = arith.constant 0 : index
    %c1_21 = arith.constant 1 : index
    %c0_22 = arith.constant 0 : index
    %11 = vector.load %arg9[%c0_20, %c1_21, %c0_22] : memref<18x18x8xbf16, #tpu.memory_space<vmem>>, vector<16x16x8xbf16>
    %12 = vector.shape_cast %11 : vector<16x16x8xbf16> to vector<256x8xbf16>
    %13 = tpu.concatenate %10, %12 in 1 : vector<256x8xbf16>, vector<256x8xbf16> -> vector<256x16xbf16>
    %c0_23 = arith.constant 0 : index
    %c0_24 = arith.constant 0 : index
    %14 = vector.load %arg10[%c0_23, %c0_24] : memref<256x72xbf16, #tpu.memory_space<vmem>>, vector<256x16xbf16>
    tpu.vector_store %arg10[%c0_23, %c0_24], %13 {strides = array<i32>} : memref<256x72xbf16, #tpu.memory_space<vmem>>, vector<256x16xbf16>,
    %c0_25 = arith.constant 0 : index
    %c2 = arith.constant 2 : index
    %c0_26 = arith.constant 0 : index
    %15 = vector.load %arg9[%c0_25, %c2, %c0_26] : memref<18x18x8xbf16, #tpu.memory_space<vmem>>, vector<16x16x8xbf16>
    %16 = vector.shape_cast %15 : vector<16x16x8xbf16> to vector<256x8xbf16>
    %c1_27 = arith.constant 1 : index
    %c0_28 = arith.constant 0 : index
    %c0_29 = arith.constant 0 : index
    %17 = vector.load %arg9[%c1_27, %c0_28, %c0_29] : memref<18x18x8xbf16, #tpu.memory_space<vmem>>, vector<16x16x8xbf16>
    %18 = vector.shape_cast %17 : vector<16x16x8xbf16> to vector<256x8xbf16>
    %19 = tpu.concatenate %16, %18 in 1 : vector<256x8xbf16>, vector<256x8xbf16> -> vector<256x16xbf16>
    %c0_30 = arith.constant 0 : index
    %c16 = arith.constant 16 : index
    %20 = vector.load %arg10[%c0_30, %c16] : memref<256x72xbf16, #tpu.memory_space<vmem>>, vector<256x16xbf16>
    tpu.vector_store %arg10[%c0_30, %c16], %19 {strides = array<i32>} : memref<256x72xbf16, #tpu.memory_space<vmem>>, vector<256x16xbf16>,
    %c1_31 = arith.constant 1 : index
    %c1_32 = arith.constant 1 : index
    %c0_33 = arith.constant 0 : index
    %21 = vector.load %arg9[%c1_31, %c1_32, %c0_33] : memref<18x18x8xbf16, #tpu.memory_space<vmem>>, vector<16x16x8xbf16>
    %22 = vector.shape_cast %21 : vector<16x16x8xbf16> to vector<256x8xbf16>
    %c1_34 = arith.constant 1 : index
    %c2_35 = arith.constant 2 : index
    %c0_36 = arith.constant 0 : index
    %23 = vector.load %arg9[%c1_34, %c2_35, %c0_36] : memref<18x18x8xbf16, #tpu.memory_space<vmem>>, vector<16x16x8xbf16>
    %24 = vector.shape_cast %23 : vector<16x16x8xbf16> to vector<256x8xbf16>
    %25 = tpu.concatenate %22, %24 in 1 : vector<256x8xbf16>, vector<256x8xbf16> -> vector<256x16xbf16>
    %c0_37 = arith.constant 0 : index
    %c32 = arith.constant 32 : index
    %26 = vector.load %arg10[%c0_37, %c32] : memref<256x72xbf16, #tpu.memory_space<vmem>>, vector<256x16xbf16>
    tpu.vector_store %arg10[%c0_37, %c32], %25 {strides = array<i32>} : memref<256x72xbf16, #tpu.memory_space<vmem>>, vector<256x16xbf16>,
    %c2_38 = arith.constant 2 : index
    %c0_39 = arith.constant 0 : index
    %c0_40 = arith.constant 0 : index
    %27 = vector.load %arg9[%c2_38, %c0_39, %c0_40] : memref<18x18x8xbf16, #tpu.memory_space<vmem>>, vector<16x16x8xbf16>
    %28 = vector.shape_cast %27 : vector<16x16x8xbf16> to vector<256x8xbf16>
    %c2_41 = arith.constant 2 : index
    %c1_42 = arith.constant 1 : index
    %c0_43 = arith.constant 0 : index
    %29 = vector.load %arg9[%c2_41, %c1_42, %c0_43] : memref<18x18x8xbf16, #tpu.memory_space<vmem>>, vector<16x16x8xbf16>
    %30 = vector.shape_cast %29 : vector<16x16x8xbf16> to vector<256x8xbf16>
    %31 = tpu.concatenate %28, %30 in 1 : vector<256x8xbf16>, vector<256x8xbf16> -> vector<256x16xbf16>
    %c0_44 = arith.constant 0 : index
    %c48 = arith.constant 48 : index
    %32 = vector.load %arg10[%c0_44, %c48] : memref<256x72xbf16, #tpu.memory_space<vmem>>, vector<256x16xbf16>
    tpu.vector_store %arg10[%c0_44, %c48], %31 {strides = array<i32>} : memref<256x72xbf16, #tpu.memory_space<vmem>>, vector<256x16xbf16>,
    %c2_45 = arith.constant 2 : index
    %c2_46 = arith.constant 2 : index
    %c0_47 = arith.constant 0 : index
    %33 = vector.load %arg9[%c2_45, %c2_46, %c0_47] : memref<18x18x8xbf16, #tpu.memory_space<vmem>>, vector<16x16x8xbf16>
    %34 = vector.shape_cast %33 : vector<16x16x8xbf16> to vector<256x8xbf16>
    %c0_48 = arith.constant 0 : index
    %c64 = arith.constant 64 : index
    %35 = vector.load %arg10[%c0_48, %c64] : memref<256x72xbf16, #tpu.memory_space<vmem>>, vector<256x8xbf16>
    tpu.vector_store %arg10[%c0_48, %c64], %34 {strides = array<i32>} : memref<256x72xbf16, #tpu.memory_space<vmem>>, vector<256x8xbf16>,
    %c0_49 = arith.constant 0 : index
    %c0_50 = arith.constant 0 : index
    %36 = vector.load %arg10[%c0_49, %c0_50] : memref<256x72xbf16, #tpu.memory_space<vmem>>, vector<256x72xbf16>
    %c0_51 = arith.constant 0 : index
    %c0_52 = arith.constant 0 : index
    %37 = vector.load %arg2[%c0_51, %c0_52] : memref<72x8xbf16, #tpu.memory_space<vmem>>, vector<72x8xbf16>
    %cst_53 = arith.constant dense<0.000000e+00> : vector<256x8xf32>
    %38 = tpu.matmul %36, %37, %cst_53 {dimension_numbers = #tpu.dot_dimension_numbers<[1], [0], [0], [1], [0, 0, 1, 1], [], []>} : vector<256x72xbf16>, vector<72x8xbf16>, vector<256x8xf32> -> vector<256x8xf32>
    %c0_54 = arith.constant 0 : index
    %c0_55 = arith.constant 0 : index
    %39 = vector.load %arg3[%c0_54, %c0_55] : memref<1x8xf32, #tpu.memory_space<vmem>>, vector<1x8xf32>
    %40 = vector.broadcast %39 : vector<1x8xf32> to vector<256x8xf32>
    %41 = arith.mulf %38, %40 : vector<256x8xf32>
    %c0_56 = arith.constant 0 : index
    %c0_57 = arith.constant 0 : index
    %42 = vector.load %arg4[%c0_56, %c0_57] : memref<1x8xf32, #tpu.memory_space<vmem>>, vector<1x8xf32>
    %43 = vector.broadcast %42 : vector<1x8xf32> to vector<256x8xf32>
    %44 = arith.addf %41, %43 : vector<256x8xf32>
    %cst_58 = arith.constant 0.000000e+00 : f32
    %45 = vector.broadcast %cst_58 : f32 to vector<256x8xf32>
    %46 = arith.maximumf %44, %45 : vector<256x8xf32>
    %47 = vector.shape_cast %46 : vector<256x8xf32> to vector<16x16x8xf32>
    %48 = arith.truncf %47 : vector<16x16x8xf32> to vector<16x16x8xbf16>
    %c1_59 = arith.constant 1 : index
    %c1_60 = arith.constant 1 : index
    %c0_61 = arith.constant 0 : index
    %49 = vector.load %arg9[%c1_59, %c1_60, %c0_61] : memref<18x18x8xbf16, #tpu.memory_space<vmem>>, vector<16x16x8xbf16>
    tpu.vector_store %arg9[%c1_59, %c1_60, %c0_61], %48 {strides = array<i32>} : memref<18x18x8xbf16, #tpu.memory_space<vmem>>, vector<16x16x8xbf16>,
    %c0_62 = arith.constant 0 : index
    %c0_63 = arith.constant 0 : index
    %c0_64 = arith.constant 0 : index
    %50 = vector.load %arg9[%c0_62, %c0_63, %c0_64] : memref<18x18x8xbf16, #tpu.memory_space<vmem>>, vector<16x16x8xbf16>
    %51 = vector.shape_cast %50 : vector<16x16x8xbf16> to vector<256x8xbf16>
    %c0_65 = arith.constant 0 : index
    %c1_66 = arith.constant 1 : index
    %c0_67 = arith.constant 0 : index
    %52 = vector.load %arg9[%c0_65, %c1_66, %c0_67] : memref<18x18x8xbf16, #tpu.memory_space<vmem>>, vector<16x16x8xbf16>
    %53 = vector.shape_cast %52 : vector<16x16x8xbf16> to vector<256x8xbf16>
    %54 = tpu.concatenate %51, %53 in 1 : vector<256x8xbf16>, vector<256x8xbf16> -> vector<256x16xbf16>
    %c0_68 = arith.constant 0 : index
    %c0_69 = arith.constant 0 : index
    %55 = vector.load %arg10[%c0_68, %c0_69] : memref<256x72xbf16, #tpu.memory_space<vmem>>, vector<256x16xbf16>
    tpu.vector_store %arg10[%c0_68, %c0_69], %54 {strides = array<i32>} : memref<256x72xbf16, #tpu.memory_space<vmem>>, vector<256x16xbf16>,
    %c0_70 = arith.constant 0 : index
    %c2_71 = arith.constant 2 : index
    %c0_72 = arith.constant 0 : index
    %56 = vector.load %arg9[%c0_70, %c2_71, %c0_72] : memref<18x18x8xbf16, #tpu.memory_space<vmem>>, vector<16x16x8xbf16>
    %57 = vector.shape_cast %56 : vector<16x16x8xbf16> to vector<256x8xbf16>
    %c1_73 = arith.constant 1 : index
    %c0_74 = arith.constant 0 : index
    %c0_75 = arith.constant 0 : index
    %58 = vector.load %arg9[%c1_73, %c0_74, %c0_75] : memref<18x18x8xbf16, #tpu.memory_space<vmem>>, vector<16x16x8xbf16>
    %59 = vector.shape_cast %58 : vector<16x16x8xbf16> to vector<256x8xbf16>
    %60 = tpu.concatenate %57, %59 in 1 : vector<256x8xbf16>, vector<256x8xbf16> -> vector<256x16xbf16>
    %c0_76 = arith.constant 0 : index
    %c16_77 = arith.constant 16 : index
    %61 = vector.load %arg10[%c0_76, %c16_77] : memref<256x72xbf16, #tpu.memory_space<vmem>>, vector<256x16xbf16>
    tpu.vector_store %arg10[%c0_76, %c16_77], %60 {strides = array<i32>} : memref<256x72xbf16, #tpu.memory_space<vmem>>, vector<256x16xbf16>,
    %c1_78 = arith.constant 1 : index
    %c1_79 = arith.constant 1 : index
    %c0_80 = arith.constant 0 : index
    %62 = vector.load %arg9[%c1_78, %c1_79, %c0_80] : memref<18x18x8xbf16, #tpu.memory_space<vmem>>, vector<16x16x8xbf16>
    %63 = vector.shape_cast %62 : vector<16x16x8xbf16> to vector<256x8xbf16>
    %c1_81 = arith.constant 1 : index
    %c2_82 = arith.constant 2 : index
    %c0_83 = arith.constant 0 : index
    %64 = vector.load %arg9[%c1_81, %c2_82, %c0_83] : memref<18x18x8xbf16, #tpu.memory_space<vmem>>, vector<16x16x8xbf16>
    %65 = vector.shape_cast %64 : vector<16x16x8xbf16> to vector<256x8xbf16>
    %66 = tpu.concatenate %63, %65 in 1 : vector<256x8xbf16>, vector<256x8xbf16> -> vector<256x16xbf16>
    %c0_84 = arith.constant 0 : index
    %c32_85 = arith.constant 32 : index
    %67 = vector.load %arg10[%c0_84, %c32_85] : memref<256x72xbf16, #tpu.memory_space<vmem>>, vector<256x16xbf16>
    tpu.vector_store %arg10[%c0_84, %c32_85], %66 {strides = array<i32>} : memref<256x72xbf16, #tpu.memory_space<vmem>>, vector<256x16xbf16>,
    %c2_86 = arith.constant 2 : index
    %c0_87 = arith.constant 0 : index
    %c0_88 = arith.constant 0 : index
    %68 = vector.load %arg9[%c2_86, %c0_87, %c0_88] : memref<18x18x8xbf16, #tpu.memory_space<vmem>>, vector<16x16x8xbf16>
    %69 = vector.shape_cast %68 : vector<16x16x8xbf16> to vector<256x8xbf16>
    %c2_89 = arith.constant 2 : index
    %c1_90 = arith.constant 1 : index
    %c0_91 = arith.constant 0 : index
    %70 = vector.load %arg9[%c2_89, %c1_90, %c0_91] : memref<18x18x8xbf16, #tpu.memory_space<vmem>>, vector<16x16x8xbf16>
    %71 = vector.shape_cast %70 : vector<16x16x8xbf16> to vector<256x8xbf16>
    %72 = tpu.concatenate %69, %71 in 1 : vector<256x8xbf16>, vector<256x8xbf16> -> vector<256x16xbf16>
    %c0_92 = arith.constant 0 : index
    %c48_93 = arith.constant 48 : index
    %73 = vector.load %arg10[%c0_92, %c48_93] : memref<256x72xbf16, #tpu.memory_space<vmem>>, vector<256x16xbf16>
    tpu.vector_store %arg10[%c0_92, %c48_93], %72 {strides = array<i32>} : memref<256x72xbf16, #tpu.memory_space<vmem>>, vector<256x16xbf16>,
    %c2_94 = arith.constant 2 : index
    %c2_95 = arith.constant 2 : index
    %c0_96 = arith.constant 0 : index
    %74 = vector.load %arg9[%c2_94, %c2_95, %c0_96] : memref<18x18x8xbf16, #tpu.memory_space<vmem>>, vector<16x16x8xbf16>
    %75 = vector.shape_cast %74 : vector<16x16x8xbf16> to vector<256x8xbf16>
    %c0_97 = arith.constant 0 : index
    %c64_98 = arith.constant 64 : index
    %76 = vector.load %arg10[%c0_97, %c64_98] : memref<256x72xbf16, #tpu.memory_space<vmem>>, vector<256x8xbf16>
    tpu.vector_store %arg10[%c0_97, %c64_98], %75 {strides = array<i32>} : memref<256x72xbf16, #tpu.memory_space<vmem>>, vector<256x8xbf16>,
    %c0_99 = arith.constant 0 : index
    %c0_100 = arith.constant 0 : index
    %77 = vector.load %arg10[%c0_99, %c0_100] : memref<256x72xbf16, #tpu.memory_space<vmem>>, vector<256x72xbf16>
    %c0_101 = arith.constant 0 : index
    %c0_102 = arith.constant 0 : index
    %78 = vector.load %arg5[%c0_101, %c0_102] : memref<72x8xbf16, #tpu.memory_space<vmem>>, vector<72x8xbf16>
    %cst_103 = arith.constant dense<0.000000e+00> : vector<256x8xf32>
    %79 = tpu.matmul %77, %78, %cst_103 {dimension_numbers = #tpu.dot_dimension_numbers<[1], [0], [0], [1], [0, 0, 1, 1], [], []>} : vector<256x72xbf16>, vector<72x8xbf16>, vector<256x8xf32> -> vector<256x8xf32>
    %c0_104 = arith.constant 0 : index
    %c0_105 = arith.constant 0 : index
    %c0_106 = arith.constant 0 : index
    %c0_107 = arith.constant 0 : index
    %80 = vector.load %arg1[%c0_104, %c0_105, %c0_106, %c0_107] : memref<1x16x16x8xbf16, #tpu.memory_space<vmem>>, vector<1x16x16x8xbf16>
    %81 = vector.shape_cast %80 : vector<1x16x16x8xbf16> to vector<16x16x8xbf16>
    %82 = vector.shape_cast %81 : vector<16x16x8xbf16> to vector<256x8xbf16>
    %83 = arith.extf %82 : vector<256x8xbf16> to vector<256x8xf32>
    %c0_108 = arith.constant 0 : index
    %c0_109 = arith.constant 0 : index
    %84 = vector.load %arg6[%c0_108, %c0_109] : memref<1x8xf32, #tpu.memory_space<vmem>>, vector<1x8xf32>
    %85 = vector.broadcast %84 : vector<1x8xf32> to vector<256x8xf32>
    %86 = arith.mulf %79, %85 : vector<256x8xf32>
    %c0_110 = arith.constant 0 : index
    %c0_111 = arith.constant 0 : index
    %87 = vector.load %arg7[%c0_110, %c0_111] : memref<1x8xf32, #tpu.memory_space<vmem>>, vector<1x8xf32>
    %88 = vector.broadcast %87 : vector<1x8xf32> to vector<256x8xf32>
    %89 = arith.addf %86, %88 : vector<256x8xf32>
    %90 = arith.addf %89, %83 : vector<256x8xf32>
    %cst_112 = arith.constant 0.000000e+00 : f32
    %91 = vector.broadcast %cst_112 : f32 to vector<256x8xf32>
    %92 = arith.maximumf %90, %91 : vector<256x8xf32>
    %93 = arith.truncf %92 : vector<256x8xf32> to vector<256x8xbf16>
    %c0_113 = arith.constant 0 : index
    %c0_114 = arith.constant 0 : index
    %c0_115 = arith.constant 0 : index
    %94 = vector.load %arg8[%c0_113, %c0_114, %c0_115] : memref<1x256x8xbf16, #tpu.memory_space<vmem>>, vector<1x256x8xbf16>
    %95 = vector.shape_cast %94 : vector<1x256x8xbf16> to vector<256x8xbf16>
    %96 = vector.shape_cast %93 : vector<256x8xbf16> to vector<1x256x8xbf16>
    tpu.vector_store %arg8[%c0_113, %c0_114, %c0_115], %96 {strides = array<i32>} : memref<1x256x8xbf16, #tpu.memory_space<vmem>>, vector<1x256x8xbf16>,
    return
  }
  func.func @transform_0(%arg0: i32) -> (i32, i32, i32, i32) {
    %c0_i32 = arith.constant 0 : i32
    %c0_i32_0 = arith.constant 0 : i32
    %c0_i32_1 = arith.constant 0 : i32
    %c0_i32_2 = arith.constant 0 : i32
    return %arg0, %c0_i32, %c0_i32_0, %c0_i32_1 : i32, i32, i32, i32
  }
  func.func @transform_1(%arg0: i32) -> (i32, i32) {
    %c0_i32 = arith.constant 0 : i32
    %c0_i32_0 = arith.constant 0 : i32
    %c0_i32_1 = arith.constant 0 : i32
    return %c0_i32, %c0_i32_0 : i32, i32
  }
  func.func @transform_2(%arg0: i32) -> (i32, i32) {
    %c0_i32 = arith.constant 0 : i32
    %c0_i32_0 = arith.constant 0 : i32
    %c0_i32_1 = arith.constant 0 : i32
    return %c0_i32, %c0_i32_0 : i32, i32
  }
  func.func @transform_3(%arg0: i32) -> (i32, i32) {
    %c0_i32 = arith.constant 0 : i32
    %c0_i32_0 = arith.constant 0 : i32
    %c0_i32_1 = arith.constant 0 : i32
    return %c0_i32, %c0_i32_0 : i32, i32
  }
  func.func @transform_4(%arg0: i32) -> (i32, i32) {
    %c0_i32 = arith.constant 0 : i32
    %c0_i32_0 = arith.constant 0 : i32
    %c0_i32_1 = arith.constant 0 : i32
    return %c0_i32, %c0_i32_0 : i32, i32
  }
  func.func @transform_5(%arg0: i32) -> (i32, i32) {
    %c0_i32 = arith.constant 0 : i32
    %c0_i32_0 = arith.constant 0 : i32
    %c0_i32_1 = arith.constant 0 : i32
    return %c0_i32, %c0_i32_0 : i32, i32
  }
  func.func @transform_6(%arg0: i32) -> (i32, i32) {
    %c0_i32 = arith.constant 0 : i32
    %c0_i32_0 = arith.constant 0 : i32
    %c0_i32_1 = arith.constant 0 : i32
    return %c0_i32, %c0_i32_0 : i32, i32
  }
  func.func @transform_7(%arg0: i32) -> (i32, i32, i32) {
    %c0_i32 = arith.constant 0 : i32
    %c0_i32_0 = arith.constant 0 : i32
    %c0_i32_1 = arith.constant 0 : i32
    return %arg0, %c0_i32, %c0_i32_0 : i32, i32, i32
  }
}

</mosaic_0001>

<llo_original>
// kernel: tpu_custom_call.1
$region0: #{tpu_custom_call.1}
  #allocation0 [shape = 'u32[]', space=smem, size = 0x4, offset = 0x4, fixed_abs, tag = 'smem constant byte address 0x4 - core index']
  #allocation1 [shape = 'u32[144,128]{1,0:T(1,128)}', space=vmem, size = 0x12000, scoped, tag = 'internal scratch']
  #allocation2 [shape = 'bf16[18,18,8]{2,1,0:T(8,128)(2,1)}', space=vmem, size = 0x1b000, scoped, tag = 'scratch operand']
  #allocation3 [shape = 'bf16[256,72]{1,0:T(8,128)(2,1)}', space=vmem, size = 0x10000, scoped, tag = 'scratch operand']
  %s0 = inlined_call_operand.vmem [shape: bf16[2,16,16,8], index: 0, kind: input, shape index: {}]
  %s1 = inlined_call_operand.vmem [shape: bf16[72,8], index: 1, kind: input, shape index: {}]
  %s2 = inlined_call_operand.vmem [shape: f32[1,8], index: 2, kind: input, shape index: {}]
  %s3 = inlined_call_operand.vmem [shape: f32[1,8], index: 3, kind: input, shape index: {}]
  %s4 = inlined_call_operand.vmem [shape: bf16[72,8], index: 4, kind: input, shape index: {}]
  %s5 = inlined_call_operand.vmem [shape: f32[1,8], index: 5, kind: input, shape index: {}]
  %s6 = inlined_call_operand.vmem [shape: f32[1,8], index: 6, kind: input, shape index: {}]
  %s7 = inlined_call_operand.vmem [shape: bf16[2,256,8], index: 7, kind: output, shape index: {}]
  %s8 = sld [smem:[#allocation0]]
  $region61: #{tpu_custom_call.1} parent=0
    _
  %s10 = ssub.s32 1, %s8
  %s11 = scalar_select 0, %s10, %s8
  loop: start=0, step=1, limit=4
  $region2: #{tpu_custom_call.1} parent=0 // loop_pre_header
    _
  $region3: #{tpu_custom_call.1} parent=0 // loop_header
    %s13 = sphi 0, %s17
    %p14 = scmp.ge.s32.totalorder %s13, 4
    %s23 = sphi 0, %s25
    %s26 = sphi 0, %s23
    %s27 = sphi 0, %s26
    %s43 = sphi 0, %s27
    %s47 = sphi 0, %s47
    %s49 = sphi 0, %s47
    %s50 = sphi 0, %s49
    %s64 = sphi 0, %s50
    %s68 = sphi 0, %s68
    %s70 = sphi 0, %s68
    %s71 = sphi 0, %s70
    %s85 = sphi 0, %s71
    %s89 = sphi 0, %s89
    %s91 = sphi 0, %s89
    %s92 = sphi 0, %s91
    %s106 = sphi 0, %s92
    %s110 = sphi 0, %s110
    %s112 = sphi 0, %s110
    %s113 = sphi 0, %s112
    %s127 = sphi 0, %s113
    %s131 = sphi 0, %s131
    %s133 = sphi 0, %s131
    %s134 = sphi 0, %s133
    %s148 = sphi 0, %s134
    %s152 = sphi 0, %s152
    %s154 = sphi 0, %s152
    %s155 = sphi 0, %s154
    %s169 = sphi 0, %s155
    %s175 = sphi 0, %s177
    %s178 = sphi 0, %s175
    %s179 = sphi 0, %s178
    %s195 = sphi 0, %s179
  $region4: #{tpu_custom_call.1} parent=0 // loop_header_branch
    %16 = sbr.rel (%p14) target = $region8
  $region5: #{tpu_custom_call.1} parent=0 // loop_body
    %s18 = ssub.s32 %s13, 1
    %s19 = ssub.s32 %s13, 2
    %s20 = sadd.s32 %s13, 1
    %s21 = ssub.s32 %s13, %s20
    %p22 = scmp.eq.s32.totalorder %s21, 0
    %s24 = sadd.s32 %s23, 1
    %s25 = scalar_select %p22, %s23, %s24
    %p28 = pneg %p22
    %p29 = scmp.eq.s32.totalorder %s13, 1
    %p30 = por %p28, %p29
    %p31 = scmp.ne.s32.totalorder %s23, %s26
    %p32 = scmp.eq.s32.totalorder %s13, 0
    %p33 = por %p31, %p32
    %p34 = scmp.ne.s32.totalorder %s23, %s26
    %p35 = scmp.eq.s32.totalorder %s18, 1
    %p36 = por %p34, %p35
    %p37 = scmp.ne.s32.totalorder %s26, %s27
    %p38 = scmp.eq.s32.totalorder %s18, 0
    %p39 = por %p37, %p38
    %p40 = scmp.ne.s32.totalorder %s26, %s27
    %p41 = scmp.eq.s32.totalorder %s19, 1
    %p42 = por %p40, %p41
    %p44 = scmp.ne.s32.totalorder %s27, %s43
    %p45 = scmp.eq.s32.totalorder %s19, 0
    %p46 = por %p44, %p45
    %s48 = sadd.s32 %s47, 1
    %p51 = scmp.eq.s32.totalorder %s13, 1
    %p52 = scmp.ne.s32.totalorder %s47, %s49
    %p53 = scmp.eq.s32.totalorder %s13, 0
    %p54 = por %p52, %p53
    %p55 = scmp.ne.s32.totalorder %s47, %s49
    %p56 = scmp.eq.s32.totalorder %s18, 1
    %p57 = por %p55, %p56
    %p58 = scmp.ne.s32.totalorder %s49, %s50
    %p59 = scmp.eq.s32.totalorder %s18, 0
    %p60 = por %p58, %p59
    %p61 = scmp.ne.s32.totalorder %s49, %s50
    %p62 = scmp.eq.s32.totalorder %s19, 1
    %p63 = por %p61, %p62
    %p65 = scmp.ne.s32.totalorder %s50, %s64
    %p66 = scmp.eq.s32.totalorder %s19, 0
    %p67 = por %p65, %p66
    %s69 = sadd.s32 %s68, 1
    %p72 = scmp.eq.s32.totalorder %s13, 1
    %p73 = scmp.ne.s32.totalorder %s68, %s70
    %p74 = scmp.eq.s32.totalorder %s13, 0
    %p75 = por %p73, %p74
    %p76 = scmp.ne.s32.totalorder %s68, %s70
    %p77 = scmp.eq.s32.totalorder %s18, 1
    %p78 = por %p76, %p77
    %p79 = scmp.ne.s32.totalorder %s70, %s71
    %p80 = scmp.eq.s32.totalorder %s18, 0
    %p81 = por %p79, %p80
    %p82 = scmp.ne.s32.totalorder %s70, %s71
    %p83 = scmp.eq.s32.totalorder %s19, 1
    %p84 = por %p82, %p83
    %p86 = scmp.ne.s32.totalorder %s71, %s85
    %p87 = scmp.eq.s32.totalorder %s19, 0
    %p88 = por %p86, %p87
    %s90 = sadd.s32 %s89, 1
    %p93 = scmp.eq.s32.totalorder %s13, 1
    %p94 = scmp.ne.s32.totalorder %s89, %s91
    %p95 = scmp.eq.s32.totalorder %s13, 0
    %p96 = por %p94, %p95
    %p97 = scmp.ne.s32.totalorder %s89, %s91
    %p98 = scmp.eq.s32.totalorder %s18, 1
    %p99 = por %p97, %p98
    %p100 = scmp.ne.s32.totalorder %s91, %s92
    %p101 = scmp.eq.s32.totalorder %s18, 0
    %p102 = por %p100, %p101
    %p103 = scmp.ne.s32.totalorder %s91, %s92
    %p104 = scmp.eq.s32.totalorder %s19, 1
    %p105 = por %p103, %p104
    %p107 = scmp.ne.s32.totalorder %s92, %s106
    %p108 = scmp.eq.s32.totalorder %s19, 0
    %p109 = por %p107, %p108
    %s111 = sadd.s32 %s110, 1
    %p114 = scmp.eq.s32.totalorder %s13, 1
    %p115 = scmp.ne.s32.totalorder %s110, %s112
    %p116 = scmp.eq.s32.totalorder %s13, 0
    %p117 = por %p115, %p116
    %p118 = scmp.ne.s32.totalorder %s110, %s112
    %p119 = scmp.eq.s32.totalorder %s18, 1
    %p120 = por %p118, %p119
    %p121 = scmp.ne.s32.totalorder %s112, %s113
    %p122 = scmp.eq.s32.totalorder %s18, 0
    %p123 = por %p121, %p122
    %p124 = scmp.ne.s32.totalorder %s112, %s113
    %p125 = scmp.eq.s32.totalorder %s19, 1
    %p126 = por %p124, %p125
    %p128 = scmp.ne.s32.totalorder %s113, %s127
    %p129 = scmp.eq.s32.totalorder %s19, 0
    %p130 = por %p128, %p129
    %s132 = sadd.s32 %s131, 1
    %p135 = scmp.eq.s32.totalorder %s13, 1
    %p136 = scmp.ne.s32.totalorder %s131, %s133
    %p137 = scmp.eq.s32.totalorder %s13, 0
    %p138 = por %p136, %p137
    %p139 = scmp.ne.s32.totalorder %s131, %s133
    %p140 = scmp.eq.s32.totalorder %s18, 1
    %p141 = por %p139, %p140
    %p142 = scmp.ne.s32.totalorder %s133, %s134
    %p143 = scmp.eq.s32.totalorder %s18, 0
    %p144 = por %p142, %p143
    %p145 = scmp.ne.s32.totalorder %s133, %s134
    %p146 = scmp.eq.s32.totalorder %s19, 1
    %p147 = por %p145, %p146
    %p149 = scmp.ne.s32.totalorder %s134, %s148
    %p150 = scmp.eq.s32.totalorder %s19, 0
    %p151 = por %p149, %p150
    %s153 = sadd.s32 %s152, 1
    %p156 = scmp.eq.s32.totalorder %s13, 1
    %p157 = scmp.ne.s32.totalorder %s152, %s154
    %p158 = scmp.eq.s32.totalorder %s13, 0
    %p159 = por %p157, %p158
    %p160 = scmp.ne.s32.totalorder %s152, %s154
    %p161 = scmp.eq.s32.totalorder %s18, 1
    %p162 = por %p160, %p161
    %p163 = scmp.ne.s32.totalorder %s154, %s155
    %p164 = scmp.eq.s32.totalorder %s18, 0
    %p165 = por %p163, %p164
    %p166 = scmp.ne.s32.totalorder %s154, %s155
    %p167 = scmp.eq.s32.totalorder %s19, 1
    %p168 = por %p166, %p167
    %p170 = scmp.ne.s32.totalorder %s155, %s169
    %p171 = scmp.eq.s32.totalorder %s19, 0
    %p172 = por %p170, %p171
    %s173 = ssub.s32 %s13, %s20
    %p174 = scmp.eq.s32.totalorder %s173, 0
    %s176 = sadd.s32 %s175, 1
    %s177 = scalar_select %p174, %s175, %s176
    %p180 = pneg %p174
    %p181 = scmp.eq.s32.totalorder %s13, 1
    %p182 = por %p180, %p181
    %p183 = scmp.ne.s32.totalorder %s175, %s178
    %p184 = scmp.eq.s32.totalorder %s13, 0
    %p185 = por %p183, %p184
    %p186 = scmp.ne.s32.totalorder %s175, %s178
    %p187 = scmp.eq.s32.totalorder %s18, 1
    %p188 = por %p186, %p187
    %p189 = scmp.ne.s32.totalorder %s178, %s179
    %p190 = scmp.eq.s32.totalorder %s18, 0
    %p191 = por %p189, %p190
    %p192 = scmp.ne.s32.totalorder %s178, %s179
    %p193 = scmp.eq.s32.totalorder %s19, 1
    %p194 = por %p192, %p193
    %p196 = scmp.ne.s32.totalorder %s179, %s195
    %p197 = scmp.eq.s32.totalorder %s19, 0
    %p198 = por %p196, %p197
    %p199 = scmp.le.s32.totalorder 1, %s13
    %p200 = scmp.lt.s32.totalorder %s13, 3
    %p201 = pnand %p199, %p200
    %p202 = pneg %p201
    // Predicated region
    $region9: #{tpu_custom_call.1} parent=5 // pred_check
      _
    $region10: #{tpu_custom_call.1} parent=5 // pred_check_branch
      %204 = sbr.rel (%p201) target = $region12
    $region11: #{tpu_custom_call.1} parent=5 // pred_region
      %s205 = ssub.s32 %s13, 1
      // Predicated region
      $region13: #{tpu_custom_call.1} parent=11 // pred_check
        %p206 = pneg %p60
      $region14: #{tpu_custom_call.1} parent=11 // pred_check_branch
        %208 = sbr.rel (%p206) target = $region16
      $region15: #{tpu_custom_call.1} parent=11 // pred_region
        _
      $region16: #{tpu_custom_call.1} parent=11 // pred_fallthru
        _
      // Predicated region
      $region17: #{tpu_custom_call.1} parent=11 // pred_check
        %p209 = pneg %p81
      $region18: #{tpu_custom_call.1} parent=11 // pred_check_branch
        %211 = sbr.rel (%p209) target = $region20
      $region19: #{tpu_custom_call.1} parent=11 // pred_region
        _
      $region20: #{tpu_custom_call.1} parent=11 // pred_fallthru
        _
      // Predicated region
      $region21: #{tpu_custom_call.1} parent=11 // pred_check
        %p212 = pneg %p102
      $region22: #{tpu_custom_call.1} parent=11 // pred_check_branch
        %214 = sbr.rel (%p212) target = $region24
      $region23: #{tpu_custom_call.1} parent=11 // pred_region
        _
      $region24: #{tpu_custom_call.1} parent=11 // pred_fallthru
        _
      // Predicated region
      $region25: #{tpu_custom_call.1} parent=11 // pred_check
        %p215 = pneg %p123
      $region26: #{tpu_custom_call.1} parent=11 // pred_check_branch
        %217 = sbr.rel (%p215) target = $region28
      $region27: #{tpu_custom_call.1} parent=11 // pred_region
        _
      $region28: #{tpu_custom_call.1} parent=11 // pred_fallthru
        _
      // Predicated region
      $region29: #{tpu_custom_call.1} parent=11 // pred_check
        %p218 = pneg %p144
      $region30: #{tpu_custom_call.1} parent=11 // pred_check_branch
        %220 = sbr.rel (%p218) target = $region32
      $region31: #{tpu_custom_call.1} parent=11 // pred_region
        _
      $region32: #{tpu_custom_call.1} parent=11 // pred_fallthru
        _
      // Predicated region
      $region33: #{tpu_custom_call.1} parent=11 // pred_check
        %p221 = pneg %p165
      $region34: #{tpu_custom_call.1} parent=11 // pred_check_branch
        %223 = sbr.rel (%p221) target = $region36
      $region35: #{tpu_custom_call.1} parent=11 // pred_region
        _
      $region36: #{tpu_custom_call.1} parent=11 // pred_fallthru
        _
    $region12: #{tpu_custom_call.1} parent=5 // pred_fallthru
      _
    %p224 = scmp.lt.s32.totalorder %s13, 2
    // Predicated region
    $region37: #{tpu_custom_call.1} parent=5 // pred_check
      %p225 = pneg %p224
    $region38: #{tpu_custom_call.1} parent=5 // pred_check_branch
      %227 = sbr.rel (%p225) target = $region40
    $region39: #{tpu_custom_call.1} parent=5 // pred_region
      // Predicated region
      $region41: #{tpu_custom_call.1} parent=39 // pred_check
        %p228 = pneg %p33
      $region42: #{tpu_custom_call.1} parent=39 // pred_check_branch
        %230 = sbr.rel (%p228) target = $region44
      $region43: #{tpu_custom_call.1} parent=39 // pred_region
        %p231 = scmp.lt.s32.totalorder %s13, 1
        %s232 = scalar_select %p231, %s13, 1
        %s233 = smul.addr %s232, 32
        %s234 = smul.addr %s233, 4
        %s235 = scalar_lea.vmem %s0, %s234
      $region44: #{tpu_custom_call.1} parent=39 // pred_fallthru
        _
    $region40: #{tpu_custom_call.1} parent=5 // pred_fallthru
      _
    %p236 = scmp.le.s32.totalorder 1, %s13
    %p237 = scmp.lt.s32.totalorder %s13, 3
    %p238 = pnand %p236, %p237
    %p239 = pneg %p238
    // Predicated region
    $region45: #{tpu_custom_call.1} parent=5 // pred_check
      _
    $region46: #{tpu_custom_call.1} parent=5 // pred_check_branch
      %241 = sbr.rel (%p238) target = $region48
    $region47: #{tpu_custom_call.1} parent=5 // pred_region
      %s242 = ssub.s32 %s13, 1
      %p243 = scmp.lt.s32.totalorder %s18, 1
      %s244 = scalar_select %p243, %s18, 1
      %s245 = smul.addr %s244, 32
      %s246 = smul.addr %s245, 4
      %s247 = scalar_lea.vmem %s0, %s246
      %p248 = pneg %p39
      %p249 = pneg %p36
      %p250 = pneg %p60
      %p251 = pneg %p57
      %p252 = pneg %p81
      %p253 = pneg %p78
      %p254 = pneg %p102
      %p255 = pneg %p99
      %p256 = pneg %p123
      %p257 = pneg %p120
      %p258 = pneg %p144
      %p259 = pneg %p141
      %p260 = pneg %p165
      %p261 = pneg %p162
      %p262 = pneg %p191
      %p263 = pneg %p188
      %p264 = scmp.lt.s32.totalorder %s18, 1
      %s265 = scalar_select %p264, %s18, 1
      %s266 = smul.addr %s265, 32
      %s267 = smul.addr %s266, 4
      %s268 = scalar_lea.vmem %s7, %s267
      %p269 = scmp.lt.s32.totalorder %s18, 1
      %s270 = scalar_select %p269, %s18, 1
      %s271 = smul.addr %s270, 32
      %s272 = smul.addr %s271, 4
      %s273 = scalar_lea.vmem %s0, %s272
      %p274 = scmp.lt.s32.totalorder %s18, 1
      %s275 = scalar_select %p274, %s18, 1
      %s276 = smul.addr %s275, 32
      %s277 = smul.addr %s276, 4
      %s278 = scalar_lea.vmem %s7, %s277
      %vm280 = vcmask 60416
      %281 = vst.msk [vmem:[#allocation2] sm:$0xf] %vm280, 0
      %282 = vst.msk [vmem:[#allocation2 + $0x4] sm:$0xf] %vm280, 0
      %vm283 = vcmask 57344
      %284 = vst.msk [vmem:[#allocation2 + $0x8] sm:$0x1] %vm283, 0
      %s285 = scalar_lea.vmem [#allocation2], 204
      %286 = vst.msk [vmem:[%s285] sm:$0xf] %vm280, 0
      %287 = vst.msk [vmem:[%s285 + $0x4] sm:$0xf] %vm280, 0
      %288 = vst.msk [vmem:[%s285 + $0x8] sm:$0x1] %vm283, 0
      %vm289 = vcmask 57344
      %vm290 = vsmask.f32 256
      %vm291 = vmand %vm289, %vm290
      %v292 = vld [vmem:[#allocation2] sm:$0x1]
      %v293 = vsel %vm291, 0, %v292
      %294 = vst [vmem:[#allocation2] sm:$0x1] %v293
      %v295 = vld [vmem:[#allocation2 + $0xc] sm:$0x1]
      %v296 = vsel %vm291, 0, %v295
      %297 = vst [vmem:[#allocation2 + $0xc] sm:$0x1] %v296
      %v298 = vld [vmem:[#allocation2 + $0x18] sm:$0x1]
      %v299 = vsel %vm291, 0, %v298
      %300 = vst [vmem:[#allocation2 + $0x18] sm:$0x1] %v299
      %v301 = vld [vmem:[#allocation2 + $0x24] sm:$0x1]
      %v302 = vsel %vm291, 0, %v301
      %303 = vst [vmem:[#allocation2 + $0x24] sm:$0x1] %v302
      %v304 = vld [vmem:[#allocation2 + $0x30] sm:$0x1]
      %v305 = vsel %vm291, 0, %v304
      %306 = vst [vmem:[#allocation2 + $0x30] sm:$0x1] %v305
      %v307 = vld [vmem:[#allocation2 + $0x3c] sm:$0x1]
      %v308 = vsel %vm291, 0, %v307
      %309 = vst [vmem:[#allocation2 + $0x3c] sm:$0x1] %v308
      %v310 = vld [vmem:[#allocation2 + $0x48] sm:$0x1]
      %v311 = vsel %vm291, 0, %v310
      %312 = vst [vmem:[#allocation2 + $0x48] sm:$0x1] %v311
      %v313 = vld [vmem:[#allocation2 + $0x54] sm:$0x1]
      %v314 = vsel %vm291, 0, %v313
      %315 = vst [vmem:[#allocation2 + $0x54] sm:$0x1] %v314
      %v316 = vld [vmem:[#allocation2 + $0x60] sm:$0x1]
      %v317 = vsel %vm291, 0, %v316
      %318 = vst [vmem:[#allocation2 + $0x60] sm:$0x1] %v317
      %v319 = vld [vmem:[#allocation2 + $0x6c] sm:$0x1]
      %v320 = vsel %vm291, 0, %v319
      %321 = vst [vmem:[#allocation2 + $0x6c] sm:$0x1] %v320
      %v322 = vld [vmem:[#allocation2 + $0x78] sm:$0x1]
      %v323 = vsel %vm291, 0, %v322
      %324 = vst [vmem:[#allocation2 + $0x78] sm:$0x1] %v323
      %v325 = vld [vmem:[#allocation2 + $0x84] sm:$0x1]
      %v326 = vsel %vm291, 0, %v325
      %327 = vst [vmem:[#allocation2 + $0x84] sm:$0x1] %v326
      %v328 = vld [vmem:[#allocation2 + $0x90] sm:$0x1]
      %v329 = vsel %vm291, 0, %v328
      %330 = vst [vmem:[#allocation2 + $0x90] sm:$0x1] %v329
      %v331 = vld [vmem:[#allocation2 + $0x9c] sm:$0x1]
      %v332 = vsel %vm291, 0, %v331
      %333 = vst [vmem:[#allocation2 + $0x9c] sm:$0x1] %v332
      %v334 = vld [vmem:[#allocation2 + $0xa8] sm:$0x1]
      %v335 = vsel %vm291, 0, %v334
      %336 = vst [vmem:[#allocation2 + $0xa8] sm:$0x1] %v335
      %v337 = vld [vmem:[#allocation2 + $0xb4] sm:$0x1]
      %v338 = vsel %vm291, 0, %v337
      %339 = vst [vmem:[#allocation2 + $0xb4] sm:$0x1] %v338
      %v340 = vld [vmem:[#allocation2 + $0xc0] sm:$0x1]
      %v341 = vsel %vm291, 0, %v340
      %342 = vst [vmem:[#allocation2 + $0xc0] sm:$0x1] %v341
      %v343 = vld [vmem:[#allocation2 + $0xcc] sm:$0x1]
      %v344 = vsel %vm291, 0, %v343
      %345 = vst [vmem:[#allocation2 + $0xcc] sm:$0x1] %v344
      %vm346 = vsmask.f32 7938
      %vm347 = vmand %vm289, %vm346
      %v348 = vld [vmem:[#allocation2 + $0x8] sm:$0x1]
      %v349 = vsel %vm347, 0, %v348
      %350 = vst [vmem:[#allocation2 + $0x8] sm:$0x1] %v349
      %v351 = vld [vmem:[#allocation2 + $0x14] sm:$0x1]
      %v352 = vsel %vm347, 0, %v351
      %353 = vst [vmem:[#allocation2 + $0x14] sm:$0x1] %v352
      %v354 = vld [vmem:[#allocation2 + $0x20] sm:$0x1]
      %v355 = vsel %vm347, 0, %v354
      %356 = vst [vmem:[#allocation2 + $0x20] sm:$0x1] %v355
      %v357 = vld [vmem:[#allocation2 + $0x2c] sm:$0x1]
      %v358 = vsel %vm347, 0, %v357
      %359 = vst [vmem:[#allocation2 + $0x2c] sm:$0x1] %v358
      %v360 = vld [vmem:[#allocation2 + $0x38] sm:$0x1]
      %v361 = vsel %vm347, 0, %v360
      %362 = vst [vmem:[#allocation2 + $0x38] sm:$0x1] %v361
      %v363 = vld [vmem:[#allocation2 + $0x44] sm:$0x1]
      %v364 = vsel %vm347, 0, %v363
      %365 = vst [vmem:[#allocation2 + $0x44] sm:$0x1] %v364
      %v366 = vld [vmem:[#allocation2 + $0x50] sm:$0x1]
      %v367 = vsel %vm347, 0, %v366
      %368 = vst [vmem:[#allocation2 + $0x50] sm:$0x1] %v367
      %v369 = vld [vmem:[#allocation2 + $0x5c] sm:$0x1]
      %v370 = vsel %vm347, 0, %v369
      %371 = vst [vmem:[#allocation2 + $0x5c] sm:$0x1] %v370
      %v372 = vld [vmem:[#allocation2 + $0x68] sm:$0x1]
      %v373 = vsel %vm347, 0, %v372
      %374 = vst [vmem:[#allocation2 + $0x68] sm:$0x1] %v373
      %v375 = vld [vmem:[#allocation2 + $0x74] sm:$0x1]
      %v376 = vsel %vm347, 0, %v375
      %377 = vst [vmem:[#allocation2 + $0x74] sm:$0x1] %v376
      %v378 = vld [vmem:[#allocation2 + $0x80] sm:$0x1]
      %v379 = vsel %vm347, 0, %v378
      %380 = vst [vmem:[#allocation2 + $0x80] sm:$0x1] %v379
      %v381 = vld [vmem:[#allocation2 + $0x8c] sm:$0x1]
      %v382 = vsel %vm347, 0, %v381
      %383 = vst [vmem:[#allocation2 + $0x8c] sm:$0x1] %v382
      %v384 = vld [vmem:[#allocation2 + $0x98] sm:$0x1]
      %v385 = vsel %vm347, 0, %v384
      %386 = vst [vmem:[#allocation2 + $0x98] sm:$0x1] %v385
      %v387 = vld [vmem:[#allocation2 + $0xa4] sm:$0x1]
      %v388 = vsel %vm347, 0, %v387
      %389 = vst [vmem:[#allocation2 + $0xa4] sm:$0x1] %v388
      %v390 = vld [vmem:[#allocation2 + $0xb0] sm:$0x1]
      %v391 = vsel %vm347, 0, %v390
      %392 = vst [vmem:[#allocation2 + $0xb0] sm:$0x1] %v391
      %v393 = vld [vmem:[#allocation2 + $0xbc] sm:$0x1]
      %v394 = vsel %vm347, 0, %v393
      %395 = vst [vmem:[#allocation2 + $0xbc] sm:$0x1] %v394
      %v396 = vld [vmem:[#allocation2 + $0xc8] sm:$0x1]
      %v397 = vsel %vm347, 0, %v396
      %398 = vst [vmem:[#allocation2 + $0xc8] sm:$0x1] %v397
      %v399 = vld [vmem:[#allocation2 + $0xd4] sm:$0x1]
      %v400 = vsel %vm347, 0, %v399
      %401 = vst [vmem:[#allocation2 + $0xd4] sm:$0x1] %v400
      %v402 = vld [vmem:[%s273] sm:$0xf]
      %v403 = vld [vmem:[%s273 + $0x4] sm:$0xf]
      %v404 = vld [vmem:[%s273 + $0x8] sm:$0xf]
      %v405 = vld [vmem:[%s273 + $0xc] sm:$0xf]
      %v406 = vld [vmem:[%s273 + $0x10] sm:$0xf]
      %v407 = vld [vmem:[%s273 + $0x14] sm:$0xf]
      %v408 = vld [vmem:[%s273 + $0x18] sm:$0xf]
      %v409 = vld [vmem:[%s273 + $0x1c] sm:$0xf]
      %v410 = vld [vmem:[%s273 + $0x20] sm:$0xf]
      %v411 = vld [vmem:[%s273 + $0x24] sm:$0xf]
      %v412 = vld [vmem:[%s273 + $0x28] sm:$0xf]
      %v413 = vld [vmem:[%s273 + $0x2c] sm:$0xf]
      %v414 = vld [vmem:[%s273 + $0x30] sm:$0xf]
      %v415 = vld [vmem:[%s273 + $0x34] sm:$0xf]
      %v416 = vld [vmem:[%s273 + $0x38] sm:$0xf]
      %v417 = vld [vmem:[%s273 + $0x3c] sm:$0xf]
      %v418 = vld [vmem:[%s273 + $0x40] sm:$0xf]
      %v419 = vld [vmem:[%s273 + $0x44] sm:$0xf]
      %v420 = vld [vmem:[%s273 + $0x48] sm:$0xf]
      %v421 = vld [vmem:[%s273 + $0x4c] sm:$0xf]
      %v422 = vld [vmem:[%s273 + $0x50] sm:$0xf]
      %v423 = vld [vmem:[%s273 + $0x54] sm:$0xf]
      %v424 = vld [vmem:[%s273 + $0x58] sm:$0xf]
      %v425 = vld [vmem:[%s273 + $0x5c] sm:$0xf]
      %v426 = vld [vmem:[%s273 + $0x60] sm:$0xf]
      %v427 = vld [vmem:[%s273 + $0x64] sm:$0xf]
      %v428 = vld [vmem:[%s273 + $0x68] sm:$0xf]
      %v429 = vld [vmem:[%s273 + $0x6c] sm:$0xf]
      %v430 = vld [vmem:[%s273 + $0x70] sm:$0xf]
      %v431 = vld [vmem:[%s273 + $0x74] sm:$0xf]
      %v432 = vld [vmem:[%s273 + $0x78] sm:$0xf]
      %v433 = vld [vmem:[%s273 + $0x7c] sm:$0xf]
      %vm434 = vsmask.f32 4368
      %vm435 = vmor %vm290, %vm434
      %v437 = vshrl.u32 %v402, 16
      %v439 = vrot.slane %v437, 7
      %v440 = vshll.u32 %v402, 16
      %v442 = vor.u32 %v439, %v440
      %v443 = vrot.slane %v439, 4
      %v445 = vshrl.u32 %v403, 16
      %v447 = vrot.slane %v445, 7
      %v448 = vshll.u32 %v403, 16
      %v450 = vor.u32 %v447, %v448
      %v451 = vsel %vm435, %v443, %v450
      %v452 = vrot.slane %v447, 4
      %v454 = vshrl.u32 %v404, 16
      %v456 = vrot.slane %v454, 7
      %v457 = vshll.u32 %v404, 16
      %v459 = vor.u32 %v456, %v457
      %v460 = vrot.slane %v456, 4
      %v462 = vshrl.u32 %v405, 16
      %v464 = vrot.slane %v462, 7
      %v465 = vshll.u32 %v405, 16
      %v467 = vor.u32 %v464, %v465
      %v468 = vsel %vm435, %v460, %v467
      %v469 = vrot.slane %v464, 4
      %v471 = vshrl.u32 %v406, 16
      %v473 = vrot.slane %v471, 7
      %v474 = vshll.u32 %v406, 16
      %v476 = vor.u32 %v473, %v474
      %v477 = vrot.slane %v473, 4
      %v479 = vshrl.u32 %v407, 16
      %v481 = vrot.slane %v479, 7
      %v482 = vshll.u32 %v407, 16
      %v484 = vor.u32 %v481, %v482
      %v485 = vsel %vm435, %v477, %v484
      %v486 = vrot.slane %v481, 4
      %v488 = vshrl.u32 %v408, 16
      %v490 = vrot.slane %v488, 7
      %v491 = vshll.u32 %v408, 16
      %v493 = vor.u32 %v490, %v491
      %v494 = vrot.slane %v490, 4
      %v496 = vshrl.u32 %v409, 16
      %v498 = vrot.slane %v496, 7
      %v499 = vshll.u32 %v409, 16
      %v501 = vor.u32 %v498, %v499
      %v502 = vsel %vm435, %v494, %v501
      %v503 = vrot.slane %v498, 4
      %v505 = vshrl.u32 %v410, 16
      %v507 = vrot.slane %v505, 7
      %v508 = vshll.u32 %v410, 16
      %v510 = vor.u32 %v507, %v508
      %v511 = vrot.slane %v507, 4
      %v513 = vshrl.u32 %v411, 16
      %v515 = vrot.slane %v513, 7
      %v516 = vshll.u32 %v411, 16
      %v518 = vor.u32 %v515, %v516
      %v519 = vsel %vm435, %v511, %v518
      %v520 = vrot.slane %v515, 4
      %v522 = vshrl.u32 %v412, 16
      %v524 = vrot.slane %v522, 7
      %v525 = vshll.u32 %v412, 16
      %v527 = vor.u32 %v524, %v525
      %v528 = vrot.slane %v524, 4
      %v530 = vshrl.u32 %v413, 16
      %v532 = vrot.slane %v530, 7
      %v533 = vshll.u32 %v413, 16
      %v535 = vor.u32 %v532, %v533
      %v536 = vsel %vm435, %v528, %v535
      %v537 = vrot.slane %v532, 4
      %v539 = vshrl.u32 %v414, 16
      %v541 = vrot.slane %v539, 7
      %v542 = vshll.u32 %v414, 16
      %v544 = vor.u32 %v541, %v542
      %v545 = vrot.slane %v541, 4
      %v547 = vshrl.u32 %v415, 16
      %v549 = vrot.slane %v547, 7
      %v550 = vshll.u32 %v415, 16
      %v552 = vor.u32 %v549, %v550
      %v553 = vsel %vm435, %v545, %v552
      %v554 = vrot.slane %v549, 4
      %v556 = vshrl.u32 %v416, 16
      %v558 = vrot.slane %v556, 7
      %v559 = vshll.u32 %v416, 16
      %v561 = vor.u32 %v558, %v559
      %v562 = vrot.slane %v558, 4
      %v564 = vshrl.u32 %v417, 16
      %v566 = vrot.slane %v564, 7
      %v567 = vshll.u32 %v417, 16
      %v569 = vor.u32 %v566, %v567
      %v570 = vsel %vm435, %v562, %v569
      %v571 = vrot.slane %v566, 4
      %v573 = vshrl.u32 %v418, 16
      %v575 = vrot.slane %v573, 7
      %v576 = vshll.u32 %v418, 16
      %v578 = vor.u32 %v575, %v576
      %v579 = vrot.slane %v575, 4
      %v581 = vshrl.u32 %v419, 16
      %v583 = vrot.slane %v581, 7
      %v584 = vshll.u32 %v419, 16
      %v586 = vor.u32 %v583, %v584
      %v587 = vsel %vm435, %v579, %v586
      %v588 = vrot.slane %v583, 4
      %v590 = vshrl.u32 %v420, 16
      %v592 = vrot.slane %v590, 7
      %v593 = vshll.u32 %v420, 16
      %v595 = vor.u32 %v592, %v593
      %v596 = vrot.slane %v592, 4
      %v598 = vshrl.u32 %v421, 16
      %v600 = vrot.slane %v598, 7
      %v601 = vshll.u32 %v421, 16
      %v603 = vor.u32 %v600, %v601
      %v604 = vsel %vm435, %v596, %v603
      %v605 = vrot.slane %v600, 4
      %v607 = vshrl.u32 %v422, 16
      %v609 = vrot.slane %v607, 7
      %v610 = vshll.u32 %v422, 16
      %v612 = vor.u32 %v609, %v610
      %v613 = vrot.slane %v609, 4
      %v615 = vshrl.u32 %v423, 16
      %v617 = vrot.slane %v615, 7
      %v618 = vshll.u32 %v423, 16
      %v620 = vor.u32 %v617, %v618
      %v621 = vsel %vm435, %v613, %v620
      %v622 = vrot.slane %v617, 4
      %v624 = vshrl.u32 %v424, 16
      %v626 = vrot.slane %v624, 7
      %v627 = vshll.u32 %v424, 16
      %v629 = vor.u32 %v626, %v627
      %v630 = vrot.slane %v626, 4
      %v632 = vshrl.u32 %v425, 16
      %v634 = vrot.slane %v632, 7
      %v635 = vshll.u32 %v425, 16
      %v637 = vor.u32 %v634, %v635
      %v638 = vsel %vm435, %v630, %v637
      %v639 = vrot.slane %v634, 4
      %v641 = vshrl.u32 %v426, 16
      %v643 = vrot.slane %v641, 7
      %v644 = vshll.u32 %v426, 16
      %v646 = vor.u32 %v643, %v644
      %v647 = vrot.slane %v643, 4
      %v649 = vshrl.u32 %v427, 16
      %v651 = vrot.slane %v649, 7
      %v652 = vshll.u32 %v427, 16
      %v654 = vor.u32 %v651, %v652
      %v655 = vsel %vm435, %v647, %v654
      %v656 = vrot.slane %v651, 4
      %v658 = vshrl.u32 %v428, 16
      %v660 = vrot.slane %v658, 7
      %v661 = vshll.u32 %v428, 16
      %v663 = vor.u32 %v660, %v661
      %v664 = vrot.slane %v660, 4
      %v666 = vshrl.u32 %v429, 16
      %v668 = vrot.slane %v666, 7
      %v669 = vshll.u32 %v429, 16
      %v671 = vor.u32 %v668, %v669
      %v672 = vsel %vm435, %v664, %v671
      %v673 = vrot.slane %v668, 4
      %v675 = vshrl.u32 %v430, 16
      %v677 = vrot.slane %v675, 7
      %v678 = vshll.u32 %v430, 16
      %v680 = vor.u32 %v677, %v678
      %v681 = vrot.slane %v677, 4
      %v683 = vshrl.u32 %v431, 16
      %v685 = vrot.slane %v683, 7
      %v686 = vshll.u32 %v431, 16
      %v688 = vor.u32 %v685, %v686
      %v689 = vsel %vm435, %v681, %v688
      %v690 = vrot.slane %v685, 4
      %v692 = vshrl.u32 %v432, 16
      %v694 = vrot.slane %v692, 7
      %v695 = vshll.u32 %v432, 16
      %v697 = vor.u32 %v694, %v695
      %v698 = vrot.slane %v694, 4
      %v700 = vshrl.u32 %v433, 16
      %v702 = vrot.slane %v700, 7
      %v703 = vshll.u32 %v433, 16
      %v705 = vor.u32 %v702, %v703
      %v706 = vsel %vm435, %v698, %v705
      %v707 = vrot.slane %v702, 4
      %s756 = scalar_lea.vmem [#allocation2], 12
      %vm757 = vcmask 60416
      %vm758 = vmand %vm757, %vm346
      %v759 = vld [vmem:[%s756] sm:$0xf]
      %v760 = vsel %vm758, %v442, %v759
      %761 = vst [vmem:[%s756] sm:$0xf] %v760
      %762 = vst.msk [vmem:[%s756 + $0x4] sm:$0xf] %vm280, %v451
      %v763 = vld [vmem:[%s756 + $0x8] sm:$0x1]
      %v764 = vsel %vm291, %v452, %v763
      %765 = vst [vmem:[%s756 + $0x8] sm:$0x1] %v764
      %v766 = vld [vmem:[%s756 + $0xc] sm:$0xf]
      %v767 = vsel %vm758, %v459, %v766
      %768 = vst [vmem:[%s756 + $0xc] sm:$0xf] %v767
      %769 = vst.msk [vmem:[%s756 + $0x10] sm:$0xf] %vm280, %v468
      %v770 = vld [vmem:[%s756 + $0x14] sm:$0x1]
      %v771 = vsel %vm291, %v469, %v770
      %772 = vst [vmem:[%s756 + $0x14] sm:$0x1] %v771
      %v773 = vld [vmem:[%s756 + $0x18] sm:$0xf]
      %v774 = vsel %vm758, %v476, %v773
      %775 = vst [vmem:[%s756 + $0x18] sm:$0xf] %v774
      %776 = vst.msk [vmem:[%s756 + $0x1c] sm:$0xf] %vm280, %v485
      %v777 = vld [vmem:[%s756 + $0x20] sm:$0x1]
      %v778 = vsel %vm291, %v486, %v777
      %779 = vst [vmem:[%s756 + $0x20] sm:$0x1] %v778
      %v780 = vld [vmem:[%s756 + $0x24] sm:$0xf]
      %v781 = vsel %vm758, %v493, %v780
      %782 = vst [vmem:[%s756 + $0x24] sm:$0xf] %v781
      %783 = vst.msk [vmem:[%s756 + $0x28] sm:$0xf] %vm280, %v502
      %v784 = vld [vmem:[%s756 + $0x2c] sm:$0x1]
      %v785 = vsel %vm291, %v503, %v784
      %786 = vst [vmem:[%s756 + $0x2c] sm:$0x1] %v785
      %v787 = vld [vmem:[%s756 + $0x30] sm:$0xf]
      %v788 = vsel %vm758, %v510, %v787
      %789 = vst [vmem:[%s756 + $0x30] sm:$0xf] %v788
      %790 = vst.msk [vmem:[%s756 + $0x34] sm:$0xf] %vm280, %v519
      %v791 = vld [vmem:[%s756 + $0x38] sm:$0x1]
      %v792 = vsel %vm291, %v520, %v791
      %793 = vst [vmem:[%s756 + $0x38] sm:$0x1] %v792
      %v794 = vld [vmem:[%s756 + $0x3c] sm:$0xf]
      %v795 = vsel %vm758, %v527, %v794
      %796 = vst [vmem:[%s756 + $0x3c] sm:$0xf] %v795
      %797 = vst.msk [vmem:[%s756 + $0x40] sm:$0xf] %vm280, %v536
      %v798 = vld [vmem:[%s756 + $0x44] sm:$0x1]
      %v799 = vsel %vm291, %v537, %v798
      %800 = vst [vmem:[%s756 + $0x44] sm:$0x1] %v799
      %v801 = vld [vmem:[%s756 + $0x48] sm:$0xf]
      %v802 = vsel %vm758, %v544, %v801
      %803 = vst [vmem:[%s756 + $0x48] sm:$0xf] %v802
      %804 = vst.msk [vmem:[%s756 + $0x4c] sm:$0xf] %vm280, %v553
      %v805 = vld [vmem:[%s756 + $0x50] sm:$0x1]
      %v806 = vsel %vm291, %v554, %v805
      %807 = vst [vmem:[%s756 + $0x50] sm:$0x1] %v806
      %v808 = vld [vmem:[%s756 + $0x54] sm:$0xf]
      %v809 = vsel %vm758, %v561, %v808
      %810 = vst [vmem:[%s756 + $0x54] sm:$0xf] %v809
      %811 = vst.msk [vmem:[%s756 + $0x58] sm:$0xf] %vm280, %v570
      %v812 = vld [vmem:[%s756 + $0x5c] sm:$0x1]
      %v813 = vsel %vm291, %v571, %v812
      %814 = vst [vmem:[%s756 + $0x5c] sm:$0x1] %v813
      %v815 = vld [vmem:[%s756 + $0x60] sm:$0xf]
      %v816 = vsel %vm758, %v578, %v815
      %817 = vst [vmem:[%s756 + $0x60] sm:$0xf] %v816
      %818 = vst.msk [vmem:[%s756 + $0x64] sm:$0xf] %vm280, %v587
      %v819 = vld [vmem:[%s756 + $0x68] sm:$0x1]
      %v820 = vsel %vm291, %v588, %v819
      %821 = vst [vmem:[%s756 + $0x68] sm:$0x1] %v820
      %v822 = vld [vmem:[%s756 + $0x6c] sm:$0xf]
      %v823 = vsel %vm758, %v595, %v822
      %824 = vst [vmem:[%s756 + $0x6c] sm:$0xf] %v823
      %825 = vst.msk [vmem:[%s756 + $0x70] sm:$0xf] %vm280, %v604
      %v826 = vld [vmem:[%s756 + $0x74] sm:$0x1]
      %v827 = vsel %vm291, %v605, %v826
      %828 = vst [vmem:[%s756 + $0x74] sm:$0x1] %v827
      %v829 = vld [vmem:[%s756 + $0x78] sm:$0xf]
      %v830 = vsel %vm758, %v612, %v829
      %831 = vst [vmem:[%s756 + $0x78] sm:$0xf] %v830
      %832 = vst.msk [vmem:[%s756 + $0x7c] sm:$0xf] %vm280, %v621
      %v833 = vld [vmem:[%s756 + $0x80] sm:$0x1]
      %v834 = vsel %vm291, %v622, %v833
      %835 = vst [vmem:[%s756 + $0x80] sm:$0x1] %v834
      %v836 = vld [vmem:[%s756 + $0x84] sm:$0xf]
      %v837 = vsel %vm758, %v629, %v836
      %838 = vst [vmem:[%s756 + $0x84] sm:$0xf] %v837
      %839 = vst.msk [vmem:[%s756 + $0x88] sm:$0xf] %vm280, %v638
      %v840 = vld [vmem:[%s756 + $0x8c] sm:$0x1]
      %v841 = vsel %vm291, %v639, %v840
      %842 = vst [vmem:[%s756 + $0x8c] sm:$0x1] %v841
      %v843 = vld [vmem:[%s756 + $0x90] sm:$0xf]
      %v844 = vsel %vm758, %v646, %v843
      %845 = vst [vmem:[%s756 + $0x90] sm:$0xf] %v844
      %846 = vst.msk [vmem:[%s756 + $0x94] sm:$0xf] %vm280, %v655
      %v847 = vld [vmem:[%s756 + $0x98] sm:$0x1]
      %v848 = vsel %vm291, %v656, %v847
      %849 = vst [vmem:[%s756 + $0x98] sm:$0x1] %v848
      %v850 = vld [vmem:[%s756 + $0x9c] sm:$0xf]
      %v851 = vsel %vm758, %v663, %v850
      %852 = vst [vmem:[%s756 + $0x9c] sm:$0xf] %v851
      %853 = vst.msk [vmem:[%s756 + $0xa0] sm:$0xf] %vm280, %v672
      %v854 = vld [vmem:[%s756 + $0xa4] sm:$0x1]
      %v855 = vsel %vm291, %v673, %v854
      %856 = vst [vmem:[%s756 + $0xa4] sm:$0x1] %v855
      %v857 = vld [vmem:[%s756 + $0xa8] sm:$0xf]
      %v858 = vsel %vm758, %v680, %v857
      %859 = vst [vmem:[%s756 + $0xa8] sm:$0xf] %v858
      %860 = vst.msk [vmem:[%s756 + $0xac] sm:$0xf] %vm280, %v689
      %v861 = vld [vmem:[%s756 + $0xb0] sm:$0x1]
      %v862 = vsel %vm291, %v690, %v861
      %863 = vst [vmem:[%s756 + $0xb0] sm:$0x1] %v862
      %v864 = vld [vmem:[%s756 + $0xb4] sm:$0xf]
      %v865 = vsel %vm758, %v697, %v864
      %866 = vst [vmem:[%s756 + $0xb4] sm:$0xf] %v865
      %867 = vst.msk [vmem:[%s756 + $0xb8] sm:$0xf] %vm280, %v706
      %v868 = vld [vmem:[%s756 + $0xbc] sm:$0x1]
      %v869 = vsel %vm291, %v707, %v868
      %870 = vst [vmem:[%s756 + $0xbc] sm:$0x1] %v869
      %v871 = vld [vmem:[#allocation2] sm:$0xf]
      %v872 = vld [vmem:[#allocation2 + $0x4] sm:$0xf]
      %v873 = vld [vmem:[#allocation2 + $0xc] sm:$0xf]
      %v874 = vld [vmem:[#allocation2 + $0x10] sm:$0xf]
      %v875 = vld [vmem:[#allocation2 + $0x18] sm:$0xf]
      %v876 = vld [vmem:[#allocation2 + $0x1c] sm:$0xf]
      %v877 = vld [vmem:[#allocation2 + $0x24] sm:$0xf]
      %v878 = vld [vmem:[#allocation2 + $0x28] sm:$0xf]
      %v879 = vld [vmem:[#allocation2 + $0x30] sm:$0xf]
      %v880 = vld [vmem:[#allocation2 + $0x34] sm:$0xf]
      %v881 = vld [vmem:[#allocation2 + $0x3c] sm:$0xf]
      %v882 = vld [vmem:[#allocation2 + $0x40] sm:$0xf]
      %v883 = vld [vmem:[#allocation2 + $0x48] sm:$0xf]
      %v884 = vld [vmem:[#allocation2 + $0x4c] sm:$0xf]
      %v885 = vld [vmem:[#allocation2 + $0x54] sm:$0xf]
      %v886 = vld [vmem:[#allocation2 + $0x58] sm:$0xf]
      %v887 = vld [vmem:[#allocation2 + $0x60] sm:$0xf]
      %v888 = vld [vmem:[#allocation2 + $0x64] sm:$0xf]
      %v889 = vld [vmem:[#allocation2 + $0x6c] sm:$0xf]
      %v890 = vld [vmem:[#allocation2 + $0x70] sm:$0xf]
      %v891 = vld [vmem:[#allocation2 + $0x78] sm:$0xf]
      %v892 = vld [vmem:[#allocation2 + $0x7c] sm:$0xf]
      %v893 = vld [vmem:[#allocation2 + $0x84] sm:$0xf]
      %v894 = vld [vmem:[#allocation2 + $0x88] sm:$0xf]
      %v895 = vld [vmem:[#allocation2 + $0x90] sm:$0xf]
      %v896 = vld [vmem:[#allocation2 + $0x94] sm:$0xf]
      %v897 = vld [vmem:[#allocation2 + $0x9c] sm:$0xf]
      %v898 = vld [vmem:[#allocation2 + $0xa0] sm:$0xf]
      %v899 = vld [vmem:[#allocation2 + $0xa8] sm:$0xf]
      %v900 = vld [vmem:[#allocation2 + $0xac] sm:$0xf]
      %v901 = vld [vmem:[#allocation2 + $0xb4] sm:$0xf]
      %v902 = vld [vmem:[#allocation2 + $0xb8] sm:$0xf]
      %v903 = vld [vmem:[#allocation2 + $0x8] sm:$0x1]
      %v904 = vld [vmem:[#allocation2 + $0x14] sm:$0x1]
      %v905 = vld [vmem:[#allocation2 + $0x20] sm:$0x1]
      %v906 = vld [vmem:[#allocation2 + $0x2c] sm:$0x1]
      %v907 = vld [vmem:[#allocation2 + $0x38] sm:$0x1]
      %v908 = vld [vmem:[#allocation2 + $0x44] sm:$0x1]
      %v909 = vld [vmem:[#allocation2 + $0x50] sm:$0x1]
      %v910 = vld [vmem:[#allocation2 + $0x5c] sm:$0x1]
      %v911 = vld [vmem:[#allocation2 + $0x68] sm:$0x1]
      %v912 = vld [vmem:[#allocation2 + $0x74] sm:$0x1]
      %v913 = vld [vmem:[#allocation2 + $0x80] sm:$0x1]
      %v914 = vld [vmem:[#allocation2 + $0x8c] sm:$0x1]
      %v915 = vld [vmem:[#allocation2 + $0x98] sm:$0x1]
      %v916 = vld [vmem:[#allocation2 + $0xa4] sm:$0x1]
      %v917 = vld [vmem:[#allocation2 + $0xb0] sm:$0x1]
      %v918 = vld [vmem:[#allocation2 + $0xbc] sm:$0x1]
      %vm919 = vsmask.f32 3328
      %vm920 = vsmask.f32 7440
      %vm921 = vmor %vm919, %vm920
      %v923 = vshrl.u32 %v871, 16
      %v925 = vrot.slane %v923, 4
      %v926 = vshll.u32 %v871, 16
      %v928 = vrot.slane %v926, 5
      %v929 = vor.u32 %v925, %v928
      %v930 = vrot.slane %v929, 4
      %v932 = vshll.u32 %v872, 16
      %v934 = vrot.slane %v932, 5
      %v935 = vsel %vm921, %v930, %v934
      %v936 = vshrl.u32 %v872, 16
      %v938 = vrot.slane %v936, 4
      %v939 = vor.u32 %v938, %v934
      %v940 = vrot.slane %v939, 4
      %v942 = vshll.u32 %v903, 16
      %v944 = vrot.slane %v942, 5
      %v945 = vsel %vm921, %v940, %v944
      %v947 = vshrl.u32 %v873, 16
      %v949 = vrot.slane %v947, 4
      %v950 = vshll.u32 %v873, 16
      %v952 = vrot.slane %v950, 5
      %v953 = vor.u32 %v949, %v952
      %v954 = vrot.slane %v953, 4
      %v956 = vshll.u32 %v874, 16
      %v958 = vrot.slane %v956, 5
      %v959 = vsel %vm921, %v954, %v958
      %v960 = vshrl.u32 %v874, 16
      %v962 = vrot.slane %v960, 4
      %v963 = vor.u32 %v962, %v958
      %v964 = vrot.slane %v963, 4
      %v966 = vshll.u32 %v904, 16
      %v968 = vrot.slane %v966, 5
      %v969 = vsel %vm921, %v964, %v968
      %v971 = vshrl.u32 %v875, 16
      %v973 = vrot.slane %v971, 4
      %v974 = vshll.u32 %v875, 16
      %v976 = vrot.slane %v974, 5
      %v977 = vor.u32 %v973, %v976
      %v978 = vrot.slane %v977, 4
      %v980 = vshll.u32 %v876, 16
      %v982 = vrot.slane %v980, 5
      %v983 = vsel %vm921, %v978, %v982
      %v984 = vshrl.u32 %v876, 16
      %v986 = vrot.slane %v984, 4
      %v987 = vor.u32 %v986, %v982
      %v988 = vrot.slane %v987, 4
      %v990 = vshll.u32 %v905, 16
      %v992 = vrot.slane %v990, 5
      %v993 = vsel %vm921, %v988, %v992
      %v995 = vshrl.u32 %v877, 16
      %v997 = vrot.slane %v995, 4
      %v998 = vshll.u32 %v877, 16
      %v1000 = vrot.slane %v998, 5
      %v1001 = vor.u32 %v997, %v1000
      %v1002 = vrot.slane %v1001, 4
      %v1004 = vshll.u32 %v878, 16
      %v1006 = vrot.slane %v1004, 5
      %v1007 = vsel %vm921, %v1002, %v1006
      %v1008 = vshrl.u32 %v878, 16
      %v1010 = vrot.slane %v1008, 4
      %v1011 = vor.u32 %v1010, %v1006
      %v1012 = vrot.slane %v1011, 4
      %v1014 = vshll.u32 %v906, 16
      %v1016 = vrot.slane %v1014, 5
      %v1017 = vsel %vm921, %v1012, %v1016
      %v1019 = vshrl.u32 %v879, 16
      %v1021 = vrot.slane %v1019, 4
      %v1022 = vshll.u32 %v879, 16
      %v1024 = vrot.slane %v1022, 5
      %v1025 = vor.u32 %v1021, %v1024
      %v1026 = vrot.slane %v1025, 4
      %v1028 = vshll.u32 %v880, 16
      %v1030 = vrot.slane %v1028, 5
      %v1031 = vsel %vm921, %v1026, %v1030
      %v1032 = vshrl.u32 %v880, 16
      %v1034 = vrot.slane %v1032, 4
      %v1035 = vor.u32 %v1034, %v1030
      %v1036 = vrot.slane %v1035, 4
      %v1038 = vshll.u32 %v907, 16
      %v1040 = vrot.slane %v1038, 5
      %v1041 = vsel %vm921, %v1036, %v1040
      %v1043 = vshrl.u32 %v881, 16
      %v1045 = vrot.slane %v1043, 4
      %v1046 = vshll.u32 %v881, 16
      %v1048 = vrot.slane %v1046, 5
      %v1049 = vor.u32 %v1045, %v1048
      %v1050 = vrot.slane %v1049, 4
      %v1052 = vshll.u32 %v882, 16
      %v1054 = vrot.slane %v1052, 5
      %v1055 = vsel %vm921, %v1050, %v1054
      %v1056 = vshrl.u32 %v882, 16
      %v1058 = vrot.slane %v1056, 4
      %v1059 = vor.u32 %v1058, %v1054
      %v1060 = vrot.slane %v1059, 4
      %v1062 = vshll.u32 %v908, 16
      %v1064 = vrot.slane %v1062, 5
      %v1065 = vsel %vm921, %v1060, %v1064
      %v1067 = vshrl.u32 %v883, 16
      %v1069 = vrot.slane %v1067, 4
      %v1070 = vshll.u32 %v883, 16
      %v1072 = vrot.slane %v1070, 5
      %v1073 = vor.u32 %v1069, %v1072
      %v1074 = vrot.slane %v1073, 4
      %v1076 = vshll.u32 %v884, 16
      %v1078 = vrot.slane %v1076, 5
      %v1079 = vsel %vm921, %v1074, %v1078
      %v1080 = vshrl.u32 %v884, 16
      %v1082 = vrot.slane %v1080, 4
      %v1083 = vor.u32 %v1082, %v1078
      %v1084 = vrot.slane %v1083, 4
      %v1086 = vshll.u32 %v909, 16
      %v1088 = vrot.slane %v1086, 5
      %v1089 = vsel %vm921, %v1084, %v1088
      %v1091 = vshrl.u32 %v885, 16
      %v1093 = vrot.slane %v1091, 4
      %v1094 = vshll.u32 %v885, 16
      %v1096 = vrot.slane %v1094, 5
      %v1097 = vor.u32 %v1093, %v1096
      %v1098 = vrot.slane %v1097, 4
      %v1100 = vshll.u32 %v886, 16
      %v1102 = vrot.slane %v1100, 5
      %v1103 = vsel %vm921, %v1098, %v1102
      %v1104 = vshrl.u32 %v886, 16
      %v1106 = vrot.slane %v1104, 4
      %v1107 = vor.u32 %v1106, %v1102
      %v1108 = vrot.slane %v1107, 4
      %v1110 = vshll.u32 %v910, 16
      %v1112 = vrot.slane %v1110, 5
      %v1113 = vsel %vm921, %v1108, %v1112
      %v1115 = vshrl.u32 %v887, 16
      %v1117 = vrot.slane %v1115, 4
      %v1118 = vshll.u32 %v887, 16
      %v1120 = vrot.slane %v1118, 5
      %v1121 = vor.u32 %v1117, %v1120
      %v1122 = vrot.slane %v1121, 4
      %v1124 = vshll.u32 %v888, 16
      %v1126 = vrot.slane %v1124, 5
      %v1127 = vsel %vm921, %v1122, %v1126
      %v1128 = vshrl.u32 %v888, 16
      %v1130 = vrot.slane %v1128, 4
      %v1131 = vor.u32 %v1130, %v1126
      %v1132 = vrot.slane %v1131, 4
      %v1134 = vshll.u32 %v911, 16
      %v1136 = vrot.slane %v1134, 5
      %v1137 = vsel %vm921, %v1132, %v1136
      %v1139 = vshrl.u32 %v889, 16
      %v1141 = vrot.slane %v1139, 4
      %v1142 = vshll.u32 %v889, 16
      %v1144 = vrot.slane %v1142, 5
      %v1145 = vor.u32 %v1141, %v1144
      %v1146 = vrot.slane %v1145, 4
      %v1148 = vshll.u32 %v890, 16
      %v1150 = vrot.slane %v1148, 5
      %v1151 = vsel %vm921, %v1146, %v1150
      %v1152 = vshrl.u32 %v890, 16
      %v1154 = vrot.slane %v1152, 4
      %v1155 = vor.u32 %v1154, %v1150
      %v1156 = vrot.slane %v1155, 4
      %v1158 = vshll.u32 %v912, 16
      %v1160 = vrot.slane %v1158, 5
      %v1161 = vsel %vm921, %v1156, %v1160
      %v1163 = vshrl.u32 %v891, 16
      %v1165 = vrot.slane %v1163, 4
      %v1166 = vshll.u32 %v891, 16
      %v1168 = vrot.slane %v1166, 5
      %v1169 = vor.u32 %v1165, %v1168
      %v1170 = vrot.slane %v1169, 4
      %v1172 = vshll.u32 %v892, 16
      %v1174 = vrot.slane %v1172, 5
      %v1175 = vsel %vm921, %v1170, %v1174
      %v1176 = vshrl.u32 %v892, 16
      %v1178 = vrot.slane %v1176, 4
      %v1179 = vor.u32 %v1178, %v1174
      %v1180 = vrot.slane %v1179, 4
      %v1182 = vshll.u32 %v913, 16
      %v1184 = vrot.slane %v1182, 5
      %v1185 = vsel %vm921, %v1180, %v1184
      %v1187 = vshrl.u32 %v893, 16
      %v1189 = vrot.slane %v1187, 4
      %v1190 = vshll.u32 %v893, 16
      %v1192 = vrot.slane %v1190, 5
      %v1193 = vor.u32 %v1189, %v1192
      %v1194 = vrot.slane %v1193, 4
      %v1196 = vshll.u32 %v894, 16
      %v1198 = vrot.slane %v1196, 5
      %v1199 = vsel %vm921, %v1194, %v1198
      %v1200 = vshrl.u32 %v894, 16
      %v1202 = vrot.slane %v1200, 4
      %v1203 = vor.u32 %v1202, %v1198
      %v1204 = vrot.slane %v1203, 4
      %v1206 = vshll.u32 %v914, 16
      %v1208 = vrot.slane %v1206, 5
      %v1209 = vsel %vm921, %v1204, %v1208
      %v1211 = vshrl.u32 %v895, 16
      %v1213 = vrot.slane %v1211, 4
      %v1214 = vshll.u32 %v895, 16
      %v1216 = vrot.slane %v1214, 5
      %v1217 = vor.u32 %v1213, %v1216
      %v1218 = vrot.slane %v1217, 4
      %v1220 = vshll.u32 %v896, 16
      %v1222 = vrot.slane %v1220, 5
      %v1223 = vsel %vm921, %v1218, %v1222
      %v1224 = vshrl.u32 %v896, 16
      %v1226 = vrot.slane %v1224, 4
      %v1227 = vor.u32 %v1226, %v1222
      %v1228 = vrot.slane %v1227, 4
      %v1230 = vshll.u32 %v915, 16
      %v1232 = vrot.slane %v1230, 5
      %v1233 = vsel %vm921, %v1228, %v1232
      %v1235 = vshrl.u32 %v897, 16
      %v1237 = vrot.slane %v1235, 4
      %v1238 = vshll.u32 %v897, 16
      %v1240 = vrot.slane %v1238, 5
      %v1241 = vor.u32 %v1237, %v1240
      %v1242 = vrot.slane %v1241, 4
      %v1244 = vshll.u32 %v898, 16
      %v1246 = vrot.slane %v1244, 5
      %v1247 = vsel %vm921, %v1242, %v1246
      %v1248 = vshrl.u32 %v898, 16
      %v1250 = vrot.slane %v1248, 4
      %v1251 = vor.u32 %v1250, %v1246
      %v1252 = vrot.slane %v1251, 4
      %v1254 = vshll.u32 %v916, 16
      %v1256 = vrot.slane %v1254, 5
      %v1257 = vsel %vm921, %v1252, %v1256
      %v1259 = vshrl.u32 %v899, 16
      %v1261 = vrot.slane %v1259, 4
      %v1262 = vshll.u32 %v899, 16
      %v1264 = vrot.slane %v1262, 5
      %v1265 = vor.u32 %v1261, %v1264
      %v1266 = vrot.slane %v1265, 4
      %v1268 = vshll.u32 %v900, 16
      %v1270 = vrot.slane %v1268, 5
      %v1271 = vsel %vm921, %v1266, %v1270
      %v1272 = vshrl.u32 %v900, 16
      %v1274 = vrot.slane %v1272, 4
      %v1275 = vor.u32 %v1274, %v1270
      %v1276 = vrot.slane %v1275, 4
      %v1278 = vshll.u32 %v917, 16
      %v1280 = vrot.slane %v1278, 5
      %v1281 = vsel %vm921, %v1276, %v1280
      %v1283 = vshrl.u32 %v901, 16
      %v1285 = vrot.slane %v1283, 4
      %v1286 = vshll.u32 %v901, 16
      %v1288 = vrot.slane %v1286, 5
      %v1289 = vor.u32 %v1285, %v1288
      %v1290 = vrot.slane %v1289, 4
      %v1292 = vshll.u32 %v902, 16
      %v1294 = vrot.slane %v1292, 5
      %v1295 = vsel %vm921, %v1290, %v1294
      %v1296 = vshrl.u32 %v902, 16
      %v1298 = vrot.slane %v1296, 4
      %v1299 = vor.u32 %v1298, %v1294
      %v1300 = vrot.slane %v1299, 4
      %v1302 = vshll.u32 %v918, 16
      %v1304 = vrot.slane %v1302, 5
      %v1305 = vsel %vm921, %v1300, %v1304
      %v1338 = vunpack.c.l.b16 %v871
      %v1339 = vunpack.c.l.b16 %v872
      %v1340 = vunpack.c.l.b16 %v873
      %v1341 = vunpack.c.l.b16 %v874
      %v1342 = vunpack.c.l.b16 %v875
      %v1343 = vunpack.c.l.b16 %v876
      %v1344 = vunpack.c.l.b16 %v877
      %v1345 = vunpack.c.l.b16 %v878
      %v1346 = vunpack.c.l.b16 %v879
      %v1347 = vunpack.c.l.b16 %v880
      %v1348 = vunpack.c.l.b16 %v881
      %v1349 = vunpack.c.l.b16 %v882
      %v1350 = vunpack.c.l.b16 %v883
      %v1351 = vunpack.c.l.b16 %v884
      %v1352 = vunpack.c.l.b16 %v885
      %v1353 = vunpack.c.l.b16 %v886
      %v1354 = vunpack.c.l.b16 %v887
      %v1355 = vunpack.c.l.b16 %v888
      %v1356 = vunpack.c.l.b16 %v889
      %v1357 = vunpack.c.l.b16 %v890
      %v1358 = vunpack.c.l.b16 %v891
      %v1359 = vunpack.c.l.b16 %v892
      %v1360 = vunpack.c.l.b16 %v893
      %v1361 = vunpack.c.l.b16 %v894
      %v1362 = vunpack.c.l.b16 %v895
      %v1363 = vunpack.c.l.b16 %v896
      %v1364 = vunpack.c.l.b16 %v897
      %v1365 = vunpack.c.l.b16 %v898
      %v1366 = vunpack.c.l.b16 %v899
      %v1367 = vunpack.c.l.b16 %v900
      %v1368 = vunpack.c.l.b16 %v901
      %v1369 = vunpack.c.l.b16 %v902
      %v1370 = vpack.c.b16 %v1339, %v1338
      %v1371 = vpack.c.b16 %v1341, %v1340
      %v1372 = vpack.c.b16 %v1343, %v1342
      %v1373 = vpack.c.b16 %v1345, %v1344
      %v1374 = vpack.c.b16 %v1347, %v1346
      %v1375 = vpack.c.b16 %v1349, %v1348
      %v1376 = vpack.c.b16 %v1351, %v1350
      %v1377 = vpack.c.b16 %v1353, %v1352
      %v1378 = vpack.c.b16 %v1355, %v1354
      %v1379 = vpack.c.b16 %v1357, %v1356
      %v1380 = vpack.c.b16 %v1359, %v1358
      %v1381 = vpack.c.b16 %v1361, %v1360
      %v1382 = vpack.c.b16 %v1363, %v1362
      %v1383 = vpack.c.b16 %v1365, %v1364
      %v1384 = vpack.c.b16 %v1367, %v1366
      %v1385 = vpack.c.b16 %v1369, %v1368
      %v1386 = vunpack.c.l.b16 %v935
      %v1387 = vunpack.c.l.b16 %v945
      %v1388 = vunpack.c.l.b16 %v959
      %v1389 = vunpack.c.l.b16 %v969
      %v1390 = vunpack.c.l.b16 %v983
      %v1391 = vunpack.c.l.b16 %v993
      %v1392 = vunpack.c.l.b16 %v1007
      %v1393 = vunpack.c.l.b16 %v1017
      %v1394 = vunpack.c.l.b16 %v1031
      %v1395 = vunpack.c.l.b16 %v1041
      %v1396 = vunpack.c.l.b16 %v1055
      %v1397 = vunpack.c.l.b16 %v1065
      %v1398 = vunpack.c.l.b16 %v1079
      %v1399 = vunpack.c.l.b16 %v1089
      %v1400 = vunpack.c.l.b16 %v1103
      %v1401 = vunpack.c.l.b16 %v1113
      %v1402 = vunpack.c.l.b16 %v1127
      %v1403 = vunpack.c.l.b16 %v1137
      %v1404 = vunpack.c.l.b16 %v1151
      %v1405 = vunpack.c.l.b16 %v1161
      %v1406 = vunpack.c.l.b16 %v1175
      %v1407 = vunpack.c.l.b16 %v1185
      %v1408 = vunpack.c.l.b16 %v1199
      %v1409 = vunpack.c.l.b16 %v1209
      %v1410 = vunpack.c.l.b16 %v1223
      %v1411 = vunpack.c.l.b16 %v1233
      %v1412 = vunpack.c.l.b16 %v1247
      %v1413 = vunpack.c.l.b16 %v1257
      %v1414 = vunpack.c.l.b16 %v1271
      %v1415 = vunpack.c.l.b16 %v1281
      %v1416 = vunpack.c.l.b16 %v1295
      %v1417 = vunpack.c.l.b16 %v1305
      %v1418 = vpack.c.b16 %v1387, %v1386
      %v1419 = vpack.c.b16 %v1389, %v1388
      %v1420 = vpack.c.b16 %v1391, %v1390
      %v1421 = vpack.c.b16 %v1393, %v1392
      %v1422 = vpack.c.b16 %v1395, %v1394
      %v1423 = vpack.c.b16 %v1397, %v1396
      %v1424 = vpack.c.b16 %v1399, %v1398
      %v1425 = vpack.c.b16 %v1401, %v1400
      %v1426 = vpack.c.b16 %v1403, %v1402
      %v1427 = vpack.c.b16 %v1405, %v1404
      %v1428 = vpack.c.b16 %v1407, %v1406
      %v1429 = vpack.c.b16 %v1409, %v1408
      %v1430 = vpack.c.b16 %v1411, %v1410
      %v1431 = vpack.c.b16 %v1413, %v1412
      %v1432 = vpack.c.b16 %v1415, %v1414
      %v1433 = vpack.c.b16 %v1417, %v1416
      %1434 = vrot.lane.b32.xlu0 %v1418, 8
      %v1435 = vpop.permute.xlu0 %1434
      %1436 = vrot.lane.b32.xlu0 %v1419, 8
      %v1437 = vpop.permute.xlu0 %1436
      %1438 = vrot.lane.b32.xlu0 %v1420, 8
      %v1439 = vpop.permute.xlu0 %1438
      %1440 = vrot.lane.b32.xlu0 %v1421, 8
      %v1441 = vpop.permute.xlu0 %1440
      %1442 = vrot.lane.b32.xlu0 %v1422, 8
      %v1443 = vpop.permute.xlu0 %1442
      %1444 = vrot.lane.b32.xlu0 %v1423, 8
      %v1445 = vpop.permute.xlu0 %1444
      %1446 = vrot.lane.b32.xlu0 %v1424, 8
      %v1447 = vpop.permute.xlu0 %1446
      %1448 = vrot.lane.b32.xlu0 %v1425, 8
      %v1449 = vpop.permute.xlu0 %1448
      %1450 = vrot.lane.b32.xlu0 %v1426, 8
      %v1451 = vpop.permute.xlu0 %1450
      %1452 = vrot.lane.b32.xlu0 %v1427, 8
      %v1453 = vpop.permute.xlu0 %1452
      %1454 = vrot.lane.b32.xlu0 %v1428, 8
      %v1455 = vpop.permute.xlu0 %1454
      %1456 = vrot.lane.b32.xlu0 %v1429, 8
      %v1457 = vpop.permute.xlu0 %1456
      %1458 = vrot.lane.b32.xlu0 %v1430, 8
      %v1459 = vpop.permute.xlu0 %1458
      %1460 = vrot.lane.b32.xlu0 %v1431, 8
      %v1461 = vpop.permute.xlu0 %1460
      %1462 = vrot.lane.b32.xlu0 %v1432, 8
      %v1463 = vpop.permute.xlu0 %1462
      %1464 = vrot.lane.b32.xlu0 %v1433, 8
      %v1465 = vpop.permute.xlu0 %1464
      %vm1466 = vcmask 64512
      %v1469 = vsel %vm1466, %v1370, %v1435
      %v1472 = vsel %vm1466, %v1371, %v1437
      %v1475 = vsel %vm1466, %v1372, %v1439
      %v1478 = vsel %vm1466, %v1373, %v1441
      %v1481 = vsel %vm1466, %v1374, %v1443
      %v1484 = vsel %vm1466, %v1375, %v1445
      %v1487 = vsel %vm1466, %v1376, %v1447
      %v1490 = vsel %vm1466, %v1377, %v1449
      %v1493 = vsel %vm1466, %v1378, %v1451
      %v1496 = vsel %vm1466, %v1379, %v1453
      %v1499 = vsel %vm1466, %v1380, %v1455
      %v1502 = vsel %vm1466, %v1381, %v1457
      %v1505 = vsel %vm1466, %v1382, %v1459
      %v1508 = vsel %vm1466, %v1383, %v1461
      %v1511 = vsel %vm1466, %v1384, %v1463
      %v1514 = vsel %vm1466, %v1385, %v1465
      %v1531 = vunpack.c.l.b16 %v1469
      %v1532 = vunpack.c.h.b16 %v1469
      %v1533 = vunpack.c.l.b16 %v1472
      %v1534 = vunpack.c.h.b16 %v1472
      %v1535 = vunpack.c.l.b16 %v1475
      %v1536 = vunpack.c.h.b16 %v1475
      %v1537 = vunpack.c.l.b16 %v1478
      %v1538 = vunpack.c.h.b16 %v1478
      %v1539 = vunpack.c.l.b16 %v1481
      %v1540 = vunpack.c.h.b16 %v1481
      %v1541 = vunpack.c.l.b16 %v1484
      %v1542 = vunpack.c.h.b16 %v1484
      %v1543 = vunpack.c.l.b16 %v1487
      %v1544 = vunpack.c.h.b16 %v1487
      %v1545 = vunpack.c.l.b16 %v1490
      %v1546 = vunpack.c.h.b16 %v1490
      %v1547 = vunpack.c.l.b16 %v1493
      %v1548 = vunpack.c.h.b16 %v1493
      %v1549 = vunpack.c.l.b16 %v1496
      %v1550 = vunpack.c.h.b16 %v1496
      %v1551 = vunpack.c.l.b16 %v1499
      %v1552 = vunpack.c.h.b16 %v1499
      %v1553 = vunpack.c.l.b16 %v1502
      %v1554 = vunpack.c.h.b16 %v1502
      %v1555 = vunpack.c.l.b16 %v1505
      %v1556 = vunpack.c.h.b16 %v1505
      %v1557 = vunpack.c.l.b16 %v1508
      %v1558 = vunpack.c.h.b16 %v1508
      %v1559 = vunpack.c.l.b16 %v1511
      %v1560 = vunpack.c.h.b16 %v1511
      %v1561 = vunpack.c.l.b16 %v1514
      %v1562 = vunpack.c.h.b16 %v1514
      %v1563 = vpack.c.b16 %v1531, %v1531
      %v1564 = vpack.c.b16 %v1532, %v1532
      %v1565 = vpack.c.b16 %v1533, %v1533
      %v1566 = vpack.c.b16 %v1534, %v1534
      %v1567 = vpack.c.b16 %v1535, %v1535
      %v1568 = vpack.c.b16 %v1536, %v1536
      %v1569 = vpack.c.b16 %v1537, %v1537
      %v1570 = vpack.c.b16 %v1538, %v1538
      %v1571 = vpack.c.b16 %v1539, %v1539
      %v1572 = vpack.c.b16 %v1540, %v1540
      %v1573 = vpack.c.b16 %v1541, %v1541
      %v1574 = vpack.c.b16 %v1542, %v1542
      %v1575 = vpack.c.b16 %v1543, %v1543
      %v1576 = vpack.c.b16 %v1544, %v1544
      %v1577 = vpack.c.b16 %v1545, %v1545
      %v1578 = vpack.c.b16 %v1546, %v1546
      %v1579 = vpack.c.b16 %v1547, %v1547
      %v1580 = vpack.c.b16 %v1548, %v1548
      %v1581 = vpack.c.b16 %v1549, %v1549
      %v1582 = vpack.c.b16 %v1550, %v1550
      %v1583 = vpack.c.b16 %v1551, %v1551
      %v1584 = vpack.c.b16 %v1552, %v1552
      %v1585 = vpack.c.b16 %v1553, %v1553
      %v1586 = vpack.c.b16 %v1554, %v1554
      %v1587 = vpack.c.b16 %v1555, %v1555
      %v1588 = vpack.c.b16 %v1556, %v1556
      %v1589 = vpack.c.b16 %v1557, %v1557
      %v1590 = vpack.c.b16 %v1558, %v1558
      %v1591 = vpack.c.b16 %v1559, %v1559
      %v1592 = vpack.c.b16 %v1560, %v1560
      %v1593 = vpack.c.b16 %v1561, %v1561
      %v1594 = vpack.c.b16 %v1562, %v1562
      %vm1627 = vcmask 125952
      %1628 = vst.msk [vmem:[#allocation3] sm:$0xf] %vm1627, %v1563
      %1629 = vst.msk [vmem:[#allocation3 + $0x4] sm:$0xf] %vm1627, %v1564
      %1630 = vst.msk [vmem:[#allocation3 + $0x8] sm:$0xf] %vm1627, %v1565
      %1631 = vst.msk [vmem:[#allocation3 + $0xc] sm:$0xf] %vm1627, %v1566
      %1632 = vst.msk [vmem:[#allocation3 + $0x10] sm:$0xf] %vm1627, %v1567
      %1633 = vst.msk [vmem:[#allocation3 + $0x14] sm:$0xf] %vm1627, %v1568
      %1634 = vst.msk [vmem:[#allocation3 + $0x18] sm:$0xf] %vm1627, %v1569
      %1635 = vst.msk [vmem:[#allocation3 + $0x1c] sm:$0xf] %vm1627, %v1570
      %1636 = vst.msk [vmem:[#allocation3 + $0x20] sm:$0xf] %vm1627, %v1571
      %1637 = vst.msk [vmem:[#allocation3 + $0x24] sm:$0xf] %vm1627, %v1572
      %1638 = vst.msk [vmem:[#allocation3 + $0x28] sm:$0xf] %vm1627, %v1573
      %1639 = vst.msk [vmem:[#allocation3 + $0x2c] sm:$0xf] %vm1627, %v1574
      %1640 = vst.msk [vmem:[#allocation3 + $0x30] sm:$0xf] %vm1627, %v1575
      %1641 = vst.msk [vmem:[#allocation3 + $0x34] sm:$0xf] %vm1627, %v1576
      %1642 = vst.msk [vmem:[#allocation3 + $0x38] sm:$0xf] %vm1627, %v1577
      %1643 = vst.msk [vmem:[#allocation3 + $0x3c] sm:$0xf] %vm1627, %v1578
      %1644 = vst.msk [vmem:[#allocation3 + $0x40] sm:$0xf] %vm1627, %v1579
      %1645 = vst.msk [vmem:[#allocation3 + $0x44] sm:$0xf] %vm1627, %v1580
      %1646 = vst.msk [vmem:[#allocation3 + $0x48] sm:$0xf] %vm1627, %v1581
      %1647 = vst.msk [vmem:[#allocation3 + $0x4c] sm:$0xf] %vm1627, %v1582
      %1648 = vst.msk [vmem:[#allocation3 + $0x50] sm:$0xf] %vm1627, %v1583
      %1649 = vst.msk [vmem:[#allocation3 + $0x54] sm:$0xf] %vm1627, %v1584
      %1650 = vst.msk [vmem:[#allocation3 + $0x58] sm:$0xf] %vm1627, %v1585
      %1651 = vst.msk [vmem:[#allocation3 + $0x5c] sm:$0xf] %vm1627, %v1586
      %1652 = vst.msk [vmem:[#allocation3 + $0x60] sm:$0xf] %vm1627, %v1587
      %1653 = vst.msk [vmem:[#allocation3 + $0x64] sm:$0xf] %vm1627, %v1588
      %1654 = vst.msk [vmem:[#allocation3 + $0x68] sm:$0xf] %vm1627, %v1589
      %1655 = vst.msk [vmem:[#allocation3 + $0x6c] sm:$0xf] %vm1627, %v1590
      %1656 = vst.msk [vmem:[#allocation3 + $0x70] sm:$0xf] %vm1627, %v1591
      %1657 = vst.msk [vmem:[#allocation3 + $0x74] sm:$0xf] %vm1627, %v1592
      %1658 = vst.msk [vmem:[#allocation3 + $0x78] sm:$0xf] %vm1627, %v1593
      %1659 = vst.msk [vmem:[#allocation3 + $0x7c] sm:$0xf] %vm1627, %v1594
      %v1660 = vld [vmem:[#allocation2] sm:$0xe]
      %v1661 = vld [vmem:[#allocation2 + $0x4] sm:$0xf]
      %v1662 = vld [vmem:[#allocation2 + $0x8] sm:$0x1]
      %v1663 = vld [vmem:[#allocation2 + $0xc] sm:$0xe]
      %v1664 = vld [vmem:[#allocation2 + $0x10] sm:$0xf]
      %v1665 = vld [vmem:[#allocation2 + $0x14] sm:$0x1]
      %v1666 = vld [vmem:[#allocation2 + $0x18] sm:$0xe]
      %v1667 = vld [vmem:[#allocation2 + $0x1c] sm:$0xf]
      %v1668 = vld [vmem:[#allocation2 + $0x20] sm:$0x1]
      %v1669 = vld [vmem:[#allocation2 + $0x24] sm:$0xe]
      %v1670 = vld [vmem:[#allocation2 + $0x28] sm:$0xf]
      %v1671 = vld [vmem:[#allocation2 + $0x2c] sm:$0x1]
      %v1672 = vld [vmem:[#allocation2 + $0x30] sm:$0xe]
      %v1673 = vld [vmem:[#allocation2 + $0x34] sm:$0xf]
      %v1674 = vld [vmem:[#allocation2 + $0x38] sm:$0x1]
      %v1675 = vld [vmem:[#allocation2 + $0x3c] sm:$0xe]
      %v1676 = vld [vmem:[#allocation2 + $0x40] sm:$0xf]
      %v1677 = vld [vmem:[#allocation2 + $0x44] sm:$0x1]
      %v1678 = vld [vmem:[#allocation2 + $0x48] sm:$0xe]
      %v1679 = vld [vmem:[#allocation2 + $0x4c] sm:$0xf]
      %v1680 = vld [vmem:[#allocation2 + $0x50] sm:$0x1]
      %v1681 = vld [vmem:[#allocation2 + $0x54] sm:$0xe]
      %v1682 = vld [vmem:[#allocation2 + $0x58] sm:$0xf]
      %v1683 = vld [vmem:[#allocation2 + $0x5c] sm:$0x1]
      %v1684 = vld [vmem:[#allocation2 + $0x60] sm:$0xe]
      %v1685 = vld [vmem:[#allocation2 + $0x64] sm:$0xf]
      %v1686 = vld [vmem:[#allocation2 + $0x68] sm:$0x1]
      %v1687 = vld [vmem:[#allocation2 + $0x6c] sm:$0xe]
      %v1688 = vld [vmem:[#allocation2 + $0x70] sm:$0xf]
      %v1689 = vld [vmem:[#allocation2 + $0x74] sm:$0x1]
      %v1690 = vld [vmem:[#allocation2 + $0x78] sm:$0xe]
      %v1691 = vld [vmem:[#allocation2 + $0x7c] sm:$0xf]
      %v1692 = vld [vmem:[#allocation2 + $0x80] sm:$0x1]
      %v1693 = vld [vmem:[#allocation2 + $0x84] sm:$0xe]
      %v1694 = vld [vmem:[#allocation2 + $0x88] sm:$0xf]
      %v1695 = vld [vmem:[#allocation2 + $0x8c] sm:$0x1]
      %v1696 = vld [vmem:[#allocation2 + $0x90] sm:$0xe]
      %v1697 = vld [vmem:[#allocation2 + $0x94] sm:$0xf]
      %v1698 = vld [vmem:[#allocation2 + $0x98] sm:$0x1]
      %v1699 = vld [vmem:[#allocation2 + $0x9c] sm:$0xe]
      %v1700 = vld [vmem:[#allocation2 + $0xa0] sm:$0xf]
      %v1701 = vld [vmem:[#allocation2 + $0xa4] sm:$0x1]
      %v1702 = vld [vmem:[#allocation2 + $0xa8] sm:$0xe]
      %v1703 = vld [vmem:[#allocation2 + $0xac] sm:$0xf]
      %v1704 = vld [vmem:[#allocation2 + $0xb0] sm:$0x1]
      %v1705 = vld [vmem:[#allocation2 + $0xb4] sm:$0xe]
      %v1706 = vld [vmem:[#allocation2 + $0xb8] sm:$0xf]
      %v1707 = vld [vmem:[#allocation2 + $0xbc] sm:$0x1]
      %vm1756 = vcmask 1042432
      %vm1757 = vcmask 1046532
      %vm1758 = vmor %vm1756, %vm1757
      %v1759 = vrot.slane %v1660, 5
      %v1760 = vrot.slane %v1759, 4
      %v1761 = vrot.slane %v1661, 5
      %v1762 = vsel %vm1758, %v1760, %v1761
      %v1763 = vrot.slane %v1761, 4
      %v1764 = vrot.slane %v1662, 5
      %v1765 = vsel %vm1758, %v1763, %v1764
      %v1766 = vrot.slane %v1663, 5
      %v1767 = vrot.slane %v1766, 4
      %v1768 = vrot.slane %v1664, 5
      %v1769 = vsel %vm1758, %v1767, %v1768
      %v1770 = vrot.slane %v1768, 4
      %v1771 = vrot.slane %v1665, 5
      %v1772 = vsel %vm1758, %v1770, %v1771
      %v1773 = vrot.slane %v1666, 5
      %v1774 = vrot.slane %v1773, 4
      %v1775 = vrot.slane %v1667, 5
      %v1776 = vsel %vm1758, %v1774, %v1775
      %v1777 = vrot.slane %v1775, 4
      %v1778 = vrot.slane %v1668, 5
      %v1779 = vsel %vm1758, %v1777, %v1778
      %v1780 = vrot.slane %v1669, 5
      %v1781 = vrot.slane %v1780, 4
      %v1782 = vrot.slane %v1670, 5
      %v1783 = vsel %vm1758, %v1781, %v1782
      %v1784 = vrot.slane %v1782, 4
      %v1785 = vrot.slane %v1671, 5
      %v1786 = vsel %vm1758, %v1784, %v1785
      %v1787 = vrot.slane %v1672, 5
      %v1788 = vrot.slane %v1787, 4
      %v1789 = vrot.slane %v1673, 5
      %v1790 = vsel %vm1758, %v1788, %v1789
      %v1791 = vrot.slane %v1789, 4
      %v1792 = vrot.slane %v1674, 5
      %v1793 = vsel %vm1758, %v1791, %v1792
      %v1794 = vrot.slane %v1675, 5
      %v1795 = vrot.slane %v1794, 4
      %v1796 = vrot.slane %v1676, 5
      %v1797 = vsel %vm1758, %v1795, %v1796
      %v1798 = vrot.slane %v1796, 4
      %v1799 = vrot.slane %v1677, 5
      %v1800 = vsel %vm1758, %v1798, %v1799
      %v1801 = vrot.slane %v1678, 5
      %v1802 = vrot.slane %v1801, 4
      %v1803 = vrot.slane %v1679, 5
      %v1804 = vsel %vm1758, %v1802, %v1803
      %v1805 = vrot.slane %v1803, 4
      %v1806 = vrot.slane %v1680, 5
      %v1807 = vsel %vm1758, %v1805, %v1806
      %v1808 = vrot.slane %v1681, 5
      %v1809 = vrot.slane %v1808, 4
      %v1810 = vrot.slane %v1682, 5
      %v1811 = vsel %vm1758, %v1809, %v1810
      %v1812 = vrot.slane %v1810, 4
      %v1813 = vrot.slane %v1683, 5
      %v1814 = vsel %vm1758, %v1812, %v1813
      %v1815 = vrot.slane %v1684, 5
      %v1816 = vrot.slane %v1815, 4
      %v1817 = vrot.slane %v1685, 5
      %v1818 = vsel %vm1758, %v1816, %v1817
      %v1819 = vrot.slane %v1817, 4
      %v1820 = vrot.slane %v1686, 5
      %v1821 = vsel %vm1758, %v1819, %v1820
      %v1822 = vrot.slane %v1687, 5
      %v1823 = vrot.slane %v1822, 4
      %v1824 = vrot.slane %v1688, 5
      %v1825 = vsel %vm1758, %v1823, %v1824
      %v1826 = vrot.slane %v1824, 4
      %v1827 = vrot.slane %v1689, 5
      %v1828 = vsel %vm1758, %v1826, %v1827
      %v1829 = vrot.slane %v1690, 5
      %v1830 = vrot.slane %v1829, 4
      %v1831 = vrot.slane %v1691, 5
      %v1832 = vsel %vm1758, %v1830, %v1831
      %v1833 = vrot.slane %v1831, 4
      %v1834 = vrot.slane %v1692, 5
      %v1835 = vsel %vm1758, %v1833, %v1834
      %v1836 = vrot.slane %v1693, 5
      %v1837 = vrot.slane %v1836, 4
      %v1838 = vrot.slane %v1694, 5
      %v1839 = vsel %vm1758, %v1837, %v1838
      %v1840 = vrot.slane %v1838, 4
      %v1841 = vrot.slane %v1695, 5
      %v1842 = vsel %vm1758, %v1840, %v1841
      %v1843 = vrot.slane %v1696, 5
      %v1844 = vrot.slane %v1843, 4
      %v1845 = vrot.slane %v1697, 5
      %v1846 = vsel %vm1758, %v1844, %v1845
      %v1847 = vrot.slane %v1845, 4
      %v1848 = vrot.slane %v1698, 5
      %v1849 = vsel %vm1758, %v1847, %v1848
      %v1850 = vrot.slane %v1699, 5
      %v1851 = vrot.slane %v1850, 4
      %v1852 = vrot.slane %v1700, 5
      %v1853 = vsel %vm1758, %v1851, %v1852
      %v1854 = vrot.slane %v1852, 4
      %v1855 = vrot.slane %v1701, 5
      %v1856 = vsel %vm1758, %v1854, %v1855
      %v1857 = vrot.slane %v1702, 5
      %v1858 = vrot.slane %v1857, 4
      %v1859 = vrot.slane %v1703, 5
      %v1860 = vsel %vm1758, %v1858, %v1859
      %v1861 = vrot.slane %v1859, 4
      %v1862 = vrot.slane %v1704, 5
      %v1863 = vsel %vm1758, %v1861, %v1862
      %v1864 = vrot.slane %v1705, 5
      %v1865 = vrot.slane %v1864, 4
      %v1866 = vrot.slane %v1706, 5
      %v1867 = vsel %vm1758, %v1865, %v1866
      %v1868 = vrot.slane %v1866, 4
      %v1869 = vrot.slane %v1707, 5
      %v1870 = vsel %vm1758, %v1868, %v1869
      %v1871 = vld [vmem:[%s756] sm:$0xf]
      %v1872 = vld [vmem:[%s756 + $0x4] sm:$0xf]
      %v1873 = vld [vmem:[%s756 + $0xc] sm:$0xf]
      %v1874 = vld [vmem:[%s756 + $0x10] sm:$0xf]
      %v1875 = vld [vmem:[%s756 + $0x18] sm:$0xf]
      %v1876 = vld [vmem:[%s756 + $0x1c] sm:$0xf]
      %v1877 = vld [vmem:[%s756 + $0x24] sm:$0xf]
      %v1878 = vld [vmem:[%s756 + $0x28] sm:$0xf]
      %v1879 = vld [vmem:[%s756 + $0x30] sm:$0xf]
      %v1880 = vld [vmem:[%s756 + $0x34] sm:$0xf]
      %v1881 = vld [vmem:[%s756 + $0x3c] sm:$0xf]
      %v1882 = vld [vmem:[%s756 + $0x40] sm:$0xf]
      %v1883 = vld [vmem:[%s756 + $0x48] sm:$0xf]
      %v1884 = vld [vmem:[%s756 + $0x4c] sm:$0xf]
      %v1885 = vld [vmem:[%s756 + $0x54] sm:$0xf]
      %v1886 = vld [vmem:[%s756 + $0x58] sm:$0xf]
      %v1887 = vld [vmem:[%s756 + $0x60] sm:$0xf]
      %v1888 = vld [vmem:[%s756 + $0x64] sm:$0xf]
      %v1889 = vld [vmem:[%s756 + $0x6c] sm:$0xf]
      %v1890 = vld [vmem:[%s756 + $0x70] sm:$0xf]
      %v1891 = vld [vmem:[%s756 + $0x78] sm:$0xf]
      %v1892 = vld [vmem:[%s756 + $0x7c] sm:$0xf]
      %v1893 = vld [vmem:[%s756 + $0x84] sm:$0xf]
      %v1894 = vld [vmem:[%s756 + $0x88] sm:$0xf]
      %v1895 = vld [vmem:[%s756 + $0x90] sm:$0xf]
      %v1896 = vld [vmem:[%s756 + $0x94] sm:$0xf]
      %v1897 = vld [vmem:[%s756 + $0x9c] sm:$0xf]
      %v1898 = vld [vmem:[%s756 + $0xa0] sm:$0xf]
      %v1899 = vld [vmem:[%s756 + $0xa8] sm:$0xf]
      %v1900 = vld [vmem:[%s756 + $0xac] sm:$0xf]
      %v1901 = vld [vmem:[%s756 + $0xb4] sm:$0xf]
      %v1902 = vld [vmem:[%s756 + $0xb8] sm:$0xf]
      %v1903 = vunpack.c.l.b16 %v1762
      %v1904 = vunpack.c.l.b16 %v1765
      %v1905 = vunpack.c.l.b16 %v1769
      %v1906 = vunpack.c.l.b16 %v1772
      %v1907 = vunpack.c.l.b16 %v1776
      %v1908 = vunpack.c.l.b16 %v1779
      %v1909 = vunpack.c.l.b16 %v1783
      %v1910 = vunpack.c.l.b16 %v1786
      %v1911 = vunpack.c.l.b16 %v1790
      %v1912 = vunpack.c.l.b16 %v1793
      %v1913 = vunpack.c.l.b16 %v1797
      %v1914 = vunpack.c.l.b16 %v1800
      %v1915 = vunpack.c.l.b16 %v1804
      %v1916 = vunpack.c.l.b16 %v1807
      %v1917 = vunpack.c.l.b16 %v1811
      %v1918 = vunpack.c.l.b16 %v1814
      %v1919 = vunpack.c.l.b16 %v1818
      %v1920 = vunpack.c.l.b16 %v1821
      %v1921 = vunpack.c.l.b16 %v1825
      %v1922 = vunpack.c.l.b16 %v1828
      %v1923 = vunpack.c.l.b16 %v1832
      %v1924 = vunpack.c.l.b16 %v1835
      %v1925 = vunpack.c.l.b16 %v1839
      %v1926 = vunpack.c.l.b16 %v1842
      %v1927 = vunpack.c.l.b16 %v1846
      %v1928 = vunpack.c.l.b16 %v1849
      %v1929 = vunpack.c.l.b16 %v1853
      %v1930 = vunpack.c.l.b16 %v1856
      %v1931 = vunpack.c.l.b16 %v1860
      %v1932 = vunpack.c.l.b16 %v1863
      %v1933 = vunpack.c.l.b16 %v1867
      %v1934 = vunpack.c.l.b16 %v1870
      %v1935 = vpack.c.b16 %v1904, %v1903
      %v1936 = vpack.c.b16 %v1906, %v1905
      %v1937 = vpack.c.b16 %v1908, %v1907
      %v1938 = vpack.c.b16 %v1910, %v1909
      %v1939 = vpack.c.b16 %v1912, %v1911
      %v1940 = vpack.c.b16 %v1914, %v1913
      %v1941 = vpack.c.b16 %v1916, %v1915
      %v1942 = vpack.c.b16 %v1918, %v1917
      %v1943 = vpack.c.b16 %v1920, %v1919
      %v1944 = vpack.c.b16 %v1922, %v1921
      %v1945 = vpack.c.b16 %v1924, %v1923
      %v1946 = vpack.c.b16 %v1926, %v1925
      %v1947 = vpack.c.b16 %v1928, %v1927
      %v1948 = vpack.c.b16 %v1930, %v1929
      %v1949 = vpack.c.b16 %v1932, %v1931
      %v1950 = vpack.c.b16 %v1934, %v1933
      %v1983 = vunpack.c.l.b16 %v1871
      %v1984 = vunpack.c.l.b16 %v1872
      %v1985 = vunpack.c.l.b16 %v1873
      %v1986 = vunpack.c.l.b16 %v1874
      %v1987 = vunpack.c.l.b16 %v1875
      %v1988 = vunpack.c.l.b16 %v1876
      %v1989 = vunpack.c.l.b16 %v1877
      %v1990 = vunpack.c.l.b16 %v1878
      %v1991 = vunpack.c.l.b16 %v1879
      %v1992 = vunpack.c.l.b16 %v1880
      %v1993 = vunpack.c.l.b16 %v1881
      %v1994 = vunpack.c.l.b16 %v1882
      %v1995 = vunpack.c.l.b16 %v1883
      %v1996 = vunpack.c.l.b16 %v1884
      %v1997 = vunpack.c.l.b16 %v1885
      %v1998 = vunpack.c.l.b16 %v1886
      %v1999 = vunpack.c.l.b16 %v1887
      %v2000 = vunpack.c.l.b16 %v1888
      %v2001 = vunpack.c.l.b16 %v1889
      %v2002 = vunpack.c.l.b16 %v1890
      %v2003 = vunpack.c.l.b16 %v1891
      %v2004 = vunpack.c.l.b16 %v1892
      %v2005 = vunpack.c.l.b16 %v1893
      %v2006 = vunpack.c.l.b16 %v1894
      %v2007 = vunpack.c.l.b16 %v1895
      %v2008 = vunpack.c.l.b16 %v1896
      %v2009 = vunpack.c.l.b16 %v1897
      %v2010 = vunpack.c.l.b16 %v1898
      %v2011 = vunpack.c.l.b16 %v1899
      %v2012 = vunpack.c.l.b16 %v1900
      %v2013 = vunpack.c.l.b16 %v1901
      %v2014 = vunpack.c.l.b16 %v1902
      %v2015 = vpack.c.b16 %v1984, %v1983
      %v2016 = vpack.c.b16 %v1986, %v1985
      %v2017 = vpack.c.b16 %v1988, %v1987
      %v2018 = vpack.c.b16 %v1990, %v1989
      %v2019 = vpack.c.b16 %v1992, %v1991
      %v2020 = vpack.c.b16 %v1994, %v1993
      %v2021 = vpack.c.b16 %v1996, %v1995
      %v2022 = vpack.c.b16 %v1998, %v1997
      %v2023 = vpack.c.b16 %v2000, %v1999
      %v2024 = vpack.c.b16 %v2002, %v2001
      %v2025 = vpack.c.b16 %v2004, %v2003
      %v2026 = vpack.c.b16 %v2006, %v2005
      %v2027 = vpack.c.b16 %v2008, %v2007
      %v2028 = vpack.c.b16 %v2010, %v2009
      %v2029 = vpack.c.b16 %v2012, %v2011
      %v2030 = vpack.c.b16 %v2014, %v2013
      %2031 = vrot.lane.b32.xlu0 %v2015, 8
      %v2032 = vpop.permute.xlu0 %2031
      %2033 = vrot.lane.b32.xlu0 %v2016, 8
      %v2034 = vpop.permute.xlu0 %2033
      %2035 = vrot.lane.b32.xlu0 %v2017, 8
      %v2036 = vpop.permute.xlu0 %2035
      %2037 = vrot.lane.b32.xlu0 %v2018, 8
      %v2038 = vpop.permute.xlu0 %2037
      %2039 = vrot.lane.b32.xlu0 %v2019, 8
      %v2040 = vpop.permute.xlu0 %2039
      %2041 = vrot.lane.b32.xlu0 %v2020, 8
      %v2042 = vpop.permute.xlu0 %2041
      %2043 = vrot.lane.b32.xlu0 %v2021, 8
      %v2044 = vpop.permute.xlu0 %2043
      %2045 = vrot.lane.b32.xlu0 %v2022, 8
      %v2046 = vpop.permute.xlu0 %2045
      %2047 = vrot.lane.b32.xlu0 %v2023, 8
      %v2048 = vpop.permute.xlu0 %2047
      %2049 = vrot.lane.b32.xlu0 %v2024, 8
      %v2050 = vpop.permute.xlu0 %2049
      %2051 = vrot.lane.b32.xlu0 %v2025, 8
      %v2052 = vpop.permute.xlu0 %2051
      %2053 = vrot.lane.b32.xlu0 %v2026, 8
      %v2054 = vpop.permute.xlu0 %2053
      %2055 = vrot.lane.b32.xlu0 %v2027, 8
      %v2056 = vpop.permute.xlu0 %2055
      %2057 = vrot.lane.b32.xlu0 %v2028, 8
      %v2058 = vpop.permute.xlu0 %2057
      %2059 = vrot.lane.b32.xlu0 %v2029, 8
      %v2060 = vpop.permute.xlu0 %2059
      %2061 = vrot.lane.b32.xlu0 %v2030, 8
      %v2062 = vpop.permute.xlu0 %2061
      %v2065 = vsel %vm1466, %v1935, %v2032
      %v2068 = vsel %vm1466, %v1936, %v2034
      %v2071 = vsel %vm1466, %v1937, %v2036
      %v2074 = vsel %vm1466, %v1938, %v2038
      %v2077 = vsel %vm1466, %v1939, %v2040
      %v2080 = vsel %vm1466, %v1940, %v2042
      %v2083 = vsel %vm1466, %v1941, %v2044
      %v2086 = vsel %vm1466, %v1942, %v2046
      %v2089 = vsel %vm1466, %v1943, %v2048
      %v2092 = vsel %vm1466, %v1944, %v2050
      %v2095 = vsel %vm1466, %v1945, %v2052
      %v2098 = vsel %vm1466, %v1946, %v2054
      %v2101 = vsel %vm1466, %v1947, %v2056
      %v2104 = vsel %vm1466, %v1948, %v2058
      %v2107 = vsel %vm1466, %v1949, %v2060
      %v2110 = vsel %vm1466, %v1950, %v2062
      %v2127 = vunpack.c.l.b16 %v2065
      %v2128 = vunpack.c.h.b16 %v2065
      %v2129 = vunpack.c.l.b16 %v2068
      %v2130 = vunpack.c.h.b16 %v2068
      %v2131 = vunpack.c.l.b16 %v2071
      %v2132 = vunpack.c.h.b16 %v2071
      %v2133 = vunpack.c.l.b16 %v2074
      %v2134 = vunpack.c.h.b16 %v2074
      %v2135 = vunpack.c.l.b16 %v2077
      %v2136 = vunpack.c.h.b16 %v2077
      %v2137 = vunpack.c.l.b16 %v2080
      %v2138 = vunpack.c.h.b16 %v2080
      %v2139 = vunpack.c.l.b16 %v2083
      %v2140 = vunpack.c.h.b16 %v2083
      %v2141 = vunpack.c.l.b16 %v2086
      %v2142 = vunpack.c.h.b16 %v2086
      %v2143 = vunpack.c.l.b16 %v2089
      %v2144 = vunpack.c.h.b16 %v2089
      %v2145 = vunpack.c.l.b16 %v2092
      %v2146 = vunpack.c.h.b16 %v2092
      %v2147 = vunpack.c.l.b16 %v2095
      %v2148 = vunpack.c.h.b16 %v2095
      %v2149 = vunpack.c.l.b16 %v2098
      %v2150 = vunpack.c.h.b16 %v2098
      %v2151 = vunpack.c.l.b16 %v2101
      %v2152 = vunpack.c.h.b16 %v2101
      %v2153 = vunpack.c.l.b16 %v2104
      %v2154 = vunpack.c.h.b16 %v2104
      %v2155 = vunpack.c.l.b16 %v2107
      %v2156 = vunpack.c.h.b16 %v2107
      %v2157 = vunpack.c.l.b16 %v2110
      %v2158 = vunpack.c.h.b16 %v2110
      %v2159 = vpack.c.b16 %v2127, %v2127
      %v2160 = vpack.c.b16 %v2128, %v2128
      %v2161 = vpack.c.b16 %v2129, %v2129
      %v2162 = vpack.c.b16 %v2130, %v2130
      %v2163 = vpack.c.b16 %v2131, %v2131
      %v2164 = vpack.c.b16 %v2132, %v2132
      %v2165 = vpack.c.b16 %v2133, %v2133
      %v2166 = vpack.c.b16 %v2134, %v2134
      %v2167 = vpack.c.b16 %v2135, %v2135
      %v2168 = vpack.c.b16 %v2136, %v2136
      %v2169 = vpack.c.b16 %v2137, %v2137
      %v2170 = vpack.c.b16 %v2138, %v2138
      %v2171 = vpack.c.b16 %v2139, %v2139
      %v2172 = vpack.c.b16 %v2140, %v2140
      %v2173 = vpack.c.b16 %v2141, %v2141
      %v2174 = vpack.c.b16 %v2142, %v2142
      %v2175 = vpack.c.b16 %v2143, %v2143
      %v2176 = vpack.c.b16 %v2144, %v2144
      %v2177 = vpack.c.b16 %v2145, %v2145
      %v2178 = vpack.c.b16 %v2146, %v2146
      %v2179 = vpack.c.b16 %v2147, %v2147
      %v2180 = vpack.c.b16 %v2148, %v2148
      %v2181 = vpack.c.b16 %v2149, %v2149
      %v2182 = vpack.c.b16 %v2150, %v2150
      %v2183 = vpack.c.b16 %v2151, %v2151
      %v2184 = vpack.c.b16 %v2152, %v2152
      %v2185 = vpack.c.b16 %v2153, %v2153
      %v2186 = vpack.c.b16 %v2154, %v2154
      %v2187 = vpack.c.b16 %v2155, %v2155
      %v2188 = vpack.c.b16 %v2156, %v2156
      %v2189 = vpack.c.b16 %v2157, %v2157
      %v2190 = vpack.c.b16 %v2158, %v2158
      %2191 = vrot.lane.b32.xlu0 %v2159, 16
      %v2192 = vpop.permute.xlu0 %2191
      %2193 = vrot.lane.b32.xlu0 %v2160, 16
      %v2194 = vpop.permute.xlu0 %2193
      %2195 = vrot.lane.b32.xlu0 %v2161, 16
      %v2196 = vpop.permute.xlu0 %2195
      %2197 = vrot.lane.b32.xlu0 %v2162, 16
      %v2198 = vpop.permute.xlu0 %2197
      %2199 = vrot.lane.b32.xlu0 %v2163, 16
      %v2200 = vpop.permute.xlu0 %2199
      %2201 = vrot.lane.b32.xlu0 %v2164, 16
      %v2202 = vpop.permute.xlu0 %2201
      %2203 = vrot.lane.b32.xlu0 %v2165, 16
      %v2204 = vpop.permute.xlu0 %2203
      %2205 = vrot.lane.b32.xlu0 %v2166, 16
      %v2206 = vpop.permute.xlu0 %2205
      %2207 = vrot.lane.b32.xlu0 %v2167, 16
      %v2208 = vpop.permute.xlu0 %2207
      %2209 = vrot.lane.b32.xlu0 %v2168, 16
      %v2210 = vpop.permute.xlu0 %2209
      %2211 = vrot.lane.b32.xlu0 %v2169, 16
      %v2212 = vpop.permute.xlu0 %2211
      %2213 = vrot.lane.b32.xlu0 %v2170, 16
      %v2214 = vpop.permute.xlu0 %2213
      %2215 = vrot.lane.b32.xlu0 %v2171, 16
      %v2216 = vpop.permute.xlu0 %2215
      %2217 = vrot.lane.b32.xlu0 %v2172, 16
      %v2218 = vpop.permute.xlu0 %2217
      %2219 = vrot.lane.b32.xlu0 %v2173, 16
      %v2220 = vpop.permute.xlu0 %2219
      %2221 = vrot.lane.b32.xlu0 %v2174, 16
      %v2222 = vpop.permute.xlu0 %2221
      %2223 = vrot.lane.b32.xlu0 %v2175, 16
      %v2224 = vpop.permute.xlu0 %2223
      %2225 = vrot.lane.b32.xlu0 %v2176, 16
      %v2226 = vpop.permute.xlu0 %2225
      %2227 = vrot.lane.b32.xlu0 %v2177, 16
      %v2228 = vpop.permute.xlu0 %2227
      %2229 = vrot.lane.b32.xlu0 %v2178, 16
      %v2230 = vpop.permute.xlu0 %2229
      %2231 = vrot.lane.b32.xlu0 %v2179, 16
      %v2232 = vpop.permute.xlu0 %2231
      %2233 = vrot.lane.b32.xlu0 %v2180, 16
      %v2234 = vpop.permute.xlu0 %2233
      %2235 = vrot.lane.b32.xlu0 %v2181, 16
      %v2236 = vpop.permute.xlu0 %2235
      %2237 = vrot.lane.b32.xlu0 %v2182, 16
      %v2238 = vpop.permute.xlu0 %2237
      %2239 = vrot.lane.b32.xlu0 %v2183, 16
      %v2240 = vpop.permute.xlu0 %2239
      %2241 = vrot.lane.b32.xlu0 %v2184, 16
      %v2242 = vpop.permute.xlu0 %2241
      %2243 = vrot.lane.b32.xlu0 %v2185, 16
      %v2244 = vpop.permute.xlu0 %2243
      %2245 = vrot.lane.b32.xlu0 %v2186, 16
      %v2246 = vpop.permute.xlu0 %2245
      %2247 = vrot.lane.b32.xlu0 %v2187, 16
      %v2248 = vpop.permute.xlu0 %2247
      %2249 = vrot.lane.b32.xlu0 %v2188, 16
      %v2250 = vpop.permute.xlu0 %2249
      %2251 = vrot.lane.b32.xlu0 %v2189, 16
      %v2252 = vpop.permute.xlu0 %2251
      %2253 = vrot.lane.b32.xlu0 %v2190, 16
      %v2254 = vpop.permute.xlu0 %2253
      %vm2287 = vcmask 257152
      %2288 = vst.msk [vmem:[#allocation3] sm:$0xf] %vm2287, %v2192
      %2289 = vst.msk [vmem:[#allocation3 + $0x4] sm:$0xf] %vm2287, %v2194
      %2290 = vst.msk [vmem:[#allocation3 + $0x8] sm:$0xf] %vm2287, %v2196
      %2291 = vst.msk [vmem:[#allocation3 + $0xc] sm:$0xf] %vm2287, %v2198
      %2292 = vst.msk [vmem:[#allocation3 + $0x10] sm:$0xf] %vm2287, %v2200
      %2293 = vst.msk [vmem:[#allocation3 + $0x14] sm:$0xf] %vm2287, %v2202
      %2294 = vst.msk [vmem:[#allocation3 + $0x18] sm:$0xf] %vm2287, %v2204
      %2295 = vst.msk [vmem:[#allocation3 + $0x1c] sm:$0xf] %vm2287, %v2206
      %2296 = vst.msk [vmem:[#allocation3 + $0x20] sm:$0xf] %vm2287, %v2208
      %2297 = vst.msk [vmem:[#allocation3 + $0x24] sm:$0xf] %vm2287, %v2210
      %2298 = vst.msk [vmem:[#allocation3 + $0x28] sm:$0xf] %vm2287, %v2212
      %2299 = vst.msk [vmem:[#allocation3 + $0x2c] sm:$0xf] %vm2287, %v2214
      %2300 = vst.msk [vmem:[#allocation3 + $0x30] sm:$0xf] %vm2287, %v2216
      %2301 = vst.msk [vmem:[#allocation3 + $0x34] sm:$0xf] %vm2287, %v2218
      %2302 = vst.msk [vmem:[#allocation3 + $0x38] sm:$0xf] %vm2287, %v2220
      %2303 = vst.msk [vmem:[#allocation3 + $0x3c] sm:$0xf] %vm2287, %v2222
      %2304 = vst.msk [vmem:[#allocation3 + $0x40] sm:$0xf] %vm2287, %v2224
      %2305 = vst.msk [vmem:[#allocation3 + $0x44] sm:$0xf] %vm2287, %v2226
      %2306 = vst.msk [vmem:[#allocation3 + $0x48] sm:$0xf] %vm2287, %v2228
      %2307 = vst.msk [vmem:[#allocation3 + $0x4c] sm:$0xf] %vm2287, %v2230
      %2308 = vst.msk [vmem:[#allocation3 + $0x50] sm:$0xf] %vm2287, %v2232
      %2309 = vst.msk [vmem:[#allocation3 + $0x54] sm:$0xf] %vm2287, %v2234
      %2310 = vst.msk [vmem:[#allocation3 + $0x58] sm:$0xf] %vm2287, %v2236
      %2311 = vst.msk [vmem:[#allocation3 + $0x5c] sm:$0xf] %vm2287, %v2238
      %2312 = vst.msk [vmem:[#allocation3 + $0x60] sm:$0xf] %vm2287, %v2240
      %2313 = vst.msk [vmem:[#allocation3 + $0x64] sm:$0xf] %vm2287, %v2242
      %2314 = vst.msk [vmem:[#allocation3 + $0x68] sm:$0xf] %vm2287, %v2244
      %2315 = vst.msk [vmem:[#allocation3 + $0x6c] sm:$0xf] %vm2287, %v2246
      %2316 = vst.msk [vmem:[#allocation3 + $0x70] sm:$0xf] %vm2287, %v2248
      %2317 = vst.msk [vmem:[#allocation3 + $0x74] sm:$0xf] %vm2287, %v2250
      %2318 = vst.msk [vmem:[#allocation3 + $0x78] sm:$0xf] %vm2287, %v2252
      %2319 = vst.msk [vmem:[#allocation3 + $0x7c] sm:$0xf] %vm2287, %v2254
      %v2320 = vld [vmem:[%s756] sm:$0xf]
      %v2321 = vld [vmem:[%s756 + $0x4] sm:$0xf]
      %v2322 = vld [vmem:[%s756 + $0x8] sm:$0x1]
      %v2323 = vld [vmem:[%s756 + $0xc] sm:$0xf]
      %v2324 = vld [vmem:[%s756 + $0x10] sm:$0xf]
      %v2325 = vld [vmem:[%s756 + $0x14] sm:$0x1]
      %v2326 = vld [vmem:[%s756 + $0x18] sm:$0xf]
      %v2327 = vld [vmem:[%s756 + $0x1c] sm:$0xf]
      %v2328 = vld [vmem:[%s756 + $0x20] sm:$0x1]
      %v2329 = vld [vmem:[%s756 + $0x24] sm:$0xf]
      %v2330 = vld [vmem:[%s756 + $0x28] sm:$0xf]
      %v2331 = vld [vmem:[%s756 + $0x2c] sm:$0x1]
      %v2332 = vld [vmem:[%s756 + $0x30] sm:$0xf]
      %v2333 = vld [vmem:[%s756 + $0x34] sm:$0xf]
      %v2334 = vld [vmem:[%s756 + $0x38] sm:$0x1]
      %v2335 = vld [vmem:[%s756 + $0x3c] sm:$0xf]
      %v2336 = vld [vmem:[%s756 + $0x40] sm:$0xf]
      %v2337 = vld [vmem:[%s756 + $0x44] sm:$0x1]
      %v2338 = vld [vmem:[%s756 + $0x48] sm:$0xf]
      %v2339 = vld [vmem:[%s756 + $0x4c] sm:$0xf]
      %v2340 = vld [vmem:[%s756 + $0x50] sm:$0x1]
      %v2341 = vld [vmem:[%s756 + $0x54] sm:$0xf]
      %v2342 = vld [vmem:[%s756 + $0x58] sm:$0xf]
      %v2343 = vld [vmem:[%s756 + $0x5c] sm:$0x1]
      %v2344 = vld [vmem:[%s756 + $0x60] sm:$0xf]
      %v2345 = vld [vmem:[%s756 + $0x64] sm:$0xf]
      %v2346 = vld [vmem:[%s756 + $0x68] sm:$0x1]
      %v2347 = vld [vmem:[%s756 + $0x6c] sm:$0xf]
      %v2348 = vld [vmem:[%s756 + $0x70] sm:$0xf]
      %v2349 = vld [vmem:[%s756 + $0x74] sm:$0x1]
      %v2350 = vld [vmem:[%s756 + $0x78] sm:$0xf]
      %v2351 = vld [vmem:[%s756 + $0x7c] sm:$0xf]
      %v2352 = vld [vmem:[%s756 + $0x80] sm:$0x1]
      %v2353 = vld [vmem:[%s756 + $0x84] sm:$0xf]
      %v2354 = vld [vmem:[%s756 + $0x88] sm:$0xf]
      %v2355 = vld [vmem:[%s756 + $0x8c] sm:$0x1]
      %v2356 = vld [vmem:[%s756 + $0x90] sm:$0xf]
      %v2357 = vld [vmem:[%s756 + $0x94] sm:$0xf]
      %v2358 = vld [vmem:[%s756 + $0x98] sm:$0x1]
      %v2359 = vld [vmem:[%s756 + $0x9c] sm:$0xf]
      %v2360 = vld [vmem:[%s756 + $0xa0] sm:$0xf]
      %v2361 = vld [vmem:[%s756 + $0xa4] sm:$0x1]
      %v2362 = vld [vmem:[%s756 + $0xa8] sm:$0xf]
      %v2363 = vld [vmem:[%s756 + $0xac] sm:$0xf]
      %v2364 = vld [vmem:[%s756 + $0xb0] sm:$0x1]
      %v2365 = vld [vmem:[%s756 + $0xb4] sm:$0xf]
      %v2366 = vld [vmem:[%s756 + $0xb8] sm:$0xf]
      %v2367 = vld [vmem:[%s756 + $0xbc] sm:$0x1]
      %v2369 = vshrl.u32 %v2320, 16
      %v2371 = vrot.slane %v2369, 4
      %v2372 = vshll.u32 %v2320, 16
      %v2374 = vrot.slane %v2372, 5
      %v2375 = vor.u32 %v2371, %v2374
      %v2376 = vrot.slane %v2375, 4
      %v2378 = vshll.u32 %v2321, 16
      %v2380 = vrot.slane %v2378, 5
      %v2381 = vsel %vm921, %v2376, %v2380
      %v2382 = vshrl.u32 %v2321, 16
      %v2384 = vrot.slane %v2382, 4
      %v2385 = vor.u32 %v2384, %v2380
      %v2386 = vrot.slane %v2385, 4
      %v2388 = vshll.u32 %v2322, 16
      %v2390 = vrot.slane %v2388, 5
      %v2391 = vsel %vm921, %v2386, %v2390
      %v2393 = vshrl.u32 %v2323, 16
      %v2395 = vrot.slane %v2393, 4
      %v2396 = vshll.u32 %v2323, 16
      %v2398 = vrot.slane %v2396, 5
      %v2399 = vor.u32 %v2395, %v2398
      %v2400 = vrot.slane %v2399, 4
      %v2402 = vshll.u32 %v2324, 16
      %v2404 = vrot.slane %v2402, 5
      %v2405 = vsel %vm921, %v2400, %v2404
      %v2406 = vshrl.u32 %v2324, 16
      %v2408 = vrot.slane %v2406, 4
      %v2409 = vor.u32 %v2408, %v2404
      %v2410 = vrot.slane %v2409, 4
      %v2412 = vshll.u32 %v2325, 16
      %v2414 = vrot.slane %v2412, 5
      %v2415 = vsel %vm921, %v2410, %v2414
      %v2417 = vshrl.u32 %v2326, 16
      %v2419 = vrot.slane %v2417, 4
      %v2420 = vshll.u32 %v2326, 16
      %v2422 = vrot.slane %v2420, 5
      %v2423 = vor.u32 %v2419, %v2422
      %v2424 = vrot.slane %v2423, 4
      %v2426 = vshll.u32 %v2327, 16
      %v2428 = vrot.slane %v2426, 5
      %v2429 = vsel %vm921, %v2424, %v2428
      %v2430 = vshrl.u32 %v2327, 16
      %v2432 = vrot.slane %v2430, 4
      %v2433 = vor.u32 %v2432, %v2428
      %v2434 = vrot.slane %v2433, 4
      %v2436 = vshll.u32 %v2328, 16
      %v2438 = vrot.slane %v2436, 5
      %v2439 = vsel %vm921, %v2434, %v2438
      %v2441 = vshrl.u32 %v2329, 16
      %v2443 = vrot.slane %v2441, 4
      %v2444 = vshll.u32 %v2329, 16
      %v2446 = vrot.slane %v2444, 5
      %v2447 = vor.u32 %v2443, %v2446
      %v2448 = vrot.slane %v2447, 4
      %v2450 = vshll.u32 %v2330, 16
      %v2452 = vrot.slane %v2450, 5
      %v2453 = vsel %vm921, %v2448, %v2452
      %v2454 = vshrl.u32 %v2330, 16
      %v2456 = vrot.slane %v2454, 4
      %v2457 = vor.u32 %v2456, %v2452
      %v2458 = vrot.slane %v2457, 4
      %v2460 = vshll.u32 %v2331, 16
      %v2462 = vrot.slane %v2460, 5
      %v2463 = vsel %vm921, %v2458, %v2462
      %v2465 = vshrl.u32 %v2332, 16
      %v2467 = vrot.slane %v2465, 4
      %v2468 = vshll.u32 %v2332, 16
      %v2470 = vrot.slane %v2468, 5
      %v2471 = vor.u32 %v2467, %v2470
      %v2472 = vrot.slane %v2471, 4
      %v2474 = vshll.u32 %v2333, 16
      %v2476 = vrot.slane %v2474, 5
      %v2477 = vsel %vm921, %v2472, %v2476
      %v2478 = vshrl.u32 %v2333, 16
      %v2480 = vrot.slane %v2478, 4
      %v2481 = vor.u32 %v2480, %v2476
      %v2482 = vrot.slane %v2481, 4
      %v2484 = vshll.u32 %v2334, 16
      %v2486 = vrot.slane %v2484, 5
      %v2487 = vsel %vm921, %v2482, %v2486
      %v2489 = vshrl.u32 %v2335, 16
      %v2491 = vrot.slane %v2489, 4
      %v2492 = vshll.u32 %v2335, 16
      %v2494 = vrot.slane %v2492, 5
      %v2495 = vor.u32 %v2491, %v2494
      %v2496 = vrot.slane %v2495, 4
      %v2498 = vshll.u32 %v2336, 16
      %v2500 = vrot.slane %v2498, 5
      %v2501 = vsel %vm921, %v2496, %v2500
      %v2502 = vshrl.u32 %v2336, 16
      %v2504 = vrot.slane %v2502, 4
      %v2505 = vor.u32 %v2504, %v2500
      %v2506 = vrot.slane %v2505, 4
      %v2508 = vshll.u32 %v2337, 16
      %v2510 = vrot.slane %v2508, 5
      %v2511 = vsel %vm921, %v2506, %v2510
      %v2513 = vshrl.u32 %v2338, 16
      %v2515 = vrot.slane %v2513, 4
      %v2516 = vshll.u32 %v2338, 16
      %v2518 = vrot.slane %v2516, 5
      %v2519 = vor.u32 %v2515, %v2518
      %v2520 = vrot.slane %v2519, 4
      %v2522 = vshll.u32 %v2339, 16
      %v2524 = vrot.slane %v2522, 5
      %v2525 = vsel %vm921, %v2520, %v2524
      %v2526 = vshrl.u32 %v2339, 16
      %v2528 = vrot.slane %v2526, 4
      %v2529 = vor.u32 %v2528, %v2524
      %v2530 = vrot.slane %v2529, 4
      %v2532 = vshll.u32 %v2340, 16
      %v2534 = vrot.slane %v2532, 5
      %v2535 = vsel %vm921, %v2530, %v2534
      %v2537 = vshrl.u32 %v2341, 16
      %v2539 = vrot.slane %v2537, 4
      %v2540 = vshll.u32 %v2341, 16
      %v2542 = vrot.slane %v2540, 5
      %v2543 = vor.u32 %v2539, %v2542
      %v2544 = vrot.slane %v2543, 4
      %v2546 = vshll.u32 %v2342, 16
      %v2548 = vrot.slane %v2546, 5
      %v2549 = vsel %vm921, %v2544, %v2548
      %v2550 = vshrl.u32 %v2342, 16
      %v2552 = vrot.slane %v2550, 4
      %v2553 = vor.u32 %v2552, %v2548
      %v2554 = vrot.slane %v2553, 4
      %v2556 = vshll.u32 %v2343, 16
      %v2558 = vrot.slane %v2556, 5
      %v2559 = vsel %vm921, %v2554, %v2558
      %v2561 = vshrl.u32 %v2344, 16
      %v2563 = vrot.slane %v2561, 4
      %v2564 = vshll.u32 %v2344, 16
      %v2566 = vrot.slane %v2564, 5
      %v2567 = vor.u32 %v2563, %v2566
      %v2568 = vrot.slane %v2567, 4
      %v2570 = vshll.u32 %v2345, 16
      %v2572 = vrot.slane %v2570, 5
      %v2573 = vsel %vm921, %v2568, %v2572
      %v2574 = vshrl.u32 %v2345, 16
      %v2576 = vrot.slane %v2574, 4
      %v2577 = vor.u32 %v2576, %v2572
      %v2578 = vrot.slane %v2577, 4
      %v2580 = vshll.u32 %v2346, 16
      %v2582 = vrot.slane %v2580, 5
      %v2583 = vsel %vm921, %v2578, %v2582
      %v2585 = vshrl.u32 %v2347, 16
      %v2587 = vrot.slane %v2585, 4
      %v2588 = vshll.u32 %v2347, 16
      %v2590 = vrot.slane %v2588, 5
      %v2591 = vor.u32 %v2587, %v2590
      %v2592 = vrot.slane %v2591, 4
      %v2594 = vshll.u32 %v2348, 16
      %v2596 = vrot.slane %v2594, 5
      %v2597 = vsel %vm921, %v2592, %v2596
      %v2598 = vshrl.u32 %v2348, 16
      %v2600 = vrot.slane %v2598, 4
      %v2601 = vor.u32 %v2600, %v2596
      %v2602 = vrot.slane %v2601, 4
      %v2604 = vshll.u32 %v2349, 16
      %v2606 = vrot.slane %v2604, 5
      %v2607 = vsel %vm921, %v2602, %v2606
      %v2609 = vshrl.u32 %v2350, 16
      %v2611 = vrot.slane %v2609, 4
      %v2612 = vshll.u32 %v2350, 16
      %v2614 = vrot.slane %v2612, 5
      %v2615 = vor.u32 %v2611, %v2614
      %v2616 = vrot.slane %v2615, 4
      %v2618 = vshll.u32 %v2351, 16
      %v2620 = vrot.slane %v2618, 5
      %v2621 = vsel %vm921, %v2616, %v2620
      %v2622 = vshrl.u32 %v2351, 16
      %v2624 = vrot.slane %v2622, 4
      %v2625 = vor.u32 %v2624, %v2620
      %v2626 = vrot.slane %v2625, 4
      %v2628 = vshll.u32 %v2352, 16
      %v2630 = vrot.slane %v2628, 5
      %v2631 = vsel %vm921, %v2626, %v2630
      %v2633 = vshrl.u32 %v2353, 16
      %v2635 = vrot.slane %v2633, 4
      %v2636 = vshll.u32 %v2353, 16
      %v2638 = vrot.slane %v2636, 5
      %v2639 = vor.u32 %v2635, %v2638
      %v2640 = vrot.slane %v2639, 4
      %v2642 = vshll.u32 %v2354, 16
      %v2644 = vrot.slane %v2642, 5
      %v2645 = vsel %vm921, %v2640, %v2644
      %v2646 = vshrl.u32 %v2354, 16
      %v2648 = vrot.slane %v2646, 4
      %v2649 = vor.u32 %v2648, %v2644
      %v2650 = vrot.slane %v2649, 4
      %v2652 = vshll.u32 %v2355, 16
      %v2654 = vrot.slane %v2652, 5
      %v2655 = vsel %vm921, %v2650, %v2654
      %v2657 = vshrl.u32 %v2356, 16
      %v2659 = vrot.slane %v2657, 4
      %v2660 = vshll.u32 %v2356, 16
      %v2662 = vrot.slane %v2660, 5
      %v2663 = vor.u32 %v2659, %v2662
      %v2664 = vrot.slane %v2663, 4
      %v2666 = vshll.u32 %v2357, 16
      %v2668 = vrot.slane %v2666, 5
      %v2669 = vsel %vm921, %v2664, %v2668
      %v2670 = vshrl.u32 %v2357, 16
      %v2672 = vrot.slane %v2670, 4
      %v2673 = vor.u32 %v2672, %v2668
      %v2674 = vrot.slane %v2673, 4
      %v2676 = vshll.u32 %v2358, 16
      %v2678 = vrot.slane %v2676, 5
      %v2679 = vsel %vm921, %v2674, %v2678
      %v2681 = vshrl.u32 %v2359, 16
      %v2683 = vrot.slane %v2681, 4
      %v2684 = vshll.u32 %v2359, 16
      %v2686 = vrot.slane %v2684, 5
      %v2687 = vor.u32 %v2683, %v2686
      %v2688 = vrot.slane %v2687, 4
      %v2690 = vshll.u32 %v2360, 16
      %v2692 = vrot.slane %v2690, 5
      %v2693 = vsel %vm921, %v2688, %v2692
      %v2694 = vshrl.u32 %v2360, 16
      %v2696 = vrot.slane %v2694, 4
      %v2697 = vor.u32 %v2696, %v2692
      %v2698 = vrot.slane %v2697, 4
      %v2700 = vshll.u32 %v2361, 16
      %v2702 = vrot.slane %v2700, 5
      %v2703 = vsel %vm921, %v2698, %v2702
      %v2705 = vshrl.u32 %v2362, 16
      %v2707 = vrot.slane %v2705, 4
      %v2708 = vshll.u32 %v2362, 16
      %v2710 = vrot.slane %v2708, 5
      %v2711 = vor.u32 %v2707, %v2710
      %v2712 = vrot.slane %v2711, 4
      %v2714 = vshll.u32 %v2363, 16
      %v2716 = vrot.slane %v2714, 5
      %v2717 = vsel %vm921, %v2712, %v2716
      %v2718 = vshrl.u32 %v2363, 16
      %v2720 = vrot.slane %v2718, 4
      %v2721 = vor.u32 %v2720, %v2716
      %v2722 = vrot.slane %v2721, 4
      %v2724 = vshll.u32 %v2364, 16
      %v2726 = vrot.slane %v2724, 5
      %v2727 = vsel %vm921, %v2722, %v2726
      %v2729 = vshrl.u32 %v2365, 16
      %v2731 = vrot.slane %v2729, 4
      %v2732 = vshll.u32 %v2365, 16
      %v2734 = vrot.slane %v2732, 5
      %v2735 = vor.u32 %v2731, %v2734
      %v2736 = vrot.slane %v2735, 4
      %v2738 = vshll.u32 %v2366, 16
      %v2740 = vrot.slane %v2738, 5
      %v2741 = vsel %vm921, %v2736, %v2740
      %v2742 = vshrl.u32 %v2366, 16
      %v2744 = vrot.slane %v2742, 4
      %v2745 = vor.u32 %v2744, %v2740
      %v2746 = vrot.slane %v2745, 4
      %v2748 = vshll.u32 %v2367, 16
      %v2750 = vrot.slane %v2748, 5
      %v2751 = vsel %vm921, %v2746, %v2750
      %v2752 = vld [vmem:[%s756] sm:$0xe]
      %v2753 = vld [vmem:[%s756 + $0xc] sm:$0xe]
      %v2754 = vld [vmem:[%s756 + $0x18] sm:$0xe]
      %v2755 = vld [vmem:[%s756 + $0x24] sm:$0xe]
      %v2756 = vld [vmem:[%s756 + $0x30] sm:$0xe]
      %v2757 = vld [vmem:[%s756 + $0x3c] sm:$0xe]
      %v2758 = vld [vmem:[%s756 + $0x48] sm:$0xe]
      %v2759 = vld [vmem:[%s756 + $0x54] sm:$0xe]
      %v2760 = vld [vmem:[%s756 + $0x60] sm:$0xe]
      %v2761 = vld [vmem:[%s756 + $0x6c] sm:$0xe]
      %v2762 = vld [vmem:[%s756 + $0x78] sm:$0xe]
      %v2763 = vld [vmem:[%s756 + $0x84] sm:$0xe]
      %v2764 = vld [vmem:[%s756 + $0x90] sm:$0xe]
      %v2765 = vld [vmem:[%s756 + $0x9c] sm:$0xe]
      %v2766 = vld [vmem:[%s756 + $0xa8] sm:$0xe]
      %v2767 = vld [vmem:[%s756 + $0xb4] sm:$0xe]
      %v2816 = vrot.slane %v2752, 5
      %v2817 = vrot.slane %v2816, 4
      %v2818 = vrot.slane %v2321, 5
      %v2819 = vsel %vm1758, %v2817, %v2818
      %v2820 = vrot.slane %v2818, 4
      %v2821 = vrot.slane %v2322, 5
      %v2822 = vsel %vm1758, %v2820, %v2821
      %v2823 = vrot.slane %v2753, 5
      %v2824 = vrot.slane %v2823, 4
      %v2825 = vrot.slane %v2324, 5
      %v2826 = vsel %vm1758, %v2824, %v2825
      %v2827 = vrot.slane %v2825, 4
      %v2828 = vrot.slane %v2325, 5
      %v2829 = vsel %vm1758, %v2827, %v2828
      %v2830 = vrot.slane %v2754, 5
      %v2831 = vrot.slane %v2830, 4
      %v2832 = vrot.slane %v2327, 5
      %v2833 = vsel %vm1758, %v2831, %v2832
      %v2834 = vrot.slane %v2832, 4
      %v2835 = vrot.slane %v2328, 5
      %v2836 = vsel %vm1758, %v2834, %v2835
      %v2837 = vrot.slane %v2755, 5
      %v2838 = vrot.slane %v2837, 4
      %v2839 = vrot.slane %v2330, 5
      %v2840 = vsel %vm1758, %v2838, %v2839
      %v2841 = vrot.slane %v2839, 4
      %v2842 = vrot.slane %v2331, 5
      %v2843 = vsel %vm1758, %v2841, %v2842
      %v2844 = vrot.slane %v2756, 5
      %v2845 = vrot.slane %v2844, 4
      %v2846 = vrot.slane %v2333, 5
      %v2847 = vsel %vm1758, %v2845, %v2846
      %v2848 = vrot.slane %v2846, 4
      %v2849 = vrot.slane %v2334, 5
      %v2850 = vsel %vm1758, %v2848, %v2849
      %v2851 = vrot.slane %v2757, 5
      %v2852 = vrot.slane %v2851, 4
      %v2853 = vrot.slane %v2336, 5
      %v2854 = vsel %vm1758, %v2852, %v2853
      %v2855 = vrot.slane %v2853, 4
      %v2856 = vrot.slane %v2337, 5
      %v2857 = vsel %vm1758, %v2855, %v2856
      %v2858 = vrot.slane %v2758, 5
      %v2859 = vrot.slane %v2858, 4
      %v2860 = vrot.slane %v2339, 5
      %v2861 = vsel %vm1758, %v2859, %v2860
      %v2862 = vrot.slane %v2860, 4
      %v2863 = vrot.slane %v2340, 5
      %v2864 = vsel %vm1758, %v2862, %v2863
      %v2865 = vrot.slane %v2759, 5
      %v2866 = vrot.slane %v2865, 4
      %v2867 = vrot.slane %v2342, 5
      %v2868 = vsel %vm1758, %v2866, %v2867
      %v2869 = vrot.slane %v2867, 4
      %v2870 = vrot.slane %v2343, 5
      %v2871 = vsel %vm1758, %v2869, %v2870
      %v2872 = vrot.slane %v2760, 5
      %v2873 = vrot.slane %v2872, 4
      %v2874 = vrot.slane %v2345, 5
      %v2875 = vsel %vm1758, %v2873, %v2874
      %v2876 = vrot.slane %v2874, 4
      %v2877 = vrot.slane %v2346, 5
      %v2878 = vsel %vm1758, %v2876, %v2877
      %v2879 = vrot.slane %v2761, 5
      %v2880 = vrot.slane %v2879, 4
      %v2881 = vrot.slane %v2348, 5
      %v2882 = vsel %vm1758, %v2880, %v2881
      %v2883 = vrot.slane %v2881, 4
      %v2884 = vrot.slane %v2349, 5
      %v2885 = vsel %vm1758, %v2883, %v2884
      %v2886 = vrot.slane %v2762, 5
      %v2887 = vrot.slane %v2886, 4
      %v2888 = vrot.slane %v2351, 5
      %v2889 = vsel %vm1758, %v2887, %v2888
      %v2890 = vrot.slane %v2888, 4
      %v2891 = vrot.slane %v2352, 5
      %v2892 = vsel %vm1758, %v2890, %v2891
      %v2893 = vrot.slane %v2763, 5
      %v2894 = vrot.slane %v2893, 4
      %v2895 = vrot.slane %v2354, 5
      %v2896 = vsel %vm1758, %v2894, %v2895
      %v2897 = vrot.slane %v2895, 4
      %v2898 = vrot.slane %v2355, 5
      %v2899 = vsel %vm1758, %v2897, %v2898
      %v2900 = vrot.slane %v2764, 5
      %v2901 = vrot.slane %v2900, 4
      %v2902 = vrot.slane %v2357, 5
      %v2903 = vsel %vm1758, %v2901, %v2902
      %v2904 = vrot.slane %v2902, 4
      %v2905 = vrot.slane %v2358, 5
      %v2906 = vsel %vm1758, %v2904, %v2905
      %v2907 = vrot.slane %v2765, 5
      %v2908 = vrot.slane %v2907, 4
      %v2909 = vrot.slane %v2360, 5
      %v2910 = vsel %vm1758, %v2908, %v2909
      %v2911 = vrot.slane %v2909, 4
      %v2912 = vrot.slane %v2361, 5
      %v2913 = vsel %vm1758, %v2911, %v2912
      %v2914 = vrot.slane %v2766, 5
      %v2915 = vrot.slane %v2914, 4
      %v2916 = vrot.slane %v2363, 5
      %v2917 = vsel %vm1758, %v2915, %v2916
      %v2918 = vrot.slane %v2916, 4
      %v2919 = vrot.slane %v2364, 5
      %v2920 = vsel %vm1758, %v2918, %v2919
      %v2921 = vrot.slane %v2767, 5
      %v2922 = vrot.slane %v2921, 4
      %v2923 = vrot.slane %v2366, 5
      %v2924 = vsel %vm1758, %v2922, %v2923
      %v2925 = vrot.slane %v2923, 4
      %v2926 = vrot.slane %v2367, 5
      %v2927 = vsel %vm1758, %v2925, %v2926
      %v2928 = vunpack.c.l.b16 %v2381
      %v2929 = vunpack.c.l.b16 %v2391
      %v2930 = vunpack.c.l.b16 %v2405
      %v2931 = vunpack.c.l.b16 %v2415
      %v2932 = vunpack.c.l.b16 %v2429
      %v2933 = vunpack.c.l.b16 %v2439
      %v2934 = vunpack.c.l.b16 %v2453
      %v2935 = vunpack.c.l.b16 %v2463
      %v2936 = vunpack.c.l.b16 %v2477
      %v2937 = vunpack.c.l.b16 %v2487
      %v2938 = vunpack.c.l.b16 %v2501
      %v2939 = vunpack.c.l.b16 %v2511
      %v2940 = vunpack.c.l.b16 %v2525
      %v2941 = vunpack.c.l.b16 %v2535
      %v2942 = vunpack.c.l.b16 %v2549
      %v2943 = vunpack.c.l.b16 %v2559
      %v2944 = vunpack.c.l.b16 %v2573
      %v2945 = vunpack.c.l.b16 %v2583
      %v2946 = vunpack.c.l.b16 %v2597
      %v2947 = vunpack.c.l.b16 %v2607
      %v2948 = vunpack.c.l.b16 %v2621
      %v2949 = vunpack.c.l.b16 %v2631
      %v2950 = vunpack.c.l.b16 %v2645
      %v2951 = vunpack.c.l.b16 %v2655
      %v2952 = vunpack.c.l.b16 %v2669
      %v2953 = vunpack.c.l.b16 %v2679
      %v2954 = vunpack.c.l.b16 %v2693
      %v2955 = vunpack.c.l.b16 %v2703
      %v2956 = vunpack.c.l.b16 %v2717
      %v2957 = vunpack.c.l.b16 %v2727
      %v2958 = vunpack.c.l.b16 %v2741
      %v2959 = vunpack.c.l.b16 %v2751
      %v2960 = vpack.c.b16 %v2929, %v2928
      %v2961 = vpack.c.b16 %v2931, %v2930
      %v2962 = vpack.c.b16 %v2933, %v2932
      %v2963 = vpack.c.b16 %v2935, %v2934
      %v2964 = vpack.c.b16 %v2937, %v2936
      %v2965 = vpack.c.b16 %v2939, %v2938
      %v2966 = vpack.c.b16 %v2941, %v2940
      %v2967 = vpack.c.b16 %v2943, %v2942
      %v2968 = vpack.c.b16 %v2945, %v2944
      %v2969 = vpack.c.b16 %v2947, %v2946
      %v2970 = vpack.c.b16 %v2949, %v2948
      %v2971 = vpack.c.b16 %v2951, %v2950
      %v2972 = vpack.c.b16 %v2953, %v2952
      %v2973 = vpack.c.b16 %v2955, %v2954
      %v2974 = vpack.c.b16 %v2957, %v2956
      %v2975 = vpack.c.b16 %v2959, %v2958
      %v2976 = vunpack.c.l.b16 %v2819
      %v2977 = vunpack.c.l.b16 %v2822
      %v2978 = vunpack.c.l.b16 %v2826
      %v2979 = vunpack.c.l.b16 %v2829
      %v2980 = vunpack.c.l.b16 %v2833
      %v2981 = vunpack.c.l.b16 %v2836
      %v2982 = vunpack.c.l.b16 %v2840
      %v2983 = vunpack.c.l.b16 %v2843
      %v2984 = vunpack.c.l.b16 %v2847
      %v2985 = vunpack.c.l.b16 %v2850
      %v2986 = vunpack.c.l.b16 %v2854
      %v2987 = vunpack.c.l.b16 %v2857
      %v2988 = vunpack.c.l.b16 %v2861
      %v2989 = vunpack.c.l.b16 %v2864
      %v2990 = vunpack.c.l.b16 %v2868
      %v2991 = vunpack.c.l.b16 %v2871
      %v2992 = vunpack.c.l.b16 %v2875
      %v2993 = vunpack.c.l.b16 %v2878
      %v2994 = vunpack.c.l.b16 %v2882
      %v2995 = vunpack.c.l.b16 %v2885
      %v2996 = vunpack.c.l.b16 %v2889
      %v2997 = vunpack.c.l.b16 %v2892
      %v2998 = vunpack.c.l.b16 %v2896
      %v2999 = vunpack.c.l.b16 %v2899
      %v3000 = vunpack.c.l.b16 %v2903
      %v3001 = vunpack.c.l.b16 %v2906
      %v3002 = vunpack.c.l.b16 %v2910
      %v3003 = vunpack.c.l.b16 %v2913
      %v3004 = vunpack.c.l.b16 %v2917
      %v3005 = vunpack.c.l.b16 %v2920
      %v3006 = vunpack.c.l.b16 %v2924
      %v3007 = vunpack.c.l.b16 %v2927
      %v3008 = vpack.c.b16 %v2977, %v2976
      %v3009 = vpack.c.b16 %v2979, %v2978
      %v3010 = vpack.c.b16 %v2981, %v2980
      %v3011 = vpack.c.b16 %v2983, %v2982
      %v3012 = vpack.c.b16 %v2985, %v2984
      %v3013 = vpack.c.b16 %v2987, %v2986
      %v3014 = vpack.c.b16 %v2989, %v2988
      %v3015 = vpack.c.b16 %v2991, %v2990
      %v3016 = vpack.c.b16 %v2993, %v2992
      %v3017 = vpack.c.b16 %v2995, %v2994
      %v3018 = vpack.c.b16 %v2997, %v2996
      %v3019 = vpack.c.b16 %v2999, %v2998
      %v3020 = vpack.c.b16 %v3001, %v3000
      %v3021 = vpack.c.b16 %v3003, %v3002
      %v3022 = vpack.c.b16 %v3005, %v3004
      %v3023 = vpack.c.b16 %v3007, %v3006
      %3024 = vrot.lane.b32.xlu0 %v3008, 8
      %v3025 = vpop.permute.xlu0 %3024
      %3026 = vrot.lane.b32.xlu0 %v3009, 8
      %v3027 = vpop.permute.xlu0 %3026
      %3028 = vrot.lane.b32.xlu0 %v3010, 8
      %v3029 = vpop.permute.xlu0 %3028
      %3030 = vrot.lane.b32.xlu0 %v3011, 8
      %v3031 = vpop.permute.xlu0 %3030
      %3032 = vrot.lane.b32.xlu0 %v3012, 8
      %v3033 = vpop.permute.xlu0 %3032
      %3034 = vrot.lane.b32.xlu0 %v3013, 8
      %v3035 = vpop.permute.xlu0 %3034
      %3036 = vrot.lane.b32.xlu0 %v3014, 8
      %v3037 = vpop.permute.xlu0 %3036
      %3038 = vrot.lane.b32.xlu0 %v3015, 8
      %v3039 = vpop.permute.xlu0 %3038
      %3040 = vrot.lane.b32.xlu0 %v3016, 8
      %v3041 = vpop.permute.xlu0 %3040
      %3042 = vrot.lane.b32.xlu0 %v3017, 8
      %v3043 = vpop.permute.xlu0 %3042
      %3044 = vrot.lane.b32.xlu0 %v3018, 8
      %v3045 = vpop.permute.xlu0 %3044
      %3046 = vrot.lane.b32.xlu0 %v3019, 8
      %v3047 = vpop.permute.xlu0 %3046
      %3048 = vrot.lane.b32.xlu0 %v3020, 8
      %v3049 = vpop.permute.xlu0 %3048
      %3050 = vrot.lane.b32.xlu0 %v3021, 8
      %v3051 = vpop.permute.xlu0 %3050
      %3052 = vrot.lane.b32.xlu0 %v3022, 8
      %v3053 = vpop.permute.xlu0 %3052
      %3054 = vrot.lane.b32.xlu0 %v3023, 8
      %v3055 = vpop.permute.xlu0 %3054
      %v3058 = vsel %vm1466, %v2960, %v3025
      %v3061 = vsel %vm1466, %v2961, %v3027
      %v3064 = vsel %vm1466, %v2962, %v3029
      %v3067 = vsel %vm1466, %v2963, %v3031
      %v3070 = vsel %vm1466, %v2964, %v3033
      %v3073 = vsel %vm1466, %v2965, %v3035
      %v3076 = vsel %vm1466, %v2966, %v3037
      %v3079 = vsel %vm1466, %v2967, %v3039
      %v3082 = vsel %vm1466, %v2968, %v3041
      %v3085 = vsel %vm1466, %v2969, %v3043
      %v3088 = vsel %vm1466, %v2970, %v3045
      %v3091 = vsel %vm1466, %v2971, %v3047
      %v3094 = vsel %vm1466, %v2972, %v3049
      %v3097 = vsel %vm1466, %v2973, %v3051
      %v3100 = vsel %vm1466, %v2974, %v3053
      %v3103 = vsel %vm1466, %v2975, %v3055
      %v3120 = vunpack.c.l.b16 %v3058
      %v3121 = vunpack.c.h.b16 %v3058
      %v3122 = vunpack.c.l.b16 %v3061
      %v3123 = vunpack.c.h.b16 %v3061
      %v3124 = vunpack.c.l.b16 %v3064
      %v3125 = vunpack.c.h.b16 %v3064
      %v3126 = vunpack.c.l.b16 %v3067
      %v3127 = vunpack.c.h.b16 %v3067
      %v3128 = vunpack.c.l.b16 %v3070
      %v3129 = vunpack.c.h.b16 %v3070
      %v3130 = vunpack.c.l.b16 %v3073
      %v3131 = vunpack.c.h.b16 %v3073
      %v3132 = vunpack.c.l.b16 %v3076
      %v3133 = vunpack.c.h.b16 %v3076
      %v3134 = vunpack.c.l.b16 %v3079
      %v3135 = vunpack.c.h.b16 %v3079
      %v3136 = vunpack.c.l.b16 %v3082
      %v3137 = vunpack.c.h.b16 %v3082
      %v3138 = vunpack.c.l.b16 %v3085
      %v3139 = vunpack.c.h.b16 %v3085
      %v3140 = vunpack.c.l.b16 %v3088
      %v3141 = vunpack.c.h.b16 %v3088
      %v3142 = vunpack.c.l.b16 %v3091
      %v3143 = vunpack.c.h.b16 %v3091
      %v3144 = vunpack.c.l.b16 %v3094
      %v3145 = vunpack.c.h.b16 %v3094
      %v3146 = vunpack.c.l.b16 %v3097
      %v3147 = vunpack.c.h.b16 %v3097
      %v3148 = vunpack.c.l.b16 %v3100
      %v3149 = vunpack.c.h.b16 %v3100
      %v3150 = vunpack.c.l.b16 %v3103
      %v3151 = vunpack.c.h.b16 %v3103
      %v3152 = vpack.c.b16 %v3120, %v3120
      %v3153 = vpack.c.b16 %v3121, %v3121
      %v3154 = vpack.c.b16 %v3122, %v3122
      %v3155 = vpack.c.b16 %v3123, %v3123
      %v3156 = vpack.c.b16 %v3124, %v3124
      %v3157 = vpack.c.b16 %v3125, %v3125
      %v3158 = vpack.c.b16 %v3126, %v3126
      %v3159 = vpack.c.b16 %v3127, %v3127
      %v3160 = vpack.c.b16 %v3128, %v3128
      %v3161 = vpack.c.b16 %v3129, %v3129
      %v3162 = vpack.c.b16 %v3130, %v3130
      %v3163 = vpack.c.b16 %v3131, %v3131
      %v3164 = vpack.c.b16 %v3132, %v3132
      %v3165 = vpack.c.b16 %v3133, %v3133
      %v3166 = vpack.c.b16 %v3134, %v3134
      %v3167 = vpack.c.b16 %v3135, %v3135
      %v3168 = vpack.c.b16 %v3136, %v3136
      %v3169 = vpack.c.b16 %v3137, %v3137
      %v3170 = vpack.c.b16 %v3138, %v3138
      %v3171 = vpack.c.b16 %v3139, %v3139
      %v3172 = vpack.c.b16 %v3140, %v3140
      %v3173 = vpack.c.b16 %v3141, %v3141
      %v3174 = vpack.c.b16 %v3142, %v3142
      %v3175 = vpack.c.b16 %v3143, %v3143
      %v3176 = vpack.c.b16 %v3144, %v3144
      %v3177 = vpack.c.b16 %v3145, %v3145
      %v3178 = vpack.c.b16 %v3146, %v3146
      %v3179 = vpack.c.b16 %v3147, %v3147
      %v3180 = vpack.c.b16 %v3148, %v3148
      %v3181 = vpack.c.b16 %v3149, %v3149
      %v3182 = vpack.c.b16 %v3150, %v3150
      %v3183 = vpack.c.b16 %v3151, %v3151
      %3184 = vrot.lane.b32.xlu0 %v3152, 32
      %v3185 = vpop.permute.xlu0 %3184
      %3186 = vrot.lane.b32.xlu0 %v3153, 32
      %v3187 = vpop.permute.xlu0 %3186
      %3188 = vrot.lane.b32.xlu0 %v3154, 32
      %v3189 = vpop.permute.xlu0 %3188
      %3190 = vrot.lane.b32.xlu0 %v3155, 32
      %v3191 = vpop.permute.xlu0 %3190
      %3192 = vrot.lane.b32.xlu0 %v3156, 32
      %v3193 = vpop.permute.xlu0 %3192
      %3194 = vrot.lane.b32.xlu0 %v3157, 32
      %v3195 = vpop.permute.xlu0 %3194
      %3196 = vrot.lane.b32.xlu0 %v3158, 32
      %v3197 = vpop.permute.xlu0 %3196
      %3198 = vrot.lane.b32.xlu0 %v3159, 32
      %v3199 = vpop.permute.xlu0 %3198
      %3200 = vrot.lane.b32.xlu0 %v3160, 32
      %v3201 = vpop.permute.xlu0 %3200
      %3202 = vrot.lane.b32.xlu0 %v3161, 32
      %v3203 = vpop.permute.xlu0 %3202
      %3204 = vrot.lane.b32.xlu0 %v3162, 32
      %v3205 = vpop.permute.xlu0 %3204
      %3206 = vrot.lane.b32.xlu0 %v3163, 32
      %v3207 = vpop.permute.xlu0 %3206
      %3208 = vrot.lane.b32.xlu0 %v3164, 32
      %v3209 = vpop.permute.xlu0 %3208
      %3210 = vrot.lane.b32.xlu0 %v3165, 32
      %v3211 = vpop.permute.xlu0 %3210
      %3212 = vrot.lane.b32.xlu0 %v3166, 32
      %v3213 = vpop.permute.xlu0 %3212
      %3214 = vrot.lane.b32.xlu0 %v3167, 32
      %v3215 = vpop.permute.xlu0 %3214
      %3216 = vrot.lane.b32.xlu0 %v3168, 32
      %v3217 = vpop.permute.xlu0 %3216
      %3218 = vrot.lane.b32.xlu0 %v3169, 32
      %v3219 = vpop.permute.xlu0 %3218
      %3220 = vrot.lane.b32.xlu0 %v3170, 32
      %v3221 = vpop.permute.xlu0 %3220
      %3222 = vrot.lane.b32.xlu0 %v3171, 32
      %v3223 = vpop.permute.xlu0 %3222
      %3224 = vrot.lane.b32.xlu0 %v3172, 32
      %v3225 = vpop.permute.xlu0 %3224
      %3226 = vrot.lane.b32.xlu0 %v3173, 32
      %v3227 = vpop.permute.xlu0 %3226
      %3228 = vrot.lane.b32.xlu0 %v3174, 32
      %v3229 = vpop.permute.xlu0 %3228
      %3230 = vrot.lane.b32.xlu0 %v3175, 32
      %v3231 = vpop.permute.xlu0 %3230
      %3232 = vrot.lane.b32.xlu0 %v3176, 32
      %v3233 = vpop.permute.xlu0 %3232
      %3234 = vrot.lane.b32.xlu0 %v3177, 32
      %v3235 = vpop.permute.xlu0 %3234
      %3236 = vrot.lane.b32.xlu0 %v3178, 32
      %v3237 = vpop.permute.xlu0 %3236
      %3238 = vrot.lane.b32.xlu0 %v3179, 32
      %v3239 = vpop.permute.xlu0 %3238
      %3240 = vrot.lane.b32.xlu0 %v3180, 32
      %v3241 = vpop.permute.xlu0 %3240
      %3242 = vrot.lane.b32.xlu0 %v3181, 32
      %v3243 = vpop.permute.xlu0 %3242
      %3244 = vrot.lane.b32.xlu0 %v3182, 32
      %v3245 = vpop.permute.xlu0 %3244
      %3246 = vrot.lane.b32.xlu0 %v3183, 32
      %v3247 = vpop.permute.xlu0 %3246
      %vm3280 = vcmask 388352
      %3281 = vst.msk [vmem:[#allocation3] sm:$0xf] %vm3280, %v3185
      %3282 = vst.msk [vmem:[#allocation3 + $0x4] sm:$0xf] %vm3280, %v3187
      %3283 = vst.msk [vmem:[#allocation3 + $0x8] sm:$0xf] %vm3280, %v3189
      %3284 = vst.msk [vmem:[#allocation3 + $0xc] sm:$0xf] %vm3280, %v3191
      %3285 = vst.msk [vmem:[#allocation3 + $0x10] sm:$0xf] %vm3280, %v3193
      %3286 = vst.msk [vmem:[#allocation3 + $0x14] sm:$0xf] %vm3280, %v3195
      %3287 = vst.msk [vmem:[#allocation3 + $0x18] sm:$0xf] %vm3280, %v3197
      %3288 = vst.msk [vmem:[#allocation3 + $0x1c] sm:$0xf] %vm3280, %v3199
      %3289 = vst.msk [vmem:[#allocation3 + $0x20] sm:$0xf] %vm3280, %v3201
      %3290 = vst.msk [vmem:[#allocation3 + $0x24] sm:$0xf] %vm3280, %v3203
      %3291 = vst.msk [vmem:[#allocation3 + $0x28] sm:$0xf] %vm3280, %v3205
      %3292 = vst.msk [vmem:[#allocation3 + $0x2c] sm:$0xf] %vm3280, %v3207
      %3293 = vst.msk [vmem:[#allocation3 + $0x30] sm:$0xf] %vm3280, %v3209
      %3294 = vst.msk [vmem:[#allocation3 + $0x34] sm:$0xf] %vm3280, %v3211
      %3295 = vst.msk [vmem:[#allocation3 + $0x38] sm:$0xf] %vm3280, %v3213
      %3296 = vst.msk [vmem:[#allocation3 + $0x3c] sm:$0xf] %vm3280, %v3215
      %3297 = vst.msk [vmem:[#allocation3 + $0x40] sm:$0xf] %vm3280, %v3217
      %3298 = vst.msk [vmem:[#allocation3 + $0x44] sm:$0xf] %vm3280, %v3219
      %3299 = vst.msk [vmem:[#allocation3 + $0x48] sm:$0xf] %vm3280, %v3221
      %3300 = vst.msk [vmem:[#allocation3 + $0x4c] sm:$0xf] %vm3280, %v3223
      %3301 = vst.msk [vmem:[#allocation3 + $0x50] sm:$0xf] %vm3280, %v3225
      %3302 = vst.msk [vmem:[#allocation3 + $0x54] sm:$0xf] %vm3280, %v3227
      %3303 = vst.msk [vmem:[#allocation3 + $0x58] sm:$0xf] %vm3280, %v3229
      %3304 = vst.msk [vmem:[#allocation3 + $0x5c] sm:$0xf] %vm3280, %v3231
      %3305 = vst.msk [vmem:[#allocation3 + $0x60] sm:$0xf] %vm3280, %v3233
      %3306 = vst.msk [vmem:[#allocation3 + $0x64] sm:$0xf] %vm3280, %v3235
      %3307 = vst.msk [vmem:[#allocation3 + $0x68] sm:$0xf] %vm3280, %v3237
      %3308 = vst.msk [vmem:[#allocation3 + $0x6c] sm:$0xf] %vm3280, %v3239
      %3309 = vst.msk [vmem:[#allocation3 + $0x70] sm:$0xf] %vm3280, %v3241
      %3310 = vst.msk [vmem:[#allocation3 + $0x74] sm:$0xf] %vm3280, %v3243
      %3311 = vst.msk [vmem:[#allocation3 + $0x78] sm:$0xf] %vm3280, %v3245
      %3312 = vst.msk [vmem:[#allocation3 + $0x7c] sm:$0xf] %vm3280, %v3247
      %s3313 = scalar_lea.vmem [#allocation2], 24
      %v3314 = vld [vmem:[%s3313] sm:$0xf]
      %v3315 = vld [vmem:[%s3313 + $0x4] sm:$0xf]
      %v3316 = vld [vmem:[%s3313 + $0xc] sm:$0xf]
      %v3317 = vld [vmem:[%s3313 + $0x10] sm:$0xf]
      %v3318 = vld [vmem:[%s3313 + $0x18] sm:$0xf]
      %v3319 = vld [vmem:[%s3313 + $0x1c] sm:$0xf]
      %v3320 = vld [vmem:[%s3313 + $0x24] sm:$0xf]
      %v3321 = vld [vmem:[%s3313 + $0x28] sm:$0xf]
      %v3322 = vld [vmem:[%s3313 + $0x30] sm:$0xf]
      %v3323 = vld [vmem:[%s3313 + $0x34] sm:$0xf]
      %v3324 = vld [vmem:[%s3313 + $0x3c] sm:$0xf]
      %v3325 = vld [vmem:[%s3313 + $0x40] sm:$0xf]
      %v3326 = vld [vmem:[%s3313 + $0x48] sm:$0xf]
      %v3327 = vld [vmem:[%s3313 + $0x4c] sm:$0xf]
      %v3328 = vld [vmem:[%s3313 + $0x54] sm:$0xf]
      %v3329 = vld [vmem:[%s3313 + $0x58] sm:$0xf]
      %v3330 = vld [vmem:[%s3313 + $0x60] sm:$0xf]
      %v3331 = vld [vmem:[%s3313 + $0x64] sm:$0xf]
      %v3332 = vld [vmem:[%s3313 + $0x6c] sm:$0xf]
      %v3333 = vld [vmem:[%s3313 + $0x70] sm:$0xf]
      %v3334 = vld [vmem:[%s3313 + $0x78] sm:$0xf]
      %v3335 = vld [vmem:[%s3313 + $0x7c] sm:$0xf]
      %v3336 = vld [vmem:[%s3313 + $0x84] sm:$0xf]
      %v3337 = vld [vmem:[%s3313 + $0x88] sm:$0xf]
      %v3338 = vld [vmem:[%s3313 + $0x90] sm:$0xf]
      %v3339 = vld [vmem:[%s3313 + $0x94] sm:$0xf]
      %v3340 = vld [vmem:[%s3313 + $0x9c] sm:$0xf]
      %v3341 = vld [vmem:[%s3313 + $0xa0] sm:$0xf]
      %v3342 = vld [vmem:[%s3313 + $0xa8] sm:$0xf]
      %v3343 = vld [vmem:[%s3313 + $0xac] sm:$0xf]
      %v3344 = vld [vmem:[%s3313 + $0xb4] sm:$0xf]
      %v3345 = vld [vmem:[%s3313 + $0xb8] sm:$0xf]
      %v3346 = vld [vmem:[%s3313 + $0x8] sm:$0x1]
      %v3347 = vld [vmem:[%s3313 + $0x14] sm:$0x1]
      %v3348 = vld [vmem:[%s3313 + $0x20] sm:$0x1]
      %v3349 = vld [vmem:[%s3313 + $0x2c] sm:$0x1]
      %v3350 = vld [vmem:[%s3313 + $0x38] sm:$0x1]
      %v3351 = vld [vmem:[%s3313 + $0x44] sm:$0x1]
      %v3352 = vld [vmem:[%s3313 + $0x50] sm:$0x1]
      %v3353 = vld [vmem:[%s3313 + $0x5c] sm:$0x1]
      %v3354 = vld [vmem:[%s3313 + $0x68] sm:$0x1]
      %v3355 = vld [vmem:[%s3313 + $0x74] sm:$0x1]
      %v3356 = vld [vmem:[%s3313 + $0x80] sm:$0x1]
      %v3357 = vld [vmem:[%s3313 + $0x8c] sm:$0x1]
      %v3358 = vld [vmem:[%s3313 + $0x98] sm:$0x1]
      %v3359 = vld [vmem:[%s3313 + $0xa4] sm:$0x1]
      %v3360 = vld [vmem:[%s3313 + $0xb0] sm:$0x1]
      %v3361 = vld [vmem:[%s3313 + $0xbc] sm:$0x1]
      %v3363 = vshrl.u32 %v3314, 16
      %v3365 = vrot.slane %v3363, 4
      %v3366 = vshll.u32 %v3314, 16
      %v3368 = vrot.slane %v3366, 5
      %v3369 = vor.u32 %v3365, %v3368
      %v3370 = vrot.slane %v3369, 4
      %v3372 = vshll.u32 %v3315, 16
      %v3374 = vrot.slane %v3372, 5
      %v3375 = vsel %vm921, %v3370, %v3374
      %v3376 = vshrl.u32 %v3315, 16
      %v3378 = vrot.slane %v3376, 4
      %v3379 = vor.u32 %v3378, %v3374
      %v3380 = vrot.slane %v3379, 4
      %v3382 = vshll.u32 %v3346, 16
      %v3384 = vrot.slane %v3382, 5
      %v3385 = vsel %vm921, %v3380, %v3384
      %v3387 = vshrl.u32 %v3316, 16
      %v3389 = vrot.slane %v3387, 4
      %v3390 = vshll.u32 %v3316, 16
      %v3392 = vrot.slane %v3390, 5
      %v3393 = vor.u32 %v3389, %v3392
      %v3394 = vrot.slane %v3393, 4
      %v3396 = vshll.u32 %v3317, 16
      %v3398 = vrot.slane %v3396, 5
      %v3399 = vsel %vm921, %v3394, %v3398
      %v3400 = vshrl.u32 %v3317, 16
      %v3402 = vrot.slane %v3400, 4
      %v3403 = vor.u32 %v3402, %v3398
      %v3404 = vrot.slane %v3403, 4
      %v3406 = vshll.u32 %v3347, 16
      %v3408 = vrot.slane %v3406, 5
      %v3409 = vsel %vm921, %v3404, %v3408
      %v3411 = vshrl.u32 %v3318, 16
      %v3413 = vrot.slane %v3411, 4
      %v3414 = vshll.u32 %v3318, 16
      %v3416 = vrot.slane %v3414, 5
      %v3417 = vor.u32 %v3413, %v3416
      %v3418 = vrot.slane %v3417, 4
      %v3420 = vshll.u32 %v3319, 16
      %v3422 = vrot.slane %v3420, 5
      %v3423 = vsel %vm921, %v3418, %v3422
      %v3424 = vshrl.u32 %v3319, 16
      %v3426 = vrot.slane %v3424, 4
      %v3427 = vor.u32 %v3426, %v3422
      %v3428 = vrot.slane %v3427, 4
      %v3430 = vshll.u32 %v3348, 16
      %v3432 = vrot.slane %v3430, 5
      %v3433 = vsel %vm921, %v3428, %v3432
      %v3435 = vshrl.u32 %v3320, 16
      %v3437 = vrot.slane %v3435, 4
      %v3438 = vshll.u32 %v3320, 16
      %v3440 = vrot.slane %v3438, 5
      %v3441 = vor.u32 %v3437, %v3440
      %v3442 = vrot.slane %v3441, 4
      %v3444 = vshll.u32 %v3321, 16
      %v3446 = vrot.slane %v3444, 5
      %v3447 = vsel %vm921, %v3442, %v3446
      %v3448 = vshrl.u32 %v3321, 16
      %v3450 = vrot.slane %v3448, 4
      %v3451 = vor.u32 %v3450, %v3446
      %v3452 = vrot.slane %v3451, 4
      %v3454 = vshll.u32 %v3349, 16
      %v3456 = vrot.slane %v3454, 5
      %v3457 = vsel %vm921, %v3452, %v3456
      %v3459 = vshrl.u32 %v3322, 16
      %v3461 = vrot.slane %v3459, 4
      %v3462 = vshll.u32 %v3322, 16
      %v3464 = vrot.slane %v3462, 5
      %v3465 = vor.u32 %v3461, %v3464
      %v3466 = vrot.slane %v3465, 4
      %v3468 = vshll.u32 %v3323, 16
      %v3470 = vrot.slane %v3468, 5
      %v3471 = vsel %vm921, %v3466, %v3470
      %v3472 = vshrl.u32 %v3323, 16
      %v3474 = vrot.slane %v3472, 4
      %v3475 = vor.u32 %v3474, %v3470
      %v3476 = vrot.slane %v3475, 4
      %v3478 = vshll.u32 %v3350, 16
      %v3480 = vrot.slane %v3478, 5
      %v3481 = vsel %vm921, %v3476, %v3480
      %v3483 = vshrl.u32 %v3324, 16
      %v3485 = vrot.slane %v3483, 4
      %v3486 = vshll.u32 %v3324, 16
      %v3488 = vrot.slane %v3486, 5
      %v3489 = vor.u32 %v3485, %v3488
      %v3490 = vrot.slane %v3489, 4
      %v3492 = vshll.u32 %v3325, 16
      %v3494 = vrot.slane %v3492, 5
      %v3495 = vsel %vm921, %v3490, %v3494
      %v3496 = vshrl.u32 %v3325, 16
      %v3498 = vrot.slane %v3496, 4
      %v3499 = vor.u32 %v3498, %v3494
      %v3500 = vrot.slane %v3499, 4
      %v3502 = vshll.u32 %v3351, 16
      %v3504 = vrot.slane %v3502, 5
      %v3505 = vsel %vm921, %v3500, %v3504
      %v3507 = vshrl.u32 %v3326, 16
      %v3509 = vrot.slane %v3507, 4
      %v3510 = vshll.u32 %v3326, 16
      %v3512 = vrot.slane %v3510, 5
      %v3513 = vor.u32 %v3509, %v3512
      %v3514 = vrot.slane %v3513, 4
      %v3516 = vshll.u32 %v3327, 16
      %v3518 = vrot.slane %v3516, 5
      %v3519 = vsel %vm921, %v3514, %v3518
      %v3520 = vshrl.u32 %v3327, 16
      %v3522 = vrot.slane %v3520, 4
      %v3523 = vor.u32 %v3522, %v3518
      %v3524 = vrot.slane %v3523, 4
      %v3526 = vshll.u32 %v3352, 16
      %v3528 = vrot.slane %v3526, 5
      %v3529 = vsel %vm921, %v3524, %v3528
      %v3531 = vshrl.u32 %v3328, 16
      %v3533 = vrot.slane %v3531, 4
      %v3534 = vshll.u32 %v3328, 16
      %v3536 = vrot.slane %v3534, 5
      %v3537 = vor.u32 %v3533, %v3536
      %v3538 = vrot.slane %v3537, 4
      %v3540 = vshll.u32 %v3329, 16
      %v3542 = vrot.slane %v3540, 5
      %v3543 = vsel %vm921, %v3538, %v3542
      %v3544 = vshrl.u32 %v3329, 16
      %v3546 = vrot.slane %v3544, 4
      %v3547 = vor.u32 %v3546, %v3542
      %v3548 = vrot.slane %v3547, 4
      %v3550 = vshll.u32 %v3353, 16
      %v3552 = vrot.slane %v3550, 5
      %v3553 = vsel %vm921, %v3548, %v3552
      %v3555 = vshrl.u32 %v3330, 16
      %v3557 = vrot.slane %v3555, 4
      %v3558 = vshll.u32 %v3330, 16
      %v3560 = vrot.slane %v3558, 5
      %v3561 = vor.u32 %v3557, %v3560
      %v3562 = vrot.slane %v3561, 4
      %v3564 = vshll.u32 %v3331, 16
      %v3566 = vrot.slane %v3564, 5
      %v3567 = vsel %vm921, %v3562, %v3566
      %v3568 = vshrl.u32 %v3331, 16
      %v3570 = vrot.slane %v3568, 4
      %v3571 = vor.u32 %v3570, %v3566
      %v3572 = vrot.slane %v3571, 4
      %v3574 = vshll.u32 %v3354, 16
      %v3576 = vrot.slane %v3574, 5
      %v3577 = vsel %vm921, %v3572, %v3576
      %v3579 = vshrl.u32 %v3332, 16
      %v3581 = vrot.slane %v3579, 4
      %v3582 = vshll.u32 %v3332, 16
      %v3584 = vrot.slane %v3582, 5
      %v3585 = vor.u32 %v3581, %v3584
      %v3586 = vrot.slane %v3585, 4
      %v3588 = vshll.u32 %v3333, 16
      %v3590 = vrot.slane %v3588, 5
      %v3591 = vsel %vm921, %v3586, %v3590
      %v3592 = vshrl.u32 %v3333, 16
      %v3594 = vrot.slane %v3592, 4
      %v3595 = vor.u32 %v3594, %v3590
      %v3596 = vrot.slane %v3595, 4
      %v3598 = vshll.u32 %v3355, 16
      %v3600 = vrot.slane %v3598, 5
      %v3601 = vsel %vm921, %v3596, %v3600
      %v3603 = vshrl.u32 %v3334, 16
      %v3605 = vrot.slane %v3603, 4
      %v3606 = vshll.u32 %v3334, 16
      %v3608 = vrot.slane %v3606, 5
      %v3609 = vor.u32 %v3605, %v3608
      %v3610 = vrot.slane %v3609, 4
      %v3612 = vshll.u32 %v3335, 16
      %v3614 = vrot.slane %v3612, 5
      %v3615 = vsel %vm921, %v3610, %v3614
      %v3616 = vshrl.u32 %v3335, 16
      %v3618 = vrot.slane %v3616, 4
      %v3619 = vor.u32 %v3618, %v3614
      %v3620 = vrot.slane %v3619, 4
      %v3622 = vshll.u32 %v3356, 16
      %v3624 = vrot.slane %v3622, 5
      %v3625 = vsel %vm921, %v3620, %v3624
      %v3627 = vshrl.u32 %v3336, 16
      %v3629 = vrot.slane %v3627, 4
      %v3630 = vshll.u32 %v3336, 16
      %v3632 = vrot.slane %v3630, 5
      %v3633 = vor.u32 %v3629, %v3632
      %v3634 = vrot.slane %v3633, 4
      %v3636 = vshll.u32 %v3337, 16
      %v3638 = vrot.slane %v3636, 5
      %v3639 = vsel %vm921, %v3634, %v3638
      %v3640 = vshrl.u32 %v3337, 16
      %v3642 = vrot.slane %v3640, 4
      %v3643 = vor.u32 %v3642, %v3638
      %v3644 = vrot.slane %v3643, 4
      %v3646 = vshll.u32 %v3357, 16
      %v3648 = vrot.slane %v3646, 5
      %v3649 = vsel %vm921, %v3644, %v3648
      %v3651 = vshrl.u32 %v3338, 16
      %v3653 = vrot.slane %v3651, 4
      %v3654 = vshll.u32 %v3338, 16
      %v3656 = vrot.slane %v3654, 5
      %v3657 = vor.u32 %v3653, %v3656
      %v3658 = vrot.slane %v3657, 4
      %v3660 = vshll.u32 %v3339, 16
      %v3662 = vrot.slane %v3660, 5
      %v3663 = vsel %vm921, %v3658, %v3662
      %v3664 = vshrl.u32 %v3339, 16
      %v3666 = vrot.slane %v3664, 4
      %v3667 = vor.u32 %v3666, %v3662
      %v3668 = vrot.slane %v3667, 4
      %v3670 = vshll.u32 %v3358, 16
      %v3672 = vrot.slane %v3670, 5
      %v3673 = vsel %vm921, %v3668, %v3672
      %v3675 = vshrl.u32 %v3340, 16
      %v3677 = vrot.slane %v3675, 4
      %v3678 = vshll.u32 %v3340, 16
      %v3680 = vrot.slane %v3678, 5
      %v3681 = vor.u32 %v3677, %v3680
      %v3682 = vrot.slane %v3681, 4
      %v3684 = vshll.u32 %v3341, 16
      %v3686 = vrot.slane %v3684, 5
      %v3687 = vsel %vm921, %v3682, %v3686
      %v3688 = vshrl.u32 %v3341, 16
      %v3690 = vrot.slane %v3688, 4
      %v3691 = vor.u32 %v3690, %v3686
      %v3692 = vrot.slane %v3691, 4
      %v3694 = vshll.u32 %v3359, 16
      %v3696 = vrot.slane %v3694, 5
      %v3697 = vsel %vm921, %v3692, %v3696
      %v3699 = vshrl.u32 %v3342, 16
      %v3701 = vrot.slane %v3699, 4
      %v3702 = vshll.u32 %v3342, 16
      %v3704 = vrot.slane %v3702, 5
      %v3705 = vor.u32 %v3701, %v3704
      %v3706 = vrot.slane %v3705, 4
      %v3708 = vshll.u32 %v3343, 16
      %v3710 = vrot.slane %v3708, 5
      %v3711 = vsel %vm921, %v3706, %v3710
      %v3712 = vshrl.u32 %v3343, 16
      %v3714 = vrot.slane %v3712, 4
      %v3715 = vor.u32 %v3714, %v3710
      %v3716 = vrot.slane %v3715, 4
      %v3718 = vshll.u32 %v3360, 16
      %v3720 = vrot.slane %v3718, 5
      %v3721 = vsel %vm921, %v3716, %v3720
      %v3723 = vshrl.u32 %v3344, 16
      %v3725 = vrot.slane %v3723, 4
      %v3726 = vshll.u32 %v3344, 16
      %v3728 = vrot.slane %v3726, 5
      %v3729 = vor.u32 %v3725, %v3728
      %v3730 = vrot.slane %v3729, 4
      %v3732 = vshll.u32 %v3345, 16
      %v3734 = vrot.slane %v3732, 5
      %v3735 = vsel %vm921, %v3730, %v3734
      %v3736 = vshrl.u32 %v3345, 16
      %v3738 = vrot.slane %v3736, 4
      %v3739 = vor.u32 %v3738, %v3734
      %v3740 = vrot.slane %v3739, 4
      %v3742 = vshll.u32 %v3361, 16
      %v3744 = vrot.slane %v3742, 5
      %v3745 = vsel %vm921, %v3740, %v3744
      %v3778 = vunpack.c.l.b16 %v3314
      %v3779 = vunpack.c.l.b16 %v3315
      %v3780 = vunpack.c.l.b16 %v3316
      %v3781 = vunpack.c.l.b16 %v3317
      %v3782 = vunpack.c.l.b16 %v3318
      %v3783 = vunpack.c.l.b16 %v3319
      %v3784 = vunpack.c.l.b16 %v3320
      %v3785 = vunpack.c.l.b16 %v3321
      %v3786 = vunpack.c.l.b16 %v3322
      %v3787 = vunpack.c.l.b16 %v3323
      %v3788 = vunpack.c.l.b16 %v3324
      %v3789 = vunpack.c.l.b16 %v3325
      %v3790 = vunpack.c.l.b16 %v3326
      %v3791 = vunpack.c.l.b16 %v3327
      %v3792 = vunpack.c.l.b16 %v3328
      %v3793 = vunpack.c.l.b16 %v3329
      %v3794 = vunpack.c.l.b16 %v3330
      %v3795 = vunpack.c.l.b16 %v3331
      %v3796 = vunpack.c.l.b16 %v3332
      %v3797 = vunpack.c.l.b16 %v3333
      %v3798 = vunpack.c.l.b16 %v3334
      %v3799 = vunpack.c.l.b16 %v3335
      %v3800 = vunpack.c.l.b16 %v3336
      %v3801 = vunpack.c.l.b16 %v3337
      %v3802 = vunpack.c.l.b16 %v3338
      %v3803 = vunpack.c.l.b16 %v3339
      %v3804 = vunpack.c.l.b16 %v3340
      %v3805 = vunpack.c.l.b16 %v3341
      %v3806 = vunpack.c.l.b16 %v3342
      %v3807 = vunpack.c.l.b16 %v3343
      %v3808 = vunpack.c.l.b16 %v3344
      %v3809 = vunpack.c.l.b16 %v3345
      %v3810 = vpack.c.b16 %v3779, %v3778
      %v3811 = vpack.c.b16 %v3781, %v3780
      %v3812 = vpack.c.b16 %v3783, %v3782
      %v3813 = vpack.c.b16 %v3785, %v3784
      %v3814 = vpack.c.b16 %v3787, %v3786
      %v3815 = vpack.c.b16 %v3789, %v3788
      %v3816 = vpack.c.b16 %v3791, %v3790
      %v3817 = vpack.c.b16 %v3793, %v3792
      %v3818 = vpack.c.b16 %v3795, %v3794
      %v3819 = vpack.c.b16 %v3797, %v3796
      %v3820 = vpack.c.b16 %v3799, %v3798
      %v3821 = vpack.c.b16 %v3801, %v3800
      %v3822 = vpack.c.b16 %v3803, %v3802
      %v3823 = vpack.c.b16 %v3805, %v3804
      %v3824 = vpack.c.b16 %v3807, %v3806
      %v3825 = vpack.c.b16 %v3809, %v3808
      %v3826 = vunpack.c.l.b16 %v3375
      %v3827 = vunpack.c.l.b16 %v3385
      %v3828 = vunpack.c.l.b16 %v3399
      %v3829 = vunpack.c.l.b16 %v3409
      %v3830 = vunpack.c.l.b16 %v3423
      %v3831 = vunpack.c.l.b16 %v3433
      %v3832 = vunpack.c.l.b16 %v3447
      %v3833 = vunpack.c.l.b16 %v3457
      %v3834 = vunpack.c.l.b16 %v3471
      %v3835 = vunpack.c.l.b16 %v3481
      %v3836 = vunpack.c.l.b16 %v3495
      %v3837 = vunpack.c.l.b16 %v3505
      %v3838 = vunpack.c.l.b16 %v3519
      %v3839 = vunpack.c.l.b16 %v3529
      %v3840 = vunpack.c.l.b16 %v3543
      %v3841 = vunpack.c.l.b16 %v3553
      %v3842 = vunpack.c.l.b16 %v3567
      %v3843 = vunpack.c.l.b16 %v3577
      %v3844 = vunpack.c.l.b16 %v3591
      %v3845 = vunpack.c.l.b16 %v3601
      %v3846 = vunpack.c.l.b16 %v3615
      %v3847 = vunpack.c.l.b16 %v3625
      %v3848 = vunpack.c.l.b16 %v3639
      %v3849 = vunpack.c.l.b16 %v3649
      %v3850 = vunpack.c.l.b16 %v3663
      %v3851 = vunpack.c.l.b16 %v3673
      %v3852 = vunpack.c.l.b16 %v3687
      %v3853 = vunpack.c.l.b16 %v3697
      %v3854 = vunpack.c.l.b16 %v3711
      %v3855 = vunpack.c.l.b16 %v3721
      %v3856 = vunpack.c.l.b16 %v3735
      %v3857 = vunpack.c.l.b16 %v3745
      %v3858 = vpack.c.b16 %v3827, %v3826
      %v3859 = vpack.c.b16 %v3829, %v3828
      %v3860 = vpack.c.b16 %v3831, %v3830
      %v3861 = vpack.c.b16 %v3833, %v3832
      %v3862 = vpack.c.b16 %v3835, %v3834
      %v3863 = vpack.c.b16 %v3837, %v3836
      %v3864 = vpack.c.b16 %v3839, %v3838
      %v3865 = vpack.c.b16 %v3841, %v3840
      %v3866 = vpack.c.b16 %v3843, %v3842
      %v3867 = vpack.c.b16 %v3845, %v3844
      %v3868 = vpack.c.b16 %v3847, %v3846
      %v3869 = vpack.c.b16 %v3849, %v3848
      %v3870 = vpack.c.b16 %v3851, %v3850
      %v3871 = vpack.c.b16 %v3853, %v3852
      %v3872 = vpack.c.b16 %v3855, %v3854
      %v3873 = vpack.c.b16 %v3857, %v3856
      %3874 = vrot.lane.b32.xlu0 %v3858, 8
      %v3875 = vpop.permute.xlu0 %3874
      %3876 = vrot.lane.b32.xlu0 %v3859, 8
      %v3877 = vpop.permute.xlu0 %3876
      %3878 = vrot.lane.b32.xlu0 %v3860, 8
      %v3879 = vpop.permute.xlu0 %3878
      %3880 = vrot.lane.b32.xlu0 %v3861, 8
      %v3881 = vpop.permute.xlu0 %3880
      %3882 = vrot.lane.b32.xlu0 %v3862, 8
      %v3883 = vpop.permute.xlu0 %3882
      %3884 = vrot.lane.b32.xlu0 %v3863, 8
      %v3885 = vpop.permute.xlu0 %3884
      %3886 = vrot.lane.b32.xlu0 %v3864, 8
      %v3887 = vpop.permute.xlu0 %3886
      %3888 = vrot.lane.b32.xlu0 %v3865, 8
      %v3889 = vpop.permute.xlu0 %3888
      %3890 = vrot.lane.b32.xlu0 %v3866, 8
      %v3891 = vpop.permute.xlu0 %3890
      %3892 = vrot.lane.b32.xlu0 %v3867, 8
      %v3893 = vpop.permute.xlu0 %3892
      %3894 = vrot.lane.b32.xlu0 %v3868, 8
      %v3895 = vpop.permute.xlu0 %3894
      %3896 = vrot.lane.b32.xlu0 %v3869, 8
      %v3897 = vpop.permute.xlu0 %3896
      %3898 = vrot.lane.b32.xlu0 %v3870, 8
      %v3899 = vpop.permute.xlu0 %3898
      %3900 = vrot.lane.b32.xlu0 %v3871, 8
      %v3901 = vpop.permute.xlu0 %3900
      %3902 = vrot.lane.b32.xlu0 %v3872, 8
      %v3903 = vpop.permute.xlu0 %3902
      %3904 = vrot.lane.b32.xlu0 %v3873, 8
      %v3905 = vpop.permute.xlu0 %3904
      %v3908 = vsel %vm1466, %v3810, %v3875
      %v3911 = vsel %vm1466, %v3811, %v3877
      %v3914 = vsel %vm1466, %v3812, %v3879
      %v3917 = vsel %vm1466, %v3813, %v3881
      %v3920 = vsel %vm1466, %v3814, %v3883
      %v3923 = vsel %vm1466, %v3815, %v3885
      %v3926 = vsel %vm1466, %v3816, %v3887
      %v3929 = vsel %vm1466, %v3817, %v3889
      %v3932 = vsel %vm1466, %v3818, %v3891
      %v3935 = vsel %vm1466, %v3819, %v3893
      %v3938 = vsel %vm1466, %v3820, %v3895
      %v3941 = vsel %vm1466, %v3821, %v3897
      %v3944 = vsel %vm1466, %v3822, %v3899
      %v3947 = vsel %vm1466, %v3823, %v3901
      %v3950 = vsel %vm1466, %v3824, %v3903
      %v3953 = vsel %vm1466, %v3825, %v3905
      %v3970 = vunpack.c.l.b16 %v3908
      %v3971 = vunpack.c.h.b16 %v3908
      %v3972 = vunpack.c.l.b16 %v3911
      %v3973 = vunpack.c.h.b16 %v3911
      %v3974 = vunpack.c.l.b16 %v3914
      %v3975 = vunpack.c.h.b16 %v3914
      %v3976 = vunpack.c.l.b16 %v3917
      %v3977 = vunpack.c.h.b16 %v3917
      %v3978 = vunpack.c.l.b16 %v3920
      %v3979 = vunpack.c.h.b16 %v3920
      %v3980 = vunpack.c.l.b16 %v3923
      %v3981 = vunpack.c.h.b16 %v3923
      %v3982 = vunpack.c.l.b16 %v3926
      %v3983 = vunpack.c.h.b16 %v3926
      %v3984 = vunpack.c.l.b16 %v3929
      %v3985 = vunpack.c.h.b16 %v3929
      %v3986 = vunpack.c.l.b16 %v3932
      %v3987 = vunpack.c.h.b16 %v3932
      %v3988 = vunpack.c.l.b16 %v3935
      %v3989 = vunpack.c.h.b16 %v3935
      %v3990 = vunpack.c.l.b16 %v3938
      %v3991 = vunpack.c.h.b16 %v3938
      %v3992 = vunpack.c.l.b16 %v3941
      %v3993 = vunpack.c.h.b16 %v3941
      %v3994 = vunpack.c.l.b16 %v3944
      %v3995 = vunpack.c.h.b16 %v3944
      %v3996 = vunpack.c.l.b16 %v3947
      %v3997 = vunpack.c.h.b16 %v3947
      %v3998 = vunpack.c.l.b16 %v3950
      %v3999 = vunpack.c.h.b16 %v3950
      %v4000 = vunpack.c.l.b16 %v3953
      %v4001 = vunpack.c.h.b16 %v3953
      %v4002 = vpack.c.b16 %v3970, %v3970
      %v4003 = vpack.c.b16 %v3971, %v3971
      %v4004 = vpack.c.b16 %v3972, %v3972
      %v4005 = vpack.c.b16 %v3973, %v3973
      %v4006 = vpack.c.b16 %v3974, %v3974
      %v4007 = vpack.c.b16 %v3975, %v3975
      %v4008 = vpack.c.b16 %v3976, %v3976
      %v4009 = vpack.c.b16 %v3977, %v3977
      %v4010 = vpack.c.b16 %v3978, %v3978
      %v4011 = vpack.c.b16 %v3979, %v3979
      %v4012 = vpack.c.b16 %v3980, %v3980
      %v4013 = vpack.c.b16 %v3981, %v3981
      %v4014 = vpack.c.b16 %v3982, %v3982
      %v4015 = vpack.c.b16 %v3983, %v3983
      %v4016 = vpack.c.b16 %v3984, %v3984
      %v4017 = vpack.c.b16 %v3985, %v3985
      %v4018 = vpack.c.b16 %v3986, %v3986
      %v4019 = vpack.c.b16 %v3987, %v3987
      %v4020 = vpack.c.b16 %v3988, %v3988
      %v4021 = vpack.c.b16 %v3989, %v3989
      %v4022 = vpack.c.b16 %v3990, %v3990
      %v4023 = vpack.c.b16 %v3991, %v3991
      %v4024 = vpack.c.b16 %v3992, %v3992
      %v4025 = vpack.c.b16 %v3993, %v3993
      %v4026 = vpack.c.b16 %v3994, %v3994
      %v4027 = vpack.c.b16 %v3995, %v3995
      %v4028 = vpack.c.b16 %v3996, %v3996
      %v4029 = vpack.c.b16 %v3997, %v3997
      %v4030 = vpack.c.b16 %v3998, %v3998
      %v4031 = vpack.c.b16 %v3999, %v3999
      %v4032 = vpack.c.b16 %v4000, %v4000
      %v4033 = vpack.c.b16 %v4001, %v4001
      %4034 = vrot.lane.b32.xlu0 %v4002, 48
      %v4035 = vpop.permute.xlu0 %4034
      %4036 = vrot.lane.b32.xlu0 %v4003, 48
      %v4037 = vpop.permute.xlu0 %4036
      %4038 = vrot.lane.b32.xlu0 %v4004, 48
      %v4039 = vpop.permute.xlu0 %4038
      %4040 = vrot.lane.b32.xlu0 %v4005, 48
      %v4041 = vpop.permute.xlu0 %4040
      %4042 = vrot.lane.b32.xlu0 %v4006, 48
      %v4043 = vpop.permute.xlu0 %4042
      %4044 = vrot.lane.b32.xlu0 %v4007, 48
      %v4045 = vpop.permute.xlu0 %4044
      %4046 = vrot.lane.b32.xlu0 %v4008, 48
      %v4047 = vpop.permute.xlu0 %4046
      %4048 = vrot.lane.b32.xlu0 %v4009, 48
      %v4049 = vpop.permute.xlu0 %4048
      %4050 = vrot.lane.b32.xlu0 %v4010, 48
      %v4051 = vpop.permute.xlu0 %4050
      %4052 = vrot.lane.b32.xlu0 %v4011, 48
      %v4053 = vpop.permute.xlu0 %4052
      %4054 = vrot.lane.b32.xlu0 %v4012, 48
      %v4055 = vpop.permute.xlu0 %4054
      %4056 = vrot.lane.b32.xlu0 %v4013, 48
      %v4057 = vpop.permute.xlu0 %4056
      %4058 = vrot.lane.b32.xlu0 %v4014, 48
      %v4059 = vpop.permute.xlu0 %4058
      %4060 = vrot.lane.b32.xlu0 %v4015, 48
      %v4061 = vpop.permute.xlu0 %4060
      %4062 = vrot.lane.b32.xlu0 %v4016, 48
      %v4063 = vpop.permute.xlu0 %4062
      %4064 = vrot.lane.b32.xlu0 %v4017, 48
      %v4065 = vpop.permute.xlu0 %4064
      %4066 = vrot.lane.b32.xlu0 %v4018, 48
      %v4067 = vpop.permute.xlu0 %4066
      %4068 = vrot.lane.b32.xlu0 %v4019, 48
      %v4069 = vpop.permute.xlu0 %4068
      %4070 = vrot.lane.b32.xlu0 %v4020, 48
      %v4071 = vpop.permute.xlu0 %4070
      %4072 = vrot.lane.b32.xlu0 %v4021, 48
      %v4073 = vpop.permute.xlu0 %4072
      %4074 = vrot.lane.b32.xlu0 %v4022, 48
      %v4075 = vpop.permute.xlu0 %4074
      %4076 = vrot.lane.b32.xlu0 %v4023, 48
      %v4077 = vpop.permute.xlu0 %4076
      %4078 = vrot.lane.b32.xlu0 %v4024, 48
      %v4079 = vpop.permute.xlu0 %4078
      %4080 = vrot.lane.b32.xlu0 %v4025, 48
      %v4081 = vpop.permute.xlu0 %4080
      %4082 = vrot.lane.b32.xlu0 %v4026, 48
      %v4083 = vpop.permute.xlu0 %4082
      %4084 = vrot.lane.b32.xlu0 %v4027, 48
      %v4085 = vpop.permute.xlu0 %4084
      %4086 = vrot.lane.b32.xlu0 %v4028, 48
      %v4087 = vpop.permute.xlu0 %4086
      %4088 = vrot.lane.b32.xlu0 %v4029, 48
      %v4089 = vpop.permute.xlu0 %4088
      %4090 = vrot.lane.b32.xlu0 %v4030, 48
      %v4091 = vpop.permute.xlu0 %4090
      %4092 = vrot.lane.b32.xlu0 %v4031, 48
      %v4093 = vpop.permute.xlu0 %4092
      %4094 = vrot.lane.b32.xlu0 %v4032, 48
      %v4095 = vpop.permute.xlu0 %4094
      %4096 = vrot.lane.b32.xlu0 %v4033, 48
      %v4097 = vpop.permute.xlu0 %4096
      %vm4130 = vcmask 519552
      %4131 = vst.msk [vmem:[#allocation3] sm:$0xf] %vm4130, %v4035
      %4132 = vst.msk [vmem:[#allocation3 + $0x4] sm:$0xf] %vm4130, %v4037
      %4133 = vst.msk [vmem:[#allocation3 + $0x8] sm:$0xf] %vm4130, %v4039
      %4134 = vst.msk [vmem:[#allocation3 + $0xc] sm:$0xf] %vm4130, %v4041
      %4135 = vst.msk [vmem:[#allocation3 + $0x10] sm:$0xf] %vm4130, %v4043
      %4136 = vst.msk [vmem:[#allocation3 + $0x14] sm:$0xf] %vm4130, %v4045
      %4137 = vst.msk [vmem:[#allocation3 + $0x18] sm:$0xf] %vm4130, %v4047
      %4138 = vst.msk [vmem:[#allocation3 + $0x1c] sm:$0xf] %vm4130, %v4049
      %4139 = vst.msk [vmem:[#allocation3 + $0x20] sm:$0xf] %vm4130, %v4051
      %4140 = vst.msk [vmem:[#allocation3 + $0x24] sm:$0xf] %vm4130, %v4053
      %4141 = vst.msk [vmem:[#allocation3 + $0x28] sm:$0xf] %vm4130, %v4055
      %4142 = vst.msk [vmem:[#allocation3 + $0x2c] sm:$0xf] %vm4130, %v4057
      %4143 = vst.msk [vmem:[#allocation3 + $0x30] sm:$0xf] %vm4130, %v4059
      %4144 = vst.msk [vmem:[#allocation3 + $0x34] sm:$0xf] %vm4130, %v4061
      %4145 = vst.msk [vmem:[#allocation3 + $0x38] sm:$0xf] %vm4130, %v4063
      %4146 = vst.msk [vmem:[#allocation3 + $0x3c] sm:$0xf] %vm4130, %v4065
      %4147 = vst.msk [vmem:[#allocation3 + $0x40] sm:$0xf] %vm4130, %v4067
      %4148 = vst.msk [vmem:[#allocation3 + $0x44] sm:$0xf] %vm4130, %v4069
      %4149 = vst.msk [vmem:[#allocation3 + $0x48] sm:$0xf] %vm4130, %v4071
      %4150 = vst.msk [vmem:[#allocation3 + $0x4c] sm:$0xf] %vm4130, %v4073
      %4151 = vst.msk [vmem:[#allocation3 + $0x50] sm:$0xf] %vm4130, %v4075
      %4152 = vst.msk [vmem:[#allocation3 + $0x54] sm:$0xf] %vm4130, %v4077
      %4153 = vst.msk [vmem:[#allocation3 + $0x58] sm:$0xf] %vm4130, %v4079
      %4154 = vst.msk [vmem:[#allocation3 + $0x5c] sm:$0xf] %vm4130, %v4081
      %4155 = vst.msk [vmem:[#allocation3 + $0x60] sm:$0xf] %vm4130, %v4083
      %4156 = vst.msk [vmem:[#allocation3 + $0x64] sm:$0xf] %vm4130, %v4085
      %4157 = vst.msk [vmem:[#allocation3 + $0x68] sm:$0xf] %vm4130, %v4087
      %4158 = vst.msk [vmem:[#allocation3 + $0x6c] sm:$0xf] %vm4130, %v4089
      %4159 = vst.msk [vmem:[#allocation3 + $0x70] sm:$0xf] %vm4130, %v4091
      %4160 = vst.msk [vmem:[#allocation3 + $0x74] sm:$0xf] %vm4130, %v4093
      %4161 = vst.msk [vmem:[#allocation3 + $0x78] sm:$0xf] %vm4130, %v4095
      %4162 = vst.msk [vmem:[#allocation3 + $0x7c] sm:$0xf] %vm4130, %v4097
      %v4163 = vld [vmem:[%s3313] sm:$0xe]
      %v4164 = vld [vmem:[%s3313 + $0x4] sm:$0xf]
      %v4165 = vld [vmem:[%s3313 + $0x8] sm:$0x1]
      %v4166 = vld [vmem:[%s3313 + $0xc] sm:$0xe]
      %v4167 = vld [vmem:[%s3313 + $0x10] sm:$0xf]
      %v4168 = vld [vmem:[%s3313 + $0x14] sm:$0x1]
      %v4169 = vld [vmem:[%s3313 + $0x18] sm:$0xe]
      %v4170 = vld [vmem:[%s3313 + $0x1c] sm:$0xf]
      %v4171 = vld [vmem:[%s3313 + $0x20] sm:$0x1]
      %v4172 = vld [vmem:[%s3313 + $0x24] sm:$0xe]
      %v4173 = vld [vmem:[%s3313 + $0x28] sm:$0xf]
      %v4174 = vld [vmem:[%s3313 + $0x2c] sm:$0x1]
      %v4175 = vld [vmem:[%s3313 + $0x30] sm:$0xe]
      %v4176 = vld [vmem:[%s3313 + $0x34] sm:$0xf]
      %v4177 = vld [vmem:[%s3313 + $0x38] sm:$0x1]
      %v4178 = vld [vmem:[%s3313 + $0x3c] sm:$0xe]
      %v4179 = vld [vmem:[%s3313 + $0x40] sm:$0xf]
      %v4180 = vld [vmem:[%s3313 + $0x44] sm:$0x1]
      %v4181 = vld [vmem:[%s3313 + $0x48] sm:$0xe]
      %v4182 = vld [vmem:[%s3313 + $0x4c] sm:$0xf]
      %v4183 = vld [vmem:[%s3313 + $0x50] sm:$0x1]
      %v4184 = vld [vmem:[%s3313 + $0x54] sm:$0xe]
      %v4185 = vld [vmem:[%s3313 + $0x58] sm:$0xf]
      %v4186 = vld [vmem:[%s3313 + $0x5c] sm:$0x1]
      %v4187 = vld [vmem:[%s3313 + $0x60] sm:$0xe]
      %v4188 = vld [vmem:[%s3313 + $0x64] sm:$0xf]
      %v4189 = vld [vmem:[%s3313 + $0x68] sm:$0x1]
      %v4190 = vld [vmem:[%s3313 + $0x6c] sm:$0xe]
      %v4191 = vld [vmem:[%s3313 + $0x70] sm:$0xf]
      %v4192 = vld [vmem:[%s3313 + $0x74] sm:$0x1]
      %v4193 = vld [vmem:[%s3313 + $0x78] sm:$0xe]
      %v4194 = vld [vmem:[%s3313 + $0x7c] sm:$0xf]
      %v4195 = vld [vmem:[%s3313 + $0x80] sm:$0x1]
      %v4196 = vld [vmem:[%s3313 + $0x84] sm:$0xe]
      %v4197 = vld [vmem:[%s3313 + $0x88] sm:$0xf]
      %v4198 = vld [vmem:[%s3313 + $0x8c] sm:$0x1]
      %v4199 = vld [vmem:[%s3313 + $0x90] sm:$0xe]
      %v4200 = vld [vmem:[%s3313 + $0x94] sm:$0xf]
      %v4201 = vld [vmem:[%s3313 + $0x98] sm:$0x1]
      %v4202 = vld [vmem:[%s3313 + $0x9c] sm:$0xe]
      %v4203 = vld [vmem:[%s3313 + $0xa0] sm:$0xf]
      %v4204 = vld [vmem:[%s3313 + $0xa4] sm:$0x1]
      %v4205 = vld [vmem:[%s3313 + $0xa8] sm:$0xe]
      %v4206 = vld [vmem:[%s3313 + $0xac] sm:$0xf]
      %v4207 = vld [vmem:[%s3313 + $0xb0] sm:$0x1]
      %v4208 = vld [vmem:[%s3313 + $0xb4] sm:$0xe]
      %v4209 = vld [vmem:[%s3313 + $0xb8] sm:$0xf]
      %v4210 = vld [vmem:[%s3313 + $0xbc] sm:$0x1]
      %v4259 = vrot.slane %v4163, 5
      %v4260 = vrot.slane %v4259, 4
      %v4261 = vrot.slane %v4164, 5
      %v4262 = vsel %vm1758, %v4260, %v4261
      %v4263 = vrot.slane %v4261, 4
      %v4264 = vrot.slane %v4165, 5
      %v4265 = vsel %vm1758, %v4263, %v4264
      %v4266 = vrot.slane %v4166, 5
      %v4267 = vrot.slane %v4266, 4
      %v4268 = vrot.slane %v4167, 5
      %v4269 = vsel %vm1758, %v4267, %v4268
      %v4270 = vrot.slane %v4268, 4
      %v4271 = vrot.slane %v4168, 5
      %v4272 = vsel %vm1758, %v4270, %v4271
      %v4273 = vrot.slane %v4169, 5
      %v4274 = vrot.slane %v4273, 4
      %v4275 = vrot.slane %v4170, 5
      %v4276 = vsel %vm1758, %v4274, %v4275
      %v4277 = vrot.slane %v4275, 4
      %v4278 = vrot.slane %v4171, 5
      %v4279 = vsel %vm1758, %v4277, %v4278
      %v4280 = vrot.slane %v4172, 5
      %v4281 = vrot.slane %v4280, 4
      %v4282 = vrot.slane %v4173, 5
      %v4283 = vsel %vm1758, %v4281, %v4282
      %v4284 = vrot.slane %v4282, 4
      %v4285 = vrot.slane %v4174, 5
      %v4286 = vsel %vm1758, %v4284, %v4285
      %v4287 = vrot.slane %v4175, 5
      %v4288 = vrot.slane %v4287, 4
      %v4289 = vrot.slane %v4176, 5
      %v4290 = vsel %vm1758, %v4288, %v4289
      %v4291 = vrot.slane %v4289, 4
      %v4292 = vrot.slane %v4177, 5
      %v4293 = vsel %vm1758, %v4291, %v4292
      %v4294 = vrot.slane %v4178, 5
      %v4295 = vrot.slane %v4294, 4
      %v4296 = vrot.slane %v4179, 5
      %v4297 = vsel %vm1758, %v4295, %v4296
      %v4298 = vrot.slane %v4296, 4
      %v4299 = vrot.slane %v4180, 5
      %v4300 = vsel %vm1758, %v4298, %v4299
      %v4301 = vrot.slane %v4181, 5
      %v4302 = vrot.slane %v4301, 4
      %v4303 = vrot.slane %v4182, 5
      %v4304 = vsel %vm1758, %v4302, %v4303
      %v4305 = vrot.slane %v4303, 4
      %v4306 = vrot.slane %v4183, 5
      %v4307 = vsel %vm1758, %v4305, %v4306
      %v4308 = vrot.slane %v4184, 5
      %v4309 = vrot.slane %v4308, 4
      %v4310 = vrot.slane %v4185, 5
      %v4311 = vsel %vm1758, %v4309, %v4310
      %v4312 = vrot.slane %v4310, 4
      %v4313 = vrot.slane %v4186, 5
      %v4314 = vsel %vm1758, %v4312, %v4313
      %v4315 = vrot.slane %v4187, 5
      %v4316 = vrot.slane %v4315, 4
      %v4317 = vrot.slane %v4188, 5
      %v4318 = vsel %vm1758, %v4316, %v4317
      %v4319 = vrot.slane %v4317, 4
      %v4320 = vrot.slane %v4189, 5
      %v4321 = vsel %vm1758, %v4319, %v4320
      %v4322 = vrot.slane %v4190, 5
      %v4323 = vrot.slane %v4322, 4
      %v4324 = vrot.slane %v4191, 5
      %v4325 = vsel %vm1758, %v4323, %v4324
      %v4326 = vrot.slane %v4324, 4
      %v4327 = vrot.slane %v4192, 5
      %v4328 = vsel %vm1758, %v4326, %v4327
      %v4329 = vrot.slane %v4193, 5
      %v4330 = vrot.slane %v4329, 4
      %v4331 = vrot.slane %v4194, 5
      %v4332 = vsel %vm1758, %v4330, %v4331
      %v4333 = vrot.slane %v4331, 4
      %v4334 = vrot.slane %v4195, 5
      %v4335 = vsel %vm1758, %v4333, %v4334
      %v4336 = vrot.slane %v4196, 5
      %v4337 = vrot.slane %v4336, 4
      %v4338 = vrot.slane %v4197, 5
      %v4339 = vsel %vm1758, %v4337, %v4338
      %v4340 = vrot.slane %v4338, 4
      %v4341 = vrot.slane %v4198, 5
      %v4342 = vsel %vm1758, %v4340, %v4341
      %v4343 = vrot.slane %v4199, 5
      %v4344 = vrot.slane %v4343, 4
      %v4345 = vrot.slane %v4200, 5
      %v4346 = vsel %vm1758, %v4344, %v4345
      %v4347 = vrot.slane %v4345, 4
      %v4348 = vrot.slane %v4201, 5
      %v4349 = vsel %vm1758, %v4347, %v4348
      %v4350 = vrot.slane %v4202, 5
      %v4351 = vrot.slane %v4350, 4
      %v4352 = vrot.slane %v4203, 5
      %v4353 = vsel %vm1758, %v4351, %v4352
      %v4354 = vrot.slane %v4352, 4
      %v4355 = vrot.slane %v4204, 5
      %v4356 = vsel %vm1758, %v4354, %v4355
      %v4357 = vrot.slane %v4205, 5
      %v4358 = vrot.slane %v4357, 4
      %v4359 = vrot.slane %v4206, 5
      %v4360 = vsel %vm1758, %v4358, %v4359
      %v4361 = vrot.slane %v4359, 4
      %v4362 = vrot.slane %v4207, 5
      %v4363 = vsel %vm1758, %v4361, %v4362
      %v4364 = vrot.slane %v4208, 5
      %v4365 = vrot.slane %v4364, 4
      %v4366 = vrot.slane %v4209, 5
      %v4367 = vsel %vm1758, %v4365, %v4366
      %v4368 = vrot.slane %v4366, 4
      %v4369 = vrot.slane %v4210, 5
      %v4370 = vsel %vm1758, %v4368, %v4369
      %4371 = vrot.lane.b32.xlu0 %v4262, 64
      %v4372 = vpop.permute.xlu0 %4371
      %4373 = vrot.lane.b32.xlu0 %v4265, 64
      %v4374 = vpop.permute.xlu0 %4373
      %4375 = vrot.lane.b32.xlu0 %v4269, 64
      %v4376 = vpop.permute.xlu0 %4375
      %4377 = vrot.lane.b32.xlu0 %v4272, 64
      %v4378 = vpop.permute.xlu0 %4377
      %4379 = vrot.lane.b32.xlu0 %v4276, 64
      %v4380 = vpop.permute.xlu0 %4379
      %4381 = vrot.lane.b32.xlu0 %v4279, 64
      %v4382 = vpop.permute.xlu0 %4381
      %4383 = vrot.lane.b32.xlu0 %v4283, 64
      %v4384 = vpop.permute.xlu0 %4383
      %4385 = vrot.lane.b32.xlu0 %v4286, 64
      %v4386 = vpop.permute.xlu0 %4385
      %4387 = vrot.lane.b32.xlu0 %v4290, 64
      %v4388 = vpop.permute.xlu0 %4387
      %4389 = vrot.lane.b32.xlu0 %v4293, 64
      %v4390 = vpop.permute.xlu0 %4389
      %4391 = vrot.lane.b32.xlu0 %v4297, 64
      %v4392 = vpop.permute.xlu0 %4391
      %4393 = vrot.lane.b32.xlu0 %v4300, 64
      %v4394 = vpop.permute.xlu0 %4393
      %4395 = vrot.lane.b32.xlu0 %v4304, 64
      %v4396 = vpop.permute.xlu0 %4395
      %4397 = vrot.lane.b32.xlu0 %v4307, 64
      %v4398 = vpop.permute.xlu0 %4397
      %4399 = vrot.lane.b32.xlu0 %v4311, 64
      %v4400 = vpop.permute.xlu0 %4399
      %4401 = vrot.lane.b32.xlu0 %v4314, 64
      %v4402 = vpop.permute.xlu0 %4401
      %4403 = vrot.lane.b32.xlu0 %v4318, 64
      %v4404 = vpop.permute.xlu0 %4403
      %4405 = vrot.lane.b32.xlu0 %v4321, 64
      %v4406 = vpop.permute.xlu0 %4405
      %4407 = vrot.lane.b32.xlu0 %v4325, 64
      %v4408 = vpop.permute.xlu0 %4407
      %4409 = vrot.lane.b32.xlu0 %v4328, 64
      %v4410 = vpop.permute.xlu0 %4409
      %4411 = vrot.lane.b32.xlu0 %v4332, 64
      %v4412 = vpop.permute.xlu0 %4411
      %4413 = vrot.lane.b32.xlu0 %v4335, 64
      %v4414 = vpop.permute.xlu0 %4413
      %4415 = vrot.lane.b32.xlu0 %v4339, 64
      %v4416 = vpop.permute.xlu0 %4415
      %4417 = vrot.lane.b32.xlu0 %v4342, 64
      %v4418 = vpop.permute.xlu0 %4417
      %4419 = vrot.lane.b32.xlu0 %v4346, 64
      %v4420 = vpop.permute.xlu0 %4419
      %4421 = vrot.lane.b32.xlu0 %v4349, 64
      %v4422 = vpop.permute.xlu0 %4421
      %4423 = vrot.lane.b32.xlu0 %v4353, 64
      %v4424 = vpop.permute.xlu0 %4423
      %4425 = vrot.lane.b32.xlu0 %v4356, 64
      %v4426 = vpop.permute.xlu0 %4425
      %4427 = vrot.lane.b32.xlu0 %v4360, 64
      %v4428 = vpop.permute.xlu0 %4427
      %4429 = vrot.lane.b32.xlu0 %v4363, 64
      %v4430 = vpop.permute.xlu0 %4429
      %4431 = vrot.lane.b32.xlu0 %v4367, 64
      %v4432 = vpop.permute.xlu0 %4431
      %4433 = vrot.lane.b32.xlu0 %v4370, 64
      %v4434 = vpop.permute.xlu0 %4433
      %vm4467 = vcmask 585216
      %4468 = vst.msk [vmem:[#allocation3] sm:$0xf] %vm4467, %v4372
      %4469 = vst.msk [vmem:[#allocation3 + $0x4] sm:$0xf] %vm4467, %v4374
      %4470 = vst.msk [vmem:[#allocation3 + $0x8] sm:$0xf] %vm4467, %v4376
      %4471 = vst.msk [vmem:[#allocation3 + $0xc] sm:$0xf] %vm4467, %v4378
      %4472 = vst.msk [vmem:[#allocation3 + $0x10] sm:$0xf] %vm4467, %v4380
      %4473 = vst.msk [vmem:[#allocation3 + $0x14] sm:$0xf] %vm4467, %v4382
      %4474 = vst.msk [vmem:[#allocation3 + $0x18] sm:$0xf] %vm4467, %v4384
      %4475 = vst.msk [vmem:[#allocation3 + $0x1c] sm:$0xf] %vm4467, %v4386
      %4476 = vst.msk [vmem:[#allocation3 + $0x20] sm:$0xf] %vm4467, %v4388
      %4477 = vst.msk [vmem:[#allocation3 + $0x24] sm:$0xf] %vm4467, %v4390
      %4478 = vst.msk [vmem:[#allocation3 + $0x28] sm:$0xf] %vm4467, %v4392
      %4479 = vst.msk [vmem:[#allocation3 + $0x2c] sm:$0xf] %vm4467, %v4394
      %4480 = vst.msk [vmem:[#allocation3 + $0x30] sm:$0xf] %vm4467, %v4396
      %4481 = vst.msk [vmem:[#allocation3 + $0x34] sm:$0xf] %vm4467, %v4398
      %4482 = vst.msk [vmem:[#allocation3 + $0x38] sm:$0xf] %vm4467, %v4400
      %4483 = vst.msk [vmem:[#allocation3 + $0x3c] sm:$0xf] %vm4467, %v4402
      %4484 = vst.msk [vmem:[#allocation3 + $0x40] sm:$0xf] %vm4467, %v4404
      %4485 = vst.msk [vmem:[#allocation3 + $0x44] sm:$0xf] %vm4467, %v4406
      %4486 = vst.msk [vmem:[#allocation3 + $0x48] sm:$0xf] %vm4467, %v4408
      %4487 = vst.msk [vmem:[#allocation3 + $0x4c] sm:$0xf] %vm4467, %v4410
      %4488 = vst.msk [vmem:[#allocation3 + $0x50] sm:$0xf] %vm4467, %v4412
      %4489 = vst.msk [vmem:[#allocation3 + $0x54] sm:$0xf] %vm4467, %v4414
      %4490 = vst.msk [vmem:[#allocation3 + $0x58] sm:$0xf] %vm4467, %v4416
      %4491 = vst.msk [vmem:[#allocation3 + $0x5c] sm:$0xf] %vm4467, %v4418
      %4492 = vst.msk [vmem:[#allocation3 + $0x60] sm:$0xf] %vm4467, %v4420
      %4493 = vst.msk [vmem:[#allocation3 + $0x64] sm:$0xf] %vm4467, %v4422
      %4494 = vst.msk [vmem:[#allocation3 + $0x68] sm:$0xf] %vm4467, %v4424
      %4495 = vst.msk [vmem:[#allocation3 + $0x6c] sm:$0xf] %vm4467, %v4426
      %4496 = vst.msk [vmem:[#allocation3 + $0x70] sm:$0xf] %vm4467, %v4428
      %4497 = vst.msk [vmem:[#allocation3 + $0x74] sm:$0xf] %vm4467, %v4430
      %4498 = vst.msk [vmem:[#allocation3 + $0x78] sm:$0xf] %vm4467, %v4432
      %4499 = vst.msk [vmem:[#allocation3 + $0x7c] sm:$0xf] %vm4467, %v4434
      %v4500 = vld [vmem:[#allocation3] sm:$0xf]
      %v4501 = vld [vmem:[#allocation3 + $0x4] sm:$0xf]
      %v4502 = vld [vmem:[#allocation3 + $0x8] sm:$0xf]
      %v4503 = vld [vmem:[#allocation3 + $0xc] sm:$0xf]
      %v4504 = vld [vmem:[#allocation3 + $0x10] sm:$0xf]
      %v4505 = vld [vmem:[#allocation3 + $0x14] sm:$0xf]
      %v4506 = vld [vmem:[#allocation3 + $0x18] sm:$0xf]
      %v4507 = vld [vmem:[#allocation3 + $0x1c] sm:$0xf]
      %v4508 = vld [vmem:[#allocation3 + $0x20] sm:$0xf]
      %v4509 = vld [vmem:[#allocation3 + $0x24] sm:$0xf]
      %v4510 = vld [vmem:[#allocation3 + $0x28] sm:$0xf]
      %v4511 = vld [vmem:[#allocation3 + $0x2c] sm:$0xf]
      %v4512 = vld [vmem:[#allocation3 + $0x30] sm:$0xf]
      %v4513 = vld [vmem:[#allocation3 + $0x34] sm:$0xf]
      %v4514 = vld [vmem:[#allocation3 + $0x38] sm:$0xf]
      %v4515 = vld [vmem:[#allocation3 + $0x3c] sm:$0xf]
      %v4516 = vld [vmem:[#allocation3 + $0x40] sm:$0xf]
      %v4517 = vld [vmem:[#allocation3 + $0x44] sm:$0xf]
      %v4518 = vld [vmem:[#allocation3 + $0x48] sm:$0xf]
      %v4519 = vld [vmem:[#allocation3 + $0x4c] sm:$0xf]
      %v4520 = vld [vmem:[#allocation3 + $0x50] sm:$0xf]
      %v4521 = vld [vmem:[#allocation3 + $0x54] sm:$0xf]
      %v4522 = vld [vmem:[#allocation3 + $0x58] sm:$0xf]
      %v4523 = vld [vmem:[#allocation3 + $0x5c] sm:$0xf]
      %v4524 = vld [vmem:[#allocation3 + $0x60] sm:$0xf]
      %v4525 = vld [vmem:[#allocation3 + $0x64] sm:$0xf]
      %v4526 = vld [vmem:[#allocation3 + $0x68] sm:$0xf]
      %v4527 = vld [vmem:[#allocation3 + $0x6c] sm:$0xf]
      %v4528 = vld [vmem:[#allocation3 + $0x70] sm:$0xf]
      %v4529 = vld [vmem:[#allocation3 + $0x74] sm:$0xf]
      %v4530 = vld [vmem:[#allocation3 + $0x78] sm:$0xf]
      %v4531 = vld [vmem:[#allocation3 + $0x7c] sm:$0xf]
      %v4532 = vld [vmem:[%s1] sm:$0xf]
      %v4533 = vld [vmem:[%s1 + $0x4] sm:$0xf]
      %v4534 = vld [vmem:[%s1 + $0x8] sm:$0xf]
      %v4535 = vld [vmem:[%s1 + $0xc] sm:$0xf]
      %v4536 = vld [vmem:[%s1 + $0x10] sm:$0xf]
      %v4537 = vld [vmem:[%s1 + $0x14] sm:$0xf]
      %v4538 = vld [vmem:[%s1 + $0x18] sm:$0xf]
      %v4539 = vld [vmem:[%s1 + $0x1c] sm:$0xf]
      %v4540 = vld [vmem:[%s1 + $0x20] sm:$0xf]
      %v4573 = vunpack.c.l.b16 %v4500
      %v4574 = vunpack.c.l.b16 %v4501
      %v4575 = vunpack.c.l.b16 %v4502
      %v4576 = vunpack.c.l.b16 %v4503
      %v4577 = vunpack.c.l.b16 %v4504
      %v4578 = vunpack.c.l.b16 %v4505
      %v4579 = vunpack.c.l.b16 %v4506
      %v4580 = vunpack.c.l.b16 %v4507
      %v4581 = vunpack.c.l.b16 %v4508
      %v4582 = vunpack.c.l.b16 %v4509
      %v4583 = vunpack.c.l.b16 %v4510
      %v4584 = vunpack.c.l.b16 %v4511
      %v4585 = vunpack.c.l.b16 %v4512
      %v4586 = vunpack.c.l.b16 %v4513
      %v4587 = vunpack.c.l.b16 %v4514
      %v4588 = vunpack.c.l.b16 %v4515
      %v4589 = vunpack.c.l.b16 %v4516
      %v4590 = vunpack.c.l.b16 %v4517
      %v4591 = vunpack.c.l.b16 %v4518
      %v4592 = vunpack.c.l.b16 %v4519
      %v4593 = vunpack.c.l.b16 %v4520
      %v4594 = vunpack.c.l.b16 %v4521
      %v4595 = vunpack.c.l.b16 %v4522
      %v4596 = vunpack.c.l.b16 %v4523
      %v4597 = vunpack.c.l.b16 %v4524
      %v4598 = vunpack.c.l.b16 %v4525
      %v4599 = vunpack.c.l.b16 %v4526
      %v4600 = vunpack.c.l.b16 %v4527
      %v4601 = vunpack.c.l.b16 %v4528
      %v4602 = vunpack.c.l.b16 %v4529
      %v4603 = vunpack.c.l.b16 %v4530
      %v4604 = vunpack.c.l.b16 %v4531
      %v4605 = vpack.c.b16 %v4574, %v4573
      %v4606 = vpack.c.b16 %v4576, %v4575
      %v4607 = vpack.c.b16 %v4578, %v4577
      %v4608 = vpack.c.b16 %v4580, %v4579
      %v4609 = vpack.c.b16 %v4582, %v4581
      %v4610 = vpack.c.b16 %v4584, %v4583
      %v4611 = vpack.c.b16 %v4586, %v4585
      %v4612 = vpack.c.b16 %v4588, %v4587
      %v4613 = vpack.c.b16 %v4590, %v4589
      %v4614 = vpack.c.b16 %v4592, %v4591
      %v4615 = vpack.c.b16 %v4594, %v4593
      %v4616 = vpack.c.b16 %v4596, %v4595
      %v4617 = vpack.c.b16 %v4598, %v4597
      %v4618 = vpack.c.b16 %v4600, %v4599
      %v4619 = vpack.c.b16 %v4602, %v4601
      %v4620 = vpack.c.b16 %v4604, %v4603
      %v4630 = vunpack.c.l.b16 %v4532
      %v4631 = vunpack.c.l.b16 %v4533
      %v4632 = vunpack.c.l.b16 %v4534
      %v4633 = vunpack.c.l.b16 %v4535
      %v4634 = vunpack.c.l.b16 %v4536
      %v4635 = vunpack.c.l.b16 %v4537
      %v4636 = vunpack.c.l.b16 %v4538
      %v4637 = vunpack.c.l.b16 %v4539
      %v4638 = vunpack.c.l.b16 %v4540
      %v4639 = vpack.c.b16 %v4631, %v4630
      %v4640 = vpack.c.b16 %v4633, %v4632
      %v4641 = vpack.c.b16 %v4635, %v4634
      %v4642 = vpack.c.b16 %v4637, %v4636
      %v4643 = vpack.c.b16 %v4638, %v4638
      %vm4648 = vcmask 588800
      %v4650 = vsel %vm4648, %v4605, 0
      %v4653 = vsel %vm4648, %v4606, 0
      %v4656 = vsel %vm4648, %v4607, 0
      %v4659 = vsel %vm4648, %v4608, 0
      %v4662 = vsel %vm4648, %v4609, 0
      %v4665 = vsel %vm4648, %v4610, 0
      %v4668 = vsel %vm4648, %v4611, 0
      %v4671 = vsel %vm4648, %v4612, 0
      %v4674 = vsel %vm4648, %v4613, 0
      %v4677 = vsel %vm4648, %v4614, 0
      %v4680 = vsel %vm4648, %v4615, 0
      %v4683 = vsel %vm4648, %v4616, 0
      %v4686 = vsel %vm4648, %v4617, 0
      %v4689 = vsel %vm4648, %v4618, 0
      %v4692 = vsel %vm4648, %v4619, 0
      %v4695 = vsel %vm4648, %v4620, 0
      %vm4697 = vcmask 1043456
      %v4699 = vsel %vm4697, %v4643, 0
      %4701 = vmatprep.subr.bf16.mxu0 0
      %4702 = vmatpush1.bf16.msra.mxu0 0
      %4703 = vmatprep.subr.bf16.mxu0 0
      %4704 = vmatpush1.bf16.msra.mxu0 0
      %4705 = vmatprep.subr.bf16.mxu0 0
      %4706 = vmatpush1.bf16.msra.mxu0 0
      %4707 = vmatprep.subr.bf16.mxu0 0
      %4708 = vmatpush1.bf16.msra.mxu0 %v4699
      %4709 = vmatprep.subr.bf16.mxu0 0
      %4710 = vmatpush1.bf16.msra.mxu0 %v4642
      %4711 = vmatprep.subr.bf16.mxu0 0
      %4712 = vmatpush1.bf16.msra.mxu0 %v4641
      %4713 = vmatprep.subr.bf16.mxu0 0
      %4714 = vmatpush1.bf16.msra.mxu0 %v4640
      %4715 = vmatprep.subr.bf16.mxu0 0
      %4716 = vmatpush1.bf16.msra.mxu0 %v4639
      %4717 = vmatprep.subr.bf16.mxu0 0
      %4718 = vmatpush2.bf16.msra.mxu0 0
      %4719 = vmatprep.subr.bf16.mxu0 0
      %4720 = vmatpush2.bf16.msra.mxu0 0
      %4721 = vmatprep.subr.bf16.mxu0 0
      %4722 = vmatpush2.bf16.msra.mxu0 0
      %4723 = vmatprep.subr.bf16.mxu0 0
      %4724 = vmatpush2.bf16.msra.mxu0 0
      %4725 = vmatprep.subr.bf16.mxu0 0
      %4726 = vmatpush2.bf16.msra.mxu0 0
      %4727 = vmatprep.subr.bf16.mxu0 0
      %4728 = vmatpush2.bf16.msra.mxu0 0
      %4729 = vmatprep.subr.bf16.mxu0 0
      %4730 = vmatpush2.bf16.msra.mxu0 0
      %4731 = vmatprep.subr.bf16.mxu0 0
      %4732 = vmatpush2.bf16.msra.mxu0 0
      %4733 = vmatprep.mubr.bf16.mxu0 0
      %4734 = vmatmul.mubr.bf16.gmra.mxu0 %v4650
      %v4735 = vpop.f32.mrf.mxu0
      %v4736 = vadd.f32 0.0, %v4735
      %v4737 = vpop.f32.mrf.mxu0
      %v4738 = vpop.f32.mrf.mxu0
      %v4739 = vadd.f32 0.0, %v4738
      %v4740 = vpop.f32.mrf.mxu0
      %4741 = vmatprep.mubr.bf16.mxu0 0
      %4742 = vmatmul.mubr.bf16.gmra.mxu0 %v4653
      %v4743 = vpop.f32.mrf.mxu0
      %v4744 = vadd.f32 0.0, %v4743
      %v4745 = vpop.f32.mrf.mxu0
      %v4746 = vpop.f32.mrf.mxu0
      %v4747 = vadd.f32 0.0, %v4746
      %v4748 = vpop.f32.mrf.mxu0
      %4749 = vmatprep.mubr.bf16.mxu0 0
      %4750 = vmatmul.mubr.bf16.gmra.mxu0 %v4656
      %v4751 = vpop.f32.mrf.mxu0
      %v4752 = vadd.f32 0.0, %v4751
      %v4753 = vpop.f32.mrf.mxu0
      %v4754 = vpop.f32.mrf.mxu0
      %v4755 = vadd.f32 0.0, %v4754
      %v4756 = vpop.f32.mrf.mxu0
      %4757 = vmatprep.mubr.bf16.mxu0 0
      %4758 = vmatmul.mubr.bf16.gmra.mxu0 %v4659
      %v4759 = vpop.f32.mrf.mxu0
      %v4760 = vadd.f32 0.0, %v4759
      %v4761 = vpop.f32.mrf.mxu0
      %v4762 = vpop.f32.mrf.mxu0
      %v4763 = vadd.f32 0.0, %v4762
      %v4764 = vpop.f32.mrf.mxu0
      %4765 = vmatprep.mubr.bf16.mxu0 0
      %4766 = vmatmul.mubr.bf16.gmra.mxu0 %v4662
      %v4767 = vpop.f32.mrf.mxu0
      %v4768 = vadd.f32 0.0, %v4767
      %v4769 = vpop.f32.mrf.mxu0
      %v4770 = vpop.f32.mrf.mxu0
      %v4771 = vadd.f32 0.0, %v4770
      %v4772 = vpop.f32.mrf.mxu0
      %4773 = vmatprep.mubr.bf16.mxu0 0
      %4774 = vmatmul.mubr.bf16.gmra.mxu0 %v4665
      %v4775 = vpop.f32.mrf.mxu0
      %v4776 = vadd.f32 0.0, %v4775
      %v4777 = vpop.f32.mrf.mxu0
      %v4778 = vpop.f32.mrf.mxu0
      %v4779 = vadd.f32 0.0, %v4778
      %v4780 = vpop.f32.mrf.mxu0
      %4781 = vmatprep.mubr.bf16.mxu0 0
      %4782 = vmatmul.mubr.bf16.gmra.mxu0 %v4668
      %v4783 = vpop.f32.mrf.mxu0
      %v4784 = vadd.f32 0.0, %v4783
      %v4785 = vpop.f32.mrf.mxu0
      %v4786 = vpop.f32.mrf.mxu0
      %v4787 = vadd.f32 0.0, %v4786
      %v4788 = vpop.f32.mrf.mxu0
      %4789 = vmatprep.mubr.bf16.mxu0 0
      %4790 = vmatmul.mubr.bf16.gmra.mxu0 %v4671
      %v4791 = vpop.f32.mrf.mxu0
      %v4792 = vadd.f32 0.0, %v4791
      %v4793 = vpop.f32.mrf.mxu0
      %v4794 = vpop.f32.mrf.mxu0
      %v4795 = vadd.f32 0.0, %v4794
      %v4796 = vpop.f32.mrf.mxu0
      %4797 = vmatprep.mubr.bf16.mxu0 0
      %4798 = vmatmul.mubr.bf16.gmra.mxu0 %v4674
      %v4799 = vpop.f32.mrf.mxu0
      %v4800 = vadd.f32 0.0, %v4799
      %v4801 = vpop.f32.mrf.mxu0
      %v4802 = vpop.f32.mrf.mxu0
      %v4803 = vadd.f32 0.0, %v4802
      %v4804 = vpop.f32.mrf.mxu0
      %4805 = vmatprep.mubr.bf16.mxu0 0
      %4806 = vmatmul.mubr.bf16.gmra.mxu0 %v4677
      %v4807 = vpop.f32.mrf.mxu0
      %v4808 = vadd.f32 0.0, %v4807
      %v4809 = vpop.f32.mrf.mxu0
      %v4810 = vpop.f32.mrf.mxu0
      %v4811 = vadd.f32 0.0, %v4810
      %v4812 = vpop.f32.mrf.mxu0
      %4813 = vmatprep.mubr.bf16.mxu0 0
      %4814 = vmatmul.mubr.bf16.gmra.mxu0 %v4680
      %v4815 = vpop.f32.mrf.mxu0
      %v4816 = vadd.f32 0.0, %v4815
      %v4817 = vpop.f32.mrf.mxu0
      %v4818 = vpop.f32.mrf.mxu0
      %v4819 = vadd.f32 0.0, %v4818
      %v4820 = vpop.f32.mrf.mxu0
      %4821 = vmatprep.mubr.bf16.mxu0 0
      %4822 = vmatmul.mubr.bf16.gmra.mxu0 %v4683
      %v4823 = vpop.f32.mrf.mxu0
      %v4824 = vadd.f32 0.0, %v4823
      %v4825 = vpop.f32.mrf.mxu0
      %v4826 = vpop.f32.mrf.mxu0
      %v4827 = vadd.f32 0.0, %v4826
      %v4828 = vpop.f32.mrf.mxu0
      %4829 = vmatprep.mubr.bf16.mxu0 0
      %4830 = vmatmul.mubr.bf16.gmra.mxu0 %v4686
      %v4831 = vpop.f32.mrf.mxu0
      %v4832 = vadd.f32 0.0, %v4831
      %v4833 = vpop.f32.mrf.mxu0
      %v4834 = vpop.f32.mrf.mxu0
      %v4835 = vadd.f32 0.0, %v4834
      %v4836 = vpop.f32.mrf.mxu0
      %4837 = vmatprep.mubr.bf16.mxu0 0
      %4838 = vmatmul.mubr.bf16.gmra.mxu0 %v4689
      %v4839 = vpop.f32.mrf.mxu0
      %v4840 = vadd.f32 0.0, %v4839
      %v4841 = vpop.f32.mrf.mxu0
      %v4842 = vpop.f32.mrf.mxu0
      %v4843 = vadd.f32 0.0, %v4842
      %v4844 = vpop.f32.mrf.mxu0
      %4845 = vmatprep.mubr.bf16.mxu0 0
      %4846 = vmatmul.mubr.bf16.gmra.mxu0 %v4692
      %v4847 = vpop.f32.mrf.mxu0
      %v4848 = vadd.f32 0.0, %v4847
      %v4849 = vpop.f32.mrf.mxu0
      %v4850 = vpop.f32.mrf.mxu0
      %v4851 = vadd.f32 0.0, %v4850
      %v4852 = vpop.f32.mrf.mxu0
      %4853 = vmatprep.mubr.bf16.mxu0 0
      %4854 = vmatmul.mubr.bf16.gmra.mxu0 %v4695
      %v4855 = vpop.f32.mrf.mxu0
      %v4856 = vadd.f32 0.0, %v4855
      %v4857 = vpop.f32.mrf.mxu0
      %v4858 = vpop.f32.mrf.mxu0
      %v4859 = vadd.f32 0.0, %v4858
      %v4860 = vpop.f32.mrf.mxu0
      %4861 = vdwg.mxu0
      %v4862 = vld [vmem:[%s2] sm:$0x1]
      %v4864 = vlaneseq
      %v4865 = vshrl.u32 %v4864, 7
      %v4866 = vsub.s32 0, %v4865
      %v4867 = vrot.slane %v4862, %v4866
      %v4869 = vmul.f32 %v4736, %v4867
      %v4870 = vmul.f32 %v4739, %v4867
      %v4871 = vmul.f32 %v4744, %v4867
      %v4872 = vmul.f32 %v4747, %v4867
      %v4873 = vmul.f32 %v4752, %v4867
      %v4874 = vmul.f32 %v4755, %v4867
      %v4875 = vmul.f32 %v4760, %v4867
      %v4876 = vmul.f32 %v4763, %v4867
      %v4877 = vmul.f32 %v4768, %v4867
      %v4878 = vmul.f32 %v4771, %v4867
      %v4879 = vmul.f32 %v4776, %v4867
      %v4880 = vmul.f32 %v4779, %v4867
      %v4881 = vmul.f32 %v4784, %v4867
      %v4882 = vmul.f32 %v4787, %v4867
      %v4883 = vmul.f32 %v4792, %v4867
      %v4884 = vmul.f32 %v4795, %v4867
      %v4885 = vmul.f32 %v4800, %v4867
      %v4886 = vmul.f32 %v4803, %v4867
      %v4887 = vmul.f32 %v4808, %v4867
      %v4888 = vmul.f32 %v4811, %v4867
      %v4889 = vmul.f32 %v4816, %v4867
      %v4890 = vmul.f32 %v4819, %v4867
      %v4891 = vmul.f32 %v4824, %v4867
      %v4892 = vmul.f32 %v4827, %v4867
      %v4893 = vmul.f32 %v4832, %v4867
      %v4894 = vmul.f32 %v4835, %v4867
      %v4895 = vmul.f32 %v4840, %v4867
      %v4896 = vmul.f32 %v4843, %v4867
      %v4897 = vmul.f32 %v4848, %v4867
      %v4898 = vmul.f32 %v4851, %v4867
      %v4899 = vmul.f32 %v4856, %v4867
      %v4900 = vmul.f32 %v4859, %v4867
      %v4901 = vld [vmem:[%s3] sm:$0x1]
      %v4903 = vlaneseq
      %v4904 = vshrl.u32 %v4903, 7
      %v4905 = vsub.s32 0, %v4904
      %v4906 = vrot.slane %v4901, %v4905
      %v4908 = vadd.f32 %v4869, %v4906
      %v4909 = vadd.f32 %v4870, %v4906
      %v4910 = vadd.f32 %v4871, %v4906
      %v4911 = vadd.f32 %v4872, %v4906
      %v4912 = vadd.f32 %v4873, %v4906
      %v4913 = vadd.f32 %v4874, %v4906
      %v4914 = vadd.f32 %v4875, %v4906
      %v4915 = vadd.f32 %v4876, %v4906
      %v4916 = vadd.f32 %v4877, %v4906
      %v4917 = vadd.f32 %v4878, %v4906
      %v4918 = vadd.f32 %v4879, %v4906
      %v4919 = vadd.f32 %v4880, %v4906
      %v4920 = vadd.f32 %v4881, %v4906
      %v4921 = vadd.f32 %v4882, %v4906
      %v4922 = vadd.f32 %v4883, %v4906
      %v4923 = vadd.f32 %v4884, %v4906
      %v4924 = vadd.f32 %v4885, %v4906
      %v4925 = vadd.f32 %v4886, %v4906
      %v4926 = vadd.f32 %v4887, %v4906
      %v4927 = vadd.f32 %v4888, %v4906
      %v4928 = vadd.f32 %v4889, %v4906
      %v4929 = vadd.f32 %v4890, %v4906
      %v4930 = vadd.f32 %v4891, %v4906
      %v4931 = vadd.f32 %v4892, %v4906
      %v4932 = vadd.f32 %v4893, %v4906
      %v4933 = vadd.f32 %v4894, %v4906
      %v4934 = vadd.f32 %v4895, %v4906
      %v4935 = vadd.f32 %v4896, %v4906
      %v4936 = vadd.f32 %v4897, %v4906
      %v4937 = vadd.f32 %v4898, %v4906
      %v4938 = vadd.f32 %v4899, %v4906
      %v4939 = vadd.f32 %v4900, %v4906
      %v4940 = vmax.f32 %v4908, 0.0
      %v4941 = vmax.f32 %v4909, 0.0
      %v4942 = vmax.f32 %v4910, 0.0
      %v4943 = vmax.f32 %v4911, 0.0
      %v4944 = vmax.f32 %v4912, 0.0
      %v4945 = vmax.f32 %v4913, 0.0
      %v4946 = vmax.f32 %v4914, 0.0
      %v4947 = vmax.f32 %v4915, 0.0
      %v4948 = vmax.f32 %v4916, 0.0
      %v4949 = vmax.f32 %v4917, 0.0
      %v4950 = vmax.f32 %v4918, 0.0
      %v4951 = vmax.f32 %v4919, 0.0
      %v4952 = vmax.f32 %v4920, 0.0
      %v4953 = vmax.f32 %v4921, 0.0
      %v4954 = vmax.f32 %v4922, 0.0
      %v4955 = vmax.f32 %v4923, 0.0
      %v4956 = vmax.f32 %v4924, 0.0
      %v4957 = vmax.f32 %v4925, 0.0
      %v4958 = vmax.f32 %v4926, 0.0
      %v4959 = vmax.f32 %v4927, 0.0
      %v4960 = vmax.f32 %v4928, 0.0
      %v4961 = vmax.f32 %v4929, 0.0
      %v4962 = vmax.f32 %v4930, 0.0
      %v4963 = vmax.f32 %v4931, 0.0
      %v4964 = vmax.f32 %v4932, 0.0
      %v4965 = vmax.f32 %v4933, 0.0
      %v4966 = vmax.f32 %v4934, 0.0
      %v4967 = vmax.f32 %v4935, 0.0
      %v4968 = vmax.f32 %v4936, 0.0
      %v4969 = vmax.f32 %v4937, 0.0
      %v4970 = vmax.f32 %v4938, 0.0
      %v4971 = vmax.f32 %v4939, 0.0
      %v4972 = vpack.c.bf16 %v4941, %v4940
      %v4973 = vpack.c.bf16 %v4943, %v4942
      %v4974 = vpack.c.bf16 %v4945, %v4944
      %v4975 = vpack.c.bf16 %v4947, %v4946
      %v4976 = vpack.c.bf16 %v4949, %v4948
      %v4977 = vpack.c.bf16 %v4951, %v4950
      %v4978 = vpack.c.bf16 %v4953, %v4952
      %v4979 = vpack.c.bf16 %v4955, %v4954
      %v4980 = vpack.c.bf16 %v4957, %v4956
      %v4981 = vpack.c.bf16 %v4959, %v4958
      %v4982 = vpack.c.bf16 %v4961, %v4960
      %v4983 = vpack.c.bf16 %v4963, %v4962
      %v4984 = vpack.c.bf16 %v4965, %v4964
      %v4985 = vpack.c.bf16 %v4967, %v4966
      %v4986 = vpack.c.bf16 %v4969, %v4968
      %v4987 = vpack.c.bf16 %v4971, %v4970
      %v5004 = vunpack.c.l.b16 %v4972
      %v5005 = vunpack.c.h.b16 %v4972
      %v5006 = vunpack.c.l.b16 %v4973
      %v5007 = vunpack.c.h.b16 %v4973
      %v5008 = vunpack.c.l.b16 %v4974
      %v5009 = vunpack.c.h.b16 %v4974
      %v5010 = vunpack.c.l.b16 %v4975
      %v5011 = vunpack.c.h.b16 %v4975
      %v5012 = vunpack.c.l.b16 %v4976
      %v5013 = vunpack.c.h.b16 %v4976
      %v5014 = vunpack.c.l.b16 %v4977
      %v5015 = vunpack.c.h.b16 %v4977
      %v5016 = vunpack.c.l.b16 %v4978
      %v5017 = vunpack.c.h.b16 %v4978
      %v5018 = vunpack.c.l.b16 %v4979
      %v5019 = vunpack.c.h.b16 %v4979
      %v5020 = vunpack.c.l.b16 %v4980
      %v5021 = vunpack.c.h.b16 %v4980
      %v5022 = vunpack.c.l.b16 %v4981
      %v5023 = vunpack.c.h.b16 %v4981
      %v5024 = vunpack.c.l.b16 %v4982
      %v5025 = vunpack.c.h.b16 %v4982
      %v5026 = vunpack.c.l.b16 %v4983
      %v5027 = vunpack.c.h.b16 %v4983
      %v5028 = vunpack.c.l.b16 %v4984
      %v5029 = vunpack.c.h.b16 %v4984
      %v5030 = vunpack.c.l.b16 %v4985
      %v5031 = vunpack.c.h.b16 %v4985
      %v5032 = vunpack.c.l.b16 %v4986
      %v5033 = vunpack.c.h.b16 %v4986
      %v5034 = vunpack.c.l.b16 %v4987
      %v5035 = vunpack.c.h.b16 %v4987
      %v5036 = vpack.c.b16 %v5004, %v5004
      %v5037 = vpack.c.b16 %v5005, %v5005
      %v5038 = vpack.c.b16 %v5006, %v5006
      %v5039 = vpack.c.b16 %v5007, %v5007
      %v5040 = vpack.c.b16 %v5008, %v5008
      %v5041 = vpack.c.b16 %v5009, %v5009
      %v5042 = vpack.c.b16 %v5010, %v5010
      %v5043 = vpack.c.b16 %v5011, %v5011
      %v5044 = vpack.c.b16 %v5012, %v5012
      %v5045 = vpack.c.b16 %v5013, %v5013
      %v5046 = vpack.c.b16 %v5014, %v5014
      %v5047 = vpack.c.b16 %v5015, %v5015
      %v5048 = vpack.c.b16 %v5016, %v5016
      %v5049 = vpack.c.b16 %v5017, %v5017
      %v5050 = vpack.c.b16 %v5018, %v5018
      %v5051 = vpack.c.b16 %v5019, %v5019
      %v5052 = vpack.c.b16 %v5020, %v5020
      %v5053 = vpack.c.b16 %v5021, %v5021
      %v5054 = vpack.c.b16 %v5022, %v5022
      %v5055 = vpack.c.b16 %v5023, %v5023
      %v5056 = vpack.c.b16 %v5024, %v5024
      %v5057 = vpack.c.b16 %v5025, %v5025
      %v5058 = vpack.c.b16 %v5026, %v5026
      %v5059 = vpack.c.b16 %v5027, %v5027
      %v5060 = vpack.c.b16 %v5028, %v5028
      %v5061 = vpack.c.b16 %v5029, %v5029
      %v5062 = vpack.c.b16 %v5030, %v5030
      %v5063 = vpack.c.b16 %v5031, %v5031
      %v5064 = vpack.c.b16 %v5032, %v5032
      %v5065 = vpack.c.b16 %v5033, %v5033
      %v5066 = vpack.c.b16 %v5034, %v5034
      %v5067 = vpack.c.b16 %v5035, %v5035
      %v5069 = vshrl.u32 %v5036, 16
      %v5071 = vrot.slane %v5069, 7
      %v5072 = vshll.u32 %v5036, 16
      %v5074 = vor.u32 %v5071, %v5072
      %v5075 = vrot.slane %v5071, 4
      %v5077 = vshrl.u32 %v5037, 16
      %v5079 = vrot.slane %v5077, 7
      %v5080 = vshll.u32 %v5037, 16
      %v5082 = vor.u32 %v5079, %v5080
      %v5083 = vsel %vm435, %v5075, %v5082
      %v5084 = vrot.slane %v5079, 4
      %v5086 = vshrl.u32 %v5038, 16
      %v5088 = vrot.slane %v5086, 7
      %v5089 = vshll.u32 %v5038, 16
      %v5091 = vor.u32 %v5088, %v5089
      %v5092 = vrot.slane %v5088, 4
      %v5094 = vshrl.u32 %v5039, 16
      %v5096 = vrot.slane %v5094, 7
      %v5097 = vshll.u32 %v5039, 16
      %v5099 = vor.u32 %v5096, %v5097
      %v5100 = vsel %vm435, %v5092, %v5099
      %v5101 = vrot.slane %v5096, 4
      %v5103 = vshrl.u32 %v5040, 16
      %v5105 = vrot.slane %v5103, 7
      %v5106 = vshll.u32 %v5040, 16
      %v5108 = vor.u32 %v5105, %v5106
      %v5109 = vrot.slane %v5105, 4
      %v5111 = vshrl.u32 %v5041, 16
      %v5113 = vrot.slane %v5111, 7
      %v5114 = vshll.u32 %v5041, 16
      %v5116 = vor.u32 %v5113, %v5114
      %v5117 = vsel %vm435, %v5109, %v5116
      %v5118 = vrot.slane %v5113, 4
      %v5120 = vshrl.u32 %v5042, 16
      %v5122 = vrot.slane %v5120, 7
      %v5123 = vshll.u32 %v5042, 16
      %v5125 = vor.u32 %v5122, %v5123
      %v5126 = vrot.slane %v5122, 4
      %v5128 = vshrl.u32 %v5043, 16
      %v5130 = vrot.slane %v5128, 7
      %v5131 = vshll.u32 %v5043, 16
      %v5133 = vor.u32 %v5130, %v5131
      %v5134 = vsel %vm435, %v5126, %v5133
      %v5135 = vrot.slane %v5130, 4
      %v5137 = vshrl.u32 %v5044, 16
      %v5139 = vrot.slane %v5137, 7
      %v5140 = vshll.u32 %v5044, 16
      %v5142 = vor.u32 %v5139, %v5140
      %v5143 = vrot.slane %v5139, 4
      %v5145 = vshrl.u32 %v5045, 16
      %v5147 = vrot.slane %v5145, 7
      %v5148 = vshll.u32 %v5045, 16
      %v5150 = vor.u32 %v5147, %v5148
      %v5151 = vsel %vm435, %v5143, %v5150
      %v5152 = vrot.slane %v5147, 4
      %v5154 = vshrl.u32 %v5046, 16
      %v5156 = vrot.slane %v5154, 7
      %v5157 = vshll.u32 %v5046, 16
      %v5159 = vor.u32 %v5156, %v5157
      %v5160 = vrot.slane %v5156, 4
      %v5162 = vshrl.u32 %v5047, 16
      %v5164 = vrot.slane %v5162, 7
      %v5165 = vshll.u32 %v5047, 16
      %v5167 = vor.u32 %v5164, %v5165
      %v5168 = vsel %vm435, %v5160, %v5167
      %v5169 = vrot.slane %v5164, 4
      %v5171 = vshrl.u32 %v5048, 16
      %v5173 = vrot.slane %v5171, 7
      %v5174 = vshll.u32 %v5048, 16
      %v5176 = vor.u32 %v5173, %v5174
      %v5177 = vrot.slane %v5173, 4
      %v5179 = vshrl.u32 %v5049, 16
      %v5181 = vrot.slane %v5179, 7
      %v5182 = vshll.u32 %v5049, 16
      %v5184 = vor.u32 %v5181, %v5182
      %v5185 = vsel %vm435, %v5177, %v5184
      %v5186 = vrot.slane %v5181, 4
      %v5188 = vshrl.u32 %v5050, 16
      %v5190 = vrot.slane %v5188, 7
      %v5191 = vshll.u32 %v5050, 16
      %v5193 = vor.u32 %v5190, %v5191
      %v5194 = vrot.slane %v5190, 4
      %v5196 = vshrl.u32 %v5051, 16
      %v5198 = vrot.slane %v5196, 7
      %v5199 = vshll.u32 %v5051, 16
      %v5201 = vor.u32 %v5198, %v5199
      %v5202 = vsel %vm435, %v5194, %v5201
      %v5203 = vrot.slane %v5198, 4
      %v5205 = vshrl.u32 %v5052, 16
      %v5207 = vrot.slane %v5205, 7
      %v5208 = vshll.u32 %v5052, 16
      %v5210 = vor.u32 %v5207, %v5208
      %v5211 = vrot.slane %v5207, 4
      %v5213 = vshrl.u32 %v5053, 16
      %v5215 = vrot.slane %v5213, 7
      %v5216 = vshll.u32 %v5053, 16
      %v5218 = vor.u32 %v5215, %v5216
      %v5219 = vsel %vm435, %v5211, %v5218
      %v5220 = vrot.slane %v5215, 4
      %v5222 = vshrl.u32 %v5054, 16
      %v5224 = vrot.slane %v5222, 7
      %v5225 = vshll.u32 %v5054, 16
      %v5227 = vor.u32 %v5224, %v5225
      %v5228 = vrot.slane %v5224, 4
      %v5230 = vshrl.u32 %v5055, 16
      %v5232 = vrot.slane %v5230, 7
      %v5233 = vshll.u32 %v5055, 16
      %v5235 = vor.u32 %v5232, %v5233
      %v5236 = vsel %vm435, %v5228, %v5235
      %v5237 = vrot.slane %v5232, 4
      %v5239 = vshrl.u32 %v5056, 16
      %v5241 = vrot.slane %v5239, 7
      %v5242 = vshll.u32 %v5056, 16
      %v5244 = vor.u32 %v5241, %v5242
      %v5245 = vrot.slane %v5241, 4
      %v5247 = vshrl.u32 %v5057, 16
      %v5249 = vrot.slane %v5247, 7
      %v5250 = vshll.u32 %v5057, 16
      %v5252 = vor.u32 %v5249, %v5250
      %v5253 = vsel %vm435, %v5245, %v5252
      %v5254 = vrot.slane %v5249, 4
      %v5256 = vshrl.u32 %v5058, 16
      %v5258 = vrot.slane %v5256, 7
      %v5259 = vshll.u32 %v5058, 16
      %v5261 = vor.u32 %v5258, %v5259
      %v5262 = vrot.slane %v5258, 4
      %v5264 = vshrl.u32 %v5059, 16
      %v5266 = vrot.slane %v5264, 7
      %v5267 = vshll.u32 %v5059, 16
      %v5269 = vor.u32 %v5266, %v5267
      %v5270 = vsel %vm435, %v5262, %v5269
      %v5271 = vrot.slane %v5266, 4
      %v5273 = vshrl.u32 %v5060, 16
      %v5275 = vrot.slane %v5273, 7
      %v5276 = vshll.u32 %v5060, 16
      %v5278 = vor.u32 %v5275, %v5276
      %v5279 = vrot.slane %v5275, 4
      %v5281 = vshrl.u32 %v5061, 16
      %v5283 = vrot.slane %v5281, 7
      %v5284 = vshll.u32 %v5061, 16
      %v5286 = vor.u32 %v5283, %v5284
      %v5287 = vsel %vm435, %v5279, %v5286
      %v5288 = vrot.slane %v5283, 4
      %v5290 = vshrl.u32 %v5062, 16
      %v5292 = vrot.slane %v5290, 7
      %v5293 = vshll.u32 %v5062, 16
      %v5295 = vor.u32 %v5292, %v5293
      %v5296 = vrot.slane %v5292, 4
      %v5298 = vshrl.u32 %v5063, 16
      %v5300 = vrot.slane %v5298, 7
      %v5301 = vshll.u32 %v5063, 16
      %v5303 = vor.u32 %v5300, %v5301
      %v5304 = vsel %vm435, %v5296, %v5303
      %v5305 = vrot.slane %v5300, 4
      %v5307 = vshrl.u32 %v5064, 16
      %v5309 = vrot.slane %v5307, 7
      %v5310 = vshll.u32 %v5064, 16
      %v5312 = vor.u32 %v5309, %v5310
      %v5313 = vrot.slane %v5309, 4
      %v5315 = vshrl.u32 %v5065, 16
      %v5317 = vrot.slane %v5315, 7
      %v5318 = vshll.u32 %v5065, 16
      %v5320 = vor.u32 %v5317, %v5318
      %v5321 = vsel %vm435, %v5313, %v5320
      %v5322 = vrot.slane %v5317, 4
      %v5324 = vshrl.u32 %v5066, 16
      %v5326 = vrot.slane %v5324, 7
      %v5327 = vshll.u32 %v5066, 16
      %v5329 = vor.u32 %v5326, %v5327
      %v5330 = vrot.slane %v5326, 4
      %v5332 = vshrl.u32 %v5067, 16
      %v5334 = vrot.slane %v5332, 7
      %v5335 = vshll.u32 %v5067, 16
      %v5337 = vor.u32 %v5334, %v5335
      %v5338 = vsel %vm435, %v5330, %v5337
      %v5339 = vrot.slane %v5334, 4
      %v5388 = vld [vmem:[%s756] sm:$0xf]
      %v5389 = vsel %vm758, %v5074, %v5388
      %5390 = vst [vmem:[%s756] sm:$0xf] %v5389
      %5391 = vst.msk [vmem:[%s756 + $0x4] sm:$0xf] %vm280, %v5083
      %v5392 = vld [vmem:[%s756 + $0x8] sm:$0x1]
      %v5393 = vsel %vm291, %v5084, %v5392
      %5394 = vst [vmem:[%s756 + $0x8] sm:$0x1] %v5393
      %v5395 = vld [vmem:[%s756 + $0xc] sm:$0xf]
      %v5396 = vsel %vm758, %v5091, %v5395
      %5397 = vst [vmem:[%s756 + $0xc] sm:$0xf] %v5396
      %5398 = vst.msk [vmem:[%s756 + $0x10] sm:$0xf] %vm280, %v5100
      %v5399 = vld [vmem:[%s756 + $0x14] sm:$0x1]
      %v5400 = vsel %vm291, %v5101, %v5399
      %5401 = vst [vmem:[%s756 + $0x14] sm:$0x1] %v5400
      %v5402 = vld [vmem:[%s756 + $0x18] sm:$0xf]
      %v5403 = vsel %vm758, %v5108, %v5402
      %5404 = vst [vmem:[%s756 + $0x18] sm:$0xf] %v5403
      %5405 = vst.msk [vmem:[%s756 + $0x1c] sm:$0xf] %vm280, %v5117
      %v5406 = vld [vmem:[%s756 + $0x20] sm:$0x1]
      %v5407 = vsel %vm291, %v5118, %v5406
      %5408 = vst [vmem:[%s756 + $0x20] sm:$0x1] %v5407
      %v5409 = vld [vmem:[%s756 + $0x24] sm:$0xf]
      %v5410 = vsel %vm758, %v5125, %v5409
      %5411 = vst [vmem:[%s756 + $0x24] sm:$0xf] %v5410
      %5412 = vst.msk [vmem:[%s756 + $0x28] sm:$0xf] %vm280, %v5134
      %v5413 = vld [vmem:[%s756 + $0x2c] sm:$0x1]
      %v5414 = vsel %vm291, %v5135, %v5413
      %5415 = vst [vmem:[%s756 + $0x2c] sm:$0x1] %v5414
      %v5416 = vld [vmem:[%s756 + $0x30] sm:$0xf]
      %v5417 = vsel %vm758, %v5142, %v5416
      %5418 = vst [vmem:[%s756 + $0x30] sm:$0xf] %v5417
      %5419 = vst.msk [vmem:[%s756 + $0x34] sm:$0xf] %vm280, %v5151
      %v5420 = vld [vmem:[%s756 + $0x38] sm:$0x1]
      %v5421 = vsel %vm291, %v5152, %v5420
      %5422 = vst [vmem:[%s756 + $0x38] sm:$0x1] %v5421
      %v5423 = vld [vmem:[%s756 + $0x3c] sm:$0xf]
      %v5424 = vsel %vm758, %v5159, %v5423
      %5425 = vst [vmem:[%s756 + $0x3c] sm:$0xf] %v5424
      %5426 = vst.msk [vmem:[%s756 + $0x40] sm:$0xf] %vm280, %v5168
      %v5427 = vld [vmem:[%s756 + $0x44] sm:$0x1]
      %v5428 = vsel %vm291, %v5169, %v5427
      %5429 = vst [vmem:[%s756 + $0x44] sm:$0x1] %v5428
      %v5430 = vld [vmem:[%s756 + $0x48] sm:$0xf]
      %v5431 = vsel %vm758, %v5176, %v5430
      %5432 = vst [vmem:[%s756 + $0x48] sm:$0xf] %v5431
      %5433 = vst.msk [vmem:[%s756 + $0x4c] sm:$0xf] %vm280, %v5185
      %v5434 = vld [vmem:[%s756 + $0x50] sm:$0x1]
      %v5435 = vsel %vm291, %v5186, %v5434
      %5436 = vst [vmem:[%s756 + $0x50] sm:$0x1] %v5435
      %v5437 = vld [vmem:[%s756 + $0x54] sm:$0xf]
      %v5438 = vsel %vm758, %v5193, %v5437
      %5439 = vst [vmem:[%s756 + $0x54] sm:$0xf] %v5438
      %5440 = vst.msk [vmem:[%s756 + $0x58] sm:$0xf] %vm280, %v5202
      %v5441 = vld [vmem:[%s756 + $0x5c] sm:$0x1]
      %v5442 = vsel %vm291, %v5203, %v5441
      %5443 = vst [vmem:[%s756 + $0x5c] sm:$0x1] %v5442
      %v5444 = vld [vmem:[%s756 + $0x60] sm:$0xf]
      %v5445 = vsel %vm758, %v5210, %v5444
      %5446 = vst [vmem:[%s756 + $0x60] sm:$0xf] %v5445
      %5447 = vst.msk [vmem:[%s756 + $0x64] sm:$0xf] %vm280, %v5219
      %v5448 = vld [vmem:[%s756 + $0x68] sm:$0x1]
      %v5449 = vsel %vm291, %v5220, %v5448
      %5450 = vst [vmem:[%s756 + $0x68] sm:$0x1] %v5449
      %v5451 = vld [vmem:[%s756 + $0x6c] sm:$0xf]
      %v5452 = vsel %vm758, %v5227, %v5451
      %5453 = vst [vmem:[%s756 + $0x6c] sm:$0xf] %v5452
      %5454 = vst.msk [vmem:[%s756 + $0x70] sm:$0xf] %vm280, %v5236
      %v5455 = vld [vmem:[%s756 + $0x74] sm:$0x1]
      %v5456 = vsel %vm291, %v5237, %v5455
      %5457 = vst [vmem:[%s756 + $0x74] sm:$0x1] %v5456
      %v5458 = vld [vmem:[%s756 + $0x78] sm:$0xf]
      %v5459 = vsel %vm758, %v5244, %v5458
      %5460 = vst [vmem:[%s756 + $0x78] sm:$0xf] %v5459
      %5461 = vst.msk [vmem:[%s756 + $0x7c] sm:$0xf] %vm280, %v5253
      %v5462 = vld [vmem:[%s756 + $0x80] sm:$0x1]
      %v5463 = vsel %vm291, %v5254, %v5462
      %5464 = vst [vmem:[%s756 + $0x80] sm:$0x1] %v5463
      %v5465 = vld [vmem:[%s756 + $0x84] sm:$0xf]
      %v5466 = vsel %vm758, %v5261, %v5465
      %5467 = vst [vmem:[%s756 + $0x84] sm:$0xf] %v5466
      %5468 = vst.msk [vmem:[%s756 + $0x88] sm:$0xf] %vm280, %v5270
      %v5469 = vld [vmem:[%s756 + $0x8c] sm:$0x1]
      %v5470 = vsel %vm291, %v5271, %v5469
      %5471 = vst [vmem:[%s756 + $0x8c] sm:$0x1] %v5470
      %v5472 = vld [vmem:[%s756 + $0x90] sm:$0xf]
      %v5473 = vsel %vm758, %v5278, %v5472
      %5474 = vst [vmem:[%s756 + $0x90] sm:$0xf] %v5473
      %5475 = vst.msk [vmem:[%s756 + $0x94] sm:$0xf] %vm280, %v5287
      %v5476 = vld [vmem:[%s756 + $0x98] sm:$0x1]
      %v5477 = vsel %vm291, %v5288, %v5476
      %5478 = vst [vmem:[%s756 + $0x98] sm:$0x1] %v5477
      %v5479 = vld [vmem:[%s756 + $0x9c] sm:$0xf]
      %v5480 = vsel %vm758, %v5295, %v5479
      %5481 = vst [vmem:[%s756 + $0x9c] sm:$0xf] %v5480
      %5482 = vst.msk [vmem:[%s756 + $0xa0] sm:$0xf] %vm280, %v5304
      %v5483 = vld [vmem:[%s756 + $0xa4] sm:$0x1]
      %v5484 = vsel %vm291, %v5305, %v5483
      %5485 = vst [vmem:[%s756 + $0xa4] sm:$0x1] %v5484
      %v5486 = vld [vmem:[%s756 + $0xa8] sm:$0xf]
      %v5487 = vsel %vm758, %v5312, %v5486
      %5488 = vst [vmem:[%s756 + $0xa8] sm:$0xf] %v5487
      %5489 = vst.msk [vmem:[%s756 + $0xac] sm:$0xf] %vm280, %v5321
      %v5490 = vld [vmem:[%s756 + $0xb0] sm:$0x1]
      %v5491 = vsel %vm291, %v5322, %v5490
      %5492 = vst [vmem:[%s756 + $0xb0] sm:$0x1] %v5491
      %v5493 = vld [vmem:[%s756 + $0xb4] sm:$0xf]
      %v5494 = vsel %vm758, %v5329, %v5493
      %5495 = vst [vmem:[%s756 + $0xb4] sm:$0xf] %v5494
      %5496 = vst.msk [vmem:[%s756 + $0xb8] sm:$0xf] %vm280, %v5338
      %v5497 = vld [vmem:[%s756 + $0xbc] sm:$0x1]
      %v5498 = vsel %vm291, %v5339, %v5497
      %5499 = vst [vmem:[%s756 + $0xbc] sm:$0x1] %v5498
      %v5500 = vld [vmem:[#allocation2] sm:$0xf]
      %v5501 = vld [vmem:[#allocation2 + $0x4] sm:$0xf]
      %v5502 = vld [vmem:[#allocation2 + $0xc] sm:$0xf]
      %v5503 = vld [vmem:[#allocation2 + $0x10] sm:$0xf]
      %v5504 = vld [vmem:[#allocation2 + $0x18] sm:$0xf]
      %v5505 = vld [vmem:[#allocation2 + $0x1c] sm:$0xf]
      %v5506 = vld [vmem:[#allocation2 + $0x24] sm:$0xf]
      %v5507 = vld [vmem:[#allocation2 + $0x28] sm:$0xf]
      %v5508 = vld [vmem:[#allocation2 + $0x30] sm:$0xf]
      %v5509 = vld [vmem:[#allocation2 + $0x34] sm:$0xf]
      %v5510 = vld [vmem:[#allocation2 + $0x3c] sm:$0xf]
      %v5511 = vld [vmem:[#allocation2 + $0x40] sm:$0xf]
      %v5512 = vld [vmem:[#allocation2 + $0x48] sm:$0xf]
      %v5513 = vld [vmem:[#allocation2 + $0x4c] sm:$0xf]
      %v5514 = vld [vmem:[#allocation2 + $0x54] sm:$0xf]
      %v5515 = vld [vmem:[#allocation2 + $0x58] sm:$0xf]
      %v5516 = vld [vmem:[#allocation2 + $0x60] sm:$0xf]
      %v5517 = vld [vmem:[#allocation2 + $0x64] sm:$0xf]
      %v5518 = vld [vmem:[#allocation2 + $0x6c] sm:$0xf]
      %v5519 = vld [vmem:[#allocation2 + $0x70] sm:$0xf]
      %v5520 = vld [vmem:[#allocation2 + $0x78] sm:$0xf]
      %v5521 = vld [vmem:[#allocation2 + $0x7c] sm:$0xf]
      %v5522 = vld [vmem:[#allocation2 + $0x84] sm:$0xf]
      %v5523 = vld [vmem:[#allocation2 + $0x88] sm:$0xf]
      %v5524 = vld [vmem:[#allocation2 + $0x90] sm:$0xf]
      %v5525 = vld [vmem:[#allocation2 + $0x94] sm:$0xf]
      %v5526 = vld [vmem:[#allocation2 + $0x9c] sm:$0xf]
      %v5527 = vld [vmem:[#allocation2 + $0xa0] sm:$0xf]
      %v5528 = vld [vmem:[#allocation2 + $0xa8] sm:$0xf]
      %v5529 = vld [vmem:[#allocation2 + $0xac] sm:$0xf]
      %v5530 = vld [vmem:[#allocation2 + $0xb4] sm:$0xf]
      %v5531 = vld [vmem:[#allocation2 + $0xb8] sm:$0xf]
      %v5532 = vld [vmem:[#allocation2 + $0x8] sm:$0x1]
      %v5533 = vld [vmem:[#allocation2 + $0x14] sm:$0x1]
      %v5534 = vld [vmem:[#allocation2 + $0x20] sm:$0x1]
      %v5535 = vld [vmem:[#allocation2 + $0x2c] sm:$0x1]
      %v5536 = vld [vmem:[#allocation2 + $0x38] sm:$0x1]
      %v5537 = vld [vmem:[#allocation2 + $0x44] sm:$0x1]
      %v5538 = vld [vmem:[#allocation2 + $0x50] sm:$0x1]
      %v5539 = vld [vmem:[#allocation2 + $0x5c] sm:$0x1]
      %v5540 = vld [vmem:[#allocation2 + $0x68] sm:$0x1]
      %v5541 = vld [vmem:[#allocation2 + $0x74] sm:$0x1]
      %v5542 = vld [vmem:[#allocation2 + $0x80] sm:$0x1]
      %v5543 = vld [vmem:[#allocation2 + $0x8c] sm:$0x1]
      %v5544 = vld [vmem:[#allocation2 + $0x98] sm:$0x1]
      %v5545 = vld [vmem:[#allocation2 + $0xa4] sm:$0x1]
      %v5546 = vld [vmem:[#allocation2 + $0xb0] sm:$0x1]
      %v5547 = vld [vmem:[#allocation2 + $0xbc] sm:$0x1]
      %v5549 = vshrl.u32 %v5500, 16
      %v5551 = vrot.slane %v5549, 4
      %v5552 = vshll.u32 %v5500, 16
      %v5554 = vrot.slane %v5552, 5
      %v5555 = vor.u32 %v5551, %v5554
      %v5556 = vrot.slane %v5555, 4
      %v5558 = vshll.u32 %v5501, 16
      %v5560 = vrot.slane %v5558, 5
      %v5561 = vsel %vm921, %v5556, %v5560
      %v5562 = vshrl.u32 %v5501, 16
      %v5564 = vrot.slane %v5562, 4
      %v5565 = vor.u32 %v5564, %v5560
      %v5566 = vrot.slane %v5565, 4
      %v5568 = vshll.u32 %v5532, 16
      %v5570 = vrot.slane %v5568, 5
      %v5571 = vsel %vm921, %v5566, %v5570
      %v5573 = vshrl.u32 %v5502, 16
      %v5575 = vrot.slane %v5573, 4
      %v5576 = vshll.u32 %v5502, 16
      %v5578 = vrot.slane %v5576, 5
      %v5579 = vor.u32 %v5575, %v5578
      %v5580 = vrot.slane %v5579, 4
      %v5582 = vshll.u32 %v5503, 16
      %v5584 = vrot.slane %v5582, 5
      %v5585 = vsel %vm921, %v5580, %v5584
      %v5586 = vshrl.u32 %v5503, 16
      %v5588 = vrot.slane %v5586, 4
      %v5589 = vor.u32 %v5588, %v5584
      %v5590 = vrot.slane %v5589, 4
      %v5592 = vshll.u32 %v5533, 16
      %v5594 = vrot.slane %v5592, 5
      %v5595 = vsel %vm921, %v5590, %v5594
      %v5597 = vshrl.u32 %v5504, 16
      %v5599 = vrot.slane %v5597, 4
      %v5600 = vshll.u32 %v5504, 16
      %v5602 = vrot.slane %v5600, 5
      %v5603 = vor.u32 %v5599, %v5602
      %v5604 = vrot.slane %v5603, 4
      %v5606 = vshll.u32 %v5505, 16
      %v5608 = vrot.slane %v5606, 5
      %v5609 = vsel %vm921, %v5604, %v5608
      %v5610 = vshrl.u32 %v5505, 16
      %v5612 = vrot.slane %v5610, 4
      %v5613 = vor.u32 %v5612, %v5608
      %v5614 = vrot.slane %v5613, 4
      %v5616 = vshll.u32 %v5534, 16
      %v5618 = vrot.slane %v5616, 5
      %v5619 = vsel %vm921, %v5614, %v5618
      %v5621 = vshrl.u32 %v5506, 16
      %v5623 = vrot.slane %v5621, 4
      %v5624 = vshll.u32 %v5506, 16
      %v5626 = vrot.slane %v5624, 5
      %v5627 = vor.u32 %v5623, %v5626
      %v5628 = vrot.slane %v5627, 4
      %v5630 = vshll.u32 %v5507, 16
      %v5632 = vrot.slane %v5630, 5
      %v5633 = vsel %vm921, %v5628, %v5632
      %v5634 = vshrl.u32 %v5507, 16
      %v5636 = vrot.slane %v5634, 4
      %v5637 = vor.u32 %v5636, %v5632
      %v5638 = vrot.slane %v5637, 4
      %v5640 = vshll.u32 %v5535, 16
      %v5642 = vrot.slane %v5640, 5
      %v5643 = vsel %vm921, %v5638, %v5642
      %v5645 = vshrl.u32 %v5508, 16
      %v5647 = vrot.slane %v5645, 4
      %v5648 = vshll.u32 %v5508, 16
      %v5650 = vrot.slane %v5648, 5
      %v5651 = vor.u32 %v5647, %v5650
      %v5652 = vrot.slane %v5651, 4
      %v5654 = vshll.u32 %v5509, 16
      %v5656 = vrot.slane %v5654, 5
      %v5657 = vsel %vm921, %v5652, %v5656
      %v5658 = vshrl.u32 %v5509, 16
      %v5660 = vrot.slane %v5658, 4
      %v5661 = vor.u32 %v5660, %v5656
      %v5662 = vrot.slane %v5661, 4
      %v5664 = vshll.u32 %v5536, 16
      %v5666 = vrot.slane %v5664, 5
      %v5667 = vsel %vm921, %v5662, %v5666
      %v5669 = vshrl.u32 %v5510, 16
      %v5671 = vrot.slane %v5669, 4
      %v5672 = vshll.u32 %v5510, 16
      %v5674 = vrot.slane %v5672, 5
      %v5675 = vor.u32 %v5671, %v5674
      %v5676 = vrot.slane %v5675, 4
      %v5678 = vshll.u32 %v5511, 16
      %v5680 = vrot.slane %v5678, 5
      %v5681 = vsel %vm921, %v5676, %v5680
      %v5682 = vshrl.u32 %v5511, 16
      %v5684 = vrot.slane %v5682, 4
      %v5685 = vor.u32 %v5684, %v5680
      %v5686 = vrot.slane %v5685, 4
      %v5688 = vshll.u32 %v5537, 16
      %v5690 = vrot.slane %v5688, 5
      %v5691 = vsel %vm921, %v5686, %v5690
      %v5693 = vshrl.u32 %v5512, 16
      %v5695 = vrot.slane %v5693, 4
      %v5696 = vshll.u32 %v5512, 16
      %v5698 = vrot.slane %v5696, 5
      %v5699 = vor.u32 %v5695, %v5698
      %v5700 = vrot.slane %v5699, 4
      %v5702 = vshll.u32 %v5513, 16
      %v5704 = vrot.slane %v5702, 5
      %v5705 = vsel %vm921, %v5700, %v5704
      %v5706 = vshrl.u32 %v5513, 16
      %v5708 = vrot.slane %v5706, 4
      %v5709 = vor.u32 %v5708, %v5704
      %v5710 = vrot.slane %v5709, 4
      %v5712 = vshll.u32 %v5538, 16
      %v5714 = vrot.slane %v5712, 5
      %v5715 = vsel %vm921, %v5710, %v5714
      %v5717 = vshrl.u32 %v5514, 16
      %v5719 = vrot.slane %v5717, 4
      %v5720 = vshll.u32 %v5514, 16
      %v5722 = vrot.slane %v5720, 5
      %v5723 = vor.u32 %v5719, %v5722
      %v5724 = vrot.slane %v5723, 4
      %v5726 = vshll.u32 %v5515, 16
      %v5728 = vrot.slane %v5726, 5
      %v5729 = vsel %vm921, %v5724, %v5728
      %v5730 = vshrl.u32 %v5515, 16
      %v5732 = vrot.slane %v5730, 4
      %v5733 = vor.u32 %v5732, %v5728
      %v5734 = vrot.slane %v5733, 4
      %v5736 = vshll.u32 %v5539, 16
      %v5738 = vrot.slane %v5736, 5
      %v5739 = vsel %vm921, %v5734, %v5738
      %v5741 = vshrl.u32 %v5516, 16
      %v5743 = vrot.slane %v5741, 4
      %v5744 = vshll.u32 %v5516, 16
      %v5746 = vrot.slane %v5744, 5
      %v5747 = vor.u32 %v5743, %v5746
      %v5748 = vrot.slane %v5747, 4
      %v5750 = vshll.u32 %v5517, 16
      %v5752 = vrot.slane %v5750, 5
      %v5753 = vsel %vm921, %v5748, %v5752
      %v5754 = vshrl.u32 %v5517, 16
      %v5756 = vrot.slane %v5754, 4
      %v5757 = vor.u32 %v5756, %v5752
      %v5758 = vrot.slane %v5757, 4
      %v5760 = vshll.u32 %v5540, 16
      %v5762 = vrot.slane %v5760, 5
      %v5763 = vsel %vm921, %v5758, %v5762
      %v5765 = vshrl.u32 %v5518, 16
      %v5767 = vrot.slane %v5765, 4
      %v5768 = vshll.u32 %v5518, 16
      %v5770 = vrot.slane %v5768, 5
      %v5771 = vor.u32 %v5767, %v5770
      %v5772 = vrot.slane %v5771, 4
      %v5774 = vshll.u32 %v5519, 16
      %v5776 = vrot.slane %v5774, 5
      %v5777 = vsel %vm921, %v5772, %v5776
      %v5778 = vshrl.u32 %v5519, 16
      %v5780 = vrot.slane %v5778, 4
      %v5781 = vor.u32 %v5780, %v5776
      %v5782 = vrot.slane %v5781, 4
      %v5784 = vshll.u32 %v5541, 16
      %v5786 = vrot.slane %v5784, 5
      %v5787 = vsel %vm921, %v5782, %v5786
      %v5789 = vshrl.u32 %v5520, 16
      %v5791 = vrot.slane %v5789, 4
      %v5792 = vshll.u32 %v5520, 16
      %v5794 = vrot.slane %v5792, 5
      %v5795 = vor.u32 %v5791, %v5794
      %v5796 = vrot.slane %v5795, 4
      %v5798 = vshll.u32 %v5521, 16
      %v5800 = vrot.slane %v5798, 5
      %v5801 = vsel %vm921, %v5796, %v5800
      %v5802 = vshrl.u32 %v5521, 16
      %v5804 = vrot.slane %v5802, 4
      %v5805 = vor.u32 %v5804, %v5800
      %v5806 = vrot.slane %v5805, 4
      %v5808 = vshll.u32 %v5542, 16
      %v5810 = vrot.slane %v5808, 5
      %v5811 = vsel %vm921, %v5806, %v5810
      %v5813 = vshrl.u32 %v5522, 16
      %v5815 = vrot.slane %v5813, 4
      %v5816 = vshll.u32 %v5522, 16
      %v5818 = vrot.slane %v5816, 5
      %v5819 = vor.u32 %v5815, %v5818
      %v5820 = vrot.slane %v5819, 4
      %v5822 = vshll.u32 %v5523, 16
      %v5824 = vrot.slane %v5822, 5
      %v5825 = vsel %vm921, %v5820, %v5824
      %v5826 = vshrl.u32 %v5523, 16
      %v5828 = vrot.slane %v5826, 4
      %v5829 = vor.u32 %v5828, %v5824
      %v5830 = vrot.slane %v5829, 4
      %v5832 = vshll.u32 %v5543, 16
      %v5834 = vrot.slane %v5832, 5
      %v5835 = vsel %vm921, %v5830, %v5834
      %v5837 = vshrl.u32 %v5524, 16
      %v5839 = vrot.slane %v5837, 4
      %v5840 = vshll.u32 %v5524, 16
      %v5842 = vrot.slane %v5840, 5
      %v5843 = vor.u32 %v5839, %v5842
      %v5844 = vrot.slane %v5843, 4
      %v5846 = vshll.u32 %v5525, 16
      %v5848 = vrot.slane %v5846, 5
      %v5849 = vsel %vm921, %v5844, %v5848
      %v5850 = vshrl.u32 %v5525, 16
      %v5852 = vrot.slane %v5850, 4
      %v5853 = vor.u32 %v5852, %v5848
      %v5854 = vrot.slane %v5853, 4
      %v5856 = vshll.u32 %v5544, 16
      %v5858 = vrot.slane %v5856, 5
      %v5859 = vsel %vm921, %v5854, %v5858
      %v5861 = vshrl.u32 %v5526, 16
      %v5863 = vrot.slane %v5861, 4
      %v5864 = vshll.u32 %v5526, 16
      %v5866 = vrot.slane %v5864, 5
      %v5867 = vor.u32 %v5863, %v5866
      %v5868 = vrot.slane %v5867, 4
      %v5870 = vshll.u32 %v5527, 16
      %v5872 = vrot.slane %v5870, 5
      %v5873 = vsel %vm921, %v5868, %v5872
      %v5874 = vshrl.u32 %v5527, 16
      %v5876 = vrot.slane %v5874, 4
      %v5877 = vor.u32 %v5876, %v5872
      %v5878 = vrot.slane %v5877, 4
      %v5880 = vshll.u32 %v5545, 16
      %v5882 = vrot.slane %v5880, 5
      %v5883 = vsel %vm921, %v5878, %v5882
      %v5885 = vshrl.u32 %v5528, 16
      %v5887 = vrot.slane %v5885, 4
      %v5888 = vshll.u32 %v5528, 16
      %v5890 = vrot.slane %v5888, 5
      %v5891 = vor.u32 %v5887, %v5890
      %v5892 = vrot.slane %v5891, 4
      %v5894 = vshll.u32 %v5529, 16
      %v5896 = vrot.slane %v5894, 5
      %v5897 = vsel %vm921, %v5892, %v5896
      %v5898 = vshrl.u32 %v5529, 16
      %v5900 = vrot.slane %v5898, 4
      %v5901 = vor.u32 %v5900, %v5896
      %v5902 = vrot.slane %v5901, 4
      %v5904 = vshll.u32 %v5546, 16
      %v5906 = vrot.slane %v5904, 5
      %v5907 = vsel %vm921, %v5902, %v5906
      %v5909 = vshrl.u32 %v5530, 16
      %v5911 = vrot.slane %v5909, 4
      %v5912 = vshll.u32 %v5530, 16
      %v5914 = vrot.slane %v5912, 5
      %v5915 = vor.u32 %v5911, %v5914
      %v5916 = vrot.slane %v5915, 4
      %v5918 = vshll.u32 %v5531, 16
      %v5920 = vrot.slane %v5918, 5
      %v5921 = vsel %vm921, %v5916, %v5920
      %v5922 = vshrl.u32 %v5531, 16
      %v5924 = vrot.slane %v5922, 4
      %v5925 = vor.u32 %v5924, %v5920
      %v5926 = vrot.slane %v5925, 4
      %v5928 = vshll.u32 %v5547, 16
      %v5930 = vrot.slane %v5928, 5
      %v5931 = vsel %vm921, %v5926, %v5930
      %v5964 = vunpack.c.l.b16 %v5500
      %v5965 = vunpack.c.l.b16 %v5501
      %v5966 = vunpack.c.l.b16 %v5502
      %v5967 = vunpack.c.l.b16 %v5503
      %v5968 = vunpack.c.l.b16 %v5504
      %v5969 = vunpack.c.l.b16 %v5505
      %v5970 = vunpack.c.l.b16 %v5506
      %v5971 = vunpack.c.l.b16 %v5507
      %v5972 = vunpack.c.l.b16 %v5508
      %v5973 = vunpack.c.l.b16 %v5509
      %v5974 = vunpack.c.l.b16 %v5510
      %v5975 = vunpack.c.l.b16 %v5511
      %v5976 = vunpack.c.l.b16 %v5512
      %v5977 = vunpack.c.l.b16 %v5513
      %v5978 = vunpack.c.l.b16 %v5514
      %v5979 = vunpack.c.l.b16 %v5515
      %v5980 = vunpack.c.l.b16 %v5516
      %v5981 = vunpack.c.l.b16 %v5517
      %v5982 = vunpack.c.l.b16 %v5518
      %v5983 = vunpack.c.l.b16 %v5519
      %v5984 = vunpack.c.l.b16 %v5520
      %v5985 = vunpack.c.l.b16 %v5521
      %v5986 = vunpack.c.l.b16 %v5522
      %v5987 = vunpack.c.l.b16 %v5523
      %v5988 = vunpack.c.l.b16 %v5524
      %v5989 = vunpack.c.l.b16 %v5525
      %v5990 = vunpack.c.l.b16 %v5526
      %v5991 = vunpack.c.l.b16 %v5527
      %v5992 = vunpack.c.l.b16 %v5528
      %v5993 = vunpack.c.l.b16 %v5529
      %v5994 = vunpack.c.l.b16 %v5530
      %v5995 = vunpack.c.l.b16 %v5531
      %v5996 = vpack.c.b16 %v5965, %v5964
      %v5997 = vpack.c.b16 %v5967, %v5966
      %v5998 = vpack.c.b16 %v5969, %v5968
      %v5999 = vpack.c.b16 %v5971, %v5970
      %v6000 = vpack.c.b16 %v5973, %v5972
      %v6001 = vpack.c.b16 %v5975, %v5974
      %v6002 = vpack.c.b16 %v5977, %v5976
      %v6003 = vpack.c.b16 %v5979, %v5978
      %v6004 = vpack.c.b16 %v5981, %v5980
      %v6005 = vpack.c.b16 %v5983, %v5982
      %v6006 = vpack.c.b16 %v5985, %v5984
      %v6007 = vpack.c.b16 %v5987, %v5986
      %v6008 = vpack.c.b16 %v5989, %v5988
      %v6009 = vpack.c.b16 %v5991, %v5990
      %v6010 = vpack.c.b16 %v5993, %v5992
      %v6011 = vpack.c.b16 %v5995, %v5994
      %v6012 = vunpack.c.l.b16 %v5561
      %v6013 = vunpack.c.l.b16 %v5571
      %v6014 = vunpack.c.l.b16 %v5585
      %v6015 = vunpack.c.l.b16 %v5595
      %v6016 = vunpack.c.l.b16 %v5609
      %v6017 = vunpack.c.l.b16 %v5619
      %v6018 = vunpack.c.l.b16 %v5633
      %v6019 = vunpack.c.l.b16 %v5643
      %v6020 = vunpack.c.l.b16 %v5657
      %v6021 = vunpack.c.l.b16 %v5667
      %v6022 = vunpack.c.l.b16 %v5681
      %v6023 = vunpack.c.l.b16 %v5691
      %v6024 = vunpack.c.l.b16 %v5705
      %v6025 = vunpack.c.l.b16 %v5715
      %v6026 = vunpack.c.l.b16 %v5729
      %v6027 = vunpack.c.l.b16 %v5739
      %v6028 = vunpack.c.l.b16 %v5753
      %v6029 = vunpack.c.l.b16 %v5763
      %v6030 = vunpack.c.l.b16 %v5777
      %v6031 = vunpack.c.l.b16 %v5787
      %v6032 = vunpack.c.l.b16 %v5801
      %v6033 = vunpack.c.l.b16 %v5811
      %v6034 = vunpack.c.l.b16 %v5825
      %v6035 = vunpack.c.l.b16 %v5835
      %v6036 = vunpack.c.l.b16 %v5849
      %v6037 = vunpack.c.l.b16 %v5859
      %v6038 = vunpack.c.l.b16 %v5873
      %v6039 = vunpack.c.l.b16 %v5883
      %v6040 = vunpack.c.l.b16 %v5897
      %v6041 = vunpack.c.l.b16 %v5907
      %v6042 = vunpack.c.l.b16 %v5921
      %v6043 = vunpack.c.l.b16 %v5931
      %v6044 = vpack.c.b16 %v6013, %v6012
      %v6045 = vpack.c.b16 %v6015, %v6014
      %v6046 = vpack.c.b16 %v6017, %v6016
      %v6047 = vpack.c.b16 %v6019, %v6018
      %v6048 = vpack.c.b16 %v6021, %v6020
      %v6049 = vpack.c.b16 %v6023, %v6022
      %v6050 = vpack.c.b16 %v6025, %v6024
      %v6051 = vpack.c.b16 %v6027, %v6026
      %v6052 = vpack.c.b16 %v6029, %v6028
      %v6053 = vpack.c.b16 %v6031, %v6030
      %v6054 = vpack.c.b16 %v6033, %v6032
      %v6055 = vpack.c.b16 %v6035, %v6034
      %v6056 = vpack.c.b16 %v6037, %v6036
      %v6057 = vpack.c.b16 %v6039, %v6038
      %v6058 = vpack.c.b16 %v6041, %v6040
      %v6059 = vpack.c.b16 %v6043, %v6042
      %6060 = vrot.lane.b32.xlu0 %v6044, 8
      %v6061 = vpop.permute.xlu0 %6060
      %6062 = vrot.lane.b32.xlu0 %v6045, 8
      %v6063 = vpop.permute.xlu0 %6062
      %6064 = vrot.lane.b32.xlu0 %v6046, 8
      %v6065 = vpop.permute.xlu0 %6064
      %6066 = vrot.lane.b32.xlu0 %v6047, 8
      %v6067 = vpop.permute.xlu0 %6066
      %6068 = vrot.lane.b32.xlu0 %v6048, 8
      %v6069 = vpop.permute.xlu0 %6068
      %6070 = vrot.lane.b32.xlu0 %v6049, 8
      %v6071 = vpop.permute.xlu0 %6070
      %6072 = vrot.lane.b32.xlu0 %v6050, 8
      %v6073 = vpop.permute.xlu0 %6072
      %6074 = vrot.lane.b32.xlu0 %v6051, 8
      %v6075 = vpop.permute.xlu0 %6074
      %6076 = vrot.lane.b32.xlu0 %v6052, 8
      %v6077 = vpop.permute.xlu0 %6076
      %6078 = vrot.lane.b32.xlu0 %v6053, 8
      %v6079 = vpop.permute.xlu0 %6078
      %6080 = vrot.lane.b32.xlu0 %v6054, 8
      %v6081 = vpop.permute.xlu0 %6080
      %6082 = vrot.lane.b32.xlu0 %v6055, 8
      %v6083 = vpop.permute.xlu0 %6082
      %6084 = vrot.lane.b32.xlu0 %v6056, 8
      %v6085 = vpop.permute.xlu0 %6084
      %6086 = vrot.lane.b32.xlu0 %v6057, 8
      %v6087 = vpop.permute.xlu0 %6086
      %6088 = vrot.lane.b32.xlu0 %v6058, 8
      %v6089 = vpop.permute.xlu0 %6088
      %6090 = vrot.lane.b32.xlu0 %v6059, 8
      %v6091 = vpop.permute.xlu0 %6090
      %v6094 = vsel %vm1466, %v5996, %v6061
      %v6097 = vsel %vm1466, %v5997, %v6063
      %v6100 = vsel %vm1466, %v5998, %v6065
      %v6103 = vsel %vm1466, %v5999, %v6067
      %v6106 = vsel %vm1466, %v6000, %v6069
      %v6109 = vsel %vm1466, %v6001, %v6071
      %v6112 = vsel %vm1466, %v6002, %v6073
      %v6115 = vsel %vm1466, %v6003, %v6075
      %v6118 = vsel %vm1466, %v6004, %v6077
      %v6121 = vsel %vm1466, %v6005, %v6079
      %v6124 = vsel %vm1466, %v6006, %v6081
      %v6127 = vsel %vm1466, %v6007, %v6083
      %v6130 = vsel %vm1466, %v6008, %v6085
      %v6133 = vsel %vm1466, %v6009, %v6087
      %v6136 = vsel %vm1466, %v6010, %v6089
      %v6139 = vsel %vm1466, %v6011, %v6091
      %v6156 = vunpack.c.l.b16 %v6094
      %v6157 = vunpack.c.h.b16 %v6094
      %v6158 = vunpack.c.l.b16 %v6097
      %v6159 = vunpack.c.h.b16 %v6097
      %v6160 = vunpack.c.l.b16 %v6100
      %v6161 = vunpack.c.h.b16 %v6100
      %v6162 = vunpack.c.l.b16 %v6103
      %v6163 = vunpack.c.h.b16 %v6103
      %v6164 = vunpack.c.l.b16 %v6106
      %v6165 = vunpack.c.h.b16 %v6106
      %v6166 = vunpack.c.l.b16 %v6109
      %v6167 = vunpack.c.h.b16 %v6109
      %v6168 = vunpack.c.l.b16 %v6112
      %v6169 = vunpack.c.h.b16 %v6112
      %v6170 = vunpack.c.l.b16 %v6115
      %v6171 = vunpack.c.h.b16 %v6115
      %v6172 = vunpack.c.l.b16 %v6118
      %v6173 = vunpack.c.h.b16 %v6118
      %v6174 = vunpack.c.l.b16 %v6121
      %v6175 = vunpack.c.h.b16 %v6121
      %v6176 = vunpack.c.l.b16 %v6124
      %v6177 = vunpack.c.h.b16 %v6124
      %v6178 = vunpack.c.l.b16 %v6127
      %v6179 = vunpack.c.h.b16 %v6127
      %v6180 = vunpack.c.l.b16 %v6130
      %v6181 = vunpack.c.h.b16 %v6130
      %v6182 = vunpack.c.l.b16 %v6133
      %v6183 = vunpack.c.h.b16 %v6133
      %v6184 = vunpack.c.l.b16 %v6136
      %v6185 = vunpack.c.h.b16 %v6136
      %v6186 = vunpack.c.l.b16 %v6139
      %v6187 = vunpack.c.h.b16 %v6139
      %v6188 = vpack.c.b16 %v6156, %v6156
      %v6189 = vpack.c.b16 %v6157, %v6157
      %v6190 = vpack.c.b16 %v6158, %v6158
      %v6191 = vpack.c.b16 %v6159, %v6159
      %v6192 = vpack.c.b16 %v6160, %v6160
      %v6193 = vpack.c.b16 %v6161, %v6161
      %v6194 = vpack.c.b16 %v6162, %v6162
      %v6195 = vpack.c.b16 %v6163, %v6163
      %v6196 = vpack.c.b16 %v6164, %v6164
      %v6197 = vpack.c.b16 %v6165, %v6165
      %v6198 = vpack.c.b16 %v6166, %v6166
      %v6199 = vpack.c.b16 %v6167, %v6167
      %v6200 = vpack.c.b16 %v6168, %v6168
      %v6201 = vpack.c.b16 %v6169, %v6169
      %v6202 = vpack.c.b16 %v6170, %v6170
      %v6203 = vpack.c.b16 %v6171, %v6171
      %v6204 = vpack.c.b16 %v6172, %v6172
      %v6205 = vpack.c.b16 %v6173, %v6173
      %v6206 = vpack.c.b16 %v6174, %v6174
      %v6207 = vpack.c.b16 %v6175, %v6175
      %v6208 = vpack.c.b16 %v6176, %v6176
      %v6209 = vpack.c.b16 %v6177, %v6177
      %v6210 = vpack.c.b16 %v6178, %v6178
      %v6211 = vpack.c.b16 %v6179, %v6179
      %v6212 = vpack.c.b16 %v6180, %v6180
      %v6213 = vpack.c.b16 %v6181, %v6181
      %v6214 = vpack.c.b16 %v6182, %v6182
      %v6215 = vpack.c.b16 %v6183, %v6183
      %v6216 = vpack.c.b16 %v6184, %v6184
      %v6217 = vpack.c.b16 %v6185, %v6185
      %v6218 = vpack.c.b16 %v6186, %v6186
      %v6219 = vpack.c.b16 %v6187, %v6187
      %6252 = vst.msk [vmem:[#allocation3] sm:$0xf] %vm1627, %v6188
      %6253 = vst.msk [vmem:[#allocation3 + $0x4] sm:$0xf] %vm1627, %v6189
      %6254 = vst.msk [vmem:[#allocation3 + $0x8] sm:$0xf] %vm1627, %v6190
      %6255 = vst.msk [vmem:[#allocation3 + $0xc] sm:$0xf] %vm1627, %v6191
      %6256 = vst.msk [vmem:[#allocation3 + $0x10] sm:$0xf] %vm1627, %v6192
      %6257 = vst.msk [vmem:[#allocation3 + $0x14] sm:$0xf] %vm1627, %v6193
      %6258 = vst.msk [vmem:[#allocation3 + $0x18] sm:$0xf] %vm1627, %v6194
      %6259 = vst.msk [vmem:[#allocation3 + $0x1c] sm:$0xf] %vm1627, %v6195
      %6260 = vst.msk [vmem:[#allocation3 + $0x20] sm:$0xf] %vm1627, %v6196
      %6261 = vst.msk [vmem:[#allocation3 + $0x24] sm:$0xf] %vm1627, %v6197
      %6262 = vst.msk [vmem:[#allocation3 + $0x28] sm:$0xf] %vm1627, %v6198
      %6263 = vst.msk [vmem:[#allocation3 + $0x2c] sm:$0xf] %vm1627, %v6199
      %6264 = vst.msk [vmem:[#allocation3 + $0x30] sm:$0xf] %vm1627, %v6200
      %6265 = vst.msk [vmem:[#allocation3 + $0x34] sm:$0xf] %vm1627, %v6201
      %6266 = vst.msk [vmem:[#allocation3 + $0x38] sm:$0xf] %vm1627, %v6202
      %6267 = vst.msk [vmem:[#allocation3 + $0x3c] sm:$0xf] %vm1627, %v6203
      %6268 = vst.msk [vmem:[#allocation3 + $0x40] sm:$0xf] %vm1627, %v6204
      %6269 = vst.msk [vmem:[#allocation3 + $0x44] sm:$0xf] %vm1627, %v6205
      %6270 = vst.msk [vmem:[#allocation3 + $0x48] sm:$0xf] %vm1627, %v6206
      %6271 = vst.msk [vmem:[#allocation3 + $0x4c] sm:$0xf] %vm1627, %v6207
      %6272 = vst.msk [vmem:[#allocation3 + $0x50] sm:$0xf] %vm1627, %v6208
      %6273 = vst.msk [vmem:[#allocation3 + $0x54] sm:$0xf] %vm1627, %v6209
      %6274 = vst.msk [vmem:[#allocation3 + $0x58] sm:$0xf] %vm1627, %v6210
      %6275 = vst.msk [vmem:[#allocation3 + $0x5c] sm:$0xf] %vm1627, %v6211
      %6276 = vst.msk [vmem:[#allocation3 + $0x60] sm:$0xf] %vm1627, %v6212
      %6277 = vst.msk [vmem:[#allocation3 + $0x64] sm:$0xf] %vm1627, %v6213
      %6278 = vst.msk [vmem:[#allocation3 + $0x68] sm:$0xf] %vm1627, %v6214
      %6279 = vst.msk [vmem:[#allocation3 + $0x6c] sm:$0xf] %vm1627, %v6215
      %6280 = vst.msk [vmem:[#allocation3 + $0x70] sm:$0xf] %vm1627, %v6216
      %6281 = vst.msk [vmem:[#allocation3 + $0x74] sm:$0xf] %vm1627, %v6217
      %6282 = vst.msk [vmem:[#allocation3 + $0x78] sm:$0xf] %vm1627, %v6218
      %6283 = vst.msk [vmem:[#allocation3 + $0x7c] sm:$0xf] %vm1627, %v6219
      %v6284 = vld [vmem:[#allocation2] sm:$0xe]
      %v6285 = vld [vmem:[#allocation2 + $0x4] sm:$0xf]
      %v6286 = vld [vmem:[#allocation2 + $0x8] sm:$0x1]
      %v6287 = vld [vmem:[#allocation2 + $0xc] sm:$0xe]
      %v6288 = vld [vmem:[#allocation2 + $0x10] sm:$0xf]
      %v6289 = vld [vmem:[#allocation2 + $0x14] sm:$0x1]
      %v6290 = vld [vmem:[#allocation2 + $0x18] sm:$0xe]
      %v6291 = vld [vmem:[#allocation2 + $0x1c] sm:$0xf]
      %v6292 = vld [vmem:[#allocation2 + $0x20] sm:$0x1]
      %v6293 = vld [vmem:[#allocation2 + $0x24] sm:$0xe]
      %v6294 = vld [vmem:[#allocation2 + $0x28] sm:$0xf]
      %v6295 = vld [vmem:[#allocation2 + $0x2c] sm:$0x1]
      %v6296 = vld [vmem:[#allocation2 + $0x30] sm:$0xe]
      %v6297 = vld [vmem:[#allocation2 + $0x34] sm:$0xf]
      %v6298 = vld [vmem:[#allocation2 + $0x38] sm:$0x1]
      %v6299 = vld [vmem:[#allocation2 + $0x3c] sm:$0xe]
      %v6300 = vld [vmem:[#allocation2 + $0x40] sm:$0xf]
      %v6301 = vld [vmem:[#allocation2 + $0x44] sm:$0x1]
      %v6302 = vld [vmem:[#allocation2 + $0x48] sm:$0xe]
      %v6303 = vld [vmem:[#allocation2 + $0x4c] sm:$0xf]
      %v6304 = vld [vmem:[#allocation2 + $0x50] sm:$0x1]
      %v6305 = vld [vmem:[#allocation2 + $0x54] sm:$0xe]
      %v6306 = vld [vmem:[#allocation2 + $0x58] sm:$0xf]
      %v6307 = vld [vmem:[#allocation2 + $0x5c] sm:$0x1]
      %v6308 = vld [vmem:[#allocation2 + $0x60] sm:$0xe]
      %v6309 = vld [vmem:[#allocation2 + $0x64] sm:$0xf]
      %v6310 = vld [vmem:[#allocation2 + $0x68] sm:$0x1]
      %v6311 = vld [vmem:[#allocation2 + $0x6c] sm:$0xe]
      %v6312 = vld [vmem:[#allocation2 + $0x70] sm:$0xf]
      %v6313 = vld [vmem:[#allocation2 + $0x74] sm:$0x1]
      %v6314 = vld [vmem:[#allocation2 + $0x78] sm:$0xe]
      %v6315 = vld [vmem:[#allocation2 + $0x7c] sm:$0xf]
      %v6316 = vld [vmem:[#allocation2 + $0x80] sm:$0x1]
      %v6317 = vld [vmem:[#allocation2 + $0x84] sm:$0xe]
      %v6318 = vld [vmem:[#allocation2 + $0x88] sm:$0xf]
      %v6319 = vld [vmem:[#allocation2 + $0x8c] sm:$0x1]
      %v6320 = vld [vmem:[#allocation2 + $0x90] sm:$0xe]
      %v6321 = vld [vmem:[#allocation2 + $0x94] sm:$0xf]
      %v6322 = vld [vmem:[#allocation2 + $0x98] sm:$0x1]
      %v6323 = vld [vmem:[#allocation2 + $0x9c] sm:$0xe]
      %v6324 = vld [vmem:[#allocation2 + $0xa0] sm:$0xf]
      %v6325 = vld [vmem:[#allocation2 + $0xa4] sm:$0x1]
      %v6326 = vld [vmem:[#allocation2 + $0xa8] sm:$0xe]
      %v6327 = vld [vmem:[#allocation2 + $0xac] sm:$0xf]
      %v6328 = vld [vmem:[#allocation2 + $0xb0] sm:$0x1]
      %v6329 = vld [vmem:[#allocation2 + $0xb4] sm:$0xe]
      %v6330 = vld [vmem:[#allocation2 + $0xb8] sm:$0xf]
      %v6331 = vld [vmem:[#allocation2 + $0xbc] sm:$0x1]
      %v6380 = vrot.slane %v6284, 5
      %v6381 = vrot.slane %v6380, 4
      %v6382 = vrot.slane %v6285, 5
      %v6383 = vsel %vm1758, %v6381, %v6382
      %v6384 = vrot.slane %v6382, 4
      %v6385 = vrot.slane %v6286, 5
      %v6386 = vsel %vm1758, %v6384, %v6385
      %v6387 = vrot.slane %v6287, 5
      %v6388 = vrot.slane %v6387, 4
      %v6389 = vrot.slane %v6288, 5
      %v6390 = vsel %vm1758, %v6388, %v6389
      %v6391 = vrot.slane %v6389, 4
      %v6392 = vrot.slane %v6289, 5
      %v6393 = vsel %vm1758, %v6391, %v6392
      %v6394 = vrot.slane %v6290, 5
      %v6395 = vrot.slane %v6394, 4
      %v6396 = vrot.slane %v6291, 5
      %v6397 = vsel %vm1758, %v6395, %v6396
      %v6398 = vrot.slane %v6396, 4
      %v6399 = vrot.slane %v6292, 5
      %v6400 = vsel %vm1758, %v6398, %v6399
      %v6401 = vrot.slane %v6293, 5
      %v6402 = vrot.slane %v6401, 4
      %v6403 = vrot.slane %v6294, 5
      %v6404 = vsel %vm1758, %v6402, %v6403
      %v6405 = vrot.slane %v6403, 4
      %v6406 = vrot.slane %v6295, 5
      %v6407 = vsel %vm1758, %v6405, %v6406
      %v6408 = vrot.slane %v6296, 5
      %v6409 = vrot.slane %v6408, 4
      %v6410 = vrot.slane %v6297, 5
      %v6411 = vsel %vm1758, %v6409, %v6410
      %v6412 = vrot.slane %v6410, 4
      %v6413 = vrot.slane %v6298, 5
      %v6414 = vsel %vm1758, %v6412, %v6413
      %v6415 = vrot.slane %v6299, 5
      %v6416 = vrot.slane %v6415, 4
      %v6417 = vrot.slane %v6300, 5
      %v6418 = vsel %vm1758, %v6416, %v6417
      %v6419 = vrot.slane %v6417, 4
      %v6420 = vrot.slane %v6301, 5
      %v6421 = vsel %vm1758, %v6419, %v6420
      %v6422 = vrot.slane %v6302, 5
      %v6423 = vrot.slane %v6422, 4
      %v6424 = vrot.slane %v6303, 5
      %v6425 = vsel %vm1758, %v6423, %v6424
      %v6426 = vrot.slane %v6424, 4
      %v6427 = vrot.slane %v6304, 5
      %v6428 = vsel %vm1758, %v6426, %v6427
      %v6429 = vrot.slane %v6305, 5
      %v6430 = vrot.slane %v6429, 4
      %v6431 = vrot.slane %v6306, 5
      %v6432 = vsel %vm1758, %v6430, %v6431
      %v6433 = vrot.slane %v6431, 4
      %v6434 = vrot.slane %v6307, 5
      %v6435 = vsel %vm1758, %v6433, %v6434
      %v6436 = vrot.slane %v6308, 5
      %v6437 = vrot.slane %v6436, 4
      %v6438 = vrot.slane %v6309, 5
      %v6439 = vsel %vm1758, %v6437, %v6438
      %v6440 = vrot.slane %v6438, 4
      %v6441 = vrot.slane %v6310, 5
      %v6442 = vsel %vm1758, %v6440, %v6441
      %v6443 = vrot.slane %v6311, 5
      %v6444 = vrot.slane %v6443, 4
      %v6445 = vrot.slane %v6312, 5
      %v6446 = vsel %vm1758, %v6444, %v6445
      %v6447 = vrot.slane %v6445, 4
      %v6448 = vrot.slane %v6313, 5
      %v6449 = vsel %vm1758, %v6447, %v6448
      %v6450 = vrot.slane %v6314, 5
      %v6451 = vrot.slane %v6450, 4
      %v6452 = vrot.slane %v6315, 5
      %v6453 = vsel %vm1758, %v6451, %v6452
      %v6454 = vrot.slane %v6452, 4
      %v6455 = vrot.slane %v6316, 5
      %v6456 = vsel %vm1758, %v6454, %v6455
      %v6457 = vrot.slane %v6317, 5
      %v6458 = vrot.slane %v6457, 4
      %v6459 = vrot.slane %v6318, 5
      %v6460 = vsel %vm1758, %v6458, %v6459
      %v6461 = vrot.slane %v6459, 4
      %v6462 = vrot.slane %v6319, 5
      %v6463 = vsel %vm1758, %v6461, %v6462
      %v6464 = vrot.slane %v6320, 5
      %v6465 = vrot.slane %v6464, 4
      %v6466 = vrot.slane %v6321, 5
      %v6467 = vsel %vm1758, %v6465, %v6466
      %v6468 = vrot.slane %v6466, 4
      %v6469 = vrot.slane %v6322, 5
      %v6470 = vsel %vm1758, %v6468, %v6469
      %v6471 = vrot.slane %v6323, 5
      %v6472 = vrot.slane %v6471, 4
      %v6473 = vrot.slane %v6324, 5
      %v6474 = vsel %vm1758, %v6472, %v6473
      %v6475 = vrot.slane %v6473, 4
      %v6476 = vrot.slane %v6325, 5
      %v6477 = vsel %vm1758, %v6475, %v6476
      %v6478 = vrot.slane %v6326, 5
      %v6479 = vrot.slane %v6478, 4
      %v6480 = vrot.slane %v6327, 5
      %v6481 = vsel %vm1758, %v6479, %v6480
      %v6482 = vrot.slane %v6480, 4
      %v6483 = vrot.slane %v6328, 5
      %v6484 = vsel %vm1758, %v6482, %v6483
      %v6485 = vrot.slane %v6329, 5
      %v6486 = vrot.slane %v6485, 4
      %v6487 = vrot.slane %v6330, 5
      %v6488 = vsel %vm1758, %v6486, %v6487
      %v6489 = vrot.slane %v6487, 4
      %v6490 = vrot.slane %v6331, 5
      %v6491 = vsel %vm1758, %v6489, %v6490
      %v6492 = vld [vmem:[%s756] sm:$0xf]
      %v6493 = vld [vmem:[%s756 + $0x4] sm:$0xf]
      %v6494 = vld [vmem:[%s756 + $0xc] sm:$0xf]
      %v6495 = vld [vmem:[%s756 + $0x10] sm:$0xf]
      %v6496 = vld [vmem:[%s756 + $0x18] sm:$0xf]
      %v6497 = vld [vmem:[%s756 + $0x1c] sm:$0xf]
      %v6498 = vld [vmem:[%s756 + $0x24] sm:$0xf]
      %v6499 = vld [vmem:[%s756 + $0x28] sm:$0xf]
      %v6500 = vld [vmem:[%s756 + $0x30] sm:$0xf]
      %v6501 = vld [vmem:[%s756 + $0x34] sm:$0xf]
      %v6502 = vld [vmem:[%s756 + $0x3c] sm:$0xf]
      %v6503 = vld [vmem:[%s756 + $0x40] sm:$0xf]
      %v6504 = vld [vmem:[%s756 + $0x48] sm:$0xf]
      %v6505 = vld [vmem:[%s756 + $0x4c] sm:$0xf]
      %v6506 = vld [vmem:[%s756 + $0x54] sm:$0xf]
      %v6507 = vld [vmem:[%s756 + $0x58] sm:$0xf]
      %v6508 = vld [vmem:[%s756 + $0x60] sm:$0xf]
      %v6509 = vld [vmem:[%s756 + $0x64] sm:$0xf]
      %v6510 = vld [vmem:[%s756 + $0x6c] sm:$0xf]
      %v6511 = vld [vmem:[%s756 + $0x70] sm:$0xf]
      %v6512 = vld [vmem:[%s756 + $0x78] sm:$0xf]
      %v6513 = vld [vmem:[%s756 + $0x7c] sm:$0xf]
      %v6514 = vld [vmem:[%s756 + $0x84] sm:$0xf]
      %v6515 = vld [vmem:[%s756 + $0x88] sm:$0xf]
      %v6516 = vld [vmem:[%s756 + $0x90] sm:$0xf]
      %v6517 = vld [vmem:[%s756 + $0x94] sm:$0xf]
      %v6518 = vld [vmem:[%s756 + $0x9c] sm:$0xf]
      %v6519 = vld [vmem:[%s756 + $0xa0] sm:$0xf]
      %v6520 = vld [vmem:[%s756 + $0xa8] sm:$0xf]
      %v6521 = vld [vmem:[%s756 + $0xac] sm:$0xf]
      %v6522 = vld [vmem:[%s756 + $0xb4] sm:$0xf]
      %v6523 = vld [vmem:[%s756 + $0xb8] sm:$0xf]
      %v6524 = vunpack.c.l.b16 %v6383
      %v6525 = vunpack.c.l.b16 %v6386
      %v6526 = vunpack.c.l.b16 %v6390
      %v6527 = vunpack.c.l.b16 %v6393
      %v6528 = vunpack.c.l.b16 %v6397
      %v6529 = vunpack.c.l.b16 %v6400
      %v6530 = vunpack.c.l.b16 %v6404
      %v6531 = vunpack.c.l.b16 %v6407
      %v6532 = vunpack.c.l.b16 %v6411
      %v6533 = vunpack.c.l.b16 %v6414
      %v6534 = vunpack.c.l.b16 %v6418
      %v6535 = vunpack.c.l.b16 %v6421
      %v6536 = vunpack.c.l.b16 %v6425
      %v6537 = vunpack.c.l.b16 %v6428
      %v6538 = vunpack.c.l.b16 %v6432
      %v6539 = vunpack.c.l.b16 %v6435
      %v6540 = vunpack.c.l.b16 %v6439
      %v6541 = vunpack.c.l.b16 %v6442
      %v6542 = vunpack.c.l.b16 %v6446
      %v6543 = vunpack.c.l.b16 %v6449
      %v6544 = vunpack.c.l.b16 %v6453
      %v6545 = vunpack.c.l.b16 %v6456
      %v6546 = vunpack.c.l.b16 %v6460
      %v6547 = vunpack.c.l.b16 %v6463
      %v6548 = vunpack.c.l.b16 %v6467
      %v6549 = vunpack.c.l.b16 %v6470
      %v6550 = vunpack.c.l.b16 %v6474
      %v6551 = vunpack.c.l.b16 %v6477
      %v6552 = vunpack.c.l.b16 %v6481
      %v6553 = vunpack.c.l.b16 %v6484
      %v6554 = vunpack.c.l.b16 %v6488
      %v6555 = vunpack.c.l.b16 %v6491
      %v6556 = vpack.c.b16 %v6525, %v6524
      %v6557 = vpack.c.b16 %v6527, %v6526
      %v6558 = vpack.c.b16 %v6529, %v6528
      %v6559 = vpack.c.b16 %v6531, %v6530
      %v6560 = vpack.c.b16 %v6533, %v6532
      %v6561 = vpack.c.b16 %v6535, %v6534
      %v6562 = vpack.c.b16 %v6537, %v6536
      %v6563 = vpack.c.b16 %v6539, %v6538
      %v6564 = vpack.c.b16 %v6541, %v6540
      %v6565 = vpack.c.b16 %v6543, %v6542
      %v6566 = vpack.c.b16 %v6545, %v6544
      %v6567 = vpack.c.b16 %v6547, %v6546
      %v6568 = vpack.c.b16 %v6549, %v6548
      %v6569 = vpack.c.b16 %v6551, %v6550
      %v6570 = vpack.c.b16 %v6553, %v6552
      %v6571 = vpack.c.b16 %v6555, %v6554
      %v6604 = vunpack.c.l.b16 %v6492
      %v6605 = vunpack.c.l.b16 %v6493
      %v6606 = vunpack.c.l.b16 %v6494
      %v6607 = vunpack.c.l.b16 %v6495
      %v6608 = vunpack.c.l.b16 %v6496
      %v6609 = vunpack.c.l.b16 %v6497
      %v6610 = vunpack.c.l.b16 %v6498
      %v6611 = vunpack.c.l.b16 %v6499
      %v6612 = vunpack.c.l.b16 %v6500
      %v6613 = vunpack.c.l.b16 %v6501
      %v6614 = vunpack.c.l.b16 %v6502
      %v6615 = vunpack.c.l.b16 %v6503
      %v6616 = vunpack.c.l.b16 %v6504
      %v6617 = vunpack.c.l.b16 %v6505
      %v6618 = vunpack.c.l.b16 %v6506
      %v6619 = vunpack.c.l.b16 %v6507
      %v6620 = vunpack.c.l.b16 %v6508
      %v6621 = vunpack.c.l.b16 %v6509
      %v6622 = vunpack.c.l.b16 %v6510
      %v6623 = vunpack.c.l.b16 %v6511
      %v6624 = vunpack.c.l.b16 %v6512
      %v6625 = vunpack.c.l.b16 %v6513
      %v6626 = vunpack.c.l.b16 %v6514
      %v6627 = vunpack.c.l.b16 %v6515
      %v6628 = vunpack.c.l.b16 %v6516
      %v6629 = vunpack.c.l.b16 %v6517
      %v6630 = vunpack.c.l.b16 %v6518
      %v6631 = vunpack.c.l.b16 %v6519
      %v6632 = vunpack.c.l.b16 %v6520
      %v6633 = vunpack.c.l.b16 %v6521
      %v6634 = vunpack.c.l.b16 %v6522
      %v6635 = vunpack.c.l.b16 %v6523
      %v6636 = vpack.c.b16 %v6605, %v6604
      %v6637 = vpack.c.b16 %v6607, %v6606
      %v6638 = vpack.c.b16 %v6609, %v6608
      %v6639 = vpack.c.b16 %v6611, %v6610
      %v6640 = vpack.c.b16 %v6613, %v6612
      %v6641 = vpack.c.b16 %v6615, %v6614
      %v6642 = vpack.c.b16 %v6617, %v6616
      %v6643 = vpack.c.b16 %v6619, %v6618
      %v6644 = vpack.c.b16 %v6621, %v6620
      %v6645 = vpack.c.b16 %v6623, %v6622
      %v6646 = vpack.c.b16 %v6625, %v6624
      %v6647 = vpack.c.b16 %v6627, %v6626
      %v6648 = vpack.c.b16 %v6629, %v6628
      %v6649 = vpack.c.b16 %v6631, %v6630
      %v6650 = vpack.c.b16 %v6633, %v6632
      %v6651 = vpack.c.b16 %v6635, %v6634
      %6652 = vrot.lane.b32.xlu0 %v6636, 8
      %v6653 = vpop.permute.xlu0 %6652
      %6654 = vrot.lane.b32.xlu0 %v6637, 8
      %v6655 = vpop.permute.xlu0 %6654
      %6656 = vrot.lane.b32.xlu0 %v6638, 8
      %v6657 = vpop.permute.xlu0 %6656
      %6658 = vrot.lane.b32.xlu0 %v6639, 8
      %v6659 = vpop.permute.xlu0 %6658
      %6660 = vrot.lane.b32.xlu0 %v6640, 8
      %v6661 = vpop.permute.xlu0 %6660
      %6662 = vrot.lane.b32.xlu0 %v6641, 8
      %v6663 = vpop.permute.xlu0 %6662
      %6664 = vrot.lane.b32.xlu0 %v6642, 8
      %v6665 = vpop.permute.xlu0 %6664
      %6666 = vrot.lane.b32.xlu0 %v6643, 8
      %v6667 = vpop.permute.xlu0 %6666
      %6668 = vrot.lane.b32.xlu0 %v6644, 8
      %v6669 = vpop.permute.xlu0 %6668
      %6670 = vrot.lane.b32.xlu0 %v6645, 8
      %v6671 = vpop.permute.xlu0 %6670
      %6672 = vrot.lane.b32.xlu0 %v6646, 8
      %v6673 = vpop.permute.xlu0 %6672
      %6674 = vrot.lane.b32.xlu0 %v6647, 8
      %v6675 = vpop.permute.xlu0 %6674
      %6676 = vrot.lane.b32.xlu0 %v6648, 8
      %v6677 = vpop.permute.xlu0 %6676
      %6678 = vrot.lane.b32.xlu0 %v6649, 8
      %v6679 = vpop.permute.xlu0 %6678
      %6680 = vrot.lane.b32.xlu0 %v6650, 8
      %v6681 = vpop.permute.xlu0 %6680
      %6682 = vrot.lane.b32.xlu0 %v6651, 8
      %v6683 = vpop.permute.xlu0 %6682
      %v6686 = vsel %vm1466, %v6556, %v6653
      %v6689 = vsel %vm1466, %v6557, %v6655
      %v6692 = vsel %vm1466, %v6558, %v6657
      %v6695 = vsel %vm1466, %v6559, %v6659
      %v6698 = vsel %vm1466, %v6560, %v6661
      %v6701 = vsel %vm1466, %v6561, %v6663
      %v6704 = vsel %vm1466, %v6562, %v6665
      %v6707 = vsel %vm1466, %v6563, %v6667
      %v6710 = vsel %vm1466, %v6564, %v6669
      %v6713 = vsel %vm1466, %v6565, %v6671
      %v6716 = vsel %vm1466, %v6566, %v6673
      %v6719 = vsel %vm1466, %v6567, %v6675
      %v6722 = vsel %vm1466, %v6568, %v6677
      %v6725 = vsel %vm1466, %v6569, %v6679
      %v6728 = vsel %vm1466, %v6570, %v6681
      %v6731 = vsel %vm1466, %v6571, %v6683
      %v6748 = vunpack.c.l.b16 %v6686
      %v6749 = vunpack.c.h.b16 %v6686
      %v6750 = vunpack.c.l.b16 %v6689
      %v6751 = vunpack.c.h.b16 %v6689
      %v6752 = vunpack.c.l.b16 %v6692
      %v6753 = vunpack.c.h.b16 %v6692
      %v6754 = vunpack.c.l.b16 %v6695
      %v6755 = vunpack.c.h.b16 %v6695
      %v6756 = vunpack.c.l.b16 %v6698
      %v6757 = vunpack.c.h.b16 %v6698
      %v6758 = vunpack.c.l.b16 %v6701
      %v6759 = vunpack.c.h.b16 %v6701
      %v6760 = vunpack.c.l.b16 %v6704
      %v6761 = vunpack.c.h.b16 %v6704
      %v6762 = vunpack.c.l.b16 %v6707
      %v6763 = vunpack.c.h.b16 %v6707
      %v6764 = vunpack.c.l.b16 %v6710
      %v6765 = vunpack.c.h.b16 %v6710
      %v6766 = vunpack.c.l.b16 %v6713
      %v6767 = vunpack.c.h.b16 %v6713
      %v6768 = vunpack.c.l.b16 %v6716
      %v6769 = vunpack.c.h.b16 %v6716
      %v6770 = vunpack.c.l.b16 %v6719
      %v6771 = vunpack.c.h.b16 %v6719
      %v6772 = vunpack.c.l.b16 %v6722
      %v6773 = vunpack.c.h.b16 %v6722
      %v6774 = vunpack.c.l.b16 %v6725
      %v6775 = vunpack.c.h.b16 %v6725
      %v6776 = vunpack.c.l.b16 %v6728
      %v6777 = vunpack.c.h.b16 %v6728
      %v6778 = vunpack.c.l.b16 %v6731
      %v6779 = vunpack.c.h.b16 %v6731
      %v6780 = vpack.c.b16 %v6748, %v6748
      %v6781 = vpack.c.b16 %v6749, %v6749
      %v6782 = vpack.c.b16 %v6750, %v6750
      %v6783 = vpack.c.b16 %v6751, %v6751
      %v6784 = vpack.c.b16 %v6752, %v6752
      %v6785 = vpack.c.b16 %v6753, %v6753
      %v6786 = vpack.c.b16 %v6754, %v6754
      %v6787 = vpack.c.b16 %v6755, %v6755
      %v6788 = vpack.c.b16 %v6756, %v6756
      %v6789 = vpack.c.b16 %v6757, %v6757
      %v6790 = vpack.c.b16 %v6758, %v6758
      %v6791 = vpack.c.b16 %v6759, %v6759
      %v6792 = vpack.c.b16 %v6760, %v6760
      %v6793 = vpack.c.b16 %v6761, %v6761
      %v6794 = vpack.c.b16 %v6762, %v6762
      %v6795 = vpack.c.b16 %v6763, %v6763
      %v6796 = vpack.c.b16 %v6764, %v6764
      %v6797 = vpack.c.b16 %v6765, %v6765
      %v6798 = vpack.c.b16 %v6766, %v6766
      %v6799 = vpack.c.b16 %v6767, %v6767
      %v6800 = vpack.c.b16 %v6768, %v6768
      %v6801 = vpack.c.b16 %v6769, %v6769
      %v6802 = vpack.c.b16 %v6770, %v6770
      %v6803 = vpack.c.b16 %v6771, %v6771
      %v6804 = vpack.c.b16 %v6772, %v6772
      %v6805 = vpack.c.b16 %v6773, %v6773
      %v6806 = vpack.c.b16 %v6774, %v6774
      %v6807 = vpack.c.b16 %v6775, %v6775
      %v6808 = vpack.c.b16 %v6776, %v6776
      %v6809 = vpack.c.b16 %v6777, %v6777
      %v6810 = vpack.c.b16 %v6778, %v6778
      %v6811 = vpack.c.b16 %v6779, %v6779
      %6812 = vrot.lane.b32.xlu0 %v6780, 16
      %v6813 = vpop.permute.xlu0 %6812
      %6814 = vrot.lane.b32.xlu0 %v6781, 16
      %v6815 = vpop.permute.xlu0 %6814
      %6816 = vrot.lane.b32.xlu0 %v6782, 16
      %v6817 = vpop.permute.xlu0 %6816
      %6818 = vrot.lane.b32.xlu0 %v6783, 16
      %v6819 = vpop.permute.xlu0 %6818
      %6820 = vrot.lane.b32.xlu0 %v6784, 16
      %v6821 = vpop.permute.xlu0 %6820
      %6822 = vrot.lane.b32.xlu0 %v6785, 16
      %v6823 = vpop.permute.xlu0 %6822
      %6824 = vrot.lane.b32.xlu0 %v6786, 16
      %v6825 = vpop.permute.xlu0 %6824
      %6826 = vrot.lane.b32.xlu0 %v6787, 16
      %v6827 = vpop.permute.xlu0 %6826
      %6828 = vrot.lane.b32.xlu0 %v6788, 16
      %v6829 = vpop.permute.xlu0 %6828
      %6830 = vrot.lane.b32.xlu0 %v6789, 16
      %v6831 = vpop.permute.xlu0 %6830
      %6832 = vrot.lane.b32.xlu0 %v6790, 16
      %v6833 = vpop.permute.xlu0 %6832
      %6834 = vrot.lane.b32.xlu0 %v6791, 16
      %v6835 = vpop.permute.xlu0 %6834
      %6836 = vrot.lane.b32.xlu0 %v6792, 16
      %v6837 = vpop.permute.xlu0 %6836
      %6838 = vrot.lane.b32.xlu0 %v6793, 16
      %v6839 = vpop.permute.xlu0 %6838
      %6840 = vrot.lane.b32.xlu0 %v6794, 16
      %v6841 = vpop.permute.xlu0 %6840
      %6842 = vrot.lane.b32.xlu0 %v6795, 16
      %v6843 = vpop.permute.xlu0 %6842
      %6844 = vrot.lane.b32.xlu0 %v6796, 16
      %v6845 = vpop.permute.xlu0 %6844
      %6846 = vrot.lane.b32.xlu0 %v6797, 16
      %v6847 = vpop.permute.xlu0 %6846
      %6848 = vrot.lane.b32.xlu0 %v6798, 16
      %v6849 = vpop.permute.xlu0 %6848
      %6850 = vrot.lane.b32.xlu0 %v6799, 16
      %v6851 = vpop.permute.xlu0 %6850
      %6852 = vrot.lane.b32.xlu0 %v6800, 16
      %v6853 = vpop.permute.xlu0 %6852
      %6854 = vrot.lane.b32.xlu0 %v6801, 16
      %v6855 = vpop.permute.xlu0 %6854
      %6856 = vrot.lane.b32.xlu0 %v6802, 16
      %v6857 = vpop.permute.xlu0 %6856
      %6858 = vrot.lane.b32.xlu0 %v6803, 16
      %v6859 = vpop.permute.xlu0 %6858
      %6860 = vrot.lane.b32.xlu0 %v6804, 16
      %v6861 = vpop.permute.xlu0 %6860
      %6862 = vrot.lane.b32.xlu0 %v6805, 16
      %v6863 = vpop.permute.xlu0 %6862
      %6864 = vrot.lane.b32.xlu0 %v6806, 16
      %v6865 = vpop.permute.xlu0 %6864
      %6866 = vrot.lane.b32.xlu0 %v6807, 16
      %v6867 = vpop.permute.xlu0 %6866
      %6868 = vrot.lane.b32.xlu0 %v6808, 16
      %v6869 = vpop.permute.xlu0 %6868
      %6870 = vrot.lane.b32.xlu0 %v6809, 16
      %v6871 = vpop.permute.xlu0 %6870
      %6872 = vrot.lane.b32.xlu0 %v6810, 16
      %v6873 = vpop.permute.xlu0 %6872
      %6874 = vrot.lane.b32.xlu0 %v6811, 16
      %v6875 = vpop.permute.xlu0 %6874
      %6908 = vst.msk [vmem:[#allocation3] sm:$0xf] %vm2287, %v6813
      %6909 = vst.msk [vmem:[#allocation3 + $0x4] sm:$0xf] %vm2287, %v6815
      %6910 = vst.msk [vmem:[#allocation3 + $0x8] sm:$0xf] %vm2287, %v6817
      %6911 = vst.msk [vmem:[#allocation3 + $0xc] sm:$0xf] %vm2287, %v6819
      %6912 = vst.msk [vmem:[#allocation3 + $0x10] sm:$0xf] %vm2287, %v6821
      %6913 = vst.msk [vmem:[#allocation3 + $0x14] sm:$0xf] %vm2287, %v6823
      %6914 = vst.msk [vmem:[#allocation3 + $0x18] sm:$0xf] %vm2287, %v6825
      %6915 = vst.msk [vmem:[#allocation3 + $0x1c] sm:$0xf] %vm2287, %v6827
      %6916 = vst.msk [vmem:[#allocation3 + $0x20] sm:$0xf] %vm2287, %v6829
      %6917 = vst.msk [vmem:[#allocation3 + $0x24] sm:$0xf] %vm2287, %v6831
      %6918 = vst.msk [vmem:[#allocation3 + $0x28] sm:$0xf] %vm2287, %v6833
      %6919 = vst.msk [vmem:[#allocation3 + $0x2c] sm:$0xf] %vm2287, %v6835
      %6920 = vst.msk [vmem:[#allocation3 + $0x30] sm:$0xf] %vm2287, %v6837
      %6921 = vst.msk [vmem:[#allocation3 + $0x34] sm:$0xf] %vm2287, %v6839
      %6922 = vst.msk [vmem:[#allocation3 + $0x38] sm:$0xf] %vm2287, %v6841
      %6923 = vst.msk [vmem:[#allocation3 + $0x3c] sm:$0xf] %vm2287, %v6843
      %6924 = vst.msk [vmem:[#allocation3 + $0x40] sm:$0xf] %vm2287, %v6845
      %6925 = vst.msk [vmem:[#allocation3 + $0x44] sm:$0xf] %vm2287, %v6847
      %6926 = vst.msk [vmem:[#allocation3 + $0x48] sm:$0xf] %vm2287, %v6849
      %6927 = vst.msk [vmem:[#allocation3 + $0x4c] sm:$0xf] %vm2287, %v6851
      %6928 = vst.msk [vmem:[#allocation3 + $0x50] sm:$0xf] %vm2287, %v6853
      %6929 = vst.msk [vmem:[#allocation3 + $0x54] sm:$0xf] %vm2287, %v6855
      %6930 = vst.msk [vmem:[#allocation3 + $0x58] sm:$0xf] %vm2287, %v6857
      %6931 = vst.msk [vmem:[#allocation3 + $0x5c] sm:$0xf] %vm2287, %v6859
      %6932 = vst.msk [vmem:[#allocation3 + $0x60] sm:$0xf] %vm2287, %v6861
      %6933 = vst.msk [vmem:[#allocation3 + $0x64] sm:$0xf] %vm2287, %v6863
      %6934 = vst.msk [vmem:[#allocation3 + $0x68] sm:$0xf] %vm2287, %v6865
      %6935 = vst.msk [vmem:[#allocation3 + $0x6c] sm:$0xf] %vm2287, %v6867
      %6936 = vst.msk [vmem:[#allocation3 + $0x70] sm:$0xf] %vm2287, %v6869
      %6937 = vst.msk [vmem:[#allocation3 + $0x74] sm:$0xf] %vm2287, %v6871
      %6938 = vst.msk [vmem:[#allocation3 + $0x78] sm:$0xf] %vm2287, %v6873
      %6939 = vst.msk [vmem:[#allocation3 + $0x7c] sm:$0xf] %vm2287, %v6875
      %v6940 = vld [vmem:[%s756] sm:$0xf]
      %v6941 = vld [vmem:[%s756 + $0x4] sm:$0xf]
      %v6942 = vld [vmem:[%s756 + $0x8] sm:$0x1]
      %v6943 = vld [vmem:[%s756 + $0xc] sm:$0xf]
      %v6944 = vld [vmem:[%s756 + $0x10] sm:$0xf]
      %v6945 = vld [vmem:[%s756 + $0x14] sm:$0x1]
      %v6946 = vld [vmem:[%s756 + $0x18] sm:$0xf]
      %v6947 = vld [vmem:[%s756 + $0x1c] sm:$0xf]
      %v6948 = vld [vmem:[%s756 + $0x20] sm:$0x1]
      %v6949 = vld [vmem:[%s756 + $0x24] sm:$0xf]
      %v6950 = vld [vmem:[%s756 + $0x28] sm:$0xf]
      %v6951 = vld [vmem:[%s756 + $0x2c] sm:$0x1]
      %v6952 = vld [vmem:[%s756 + $0x30] sm:$0xf]
      %v6953 = vld [vmem:[%s756 + $0x34] sm:$0xf]
      %v6954 = vld [vmem:[%s756 + $0x38] sm:$0x1]
      %v6955 = vld [vmem:[%s756 + $0x3c] sm:$0xf]
      %v6956 = vld [vmem:[%s756 + $0x40] sm:$0xf]
      %v6957 = vld [vmem:[%s756 + $0x44] sm:$0x1]
      %v6958 = vld [vmem:[%s756 + $0x48] sm:$0xf]
      %v6959 = vld [vmem:[%s756 + $0x4c] sm:$0xf]
      %v6960 = vld [vmem:[%s756 + $0x50] sm:$0x1]
      %v6961 = vld [vmem:[%s756 + $0x54] sm:$0xf]
      %v6962 = vld [vmem:[%s756 + $0x58] sm:$0xf]
      %v6963 = vld [vmem:[%s756 + $0x5c] sm:$0x1]
      %v6964 = vld [vmem:[%s756 + $0x60] sm:$0xf]
      %v6965 = vld [vmem:[%s756 + $0x64] sm:$0xf]
      %v6966 = vld [vmem:[%s756 + $0x68] sm:$0x1]
      %v6967 = vld [vmem:[%s756 + $0x6c] sm:$0xf]
      %v6968 = vld [vmem:[%s756 + $0x70] sm:$0xf]
      %v6969 = vld [vmem:[%s756 + $0x74] sm:$0x1]
      %v6970 = vld [vmem:[%s756 + $0x78] sm:$0xf]
      %v6971 = vld [vmem:[%s756 + $0x7c] sm:$0xf]
      %v6972 = vld [vmem:[%s756 + $0x80] sm:$0x1]
      %v6973 = vld [vmem:[%s756 + $0x84] sm:$0xf]
      %v6974 = vld [vmem:[%s756 + $0x88] sm:$0xf]
      %v6975 = vld [vmem:[%s756 + $0x8c] sm:$0x1]
      %v6976 = vld [vmem:[%s756 + $0x90] sm:$0xf]
      %v6977 = vld [vmem:[%s756 + $0x94] sm:$0xf]
      %v6978 = vld [vmem:[%s756 + $0x98] sm:$0x1]
      %v6979 = vld [vmem:[%s756 + $0x9c] sm:$0xf]
      %v6980 = vld [vmem:[%s756 + $0xa0] sm:$0xf]
      %v6981 = vld [vmem:[%s756 + $0xa4] sm:$0x1]
      %v6982 = vld [vmem:[%s756 + $0xa8] sm:$0xf]
      %v6983 = vld [vmem:[%s756 + $0xac] sm:$0xf]
      %v6984 = vld [vmem:[%s756 + $0xb0] sm:$0x1]
      %v6985 = vld [vmem:[%s756 + $0xb4] sm:$0xf]
      %v6986 = vld [vmem:[%s756 + $0xb8] sm:$0xf]
      %v6987 = vld [vmem:[%s756 + $0xbc] sm:$0x1]
      %v6989 = vshrl.u32 %v6940, 16
      %v6991 = vrot.slane %v6989, 4
      %v6992 = vshll.u32 %v6940, 16
      %v6994 = vrot.slane %v6992, 5
      %v6995 = vor.u32 %v6991, %v6994
      %v6996 = vrot.slane %v6995, 4
      %v6998 = vshll.u32 %v6941, 16
      %v7000 = vrot.slane %v6998, 5
      %v7001 = vsel %vm921, %v6996, %v7000
      %v7002 = vshrl.u32 %v6941, 16
      %v7004 = vrot.slane %v7002, 4
      %v7005 = vor.u32 %v7004, %v7000
      %v7006 = vrot.slane %v7005, 4
      %v7008 = vshll.u32 %v6942, 16
      %v7010 = vrot.slane %v7008, 5
      %v7011 = vsel %vm921, %v7006, %v7010
      %v7013 = vshrl.u32 %v6943, 16
      %v7015 = vrot.slane %v7013, 4
      %v7016 = vshll.u32 %v6943, 16
      %v7018 = vrot.slane %v7016, 5
      %v7019 = vor.u32 %v7015, %v7018
      %v7020 = vrot.slane %v7019, 4
      %v7022 = vshll.u32 %v6944, 16
      %v7024 = vrot.slane %v7022, 5
      %v7025 = vsel %vm921, %v7020, %v7024
      %v7026 = vshrl.u32 %v6944, 16
      %v7028 = vrot.slane %v7026, 4
      %v7029 = vor.u32 %v7028, %v7024
      %v7030 = vrot.slane %v7029, 4
      %v7032 = vshll.u32 %v6945, 16
      %v7034 = vrot.slane %v7032, 5
      %v7035 = vsel %vm921, %v7030, %v7034
      %v7037 = vshrl.u32 %v6946, 16
      %v7039 = vrot.slane %v7037, 4
      %v7040 = vshll.u32 %v6946, 16
      %v7042 = vrot.slane %v7040, 5
      %v7043 = vor.u32 %v7039, %v7042
      %v7044 = vrot.slane %v7043, 4
      %v7046 = vshll.u32 %v6947, 16
      %v7048 = vrot.slane %v7046, 5
      %v7049 = vsel %vm921, %v7044, %v7048
      %v7050 = vshrl.u32 %v6947, 16
      %v7052 = vrot.slane %v7050, 4
      %v7053 = vor.u32 %v7052, %v7048
      %v7054 = vrot.slane %v7053, 4
      %v7056 = vshll.u32 %v6948, 16
      %v7058 = vrot.slane %v7056, 5
      %v7059 = vsel %vm921, %v7054, %v7058
      %v7061 = vshrl.u32 %v6949, 16
      %v7063 = vrot.slane %v7061, 4
      %v7064 = vshll.u32 %v6949, 16
      %v7066 = vrot.slane %v7064, 5
      %v7067 = vor.u32 %v7063, %v7066
      %v7068 = vrot.slane %v7067, 4
      %v7070 = vshll.u32 %v6950, 16
      %v7072 = vrot.slane %v7070, 5
      %v7073 = vsel %vm921, %v7068, %v7072
      %v7074 = vshrl.u32 %v6950, 16
      %v7076 = vrot.slane %v7074, 4
      %v7077 = vor.u32 %v7076, %v7072
      %v7078 = vrot.slane %v7077, 4
      %v7080 = vshll.u32 %v6951, 16
      %v7082 = vrot.slane %v7080, 5
      %v7083 = vsel %vm921, %v7078, %v7082
      %v7085 = vshrl.u32 %v6952, 16
      %v7087 = vrot.slane %v7085, 4
      %v7088 = vshll.u32 %v6952, 16
      %v7090 = vrot.slane %v7088, 5
      %v7091 = vor.u32 %v7087, %v7090
      %v7092 = vrot.slane %v7091, 4
      %v7094 = vshll.u32 %v6953, 16
      %v7096 = vrot.slane %v7094, 5
      %v7097 = vsel %vm921, %v7092, %v7096
      %v7098 = vshrl.u32 %v6953, 16
      %v7100 = vrot.slane %v7098, 4
      %v7101 = vor.u32 %v7100, %v7096
      %v7102 = vrot.slane %v7101, 4
      %v7104 = vshll.u32 %v6954, 16
      %v7106 = vrot.slane %v7104, 5
      %v7107 = vsel %vm921, %v7102, %v7106
      %v7109 = vshrl.u32 %v6955, 16
      %v7111 = vrot.slane %v7109, 4
      %v7112 = vshll.u32 %v6955, 16
      %v7114 = vrot.slane %v7112, 5
      %v7115 = vor.u32 %v7111, %v7114
      %v7116 = vrot.slane %v7115, 4
      %v7118 = vshll.u32 %v6956, 16
      %v7120 = vrot.slane %v7118, 5
      %v7121 = vsel %vm921, %v7116, %v7120
      %v7122 = vshrl.u32 %v6956, 16
      %v7124 = vrot.slane %v7122, 4
      %v7125 = vor.u32 %v7124, %v7120
      %v7126 = vrot.slane %v7125, 4
      %v7128 = vshll.u32 %v6957, 16
      %v7130 = vrot.slane %v7128, 5
      %v7131 = vsel %vm921, %v7126, %v7130
      %v7133 = vshrl.u32 %v6958, 16
      %v7135 = vrot.slane %v7133, 4
      %v7136 = vshll.u32 %v6958, 16
      %v7138 = vrot.slane %v7136, 5
      %v7139 = vor.u32 %v7135, %v7138
      %v7140 = vrot.slane %v7139, 4
      %v7142 = vshll.u32 %v6959, 16
      %v7144 = vrot.slane %v7142, 5
      %v7145 = vsel %vm921, %v7140, %v7144
      %v7146 = vshrl.u32 %v6959, 16
      %v7148 = vrot.slane %v7146, 4
      %v7149 = vor.u32 %v7148, %v7144
      %v7150 = vrot.slane %v7149, 4
      %v7152 = vshll.u32 %v6960, 16
      %v7154 = vrot.slane %v7152, 5
      %v7155 = vsel %vm921, %v7150, %v7154
      %v7157 = vshrl.u32 %v6961, 16
      %v7159 = vrot.slane %v7157, 4
      %v7160 = vshll.u32 %v6961, 16
      %v7162 = vrot.slane %v7160, 5
      %v7163 = vor.u32 %v7159, %v7162
      %v7164 = vrot.slane %v7163, 4
      %v7166 = vshll.u32 %v6962, 16
      %v7168 = vrot.slane %v7166, 5
      %v7169 = vsel %vm921, %v7164, %v7168
      %v7170 = vshrl.u32 %v6962, 16
      %v7172 = vrot.slane %v7170, 4
      %v7173 = vor.u32 %v7172, %v7168
      %v7174 = vrot.slane %v7173, 4
      %v7176 = vshll.u32 %v6963, 16
      %v7178 = vrot.slane %v7176, 5
      %v7179 = vsel %vm921, %v7174, %v7178
      %v7181 = vshrl.u32 %v6964, 16
      %v7183 = vrot.slane %v7181, 4
      %v7184 = vshll.u32 %v6964, 16
      %v7186 = vrot.slane %v7184, 5
      %v7187 = vor.u32 %v7183, %v7186
      %v7188 = vrot.slane %v7187, 4
      %v7190 = vshll.u32 %v6965, 16
      %v7192 = vrot.slane %v7190, 5
      %v7193 = vsel %vm921, %v7188, %v7192
      %v7194 = vshrl.u32 %v6965, 16
      %v7196 = vrot.slane %v7194, 4
      %v7197 = vor.u32 %v7196, %v7192
      %v7198 = vrot.slane %v7197, 4
      %v7200 = vshll.u32 %v6966, 16
      %v7202 = vrot.slane %v7200, 5
      %v7203 = vsel %vm921, %v7198, %v7202
      %v7205 = vshrl.u32 %v6967, 16
      %v7207 = vrot.slane %v7205, 4
      %v7208 = vshll.u32 %v6967, 16
      %v7210 = vrot.slane %v7208, 5
      %v7211 = vor.u32 %v7207, %v7210
      %v7212 = vrot.slane %v7211, 4
      %v7214 = vshll.u32 %v6968, 16
      %v7216 = vrot.slane %v7214, 5
      %v7217 = vsel %vm921, %v7212, %v7216
      %v7218 = vshrl.u32 %v6968, 16
      %v7220 = vrot.slane %v7218, 4
      %v7221 = vor.u32 %v7220, %v7216
      %v7222 = vrot.slane %v7221, 4
      %v7224 = vshll.u32 %v6969, 16
      %v7226 = vrot.slane %v7224, 5
      %v7227 = vsel %vm921, %v7222, %v7226
      %v7229 = vshrl.u32 %v6970, 16
      %v7231 = vrot.slane %v7229, 4
      %v7232 = vshll.u32 %v6970, 16
      %v7234 = vrot.slane %v7232, 5
      %v7235 = vor.u32 %v7231, %v7234
      %v7236 = vrot.slane %v7235, 4
      %v7238 = vshll.u32 %v6971, 16
      %v7240 = vrot.slane %v7238, 5
      %v7241 = vsel %vm921, %v7236, %v7240
      %v7242 = vshrl.u32 %v6971, 16
      %v7244 = vrot.slane %v7242, 4
      %v7245 = vor.u32 %v7244, %v7240
      %v7246 = vrot.slane %v7245, 4
      %v7248 = vshll.u32 %v6972, 16
      %v7250 = vrot.slane %v7248, 5
      %v7251 = vsel %vm921, %v7246, %v7250
      %v7253 = vshrl.u32 %v6973, 16
      %v7255 = vrot.slane %v7253, 4
      %v7256 = vshll.u32 %v6973, 16
      %v7258 = vrot.slane %v7256, 5
      %v7259 = vor.u32 %v7255, %v7258
      %v7260 = vrot.slane %v7259, 4
      %v7262 = vshll.u32 %v6974, 16
      %v7264 = vrot.slane %v7262, 5
      %v7265 = vsel %vm921, %v7260, %v7264
      %v7266 = vshrl.u32 %v6974, 16
      %v7268 = vrot.slane %v7266, 4
      %v7269 = vor.u32 %v7268, %v7264
      %v7270 = vrot.slane %v7269, 4
      %v7272 = vshll.u32 %v6975, 16
      %v7274 = vrot.slane %v7272, 5
      %v7275 = vsel %vm921, %v7270, %v7274
      %v7277 = vshrl.u32 %v6976, 16
      %v7279 = vrot.slane %v7277, 4
      %v7280 = vshll.u32 %v6976, 16
      %v7282 = vrot.slane %v7280, 5
      %v7283 = vor.u32 %v7279, %v7282
      %v7284 = vrot.slane %v7283, 4
      %v7286 = vshll.u32 %v6977, 16
      %v7288 = vrot.slane %v7286, 5
      %v7289 = vsel %vm921, %v7284, %v7288
      %v7290 = vshrl.u32 %v6977, 16
      %v7292 = vrot.slane %v7290, 4
      %v7293 = vor.u32 %v7292, %v7288
      %v7294 = vrot.slane %v7293, 4
      %v7296 = vshll.u32 %v6978, 16
      %v7298 = vrot.slane %v7296, 5
      %v7299 = vsel %vm921, %v7294, %v7298
      %v7301 = vshrl.u32 %v6979, 16
      %v7303 = vrot.slane %v7301, 4
      %v7304 = vshll.u32 %v6979, 16
      %v7306 = vrot.slane %v7304, 5
      %v7307 = vor.u32 %v7303, %v7306
      %v7308 = vrot.slane %v7307, 4
      %v7310 = vshll.u32 %v6980, 16
      %v7312 = vrot.slane %v7310, 5
      %v7313 = vsel %vm921, %v7308, %v7312
      %v7314 = vshrl.u32 %v6980, 16
      %v7316 = vrot.slane %v7314, 4
      %v7317 = vor.u32 %v7316, %v7312
      %v7318 = vrot.slane %v7317, 4
      %v7320 = vshll.u32 %v6981, 16
      %v7322 = vrot.slane %v7320, 5
      %v7323 = vsel %vm921, %v7318, %v7322
      %v7325 = vshrl.u32 %v6982, 16
      %v7327 = vrot.slane %v7325, 4
      %v7328 = vshll.u32 %v6982, 16
      %v7330 = vrot.slane %v7328, 5
      %v7331 = vor.u32 %v7327, %v7330
      %v7332 = vrot.slane %v7331, 4
      %v7334 = vshll.u32 %v6983, 16
      %v7336 = vrot.slane %v7334, 5
      %v7337 = vsel %vm921, %v7332, %v7336
      %v7338 = vshrl.u32 %v6983, 16
      %v7340 = vrot.slane %v7338, 4
      %v7341 = vor.u32 %v7340, %v7336
      %v7342 = vrot.slane %v7341, 4
      %v7344 = vshll.u32 %v6984, 16
      %v7346 = vrot.slane %v7344, 5
      %v7347 = vsel %vm921, %v7342, %v7346
      %v7349 = vshrl.u32 %v6985, 16
      %v7351 = vrot.slane %v7349, 4
      %v7352 = vshll.u32 %v6985, 16
      %v7354 = vrot.slane %v7352, 5
      %v7355 = vor.u32 %v7351, %v7354
      %v7356 = vrot.slane %v7355, 4
      %v7358 = vshll.u32 %v6986, 16
      %v7360 = vrot.slane %v7358, 5
      %v7361 = vsel %vm921, %v7356, %v7360
      %v7362 = vshrl.u32 %v6986, 16
      %v7364 = vrot.slane %v7362, 4
      %v7365 = vor.u32 %v7364, %v7360
      %v7366 = vrot.slane %v7365, 4
      %v7368 = vshll.u32 %v6987, 16
      %v7370 = vrot.slane %v7368, 5
      %v7371 = vsel %vm921, %v7366, %v7370
      %v7372 = vld [vmem:[%s756] sm:$0xe]
      %v7373 = vld [vmem:[%s756 + $0xc] sm:$0xe]
      %v7374 = vld [vmem:[%s756 + $0x18] sm:$0xe]
      %v7375 = vld [vmem:[%s756 + $0x24] sm:$0xe]
      %v7376 = vld [vmem:[%s756 + $0x30] sm:$0xe]
      %v7377 = vld [vmem:[%s756 + $0x3c] sm:$0xe]
      %v7378 = vld [vmem:[%s756 + $0x48] sm:$0xe]
      %v7379 = vld [vmem:[%s756 + $0x54] sm:$0xe]
      %v7380 = vld [vmem:[%s756 + $0x60] sm:$0xe]
      %v7381 = vld [vmem:[%s756 + $0x6c] sm:$0xe]
      %v7382 = vld [vmem:[%s756 + $0x78] sm:$0xe]
      %v7383 = vld [vmem:[%s756 + $0x84] sm:$0xe]
      %v7384 = vld [vmem:[%s756 + $0x90] sm:$0xe]
      %v7385 = vld [vmem:[%s756 + $0x9c] sm:$0xe]
      %v7386 = vld [vmem:[%s756 + $0xa8] sm:$0xe]
      %v7387 = vld [vmem:[%s756 + $0xb4] sm:$0xe]
      %v7436 = vrot.slane %v7372, 5
      %v7437 = vrot.slane %v7436, 4
      %v7438 = vrot.slane %v6941, 5
      %v7439 = vsel %vm1758, %v7437, %v7438
      %v7440 = vrot.slane %v7438, 4
      %v7441 = vrot.slane %v6942, 5
      %v7442 = vsel %vm1758, %v7440, %v7441
      %v7443 = vrot.slane %v7373, 5
      %v7444 = vrot.slane %v7443, 4
      %v7445 = vrot.slane %v6944, 5
      %v7446 = vsel %vm1758, %v7444, %v7445
      %v7447 = vrot.slane %v7445, 4
      %v7448 = vrot.slane %v6945, 5
      %v7449 = vsel %vm1758, %v7447, %v7448
      %v7450 = vrot.slane %v7374, 5
      %v7451 = vrot.slane %v7450, 4
      %v7452 = vrot.slane %v6947, 5
      %v7453 = vsel %vm1758, %v7451, %v7452
      %v7454 = vrot.slane %v7452, 4
      %v7455 = vrot.slane %v6948, 5
      %v7456 = vsel %vm1758, %v7454, %v7455
      %v7457 = vrot.slane %v7375, 5
      %v7458 = vrot.slane %v7457, 4
      %v7459 = vrot.slane %v6950, 5
      %v7460 = vsel %vm1758, %v7458, %v7459
      %v7461 = vrot.slane %v7459, 4
      %v7462 = vrot.slane %v6951, 5
      %v7463 = vsel %vm1758, %v7461, %v7462
      %v7464 = vrot.slane %v7376, 5
      %v7465 = vrot.slane %v7464, 4
      %v7466 = vrot.slane %v6953, 5
      %v7467 = vsel %vm1758, %v7465, %v7466
      %v7468 = vrot.slane %v7466, 4
      %v7469 = vrot.slane %v6954, 5
      %v7470 = vsel %vm1758, %v7468, %v7469
      %v7471 = vrot.slane %v7377, 5
      %v7472 = vrot.slane %v7471, 4
      %v7473 = vrot.slane %v6956, 5
      %v7474 = vsel %vm1758, %v7472, %v7473
      %v7475 = vrot.slane %v7473, 4
      %v7476 = vrot.slane %v6957, 5
      %v7477 = vsel %vm1758, %v7475, %v7476
      %v7478 = vrot.slane %v7378, 5
      %v7479 = vrot.slane %v7478, 4
      %v7480 = vrot.slane %v6959, 5
      %v7481 = vsel %vm1758, %v7479, %v7480
      %v7482 = vrot.slane %v7480, 4
      %v7483 = vrot.slane %v6960, 5
      %v7484 = vsel %vm1758, %v7482, %v7483
      %v7485 = vrot.slane %v7379, 5
      %v7486 = vrot.slane %v7485, 4
      %v7487 = vrot.slane %v6962, 5
      %v7488 = vsel %vm1758, %v7486, %v7487
      %v7489 = vrot.slane %v7487, 4
      %v7490 = vrot.slane %v6963, 5
      %v7491 = vsel %vm1758, %v7489, %v7490
      %v7492 = vrot.slane %v7380, 5
      %v7493 = vrot.slane %v7492, 4
      %v7494 = vrot.slane %v6965, 5
      %v7495 = vsel %vm1758, %v7493, %v7494
      %v7496 = vrot.slane %v7494, 4
      %v7497 = vrot.slane %v6966, 5
      %v7498 = vsel %vm1758, %v7496, %v7497
      %v7499 = vrot.slane %v7381, 5
      %v7500 = vrot.slane %v7499, 4
      %v7501 = vrot.slane %v6968, 5
      %v7502 = vsel %vm1758, %v7500, %v7501
      %v7503 = vrot.slane %v7501, 4
      %v7504 = vrot.slane %v6969, 5
      %v7505 = vsel %vm1758, %v7503, %v7504
      %v7506 = vrot.slane %v7382, 5
      %v7507 = vrot.slane %v7506, 4
      %v7508 = vrot.slane %v6971, 5
      %v7509 = vsel %vm1758, %v7507, %v7508
      %v7510 = vrot.slane %v7508, 4
      %v7511 = vrot.slane %v6972, 5
      %v7512 = vsel %vm1758, %v7510, %v7511
      %v7513 = vrot.slane %v7383, 5
      %v7514 = vrot.slane %v7513, 4
      %v7515 = vrot.slane %v6974, 5
      %v7516 = vsel %vm1758, %v7514, %v7515
      %v7517 = vrot.slane %v7515, 4
      %v7518 = vrot.slane %v6975, 5
      %v7519 = vsel %vm1758, %v7517, %v7518
      %v7520 = vrot.slane %v7384, 5
      %v7521 = vrot.slane %v7520, 4
      %v7522 = vrot.slane %v6977, 5
      %v7523 = vsel %vm1758, %v7521, %v7522
      %v7524 = vrot.slane %v7522, 4
      %v7525 = vrot.slane %v6978, 5
      %v7526 = vsel %vm1758, %v7524, %v7525
      %v7527 = vrot.slane %v7385, 5
      %v7528 = vrot.slane %v7527, 4
      %v7529 = vrot.slane %v6980, 5
      %v7530 = vsel %vm1758, %v7528, %v7529
      %v7531 = vrot.slane %v7529, 4
      %v7532 = vrot.slane %v6981, 5
      %v7533 = vsel %vm1758, %v7531, %v7532
      %v7534 = vrot.slane %v7386, 5
      %v7535 = vrot.slane %v7534, 4
      %v7536 = vrot.slane %v6983, 5
      %v7537 = vsel %vm1758, %v7535, %v7536
      %v7538 = vrot.slane %v7536, 4
      %v7539 = vrot.slane %v6984, 5
      %v7540 = vsel %vm1758, %v7538, %v7539
      %v7541 = vrot.slane %v7387, 5
      %v7542 = vrot.slane %v7541, 4
      %v7543 = vrot.slane %v6986, 5
      %v7544 = vsel %vm1758, %v7542, %v7543
      %v7545 = vrot.slane %v7543, 4
      %v7546 = vrot.slane %v6987, 5
      %v7547 = vsel %vm1758, %v7545, %v7546
      %v7548 = vunpack.c.l.b16 %v7001
      %v7549 = vunpack.c.l.b16 %v7011
      %v7550 = vunpack.c.l.b16 %v7025
      %v7551 = vunpack.c.l.b16 %v7035
      %v7552 = vunpack.c.l.b16 %v7049
      %v7553 = vunpack.c.l.b16 %v7059
      %v7554 = vunpack.c.l.b16 %v7073
      %v7555 = vunpack.c.l.b16 %v7083
      %v7556 = vunpack.c.l.b16 %v7097
      %v7557 = vunpack.c.l.b16 %v7107
      %v7558 = vunpack.c.l.b16 %v7121
      %v7559 = vunpack.c.l.b16 %v7131
      %v7560 = vunpack.c.l.b16 %v7145
      %v7561 = vunpack.c.l.b16 %v7155
      %v7562 = vunpack.c.l.b16 %v7169
      %v7563 = vunpack.c.l.b16 %v7179
      %v7564 = vunpack.c.l.b16 %v7193
      %v7565 = vunpack.c.l.b16 %v7203
      %v7566 = vunpack.c.l.b16 %v7217
      %v7567 = vunpack.c.l.b16 %v7227
      %v7568 = vunpack.c.l.b16 %v7241
      %v7569 = vunpack.c.l.b16 %v7251
      %v7570 = vunpack.c.l.b16 %v7265
      %v7571 = vunpack.c.l.b16 %v7275
      %v7572 = vunpack.c.l.b16 %v7289
      %v7573 = vunpack.c.l.b16 %v7299
      %v7574 = vunpack.c.l.b16 %v7313
      %v7575 = vunpack.c.l.b16 %v7323
      %v7576 = vunpack.c.l.b16 %v7337
      %v7577 = vunpack.c.l.b16 %v7347
      %v7578 = vunpack.c.l.b16 %v7361
      %v7579 = vunpack.c.l.b16 %v7371
      %v7580 = vpack.c.b16 %v7549, %v7548
      %v7581 = vpack.c.b16 %v7551, %v7550
      %v7582 = vpack.c.b16 %v7553, %v7552
      %v7583 = vpack.c.b16 %v7555, %v7554
      %v7584 = vpack.c.b16 %v7557, %v7556
      %v7585 = vpack.c.b16 %v7559, %v7558
      %v7586 = vpack.c.b16 %v7561, %v7560
      %v7587 = vpack.c.b16 %v7563, %v7562
      %v7588 = vpack.c.b16 %v7565, %v7564
      %v7589 = vpack.c.b16 %v7567, %v7566
      %v7590 = vpack.c.b16 %v7569, %v7568
      %v7591 = vpack.c.b16 %v7571, %v7570
      %v7592 = vpack.c.b16 %v7573, %v7572
      %v7593 = vpack.c.b16 %v7575, %v7574
      %v7594 = vpack.c.b16 %v7577, %v7576
      %v7595 = vpack.c.b16 %v7579, %v7578
      %v7596 = vunpack.c.l.b16 %v7439
      %v7597 = vunpack.c.l.b16 %v7442
      %v7598 = vunpack.c.l.b16 %v7446
      %v7599 = vunpack.c.l.b16 %v7449
      %v7600 = vunpack.c.l.b16 %v7453
      %v7601 = vunpack.c.l.b16 %v7456
      %v7602 = vunpack.c.l.b16 %v7460
      %v7603 = vunpack.c.l.b16 %v7463
      %v7604 = vunpack.c.l.b16 %v7467
      %v7605 = vunpack.c.l.b16 %v7470
      %v7606 = vunpack.c.l.b16 %v7474
      %v7607 = vunpack.c.l.b16 %v7477
      %v7608 = vunpack.c.l.b16 %v7481
      %v7609 = vunpack.c.l.b16 %v7484
      %v7610 = vunpack.c.l.b16 %v7488
      %v7611 = vunpack.c.l.b16 %v7491
      %v7612 = vunpack.c.l.b16 %v7495
      %v7613 = vunpack.c.l.b16 %v7498
      %v7614 = vunpack.c.l.b16 %v7502
      %v7615 = vunpack.c.l.b16 %v7505
      %v7616 = vunpack.c.l.b16 %v7509
      %v7617 = vunpack.c.l.b16 %v7512
      %v7618 = vunpack.c.l.b16 %v7516
      %v7619 = vunpack.c.l.b16 %v7519
      %v7620 = vunpack.c.l.b16 %v7523
      %v7621 = vunpack.c.l.b16 %v7526
      %v7622 = vunpack.c.l.b16 %v7530
      %v7623 = vunpack.c.l.b16 %v7533
      %v7624 = vunpack.c.l.b16 %v7537
      %v7625 = vunpack.c.l.b16 %v7540
      %v7626 = vunpack.c.l.b16 %v7544
      %v7627 = vunpack.c.l.b16 %v7547
      %v7628 = vpack.c.b16 %v7597, %v7596
      %v7629 = vpack.c.b16 %v7599, %v7598
      %v7630 = vpack.c.b16 %v7601, %v7600
      %v7631 = vpack.c.b16 %v7603, %v7602
      %v7632 = vpack.c.b16 %v7605, %v7604
      %v7633 = vpack.c.b16 %v7607, %v7606
      %v7634 = vpack.c.b16 %v7609, %v7608
      %v7635 = vpack.c.b16 %v7611, %v7610
      %v7636 = vpack.c.b16 %v7613, %v7612
      %v7637 = vpack.c.b16 %v7615, %v7614
      %v7638 = vpack.c.b16 %v7617, %v7616
      %v7639 = vpack.c.b16 %v7619, %v7618
      %v7640 = vpack.c.b16 %v7621, %v7620
      %v7641 = vpack.c.b16 %v7623, %v7622
      %v7642 = vpack.c.b16 %v7625, %v7624
      %v7643 = vpack.c.b16 %v7627, %v7626
      %7644 = vrot.lane.b32.xlu0 %v7628, 8
      %v7645 = vpop.permute.xlu0 %7644
      %7646 = vrot.lane.b32.xlu0 %v7629, 8
      %v7647 = vpop.permute.xlu0 %7646
      %7648 = vrot.lane.b32.xlu0 %v7630, 8
      %v7649 = vpop.permute.xlu0 %7648
      %7650 = vrot.lane.b32.xlu0 %v7631, 8
      %v7651 = vpop.permute.xlu0 %7650
      %7652 = vrot.lane.b32.xlu0 %v7632, 8
      %v7653 = vpop.permute.xlu0 %7652
      %7654 = vrot.lane.b32.xlu0 %v7633, 8
      %v7655 = vpop.permute.xlu0 %7654
      %7656 = vrot.lane.b32.xlu0 %v7634, 8
      %v7657 = vpop.permute.xlu0 %7656
      %7658 = vrot.lane.b32.xlu0 %v7635, 8
      %v7659 = vpop.permute.xlu0 %7658
      %7660 = vrot.lane.b32.xlu0 %v7636, 8
      %v7661 = vpop.permute.xlu0 %7660
      %7662 = vrot.lane.b32.xlu0 %v7637, 8
      %v7663 = vpop.permute.xlu0 %7662
      %7664 = vrot.lane.b32.xlu0 %v7638, 8
      %v7665 = vpop.permute.xlu0 %7664
      %7666 = vrot.lane.b32.xlu0 %v7639, 8
      %v7667 = vpop.permute.xlu0 %7666
      %7668 = vrot.lane.b32.xlu0 %v7640, 8
      %v7669 = vpop.permute.xlu0 %7668
      %7670 = vrot.lane.b32.xlu0 %v7641, 8
      %v7671 = vpop.permute.xlu0 %7670
      %7672 = vrot.lane.b32.xlu0 %v7642, 8
      %v7673 = vpop.permute.xlu0 %7672
      %7674 = vrot.lane.b32.xlu0 %v7643, 8
      %v7675 = vpop.permute.xlu0 %7674
      %v7678 = vsel %vm1466, %v7580, %v7645
      %v7681 = vsel %vm1466, %v7581, %v7647
      %v7684 = vsel %vm1466, %v7582, %v7649
      %v7687 = vsel %vm1466, %v7583, %v7651
      %v7690 = vsel %vm1466, %v7584, %v7653
      %v7693 = vsel %vm1466, %v7585, %v7655
      %v7696 = vsel %vm1466, %v7586, %v7657
      %v7699 = vsel %vm1466, %v7587, %v7659
      %v7702 = vsel %vm1466, %v7588, %v7661
      %v7705 = vsel %vm1466, %v7589, %v7663
      %v7708 = vsel %vm1466, %v7590, %v7665
      %v7711 = vsel %vm1466, %v7591, %v7667
      %v7714 = vsel %vm1466, %v7592, %v7669
      %v7717 = vsel %vm1466, %v7593, %v7671
      %v7720 = vsel %vm1466, %v7594, %v7673
      %v7723 = vsel %vm1466, %v7595, %v7675
      %v7740 = vunpack.c.l.b16 %v7678
      %v7741 = vunpack.c.h.b16 %v7678
      %v7742 = vunpack.c.l.b16 %v7681
      %v7743 = vunpack.c.h.b16 %v7681
      %v7744 = vunpack.c.l.b16 %v7684
      %v7745 = vunpack.c.h.b16 %v7684
      %v7746 = vunpack.c.l.b16 %v7687
      %v7747 = vunpack.c.h.b16 %v7687
      %v7748 = vunpack.c.l.b16 %v7690
      %v7749 = vunpack.c.h.b16 %v7690
      %v7750 = vunpack.c.l.b16 %v7693
      %v7751 = vunpack.c.h.b16 %v7693
      %v7752 = vunpack.c.l.b16 %v7696
      %v7753 = vunpack.c.h.b16 %v7696
      %v7754 = vunpack.c.l.b16 %v7699
      %v7755 = vunpack.c.h.b16 %v7699
      %v7756 = vunpack.c.l.b16 %v7702
      %v7757 = vunpack.c.h.b16 %v7702
      %v7758 = vunpack.c.l.b16 %v7705
      %v7759 = vunpack.c.h.b16 %v7705
      %v7760 = vunpack.c.l.b16 %v7708
      %v7761 = vunpack.c.h.b16 %v7708
      %v7762 = vunpack.c.l.b16 %v7711
      %v7763 = vunpack.c.h.b16 %v7711
      %v7764 = vunpack.c.l.b16 %v7714
      %v7765 = vunpack.c.h.b16 %v7714
      %v7766 = vunpack.c.l.b16 %v7717
      %v7767 = vunpack.c.h.b16 %v7717
      %v7768 = vunpack.c.l.b16 %v7720
      %v7769 = vunpack.c.h.b16 %v7720
      %v7770 = vunpack.c.l.b16 %v7723
      %v7771 = vunpack.c.h.b16 %v7723
      %v7772 = vpack.c.b16 %v7740, %v7740
      %v7773 = vpack.c.b16 %v7741, %v7741
      %v7774 = vpack.c.b16 %v7742, %v7742
      %v7775 = vpack.c.b16 %v7743, %v7743
      %v7776 = vpack.c.b16 %v7744, %v7744
      %v7777 = vpack.c.b16 %v7745, %v7745
      %v7778 = vpack.c.b16 %v7746, %v7746
      %v7779 = vpack.c.b16 %v7747, %v7747
      %v7780 = vpack.c.b16 %v7748, %v7748
      %v7781 = vpack.c.b16 %v7749, %v7749
      %v7782 = vpack.c.b16 %v7750, %v7750
      %v7783 = vpack.c.b16 %v7751, %v7751
      %v7784 = vpack.c.b16 %v7752, %v7752
      %v7785 = vpack.c.b16 %v7753, %v7753
      %v7786 = vpack.c.b16 %v7754, %v7754
      %v7787 = vpack.c.b16 %v7755, %v7755
      %v7788 = vpack.c.b16 %v7756, %v7756
      %v7789 = vpack.c.b16 %v7757, %v7757
      %v7790 = vpack.c.b16 %v7758, %v7758
      %v7791 = vpack.c.b16 %v7759, %v7759
      %v7792 = vpack.c.b16 %v7760, %v7760
      %v7793 = vpack.c.b16 %v7761, %v7761
      %v7794 = vpack.c.b16 %v7762, %v7762
      %v7795 = vpack.c.b16 %v7763, %v7763
      %v7796 = vpack.c.b16 %v7764, %v7764
      %v7797 = vpack.c.b16 %v7765, %v7765
      %v7798 = vpack.c.b16 %v7766, %v7766
      %v7799 = vpack.c.b16 %v7767, %v7767
      %v7800 = vpack.c.b16 %v7768, %v7768
      %v7801 = vpack.c.b16 %v7769, %v7769
      %v7802 = vpack.c.b16 %v7770, %v7770
      %v7803 = vpack.c.b16 %v7771, %v7771
      %7804 = vrot.lane.b32.xlu0 %v7772, 32
      %v7805 = vpop.permute.xlu0 %7804
      %7806 = vrot.lane.b32.xlu0 %v7773, 32
      %v7807 = vpop.permute.xlu0 %7806
      %7808 = vrot.lane.b32.xlu0 %v7774, 32
      %v7809 = vpop.permute.xlu0 %7808
      %7810 = vrot.lane.b32.xlu0 %v7775, 32
      %v7811 = vpop.permute.xlu0 %7810
      %7812 = vrot.lane.b32.xlu0 %v7776, 32
      %v7813 = vpop.permute.xlu0 %7812
      %7814 = vrot.lane.b32.xlu0 %v7777, 32
      %v7815 = vpop.permute.xlu0 %7814
      %7816 = vrot.lane.b32.xlu0 %v7778, 32
      %v7817 = vpop.permute.xlu0 %7816
      %7818 = vrot.lane.b32.xlu0 %v7779, 32
      %v7819 = vpop.permute.xlu0 %7818
      %7820 = vrot.lane.b32.xlu0 %v7780, 32
      %v7821 = vpop.permute.xlu0 %7820
      %7822 = vrot.lane.b32.xlu0 %v7781, 32
      %v7823 = vpop.permute.xlu0 %7822
      %7824 = vrot.lane.b32.xlu0 %v7782, 32
      %v7825 = vpop.permute.xlu0 %7824
      %7826 = vrot.lane.b32.xlu0 %v7783, 32
      %v7827 = vpop.permute.xlu0 %7826
      %7828 = vrot.lane.b32.xlu0 %v7784, 32
      %v7829 = vpop.permute.xlu0 %7828
      %7830 = vrot.lane.b32.xlu0 %v7785, 32
      %v7831 = vpop.permute.xlu0 %7830
      %7832 = vrot.lane.b32.xlu0 %v7786, 32
      %v7833 = vpop.permute.xlu0 %7832
      %7834 = vrot.lane.b32.xlu0 %v7787, 32
      %v7835 = vpop.permute.xlu0 %7834
      %7836 = vrot.lane.b32.xlu0 %v7788, 32
      %v7837 = vpop.permute.xlu0 %7836
      %7838 = vrot.lane.b32.xlu0 %v7789, 32
      %v7839 = vpop.permute.xlu0 %7838
      %7840 = vrot.lane.b32.xlu0 %v7790, 32
      %v7841 = vpop.permute.xlu0 %7840
      %7842 = vrot.lane.b32.xlu0 %v7791, 32
      %v7843 = vpop.permute.xlu0 %7842
      %7844 = vrot.lane.b32.xlu0 %v7792, 32
      %v7845 = vpop.permute.xlu0 %7844
      %7846 = vrot.lane.b32.xlu0 %v7793, 32
      %v7847 = vpop.permute.xlu0 %7846
      %7848 = vrot.lane.b32.xlu0 %v7794, 32
      %v7849 = vpop.permute.xlu0 %7848
      %7850 = vrot.lane.b32.xlu0 %v7795, 32
      %v7851 = vpop.permute.xlu0 %7850
      %7852 = vrot.lane.b32.xlu0 %v7796, 32
      %v7853 = vpop.permute.xlu0 %7852
      %7854 = vrot.lane.b32.xlu0 %v7797, 32
      %v7855 = vpop.permute.xlu0 %7854
      %7856 = vrot.lane.b32.xlu0 %v7798, 32
      %v7857 = vpop.permute.xlu0 %7856
      %7858 = vrot.lane.b32.xlu0 %v7799, 32
      %v7859 = vpop.permute.xlu0 %7858
      %7860 = vrot.lane.b32.xlu0 %v7800, 32
      %v7861 = vpop.permute.xlu0 %7860
      %7862 = vrot.lane.b32.xlu0 %v7801, 32
      %v7863 = vpop.permute.xlu0 %7862
      %7864 = vrot.lane.b32.xlu0 %v7802, 32
      %v7865 = vpop.permute.xlu0 %7864
      %7866 = vrot.lane.b32.xlu0 %v7803, 32
      %v7867 = vpop.permute.xlu0 %7866
      %7900 = vst.msk [vmem:[#allocation3] sm:$0xf] %vm3280, %v7805
      %7901 = vst.msk [vmem:[#allocation3 + $0x4] sm:$0xf] %vm3280, %v7807
      %7902 = vst.msk [vmem:[#allocation3 + $0x8] sm:$0xf] %vm3280, %v7809
      %7903 = vst.msk [vmem:[#allocation3 + $0xc] sm:$0xf] %vm3280, %v7811
      %7904 = vst.msk [vmem:[#allocation3 + $0x10] sm:$0xf] %vm3280, %v7813
      %7905 = vst.msk [vmem:[#allocation3 + $0x14] sm:$0xf] %vm3280, %v7815
      %7906 = vst.msk [vmem:[#allocation3 + $0x18] sm:$0xf] %vm3280, %v7817
      %7907 = vst.msk [vmem:[#allocation3 + $0x1c] sm:$0xf] %vm3280, %v7819
      %7908 = vst.msk [vmem:[#allocation3 + $0x20] sm:$0xf] %vm3280, %v7821
      %7909 = vst.msk [vmem:[#allocation3 + $0x24] sm:$0xf] %vm3280, %v7823
      %7910 = vst.msk [vmem:[#allocation3 + $0x28] sm:$0xf] %vm3280, %v7825
      %7911 = vst.msk [vmem:[#allocation3 + $0x2c] sm:$0xf] %vm3280, %v7827
      %7912 = vst.msk [vmem:[#allocation3 + $0x30] sm:$0xf] %vm3280, %v7829
      %7913 = vst.msk [vmem:[#allocation3 + $0x34] sm:$0xf] %vm3280, %v7831
      %7914 = vst.msk [vmem:[#allocation3 + $0x38] sm:$0xf] %vm3280, %v7833
      %7915 = vst.msk [vmem:[#allocation3 + $0x3c] sm:$0xf] %vm3280, %v7835
      %7916 = vst.msk [vmem:[#allocation3 + $0x40] sm:$0xf] %vm3280, %v7837
      %7917 = vst.msk [vmem:[#allocation3 + $0x44] sm:$0xf] %vm3280, %v7839
      %7918 = vst.msk [vmem:[#allocation3 + $0x48] sm:$0xf] %vm3280, %v7841
      %7919 = vst.msk [vmem:[#allocation3 + $0x4c] sm:$0xf] %vm3280, %v7843
      %7920 = vst.msk [vmem:[#allocation3 + $0x50] sm:$0xf] %vm3280, %v7845
      %7921 = vst.msk [vmem:[#allocation3 + $0x54] sm:$0xf] %vm3280, %v7847
      %7922 = vst.msk [vmem:[#allocation3 + $0x58] sm:$0xf] %vm3280, %v7849
      %7923 = vst.msk [vmem:[#allocation3 + $0x5c] sm:$0xf] %vm3280, %v7851
      %7924 = vst.msk [vmem:[#allocation3 + $0x60] sm:$0xf] %vm3280, %v7853
      %7925 = vst.msk [vmem:[#allocation3 + $0x64] sm:$0xf] %vm3280, %v7855
      %7926 = vst.msk [vmem:[#allocation3 + $0x68] sm:$0xf] %vm3280, %v7857
      %7927 = vst.msk [vmem:[#allocation3 + $0x6c] sm:$0xf] %vm3280, %v7859
      %7928 = vst.msk [vmem:[#allocation3 + $0x70] sm:$0xf] %vm3280, %v7861
      %7929 = vst.msk [vmem:[#allocation3 + $0x74] sm:$0xf] %vm3280, %v7863
      %7930 = vst.msk [vmem:[#allocation3 + $0x78] sm:$0xf] %vm3280, %v7865
      %7931 = vst.msk [vmem:[#allocation3 + $0x7c] sm:$0xf] %vm3280, %v7867
      %v7932 = vld [vmem:[%s3313] sm:$0xf]
      %v7933 = vld [vmem:[%s3313 + $0x4] sm:$0xf]
      %v7934 = vld [vmem:[%s3313 + $0xc] sm:$0xf]
      %v7935 = vld [vmem:[%s3313 + $0x10] sm:$0xf]
      %v7936 = vld [vmem:[%s3313 + $0x18] sm:$0xf]
      %v7937 = vld [vmem:[%s3313 + $0x1c] sm:$0xf]
      %v7938 = vld [vmem:[%s3313 + $0x24] sm:$0xf]
      %v7939 = vld [vmem:[%s3313 + $0x28] sm:$0xf]
      %v7940 = vld [vmem:[%s3313 + $0x30] sm:$0xf]
      %v7941 = vld [vmem:[%s3313 + $0x34] sm:$0xf]
      %v7942 = vld [vmem:[%s3313 + $0x3c] sm:$0xf]
      %v7943 = vld [vmem:[%s3313 + $0x40] sm:$0xf]
      %v7944 = vld [vmem:[%s3313 + $0x48] sm:$0xf]
      %v7945 = vld [vmem:[%s3313 + $0x4c] sm:$0xf]
      %v7946 = vld [vmem:[%s3313 + $0x54] sm:$0xf]
      %v7947 = vld [vmem:[%s3313 + $0x58] sm:$0xf]
      %v7948 = vld [vmem:[%s3313 + $0x60] sm:$0xf]
      %v7949 = vld [vmem:[%s3313 + $0x64] sm:$0xf]
      %v7950 = vld [vmem:[%s3313 + $0x6c] sm:$0xf]
      %v7951 = vld [vmem:[%s3313 + $0x70] sm:$0xf]
      %v7952 = vld [vmem:[%s3313 + $0x78] sm:$0xf]
      %v7953 = vld [vmem:[%s3313 + $0x7c] sm:$0xf]
      %v7954 = vld [vmem:[%s3313 + $0x84] sm:$0xf]
      %v7955 = vld [vmem:[%s3313 + $0x88] sm:$0xf]
      %v7956 = vld [vmem:[%s3313 + $0x90] sm:$0xf]
      %v7957 = vld [vmem:[%s3313 + $0x94] sm:$0xf]
      %v7958 = vld [vmem:[%s3313 + $0x9c] sm:$0xf]
      %v7959 = vld [vmem:[%s3313 + $0xa0] sm:$0xf]
      %v7960 = vld [vmem:[%s3313 + $0xa8] sm:$0xf]
      %v7961 = vld [vmem:[%s3313 + $0xac] sm:$0xf]
      %v7962 = vld [vmem:[%s3313 + $0xb4] sm:$0xf]
      %v7963 = vld [vmem:[%s3313 + $0xb8] sm:$0xf]
      %v7964 = vld [vmem:[%s3313 + $0x8] sm:$0x1]
      %v7965 = vld [vmem:[%s3313 + $0x14] sm:$0x1]
      %v7966 = vld [vmem:[%s3313 + $0x20] sm:$0x1]
      %v7967 = vld [vmem:[%s3313 + $0x2c] sm:$0x1]
      %v7968 = vld [vmem:[%s3313 + $0x38] sm:$0x1]
      %v7969 = vld [vmem:[%s3313 + $0x44] sm:$0x1]
      %v7970 = vld [vmem:[%s3313 + $0x50] sm:$0x1]
      %v7971 = vld [vmem:[%s3313 + $0x5c] sm:$0x1]
      %v7972 = vld [vmem:[%s3313 + $0x68] sm:$0x1]
      %v7973 = vld [vmem:[%s3313 + $0x74] sm:$0x1]
      %v7974 = vld [vmem:[%s3313 + $0x80] sm:$0x1]
      %v7975 = vld [vmem:[%s3313 + $0x8c] sm:$0x1]
      %v7976 = vld [vmem:[%s3313 + $0x98] sm:$0x1]
      %v7977 = vld [vmem:[%s3313 + $0xa4] sm:$0x1]
      %v7978 = vld [vmem:[%s3313 + $0xb0] sm:$0x1]
      %v7979 = vld [vmem:[%s3313 + $0xbc] sm:$0x1]
      %v7981 = vshrl.u32 %v7932, 16
      %v7983 = vrot.slane %v7981, 4
      %v7984 = vshll.u32 %v7932, 16
      %v7986 = vrot.slane %v7984, 5
      %v7987 = vor.u32 %v7983, %v7986
      %v7988 = vrot.slane %v7987, 4
      %v7990 = vshll.u32 %v7933, 16
      %v7992 = vrot.slane %v7990, 5
      %v7993 = vsel %vm921, %v7988, %v7992
      %v7994 = vshrl.u32 %v7933, 16
      %v7996 = vrot.slane %v7994, 4
      %v7997 = vor.u32 %v7996, %v7992
      %v7998 = vrot.slane %v7997, 4
      %v8000 = vshll.u32 %v7964, 16
      %v8002 = vrot.slane %v8000, 5
      %v8003 = vsel %vm921, %v7998, %v8002
      %v8005 = vshrl.u32 %v7934, 16
      %v8007 = vrot.slane %v8005, 4
      %v8008 = vshll.u32 %v7934, 16
      %v8010 = vrot.slane %v8008, 5
      %v8011 = vor.u32 %v8007, %v8010
      %v8012 = vrot.slane %v8011, 4
      %v8014 = vshll.u32 %v7935, 16
      %v8016 = vrot.slane %v8014, 5
      %v8017 = vsel %vm921, %v8012, %v8016
      %v8018 = vshrl.u32 %v7935, 16
      %v8020 = vrot.slane %v8018, 4
      %v8021 = vor.u32 %v8020, %v8016
      %v8022 = vrot.slane %v8021, 4
      %v8024 = vshll.u32 %v7965, 16
      %v8026 = vrot.slane %v8024, 5
      %v8027 = vsel %vm921, %v8022, %v8026
      %v8029 = vshrl.u32 %v7936, 16
      %v8031 = vrot.slane %v8029, 4
      %v8032 = vshll.u32 %v7936, 16
      %v8034 = vrot.slane %v8032, 5
      %v8035 = vor.u32 %v8031, %v8034
      %v8036 = vrot.slane %v8035, 4
      %v8038 = vshll.u32 %v7937, 16
      %v8040 = vrot.slane %v8038, 5
      %v8041 = vsel %vm921, %v8036, %v8040
      %v8042 = vshrl.u32 %v7937, 16
      %v8044 = vrot.slane %v8042, 4
      %v8045 = vor.u32 %v8044, %v8040
      %v8046 = vrot.slane %v8045, 4
      %v8048 = vshll.u32 %v7966, 16
      %v8050 = vrot.slane %v8048, 5
      %v8051 = vsel %vm921, %v8046, %v8050
      %v8053 = vshrl.u32 %v7938, 16
      %v8055 = vrot.slane %v8053, 4
      %v8056 = vshll.u32 %v7938, 16
      %v8058 = vrot.slane %v8056, 5
      %v8059 = vor.u32 %v8055, %v8058
      %v8060 = vrot.slane %v8059, 4
      %v8062 = vshll.u32 %v7939, 16
      %v8064 = vrot.slane %v8062, 5
      %v8065 = vsel %vm921, %v8060, %v8064
      %v8066 = vshrl.u32 %v7939, 16
      %v8068 = vrot.slane %v8066, 4
      %v8069 = vor.u32 %v8068, %v8064
      %v8070 = vrot.slane %v8069, 4
      %v8072 = vshll.u32 %v7967, 16
      %v8074 = vrot.slane %v8072, 5
      %v8075 = vsel %vm921, %v8070, %v8074
      %v8077 = vshrl.u32 %v7940, 16
      %v8079 = vrot.slane %v8077, 4
      %v8080 = vshll.u32 %v7940, 16
      %v8082 = vrot.slane %v8080, 5
      %v8083 = vor.u32 %v8079, %v8082
      %v8084 = vrot.slane %v8083, 4
      %v8086 = vshll.u32 %v7941, 16
      %v8088 = vrot.slane %v8086, 5
      %v8089 = vsel %vm921, %v8084, %v8088
      %v8090 = vshrl.u32 %v7941, 16
      %v8092 = vrot.slane %v8090, 4
      %v8093 = vor.u32 %v8092, %v8088
      %v8094 = vrot.slane %v8093, 4
      %v8096 = vshll.u32 %v7968, 16
      %v8098 = vrot.slane %v8096, 5
      %v8099 = vsel %vm921, %v8094, %v8098
      %v8101 = vshrl.u32 %v7942, 16
      %v8103 = vrot.slane %v8101, 4
      %v8104 = vshll.u32 %v7942, 16
      %v8106 = vrot.slane %v8104, 5
      %v8107 = vor.u32 %v8103, %v8106
      %v8108 = vrot.slane %v8107, 4
      %v8110 = vshll.u32 %v7943, 16
      %v8112 = vrot.slane %v8110, 5
      %v8113 = vsel %vm921, %v8108, %v8112
      %v8114 = vshrl.u32 %v7943, 16
      %v8116 = vrot.slane %v8114, 4
      %v8117 = vor.u32 %v8116, %v8112
      %v8118 = vrot.slane %v8117, 4
      %v8120 = vshll.u32 %v7969, 16
      %v8122 = vrot.slane %v8120, 5
      %v8123 = vsel %vm921, %v8118, %v8122
      %v8125 = vshrl.u32 %v7944, 16
      %v8127 = vrot.slane %v8125, 4
      %v8128 = vshll.u32 %v7944, 16
      %v8130 = vrot.slane %v8128, 5
      %v8131 = vor.u32 %v8127, %v8130
      %v8132 = vrot.slane %v8131, 4
      %v8134 = vshll.u32 %v7945, 16
      %v8136 = vrot.slane %v8134, 5
      %v8137 = vsel %vm921, %v8132, %v8136
      %v8138 = vshrl.u32 %v7945, 16
      %v8140 = vrot.slane %v8138, 4
      %v8141 = vor.u32 %v8140, %v8136
      %v8142 = vrot.slane %v8141, 4
      %v8144 = vshll.u32 %v7970, 16
      %v8146 = vrot.slane %v8144, 5
      %v8147 = vsel %vm921, %v8142, %v8146
      %v8149 = vshrl.u32 %v7946, 16
      %v8151 = vrot.slane %v8149, 4
      %v8152 = vshll.u32 %v7946, 16
      %v8154 = vrot.slane %v8152, 5
      %v8155 = vor.u32 %v8151, %v8154
      %v8156 = vrot.slane %v8155, 4
      %v8158 = vshll.u32 %v7947, 16
      %v8160 = vrot.slane %v8158, 5
      %v8161 = vsel %vm921, %v8156, %v8160
      %v8162 = vshrl.u32 %v7947, 16
      %v8164 = vrot.slane %v8162, 4
      %v8165 = vor.u32 %v8164, %v8160
      %v8166 = vrot.slane %v8165, 4
      %v8168 = vshll.u32 %v7971, 16
      %v8170 = vrot.slane %v8168, 5
      %v8171 = vsel %vm921, %v8166, %v8170
      %v8173 = vshrl.u32 %v7948, 16
      %v8175 = vrot.slane %v8173, 4
      %v8176 = vshll.u32 %v7948, 16
      %v8178 = vrot.slane %v8176, 5
      %v8179 = vor.u32 %v8175, %v8178
      %v8180 = vrot.slane %v8179, 4
      %v8182 = vshll.u32 %v7949, 16
      %v8184 = vrot.slane %v8182, 5
      %v8185 = vsel %vm921, %v8180, %v8184
      %v8186 = vshrl.u32 %v7949, 16
      %v8188 = vrot.slane %v8186, 4
      %v8189 = vor.u32 %v8188, %v8184
      %v8190 = vrot.slane %v8189, 4
      %v8192 = vshll.u32 %v7972, 16
      %v8194 = vrot.slane %v8192, 5
      %v8195 = vsel %vm921, %v8190, %v8194
      %v8197 = vshrl.u32 %v7950, 16
      %v8199 = vrot.slane %v8197, 4
      %v8200 = vshll.u32 %v7950, 16
      %v8202 = vrot.slane %v8200, 5
      %v8203 = vor.u32 %v8199, %v8202
      %v8204 = vrot.slane %v8203, 4
      %v8206 = vshll.u32 %v7951, 16
      %v8208 = vrot.slane %v8206, 5
      %v8209 = vsel %vm921, %v8204, %v8208
      %v8210 = vshrl.u32 %v7951, 16
      %v8212 = vrot.slane %v8210, 4
      %v8213 = vor.u32 %v8212, %v8208
      %v8214 = vrot.slane %v8213, 4
      %v8216 = vshll.u32 %v7973, 16
      %v8218 = vrot.slane %v8216, 5
      %v8219 = vsel %vm921, %v8214, %v8218
      %v8221 = vshrl.u32 %v7952, 16
      %v8223 = vrot.slane %v8221, 4
      %v8224 = vshll.u32 %v7952, 16
      %v8226 = vrot.slane %v8224, 5
      %v8227 = vor.u32 %v8223, %v8226
      %v8228 = vrot.slane %v8227, 4
      %v8230 = vshll.u32 %v7953, 16
      %v8232 = vrot.slane %v8230, 5
      %v8233 = vsel %vm921, %v8228, %v8232
      %v8234 = vshrl.u32 %v7953, 16
      %v8236 = vrot.slane %v8234, 4
      %v8237 = vor.u32 %v8236, %v8232
      %v8238 = vrot.slane %v8237, 4
      %v8240 = vshll.u32 %v7974, 16
      %v8242 = vrot.slane %v8240, 5
      %v8243 = vsel %vm921, %v8238, %v8242
      %v8245 = vshrl.u32 %v7954, 16
      %v8247 = vrot.slane %v8245, 4
      %v8248 = vshll.u32 %v7954, 16
      %v8250 = vrot.slane %v8248, 5
      %v8251 = vor.u32 %v8247, %v8250
      %v8252 = vrot.slane %v8251, 4
      %v8254 = vshll.u32 %v7955, 16
      %v8256 = vrot.slane %v8254, 5
      %v8257 = vsel %vm921, %v8252, %v8256
      %v8258 = vshrl.u32 %v7955, 16
      %v8260 = vrot.slane %v8258, 4
      %v8261 = vor.u32 %v8260, %v8256
      %v8262 = vrot.slane %v8261, 4
      %v8264 = vshll.u32 %v7975, 16
      %v8266 = vrot.slane %v8264, 5
      %v8267 = vsel %vm921, %v8262, %v8266
      %v8269 = vshrl.u32 %v7956, 16
      %v8271 = vrot.slane %v8269, 4
      %v8272 = vshll.u32 %v7956, 16
      %v8274 = vrot.slane %v8272, 5
      %v8275 = vor.u32 %v8271, %v8274
      %v8276 = vrot.slane %v8275, 4
      %v8278 = vshll.u32 %v7957, 16
      %v8280 = vrot.slane %v8278, 5
      %v8281 = vsel %vm921, %v8276, %v8280
      %v8282 = vshrl.u32 %v7957, 16
      %v8284 = vrot.slane %v8282, 4
      %v8285 = vor.u32 %v8284, %v8280
      %v8286 = vrot.slane %v8285, 4
      %v8288 = vshll.u32 %v7976, 16
      %v8290 = vrot.slane %v8288, 5
      %v8291 = vsel %vm921, %v8286, %v8290
      %v8293 = vshrl.u32 %v7958, 16
      %v8295 = vrot.slane %v8293, 4
      %v8296 = vshll.u32 %v7958, 16
      %v8298 = vrot.slane %v8296, 5
      %v8299 = vor.u32 %v8295, %v8298
      %v8300 = vrot.slane %v8299, 4
      %v8302 = vshll.u32 %v7959, 16
      %v8304 = vrot.slane %v8302, 5
      %v8305 = vsel %vm921, %v8300, %v8304
      %v8306 = vshrl.u32 %v7959, 16
      %v8308 = vrot.slane %v8306, 4
      %v8309 = vor.u32 %v8308, %v8304
      %v8310 = vrot.slane %v8309, 4
      %v8312 = vshll.u32 %v7977, 16
      %v8314 = vrot.slane %v8312, 5
      %v8315 = vsel %vm921, %v8310, %v8314
      %v8317 = vshrl.u32 %v7960, 16
      %v8319 = vrot.slane %v8317, 4
      %v8320 = vshll.u32 %v7960, 16
      %v8322 = vrot.slane %v8320, 5
      %v8323 = vor.u32 %v8319, %v8322
      %v8324 = vrot.slane %v8323, 4
      %v8326 = vshll.u32 %v7961, 16
      %v8328 = vrot.slane %v8326, 5
      %v8329 = vsel %vm921, %v8324, %v8328
      %v8330 = vshrl.u32 %v7961, 16
      %v8332 = vrot.slane %v8330, 4
      %v8333 = vor.u32 %v8332, %v8328
      %v8334 = vrot.slane %v8333, 4
      %v8336 = vshll.u32 %v7978, 16
      %v8338 = vrot.slane %v8336, 5
      %v8339 = vsel %vm921, %v8334, %v8338
      %v8341 = vshrl.u32 %v7962, 16
      %v8343 = vrot.slane %v8341, 4
      %v8344 = vshll.u32 %v7962, 16
      %v8346 = vrot.slane %v8344, 5
      %v8347 = vor.u32 %v8343, %v8346
      %v8348 = vrot.slane %v8347, 4
      %v8350 = vshll.u32 %v7963, 16
      %v8352 = vrot.slane %v8350, 5
      %v8353 = vsel %vm921, %v8348, %v8352
      %v8354 = vshrl.u32 %v7963, 16
      %v8356 = vrot.slane %v8354, 4
      %v8357 = vor.u32 %v8356, %v8352
      %v8358 = vrot.slane %v8357, 4
      %v8360 = vshll.u32 %v7979, 16
      %v8362 = vrot.slane %v8360, 5
      %v8363 = vsel %vm921, %v8358, %v8362
      %v8396 = vunpack.c.l.b16 %v7932
      %v8397 = vunpack.c.l.b16 %v7933
      %v8398 = vunpack.c.l.b16 %v7934
      %v8399 = vunpack.c.l.b16 %v7935
      %v8400 = vunpack.c.l.b16 %v7936
      %v8401 = vunpack.c.l.b16 %v7937
      %v8402 = vunpack.c.l.b16 %v7938
      %v8403 = vunpack.c.l.b16 %v7939
      %v8404 = vunpack.c.l.b16 %v7940
      %v8405 = vunpack.c.l.b16 %v7941
      %v8406 = vunpack.c.l.b16 %v7942
      %v8407 = vunpack.c.l.b16 %v7943
      %v8408 = vunpack.c.l.b16 %v7944
      %v8409 = vunpack.c.l.b16 %v7945
      %v8410 = vunpack.c.l.b16 %v7946
      %v8411 = vunpack.c.l.b16 %v7947
      %v8412 = vunpack.c.l.b16 %v7948
      %v8413 = vunpack.c.l.b16 %v7949
      %v8414 = vunpack.c.l.b16 %v7950
      %v8415 = vunpack.c.l.b16 %v7951
      %v8416 = vunpack.c.l.b16 %v7952
      %v8417 = vunpack.c.l.b16 %v7953
      %v8418 = vunpack.c.l.b16 %v7954
      %v8419 = vunpack.c.l.b16 %v7955
      %v8420 = vunpack.c.l.b16 %v7956
      %v8421 = vunpack.c.l.b16 %v7957
      %v8422 = vunpack.c.l.b16 %v7958
      %v8423 = vunpack.c.l.b16 %v7959
      %v8424 = vunpack.c.l.b16 %v7960
      %v8425 = vunpack.c.l.b16 %v7961
      %v8426 = vunpack.c.l.b16 %v7962
      %v8427 = vunpack.c.l.b16 %v7963
      %v8428 = vpack.c.b16 %v8397, %v8396
      %v8429 = vpack.c.b16 %v8399, %v8398
      %v8430 = vpack.c.b16 %v8401, %v8400
      %v8431 = vpack.c.b16 %v8403, %v8402
      %v8432 = vpack.c.b16 %v8405, %v8404
      %v8433 = vpack.c.b16 %v8407, %v8406
      %v8434 = vpack.c.b16 %v8409, %v8408
      %v8435 = vpack.c.b16 %v8411, %v8410
      %v8436 = vpack.c.b16 %v8413, %v8412
      %v8437 = vpack.c.b16 %v8415, %v8414
      %v8438 = vpack.c.b16 %v8417, %v8416
      %v8439 = vpack.c.b16 %v8419, %v8418
      %v8440 = vpack.c.b16 %v8421, %v8420
      %v8441 = vpack.c.b16 %v8423, %v8422
      %v8442 = vpack.c.b16 %v8425, %v8424
      %v8443 = vpack.c.b16 %v8427, %v8426
      %v8444 = vunpack.c.l.b16 %v7993
      %v8445 = vunpack.c.l.b16 %v8003
      %v8446 = vunpack.c.l.b16 %v8017
      %v8447 = vunpack.c.l.b16 %v8027
      %v8448 = vunpack.c.l.b16 %v8041
      %v8449 = vunpack.c.l.b16 %v8051
      %v8450 = vunpack.c.l.b16 %v8065
      %v8451 = vunpack.c.l.b16 %v8075
      %v8452 = vunpack.c.l.b16 %v8089
      %v8453 = vunpack.c.l.b16 %v8099
      %v8454 = vunpack.c.l.b16 %v8113
      %v8455 = vunpack.c.l.b16 %v8123
      %v8456 = vunpack.c.l.b16 %v8137
      %v8457 = vunpack.c.l.b16 %v8147
      %v8458 = vunpack.c.l.b16 %v8161
      %v8459 = vunpack.c.l.b16 %v8171
      %v8460 = vunpack.c.l.b16 %v8185
      %v8461 = vunpack.c.l.b16 %v8195
      %v8462 = vunpack.c.l.b16 %v8209
      %v8463 = vunpack.c.l.b16 %v8219
      %v8464 = vunpack.c.l.b16 %v8233
      %v8465 = vunpack.c.l.b16 %v8243
      %v8466 = vunpack.c.l.b16 %v8257
      %v8467 = vunpack.c.l.b16 %v8267
      %v8468 = vunpack.c.l.b16 %v8281
      %v8469 = vunpack.c.l.b16 %v8291
      %v8470 = vunpack.c.l.b16 %v8305
      %v8471 = vunpack.c.l.b16 %v8315
      %v8472 = vunpack.c.l.b16 %v8329
      %v8473 = vunpack.c.l.b16 %v8339
      %v8474 = vunpack.c.l.b16 %v8353
      %v8475 = vunpack.c.l.b16 %v8363
      %v8476 = vpack.c.b16 %v8445, %v8444
      %v8477 = vpack.c.b16 %v8447, %v8446
      %v8478 = vpack.c.b16 %v8449, %v8448
      %v8479 = vpack.c.b16 %v8451, %v8450
      %v8480 = vpack.c.b16 %v8453, %v8452
      %v8481 = vpack.c.b16 %v8455, %v8454
      %v8482 = vpack.c.b16 %v8457, %v8456
      %v8483 = vpack.c.b16 %v8459, %v8458
      %v8484 = vpack.c.b16 %v8461, %v8460
      %v8485 = vpack.c.b16 %v8463, %v8462
      %v8486 = vpack.c.b16 %v8465, %v8464
      %v8487 = vpack.c.b16 %v8467, %v8466
      %v8488 = vpack.c.b16 %v8469, %v8468
      %v8489 = vpack.c.b16 %v8471, %v8470
      %v8490 = vpack.c.b16 %v8473, %v8472
      %v8491 = vpack.c.b16 %v8475, %v8474
      %8492 = vrot.lane.b32.xlu0 %v8476, 8
      %v8493 = vpop.permute.xlu0 %8492
      %8494 = vrot.lane.b32.xlu0 %v8477, 8
      %v8495 = vpop.permute.xlu0 %8494
      %8496 = vrot.lane.b32.xlu0 %v8478, 8
      %v8497 = vpop.permute.xlu0 %8496
      %8498 = vrot.lane.b32.xlu0 %v8479, 8
      %v8499 = vpop.permute.xlu0 %8498
      %8500 = vrot.lane.b32.xlu0 %v8480, 8
      %v8501 = vpop.permute.xlu0 %8500
      %8502 = vrot.lane.b32.xlu0 %v8481, 8
      %v8503 = vpop.permute.xlu0 %8502
      %8504 = vrot.lane.b32.xlu0 %v8482, 8
      %v8505 = vpop.permute.xlu0 %8504
      %8506 = vrot.lane.b32.xlu0 %v8483, 8
      %v8507 = vpop.permute.xlu0 %8506
      %8508 = vrot.lane.b32.xlu0 %v8484, 8
      %v8509 = vpop.permute.xlu0 %8508
      %8510 = vrot.lane.b32.xlu0 %v8485, 8
      %v8511 = vpop.permute.xlu0 %8510
      %8512 = vrot.lane.b32.xlu0 %v8486, 8
      %v8513 = vpop.permute.xlu0 %8512
      %8514 = vrot.lane.b32.xlu0 %v8487, 8
      %v8515 = vpop.permute.xlu0 %8514
      %8516 = vrot.lane.b32.xlu0 %v8488, 8
      %v8517 = vpop.permute.xlu0 %8516
      %8518 = vrot.lane.b32.xlu0 %v8489, 8
      %v8519 = vpop.permute.xlu0 %8518
      %8520 = vrot.lane.b32.xlu0 %v8490, 8
      %v8521 = vpop.permute.xlu0 %8520
      %8522 = vrot.lane.b32.xlu0 %v8491, 8
      %v8523 = vpop.permute.xlu0 %8522
      %v8526 = vsel %vm1466, %v8428, %v8493
      %v8529 = vsel %vm1466, %v8429, %v8495
      %v8532 = vsel %vm1466, %v8430, %v8497
      %v8535 = vsel %vm1466, %v8431, %v8499
      %v8538 = vsel %vm1466, %v8432, %v8501
      %v8541 = vsel %vm1466, %v8433, %v8503
      %v8544 = vsel %vm1466, %v8434, %v8505
      %v8547 = vsel %vm1466, %v8435, %v8507
      %v8550 = vsel %vm1466, %v8436, %v8509
      %v8553 = vsel %vm1466, %v8437, %v8511
      %v8556 = vsel %vm1466, %v8438, %v8513
      %v8559 = vsel %vm1466, %v8439, %v8515
      %v8562 = vsel %vm1466, %v8440, %v8517
      %v8565 = vsel %vm1466, %v8441, %v8519
      %v8568 = vsel %vm1466, %v8442, %v8521
      %v8571 = vsel %vm1466, %v8443, %v8523
      %v8588 = vunpack.c.l.b16 %v8526
      %v8589 = vunpack.c.h.b16 %v8526
      %v8590 = vunpack.c.l.b16 %v8529
      %v8591 = vunpack.c.h.b16 %v8529
      %v8592 = vunpack.c.l.b16 %v8532
      %v8593 = vunpack.c.h.b16 %v8532
      %v8594 = vunpack.c.l.b16 %v8535
      %v8595 = vunpack.c.h.b16 %v8535
      %v8596 = vunpack.c.l.b16 %v8538
      %v8597 = vunpack.c.h.b16 %v8538
      %v8598 = vunpack.c.l.b16 %v8541
      %v8599 = vunpack.c.h.b16 %v8541
      %v8600 = vunpack.c.l.b16 %v8544
      %v8601 = vunpack.c.h.b16 %v8544
      %v8602 = vunpack.c.l.b16 %v8547
      %v8603 = vunpack.c.h.b16 %v8547
      %v8604 = vunpack.c.l.b16 %v8550
      %v8605 = vunpack.c.h.b16 %v8550
      %v8606 = vunpack.c.l.b16 %v8553
      %v8607 = vunpack.c.h.b16 %v8553
      %v8608 = vunpack.c.l.b16 %v8556
      %v8609 = vunpack.c.h.b16 %v8556
      %v8610 = vunpack.c.l.b16 %v8559
      %v8611 = vunpack.c.h.b16 %v8559
      %v8612 = vunpack.c.l.b16 %v8562
      %v8613 = vunpack.c.h.b16 %v8562
      %v8614 = vunpack.c.l.b16 %v8565
      %v8615 = vunpack.c.h.b16 %v8565
      %v8616 = vunpack.c.l.b16 %v8568
      %v8617 = vunpack.c.h.b16 %v8568
      %v8618 = vunpack.c.l.b16 %v8571
      %v8619 = vunpack.c.h.b16 %v8571
      %v8620 = vpack.c.b16 %v8588, %v8588
      %v8621 = vpack.c.b16 %v8589, %v8589
      %v8622 = vpack.c.b16 %v8590, %v8590
      %v8623 = vpack.c.b16 %v8591, %v8591
      %v8624 = vpack.c.b16 %v8592, %v8592
      %v8625 = vpack.c.b16 %v8593, %v8593
      %v8626 = vpack.c.b16 %v8594, %v8594
      %v8627 = vpack.c.b16 %v8595, %v8595
      %v8628 = vpack.c.b16 %v8596, %v8596
      %v8629 = vpack.c.b16 %v8597, %v8597
      %v8630 = vpack.c.b16 %v8598, %v8598
      %v8631 = vpack.c.b16 %v8599, %v8599
      %v8632 = vpack.c.b16 %v8600, %v8600
      %v8633 = vpack.c.b16 %v8601, %v8601
      %v8634 = vpack.c.b16 %v8602, %v8602
      %v8635 = vpack.c.b16 %v8603, %v8603
      %v8636 = vpack.c.b16 %v8604, %v8604
      %v8637 = vpack.c.b16 %v8605, %v8605
      %v8638 = vpack.c.b16 %v8606, %v8606
      %v8639 = vpack.c.b16 %v8607, %v8607
      %v8640 = vpack.c.b16 %v8608, %v8608
      %v8641 = vpack.c.b16 %v8609, %v8609
      %v8642 = vpack.c.b16 %v8610, %v8610
      %v8643 = vpack.c.b16 %v8611, %v8611
      %v8644 = vpack.c.b16 %v8612, %v8612
      %v8645 = vpack.c.b16 %v8613, %v8613
      %v8646 = vpack.c.b16 %v8614, %v8614
      %v8647 = vpack.c.b16 %v8615, %v8615
      %v8648 = vpack.c.b16 %v8616, %v8616
      %v8649 = vpack.c.b16 %v8617, %v8617
      %v8650 = vpack.c.b16 %v8618, %v8618
      %v8651 = vpack.c.b16 %v8619, %v8619
      %8652 = vrot.lane.b32.xlu0 %v8620, 48
      %v8653 = vpop.permute.xlu0 %8652
      %8654 = vrot.lane.b32.xlu0 %v8621, 48
      %v8655 = vpop.permute.xlu0 %8654
      %8656 = vrot.lane.b32.xlu0 %v8622, 48
      %v8657 = vpop.permute.xlu0 %8656
      %8658 = vrot.lane.b32.xlu0 %v8623, 48
      %v8659 = vpop.permute.xlu0 %8658
      %8660 = vrot.lane.b32.xlu0 %v8624, 48
      %v8661 = vpop.permute.xlu0 %8660
      %8662 = vrot.lane.b32.xlu0 %v8625, 48
      %v8663 = vpop.permute.xlu0 %8662
      %8664 = vrot.lane.b32.xlu0 %v8626, 48
      %v8665 = vpop.permute.xlu0 %8664
      %8666 = vrot.lane.b32.xlu0 %v8627, 48
      %v8667 = vpop.permute.xlu0 %8666
      %8668 = vrot.lane.b32.xlu0 %v8628, 48
      %v8669 = vpop.permute.xlu0 %8668
      %8670 = vrot.lane.b32.xlu0 %v8629, 48
      %v8671 = vpop.permute.xlu0 %8670
      %8672 = vrot.lane.b32.xlu0 %v8630, 48
      %v8673 = vpop.permute.xlu0 %8672
      %8674 = vrot.lane.b32.xlu0 %v8631, 48
      %v8675 = vpop.permute.xlu0 %8674
      %8676 = vrot.lane.b32.xlu0 %v8632, 48
      %v8677 = vpop.permute.xlu0 %8676
      %8678 = vrot.lane.b32.xlu0 %v8633, 48
      %v8679 = vpop.permute.xlu0 %8678
      %8680 = vrot.lane.b32.xlu0 %v8634, 48
      %v8681 = vpop.permute.xlu0 %8680
      %8682 = vrot.lane.b32.xlu0 %v8635, 48
      %v8683 = vpop.permute.xlu0 %8682
      %8684 = vrot.lane.b32.xlu0 %v8636, 48
      %v8685 = vpop.permute.xlu0 %8684
      %8686 = vrot.lane.b32.xlu0 %v8637, 48
      %v8687 = vpop.permute.xlu0 %8686
      %8688 = vrot.lane.b32.xlu0 %v8638, 48
      %v8689 = vpop.permute.xlu0 %8688
      %8690 = vrot.lane.b32.xlu0 %v8639, 48
      %v8691 = vpop.permute.xlu0 %8690
      %8692 = vrot.lane.b32.xlu0 %v8640, 48
      %v8693 = vpop.permute.xlu0 %8692
      %8694 = vrot.lane.b32.xlu0 %v8641, 48
      %v8695 = vpop.permute.xlu0 %8694
      %8696 = vrot.lane.b32.xlu0 %v8642, 48
      %v8697 = vpop.permute.xlu0 %8696
      %8698 = vrot.lane.b32.xlu0 %v8643, 48
      %v8699 = vpop.permute.xlu0 %8698
      %8700 = vrot.lane.b32.xlu0 %v8644, 48
      %v8701 = vpop.permute.xlu0 %8700
      %8702 = vrot.lane.b32.xlu0 %v8645, 48
      %v8703 = vpop.permute.xlu0 %8702
      %8704 = vrot.lane.b32.xlu0 %v8646, 48
      %v8705 = vpop.permute.xlu0 %8704
      %8706 = vrot.lane.b32.xlu0 %v8647, 48
      %v8707 = vpop.permute.xlu0 %8706
      %8708 = vrot.lane.b32.xlu0 %v8648, 48
      %v8709 = vpop.permute.xlu0 %8708
      %8710 = vrot.lane.b32.xlu0 %v8649, 48
      %v8711 = vpop.permute.xlu0 %8710
      %8712 = vrot.lane.b32.xlu0 %v8650, 48
      %v8713 = vpop.permute.xlu0 %8712
      %8714 = vrot.lane.b32.xlu0 %v8651, 48
      %v8715 = vpop.permute.xlu0 %8714
      %8748 = vst.msk [vmem:[#allocation3] sm:$0xf] %vm4130, %v8653
      %8749 = vst.msk [vmem:[#allocation3 + $0x4] sm:$0xf] %vm4130, %v8655
      %8750 = vst.msk [vmem:[#allocation3 + $0x8] sm:$0xf] %vm4130, %v8657
      %8751 = vst.msk [vmem:[#allocation3 + $0xc] sm:$0xf] %vm4130, %v8659
      %8752 = vst.msk [vmem:[#allocation3 + $0x10] sm:$0xf] %vm4130, %v8661
      %8753 = vst.msk [vmem:[#allocation3 + $0x14] sm:$0xf] %vm4130, %v8663
      %8754 = vst.msk [vmem:[#allocation3 + $0x18] sm:$0xf] %vm4130, %v8665
      %8755 = vst.msk [vmem:[#allocation3 + $0x1c] sm:$0xf] %vm4130, %v8667
      %8756 = vst.msk [vmem:[#allocation3 + $0x20] sm:$0xf] %vm4130, %v8669
      %8757 = vst.msk [vmem:[#allocation3 + $0x24] sm:$0xf] %vm4130, %v8671
      %8758 = vst.msk [vmem:[#allocation3 + $0x28] sm:$0xf] %vm4130, %v8673
      %8759 = vst.msk [vmem:[#allocation3 + $0x2c] sm:$0xf] %vm4130, %v8675
      %8760 = vst.msk [vmem:[#allocation3 + $0x30] sm:$0xf] %vm4130, %v8677
      %8761 = vst.msk [vmem:[#allocation3 + $0x34] sm:$0xf] %vm4130, %v8679
      %8762 = vst.msk [vmem:[#allocation3 + $0x38] sm:$0xf] %vm4130, %v8681
      %8763 = vst.msk [vmem:[#allocation3 + $0x3c] sm:$0xf] %vm4130, %v8683
      %8764 = vst.msk [vmem:[#allocation3 + $0x40] sm:$0xf] %vm4130, %v8685
      %8765 = vst.msk [vmem:[#allocation3 + $0x44] sm:$0xf] %vm4130, %v8687
      %8766 = vst.msk [vmem:[#allocation3 + $0x48] sm:$0xf] %vm4130, %v8689
      %8767 = vst.msk [vmem:[#allocation3 + $0x4c] sm:$0xf] %vm4130, %v8691
      %8768 = vst.msk [vmem:[#allocation3 + $0x50] sm:$0xf] %vm4130, %v8693
      %8769 = vst.msk [vmem:[#allocation3 + $0x54] sm:$0xf] %vm4130, %v8695
      %8770 = vst.msk [vmem:[#allocation3 + $0x58] sm:$0xf] %vm4130, %v8697
      %8771 = vst.msk [vmem:[#allocation3 + $0x5c] sm:$0xf] %vm4130, %v8699
      %8772 = vst.msk [vmem:[#allocation3 + $0x60] sm:$0xf] %vm4130, %v8701
      %8773 = vst.msk [vmem:[#allocation3 + $0x64] sm:$0xf] %vm4130, %v8703
      %8774 = vst.msk [vmem:[#allocation3 + $0x68] sm:$0xf] %vm4130, %v8705
      %8775 = vst.msk [vmem:[#allocation3 + $0x6c] sm:$0xf] %vm4130, %v8707
      %8776 = vst.msk [vmem:[#allocation3 + $0x70] sm:$0xf] %vm4130, %v8709
      %8777 = vst.msk [vmem:[#allocation3 + $0x74] sm:$0xf] %vm4130, %v8711
      %8778 = vst.msk [vmem:[#allocation3 + $0x78] sm:$0xf] %vm4130, %v8713
      %8779 = vst.msk [vmem:[#allocation3 + $0x7c] sm:$0xf] %vm4130, %v8715
      %v8780 = vld [vmem:[%s3313] sm:$0xe]
      %v8781 = vld [vmem:[%s3313 + $0x4] sm:$0xf]
      %v8782 = vld [vmem:[%s3313 + $0x8] sm:$0x1]
      %v8783 = vld [vmem:[%s3313 + $0xc] sm:$0xe]
      %v8784 = vld [vmem:[%s3313 + $0x10] sm:$0xf]
      %v8785 = vld [vmem:[%s3313 + $0x14] sm:$0x1]
      %v8786 = vld [vmem:[%s3313 + $0x18] sm:$0xe]
      %v8787 = vld [vmem:[%s3313 + $0x1c] sm:$0xf]
      %v8788 = vld [vmem:[%s3313 + $0x20] sm:$0x1]
      %v8789 = vld [vmem:[%s3313 + $0x24] sm:$0xe]
      %v8790 = vld [vmem:[%s3313 + $0x28] sm:$0xf]
      %v8791 = vld [vmem:[%s3313 + $0x2c] sm:$0x1]
      %v8792 = vld [vmem:[%s3313 + $0x30] sm:$0xe]
      %v8793 = vld [vmem:[%s3313 + $0x34] sm:$0xf]
      %v8794 = vld [vmem:[%s3313 + $0x38] sm:$0x1]
      %v8795 = vld [vmem:[%s3313 + $0x3c] sm:$0xe]
      %v8796 = vld [vmem:[%s3313 + $0x40] sm:$0xf]
      %v8797 = vld [vmem:[%s3313 + $0x44] sm:$0x1]
      %v8798 = vld [vmem:[%s3313 + $0x48] sm:$0xe]
      %v8799 = vld [vmem:[%s3313 + $0x4c] sm:$0xf]
      %v8800 = vld [vmem:[%s3313 + $0x50] sm:$0x1]
      %v8801 = vld [vmem:[%s3313 + $0x54] sm:$0xe]
      %v8802 = vld [vmem:[%s3313 + $0x58] sm:$0xf]
      %v8803 = vld [vmem:[%s3313 + $0x5c] sm:$0x1]
      %v8804 = vld [vmem:[%s3313 + $0x60] sm:$0xe]
      %v8805 = vld [vmem:[%s3313 + $0x64] sm:$0xf]
      %v8806 = vld [vmem:[%s3313 + $0x68] sm:$0x1]
      %v8807 = vld [vmem:[%s3313 + $0x6c] sm:$0xe]
      %v8808 = vld [vmem:[%s3313 + $0x70] sm:$0xf]
      %v8809 = vld [vmem:[%s3313 + $0x74] sm:$0x1]
      %v8810 = vld [vmem:[%s3313 + $0x78] sm:$0xe]
      %v8811 = vld [vmem:[%s3313 + $0x7c] sm:$0xf]
      %v8812 = vld [vmem:[%s3313 + $0x80] sm:$0x1]
      %v8813 = vld [vmem:[%s3313 + $0x84] sm:$0xe]
      %v8814 = vld [vmem:[%s3313 + $0x88] sm:$0xf]
      %v8815 = vld [vmem:[%s3313 + $0x8c] sm:$0x1]
      %v8816 = vld [vmem:[%s3313 + $0x90] sm:$0xe]
      %v8817 = vld [vmem:[%s3313 + $0x94] sm:$0xf]
      %v8818 = vld [vmem:[%s3313 + $0x98] sm:$0x1]
      %v8819 = vld [vmem:[%s3313 + $0x9c] sm:$0xe]
      %v8820 = vld [vmem:[%s3313 + $0xa0] sm:$0xf]
      %v8821 = vld [vmem:[%s3313 + $0xa4] sm:$0x1]
      %v8822 = vld [vmem:[%s3313 + $0xa8] sm:$0xe]
      %v8823 = vld [vmem:[%s3313 + $0xac] sm:$0xf]
      %v8824 = vld [vmem:[%s3313 + $0xb0] sm:$0x1]
      %v8825 = vld [vmem:[%s3313 + $0xb4] sm:$0xe]
      %v8826 = vld [vmem:[%s3313 + $0xb8] sm:$0xf]
      %v8827 = vld [vmem:[%s3313 + $0xbc] sm:$0x1]
      %v8876 = vrot.slane %v8780, 5
      %v8877 = vrot.slane %v8876, 4
      %v8878 = vrot.slane %v8781, 5
      %v8879 = vsel %vm1758, %v8877, %v8878
      %v8880 = vrot.slane %v8878, 4
      %v8881 = vrot.slane %v8782, 5
      %v8882 = vsel %vm1758, %v8880, %v8881
      %v8883 = vrot.slane %v8783, 5
      %v8884 = vrot.slane %v8883, 4
      %v8885 = vrot.slane %v8784, 5
      %v8886 = vsel %vm1758, %v8884, %v8885
      %v8887 = vrot.slane %v8885, 4
      %v8888 = vrot.slane %v8785, 5
      %v8889 = vsel %vm1758, %v8887, %v8888
      %v8890 = vrot.slane %v8786, 5
      %v8891 = vrot.slane %v8890, 4
      %v8892 = vrot.slane %v8787, 5
      %v8893 = vsel %vm1758, %v8891, %v8892
      %v8894 = vrot.slane %v8892, 4
      %v8895 = vrot.slane %v8788, 5
      %v8896 = vsel %vm1758, %v8894, %v8895
      %v8897 = vrot.slane %v8789, 5
      %v8898 = vrot.slane %v8897, 4
      %v8899 = vrot.slane %v8790, 5
      %v8900 = vsel %vm1758, %v8898, %v8899
      %v8901 = vrot.slane %v8899, 4
      %v8902 = vrot.slane %v8791, 5
      %v8903 = vsel %vm1758, %v8901, %v8902
      %v8904 = vrot.slane %v8792, 5
      %v8905 = vrot.slane %v8904, 4
      %v8906 = vrot.slane %v8793, 5
      %v8907 = vsel %vm1758, %v8905, %v8906
      %v8908 = vrot.slane %v8906, 4
      %v8909 = vrot.slane %v8794, 5
      %v8910 = vsel %vm1758, %v8908, %v8909
      %v8911 = vrot.slane %v8795, 5
      %v8912 = vrot.slane %v8911, 4
      %v8913 = vrot.slane %v8796, 5
      %v8914 = vsel %vm1758, %v8912, %v8913
      %v8915 = vrot.slane %v8913, 4
      %v8916 = vrot.slane %v8797, 5
      %v8917 = vsel %vm1758, %v8915, %v8916
      %v8918 = vrot.slane %v8798, 5
      %v8919 = vrot.slane %v8918, 4
      %v8920 = vrot.slane %v8799, 5
      %v8921 = vsel %vm1758, %v8919, %v8920
      %v8922 = vrot.slane %v8920, 4
      %v8923 = vrot.slane %v8800, 5
      %v8924 = vsel %vm1758, %v8922, %v8923
      %v8925 = vrot.slane %v8801, 5
      %v8926 = vrot.slane %v8925, 4
      %v8927 = vrot.slane %v8802, 5
      %v8928 = vsel %vm1758, %v8926, %v8927
      %v8929 = vrot.slane %v8927, 4
      %v8930 = vrot.slane %v8803, 5
      %v8931 = vsel %vm1758, %v8929, %v8930
      %v8932 = vrot.slane %v8804, 5
      %v8933 = vrot.slane %v8932, 4
      %v8934 = vrot.slane %v8805, 5
      %v8935 = vsel %vm1758, %v8933, %v8934
      %v8936 = vrot.slane %v8934, 4
      %v8937 = vrot.slane %v8806, 5
      %v8938 = vsel %vm1758, %v8936, %v8937
      %v8939 = vrot.slane %v8807, 5
      %v8940 = vrot.slane %v8939, 4
      %v8941 = vrot.slane %v8808, 5
      %v8942 = vsel %vm1758, %v8940, %v8941
      %v8943 = vrot.slane %v8941, 4
      %v8944 = vrot.slane %v8809, 5
      %v8945 = vsel %vm1758, %v8943, %v8944
      %v8946 = vrot.slane %v8810, 5
      %v8947 = vrot.slane %v8946, 4
      %v8948 = vrot.slane %v8811, 5
      %v8949 = vsel %vm1758, %v8947, %v8948
      %v8950 = vrot.slane %v8948, 4
      %v8951 = vrot.slane %v8812, 5
      %v8952 = vsel %vm1758, %v8950, %v8951
      %v8953 = vrot.slane %v8813, 5
      %v8954 = vrot.slane %v8953, 4
      %v8955 = vrot.slane %v8814, 5
      %v8956 = vsel %vm1758, %v8954, %v8955
      %v8957 = vrot.slane %v8955, 4
      %v8958 = vrot.slane %v8815, 5
      %v8959 = vsel %vm1758, %v8957, %v8958
      %v8960 = vrot.slane %v8816, 5
      %v8961 = vrot.slane %v8960, 4
      %v8962 = vrot.slane %v8817, 5
      %v8963 = vsel %vm1758, %v8961, %v8962
      %v8964 = vrot.slane %v8962, 4
      %v8965 = vrot.slane %v8818, 5
      %v8966 = vsel %vm1758, %v8964, %v8965
      %v8967 = vrot.slane %v8819, 5
      %v8968 = vrot.slane %v8967, 4
      %v8969 = vrot.slane %v8820, 5
      %v8970 = vsel %vm1758, %v8968, %v8969
      %v8971 = vrot.slane %v8969, 4
      %v8972 = vrot.slane %v8821, 5
      %v8973 = vsel %vm1758, %v8971, %v8972
      %v8974 = vrot.slane %v8822, 5
      %v8975 = vrot.slane %v8974, 4
      %v8976 = vrot.slane %v8823, 5
      %v8977 = vsel %vm1758, %v8975, %v8976
      %v8978 = vrot.slane %v8976, 4
      %v8979 = vrot.slane %v8824, 5
      %v8980 = vsel %vm1758, %v8978, %v8979
      %v8981 = vrot.slane %v8825, 5
      %v8982 = vrot.slane %v8981, 4
      %v8983 = vrot.slane %v8826, 5
      %v8984 = vsel %vm1758, %v8982, %v8983
      %v8985 = vrot.slane %v8983, 4
      %v8986 = vrot.slane %v8827, 5
      %v8987 = vsel %vm1758, %v8985, %v8986
      %8988 = vrot.lane.b32.xlu0 %v8879, 64
      %v8989 = vpop.permute.xlu0 %8988
      %8990 = vrot.lane.b32.xlu0 %v8882, 64
      %v8991 = vpop.permute.xlu0 %8990
      %8992 = vrot.lane.b32.xlu0 %v8886, 64
      %v8993 = vpop.permute.xlu0 %8992
      %8994 = vrot.lane.b32.xlu0 %v8889, 64
      %v8995 = vpop.permute.xlu0 %8994
      %8996 = vrot.lane.b32.xlu0 %v8893, 64
      %v8997 = vpop.permute.xlu0 %8996
      %8998 = vrot.lane.b32.xlu0 %v8896, 64
      %v8999 = vpop.permute.xlu0 %8998
      %9000 = vrot.lane.b32.xlu0 %v8900, 64
      %v9001 = vpop.permute.xlu0 %9000
      %9002 = vrot.lane.b32.xlu0 %v8903, 64
      %v9003 = vpop.permute.xlu0 %9002
      %9004 = vrot.lane.b32.xlu0 %v8907, 64
      %v9005 = vpop.permute.xlu0 %9004
      %9006 = vrot.lane.b32.xlu0 %v8910, 64
      %v9007 = vpop.permute.xlu0 %9006
      %9008 = vrot.lane.b32.xlu0 %v8914, 64
      %v9009 = vpop.permute.xlu0 %9008
      %9010 = vrot.lane.b32.xlu0 %v8917, 64
      %v9011 = vpop.permute.xlu0 %9010
      %9012 = vrot.lane.b32.xlu0 %v8921, 64
      %v9013 = vpop.permute.xlu0 %9012
      %9014 = vrot.lane.b32.xlu0 %v8924, 64
      %v9015 = vpop.permute.xlu0 %9014
      %9016 = vrot.lane.b32.xlu0 %v8928, 64
      %v9017 = vpop.permute.xlu0 %9016
      %9018 = vrot.lane.b32.xlu0 %v8931, 64
      %v9019 = vpop.permute.xlu0 %9018
      %9020 = vrot.lane.b32.xlu0 %v8935, 64
      %v9021 = vpop.permute.xlu0 %9020
      %9022 = vrot.lane.b32.xlu0 %v8938, 64
      %v9023 = vpop.permute.xlu0 %9022
      %9024 = vrot.lane.b32.xlu0 %v8942, 64
      %v9025 = vpop.permute.xlu0 %9024
      %9026 = vrot.lane.b32.xlu0 %v8945, 64
      %v9027 = vpop.permute.xlu0 %9026
      %9028 = vrot.lane.b32.xlu0 %v8949, 64
      %v9029 = vpop.permute.xlu0 %9028
      %9030 = vrot.lane.b32.xlu0 %v8952, 64
      %v9031 = vpop.permute.xlu0 %9030
      %9032 = vrot.lane.b32.xlu0 %v8956, 64
      %v9033 = vpop.permute.xlu0 %9032
      %9034 = vrot.lane.b32.xlu0 %v8959, 64
      %v9035 = vpop.permute.xlu0 %9034
      %9036 = vrot.lane.b32.xlu0 %v8963, 64
      %v9037 = vpop.permute.xlu0 %9036
      %9038 = vrot.lane.b32.xlu0 %v8966, 64
      %v9039 = vpop.permute.xlu0 %9038
      %9040 = vrot.lane.b32.xlu0 %v8970, 64
      %v9041 = vpop.permute.xlu0 %9040
      %9042 = vrot.lane.b32.xlu0 %v8973, 64
      %v9043 = vpop.permute.xlu0 %9042
      %9044 = vrot.lane.b32.xlu0 %v8977, 64
      %v9045 = vpop.permute.xlu0 %9044
      %9046 = vrot.lane.b32.xlu0 %v8980, 64
      %v9047 = vpop.permute.xlu0 %9046
      %9048 = vrot.lane.b32.xlu0 %v8984, 64
      %v9049 = vpop.permute.xlu0 %9048
      %9050 = vrot.lane.b32.xlu0 %v8987, 64
      %v9051 = vpop.permute.xlu0 %9050
      %9084 = vst.msk [vmem:[#allocation3] sm:$0xf] %vm4467, %v8989
      %9085 = vst.msk [vmem:[#allocation3 + $0x4] sm:$0xf] %vm4467, %v8991
      %9086 = vst.msk [vmem:[#allocation3 + $0x8] sm:$0xf] %vm4467, %v8993
      %9087 = vst.msk [vmem:[#allocation3 + $0xc] sm:$0xf] %vm4467, %v8995
      %9088 = vst.msk [vmem:[#allocation3 + $0x10] sm:$0xf] %vm4467, %v8997
      %9089 = vst.msk [vmem:[#allocation3 + $0x14] sm:$0xf] %vm4467, %v8999
      %9090 = vst.msk [vmem:[#allocation3 + $0x18] sm:$0xf] %vm4467, %v9001
      %9091 = vst.msk [vmem:[#allocation3 + $0x1c] sm:$0xf] %vm4467, %v9003
      %9092 = vst.msk [vmem:[#allocation3 + $0x20] sm:$0xf] %vm4467, %v9005
      %9093 = vst.msk [vmem:[#allocation3 + $0x24] sm:$0xf] %vm4467, %v9007
      %9094 = vst.msk [vmem:[#allocation3 + $0x28] sm:$0xf] %vm4467, %v9009
      %9095 = vst.msk [vmem:[#allocation3 + $0x2c] sm:$0xf] %vm4467, %v9011
      %9096 = vst.msk [vmem:[#allocation3 + $0x30] sm:$0xf] %vm4467, %v9013
      %9097 = vst.msk [vmem:[#allocation3 + $0x34] sm:$0xf] %vm4467, %v9015
      %9098 = vst.msk [vmem:[#allocation3 + $0x38] sm:$0xf] %vm4467, %v9017
      %9099 = vst.msk [vmem:[#allocation3 + $0x3c] sm:$0xf] %vm4467, %v9019
      %9100 = vst.msk [vmem:[#allocation3 + $0x40] sm:$0xf] %vm4467, %v9021
      %9101 = vst.msk [vmem:[#allocation3 + $0x44] sm:$0xf] %vm4467, %v9023
      %9102 = vst.msk [vmem:[#allocation3 + $0x48] sm:$0xf] %vm4467, %v9025
      %9103 = vst.msk [vmem:[#allocation3 + $0x4c] sm:$0xf] %vm4467, %v9027
      %9104 = vst.msk [vmem:[#allocation3 + $0x50] sm:$0xf] %vm4467, %v9029
      %9105 = vst.msk [vmem:[#allocation3 + $0x54] sm:$0xf] %vm4467, %v9031
      %9106 = vst.msk [vmem:[#allocation3 + $0x58] sm:$0xf] %vm4467, %v9033
      %9107 = vst.msk [vmem:[#allocation3 + $0x5c] sm:$0xf] %vm4467, %v9035
      %9108 = vst.msk [vmem:[#allocation3 + $0x60] sm:$0xf] %vm4467, %v9037
      %9109 = vst.msk [vmem:[#allocation3 + $0x64] sm:$0xf] %vm4467, %v9039
      %9110 = vst.msk [vmem:[#allocation3 + $0x68] sm:$0xf] %vm4467, %v9041
      %9111 = vst.msk [vmem:[#allocation3 + $0x6c] sm:$0xf] %vm4467, %v9043
      %9112 = vst.msk [vmem:[#allocation3 + $0x70] sm:$0xf] %vm4467, %v9045
      %9113 = vst.msk [vmem:[#allocation3 + $0x74] sm:$0xf] %vm4467, %v9047
      %9114 = vst.msk [vmem:[#allocation3 + $0x78] sm:$0xf] %vm4467, %v9049
      %9115 = vst.msk [vmem:[#allocation3 + $0x7c] sm:$0xf] %vm4467, %v9051
      %v9116 = vld [vmem:[#allocation3] sm:$0xf]
      %v9117 = vld [vmem:[#allocation3 + $0x4] sm:$0xf]
      %v9118 = vld [vmem:[#allocation3 + $0x8] sm:$0xf]
      %v9119 = vld [vmem:[#allocation3 + $0xc] sm:$0xf]
      %v9120 = vld [vmem:[#allocation3 + $0x10] sm:$0xf]
      %v9121 = vld [vmem:[#allocation3 + $0x14] sm:$0xf]
      %v9122 = vld [vmem:[#allocation3 + $0x18] sm:$0xf]
      %v9123 = vld [vmem:[#allocation3 + $0x1c] sm:$0xf]
      %v9124 = vld [vmem:[#allocation3 + $0x20] sm:$0xf]
      %v9125 = vld [vmem:[#allocation3 + $0x24] sm:$0xf]
      %v9126 = vld [vmem:[#allocation3 + $0x28] sm:$0xf]
      %v9127 = vld [vmem:[#allocation3 + $0x2c] sm:$0xf]
      %v9128 = vld [vmem:[#allocation3 + $0x30] sm:$0xf]
      %v9129 = vld [vmem:[#allocation3 + $0x34] sm:$0xf]
      %v9130 = vld [vmem:[#allocation3 + $0x38] sm:$0xf]
      %v9131 = vld [vmem:[#allocation3 + $0x3c] sm:$0xf]
      %v9132 = vld [vmem:[#allocation3 + $0x40] sm:$0xf]
      %v9133 = vld [vmem:[#allocation3 + $0x44] sm:$0xf]
      %v9134 = vld [vmem:[#allocation3 + $0x48] sm:$0xf]
      %v9135 = vld [vmem:[#allocation3 + $0x4c] sm:$0xf]
      %v9136 = vld [vmem:[#allocation3 + $0x50] sm:$0xf]
      %v9137 = vld [vmem:[#allocation3 + $0x54] sm:$0xf]
      %v9138 = vld [vmem:[#allocation3 + $0x58] sm:$0xf]
      %v9139 = vld [vmem:[#allocation3 + $0x5c] sm:$0xf]
      %v9140 = vld [vmem:[#allocation3 + $0x60] sm:$0xf]
      %v9141 = vld [vmem:[#allocation3 + $0x64] sm:$0xf]
      %v9142 = vld [vmem:[#allocation3 + $0x68] sm:$0xf]
      %v9143 = vld [vmem:[#allocation3 + $0x6c] sm:$0xf]
      %v9144 = vld [vmem:[#allocation3 + $0x70] sm:$0xf]
      %v9145 = vld [vmem:[#allocation3 + $0x74] sm:$0xf]
      %v9146 = vld [vmem:[#allocation3 + $0x78] sm:$0xf]
      %v9147 = vld [vmem:[#allocation3 + $0x7c] sm:$0xf]
      %v9148 = vld [vmem:[%s4] sm:$0xf]
      %v9149 = vld [vmem:[%s4 + $0x4] sm:$0xf]
      %v9150 = vld [vmem:[%s4 + $0x8] sm:$0xf]
      %v9151 = vld [vmem:[%s4 + $0xc] sm:$0xf]
      %v9152 = vld [vmem:[%s4 + $0x10] sm:$0xf]
      %v9153 = vld [vmem:[%s4 + $0x14] sm:$0xf]
      %v9154 = vld [vmem:[%s4 + $0x18] sm:$0xf]
      %v9155 = vld [vmem:[%s4 + $0x1c] sm:$0xf]
      %v9156 = vld [vmem:[%s4 + $0x20] sm:$0xf]
      %v9189 = vunpack.c.l.b16 %v9116
      %v9190 = vunpack.c.l.b16 %v9117
      %v9191 = vunpack.c.l.b16 %v9118
      %v9192 = vunpack.c.l.b16 %v9119
      %v9193 = vunpack.c.l.b16 %v9120
      %v9194 = vunpack.c.l.b16 %v9121
      %v9195 = vunpack.c.l.b16 %v9122
      %v9196 = vunpack.c.l.b16 %v9123
      %v9197 = vunpack.c.l.b16 %v9124
      %v9198 = vunpack.c.l.b16 %v9125
      %v9199 = vunpack.c.l.b16 %v9126
      %v9200 = vunpack.c.l.b16 %v9127
      %v9201 = vunpack.c.l.b16 %v9128
      %v9202 = vunpack.c.l.b16 %v9129
      %v9203 = vunpack.c.l.b16 %v9130
      %v9204 = vunpack.c.l.b16 %v9131
      %v9205 = vunpack.c.l.b16 %v9132
      %v9206 = vunpack.c.l.b16 %v9133
      %v9207 = vunpack.c.l.b16 %v9134
      %v9208 = vunpack.c.l.b16 %v9135
      %v9209 = vunpack.c.l.b16 %v9136
      %v9210 = vunpack.c.l.b16 %v9137
      %v9211 = vunpack.c.l.b16 %v9138
      %v9212 = vunpack.c.l.b16 %v9139
      %v9213 = vunpack.c.l.b16 %v9140
      %v9214 = vunpack.c.l.b16 %v9141
      %v9215 = vunpack.c.l.b16 %v9142
      %v9216 = vunpack.c.l.b16 %v9143
      %v9217 = vunpack.c.l.b16 %v9144
      %v9218 = vunpack.c.l.b16 %v9145
      %v9219 = vunpack.c.l.b16 %v9146
      %v9220 = vunpack.c.l.b16 %v9147
      %v9221 = vpack.c.b16 %v9190, %v9189
      %v9222 = vpack.c.b16 %v9192, %v9191
      %v9223 = vpack.c.b16 %v9194, %v9193
      %v9224 = vpack.c.b16 %v9196, %v9195
      %v9225 = vpack.c.b16 %v9198, %v9197
      %v9226 = vpack.c.b16 %v9200, %v9199
      %v9227 = vpack.c.b16 %v9202, %v9201
      %v9228 = vpack.c.b16 %v9204, %v9203
      %v9229 = vpack.c.b16 %v9206, %v9205
      %v9230 = vpack.c.b16 %v9208, %v9207
      %v9231 = vpack.c.b16 %v9210, %v9209
      %v9232 = vpack.c.b16 %v9212, %v9211
      %v9233 = vpack.c.b16 %v9214, %v9213
      %v9234 = vpack.c.b16 %v9216, %v9215
      %v9235 = vpack.c.b16 %v9218, %v9217
      %v9236 = vpack.c.b16 %v9220, %v9219
      %v9246 = vunpack.c.l.b16 %v9148
      %v9247 = vunpack.c.l.b16 %v9149
      %v9248 = vunpack.c.l.b16 %v9150
      %v9249 = vunpack.c.l.b16 %v9151
      %v9250 = vunpack.c.l.b16 %v9152
      %v9251 = vunpack.c.l.b16 %v9153
      %v9252 = vunpack.c.l.b16 %v9154
      %v9253 = vunpack.c.l.b16 %v9155
      %v9254 = vunpack.c.l.b16 %v9156
      %v9255 = vpack.c.b16 %v9247, %v9246
      %v9256 = vpack.c.b16 %v9249, %v9248
      %v9257 = vpack.c.b16 %v9251, %v9250
      %v9258 = vpack.c.b16 %v9253, %v9252
      %v9259 = vpack.c.b16 %v9254, %v9254
      %v9265 = vsel %vm4648, %v9221, 0
      %v9268 = vsel %vm4648, %v9222, 0
      %v9271 = vsel %vm4648, %v9223, 0
      %v9274 = vsel %vm4648, %v9224, 0
      %v9277 = vsel %vm4648, %v9225, 0
      %v9280 = vsel %vm4648, %v9226, 0
      %v9283 = vsel %vm4648, %v9227, 0
      %v9286 = vsel %vm4648, %v9228, 0
      %v9289 = vsel %vm4648, %v9229, 0
      %v9292 = vsel %vm4648, %v9230, 0
      %v9295 = vsel %vm4648, %v9231, 0
      %v9298 = vsel %vm4648, %v9232, 0
      %v9301 = vsel %vm4648, %v9233, 0
      %v9304 = vsel %vm4648, %v9234, 0
      %v9307 = vsel %vm4648, %v9235, 0
      %v9310 = vsel %vm4648, %v9236, 0
      %v9313 = vsel %vm4697, %v9259, 0
      %9315 = vmatprep.subr.bf16.mxu0 0
      %9316 = vmatpush1.bf16.msra.mxu0 0
      %9317 = vmatprep.subr.bf16.mxu0 0
      %9318 = vmatpush1.bf16.msra.mxu0 0
      %9319 = vmatprep.subr.bf16.mxu0 0
      %9320 = vmatpush1.bf16.msra.mxu0 0
      %9321 = vmatprep.subr.bf16.mxu0 0
      %9322 = vmatpush1.bf16.msra.mxu0 %v9313
      %9323 = vmatprep.subr.bf16.mxu0 0
      %9324 = vmatpush1.bf16.msra.mxu0 %v9258
      %9325 = vmatprep.subr.bf16.mxu0 0
      %9326 = vmatpush1.bf16.msra.mxu0 %v9257
      %9327 = vmatprep.subr.bf16.mxu0 0
      %9328 = vmatpush1.bf16.msra.mxu0 %v9256
      %9329 = vmatprep.subr.bf16.mxu0 0
      %9330 = vmatpush1.bf16.msra.mxu0 %v9255
      %9331 = vmatprep.subr.bf16.mxu0 0
      %9332 = vmatpush2.bf16.msra.mxu0 0
      %9333 = vmatprep.subr.bf16.mxu0 0
      %9334 = vmatpush2.bf16.msra.mxu0 0
      %9335 = vmatprep.subr.bf16.mxu0 0
      %9336 = vmatpush2.bf16.msra.mxu0 0
      %9337 = vmatprep.subr.bf16.mxu0 0
      %9338 = vmatpush2.bf16.msra.mxu0 0
      %9339 = vmatprep.subr.bf16.mxu0 0
      %9340 = vmatpush2.bf16.msra.mxu0 0
      %9341 = vmatprep.subr.bf16.mxu0 0
      %9342 = vmatpush2.bf16.msra.mxu0 0
      %9343 = vmatprep.subr.bf16.mxu0 0
      %9344 = vmatpush2.bf16.msra.mxu0 0
      %9345 = vmatprep.subr.bf16.mxu0 0
      %9346 = vmatpush2.bf16.msra.mxu0 0
      %9347 = vmatprep.mubr.bf16.mxu0 0
      %9348 = vmatmul.mubr.bf16.gmra.mxu0 %v9265
      %v9349 = vpop.f32.mrf.mxu0
      %v9350 = vadd.f32 0.0, %v9349
      %v9351 = vpop.f32.mrf.mxu0
      %v9352 = vpop.f32.mrf.mxu0
      %v9353 = vadd.f32 0.0, %v9352
      %v9354 = vpop.f32.mrf.mxu0
      %9355 = vmatprep.mubr.bf16.mxu0 0
      %9356 = vmatmul.mubr.bf16.gmra.mxu0 %v9268
      %v9357 = vpop.f32.mrf.mxu0
      %v9358 = vadd.f32 0.0, %v9357
      %v9359 = vpop.f32.mrf.mxu0
      %v9360 = vpop.f32.mrf.mxu0
      %v9361 = vadd.f32 0.0, %v9360
      %v9362 = vpop.f32.mrf.mxu0
      %9363 = vmatprep.mubr.bf16.mxu0 0
      %9364 = vmatmul.mubr.bf16.gmra.mxu0 %v9271
      %v9365 = vpop.f32.mrf.mxu0
      %v9366 = vadd.f32 0.0, %v9365
      %v9367 = vpop.f32.mrf.mxu0
      %v9368 = vpop.f32.mrf.mxu0
      %v9369 = vadd.f32 0.0, %v9368
      %v9370 = vpop.f32.mrf.mxu0
      %9371 = vmatprep.mubr.bf16.mxu0 0
      %9372 = vmatmul.mubr.bf16.gmra.mxu0 %v9274
      %v9373 = vpop.f32.mrf.mxu0
      %v9374 = vadd.f32 0.0, %v9373
      %v9375 = vpop.f32.mrf.mxu0
      %v9376 = vpop.f32.mrf.mxu0
      %v9377 = vadd.f32 0.0, %v9376
      %v9378 = vpop.f32.mrf.mxu0
      %9379 = vmatprep.mubr.bf16.mxu0 0
      %9380 = vmatmul.mubr.bf16.gmra.mxu0 %v9277
      %v9381 = vpop.f32.mrf.mxu0
      %v9382 = vadd.f32 0.0, %v9381
      %v9383 = vpop.f32.mrf.mxu0
      %v9384 = vpop.f32.mrf.mxu0
      %v9385 = vadd.f32 0.0, %v9384
      %v9386 = vpop.f32.mrf.mxu0
      %9387 = vmatprep.mubr.bf16.mxu0 0
      %9388 = vmatmul.mubr.bf16.gmra.mxu0 %v9280
      %v9389 = vpop.f32.mrf.mxu0
      %v9390 = vadd.f32 0.0, %v9389
      %v9391 = vpop.f32.mrf.mxu0
      %v9392 = vpop.f32.mrf.mxu0
      %v9393 = vadd.f32 0.0, %v9392
      %v9394 = vpop.f32.mrf.mxu0
      %9395 = vmatprep.mubr.bf16.mxu0 0
      %9396 = vmatmul.mubr.bf16.gmra.mxu0 %v9283
      %v9397 = vpop.f32.mrf.mxu0
      %v9398 = vadd.f32 0.0, %v9397
      %v9399 = vpop.f32.mrf.mxu0
      %v9400 = vpop.f32.mrf.mxu0
      %v9401 = vadd.f32 0.0, %v9400
      %v9402 = vpop.f32.mrf.mxu0
      %9403 = vmatprep.mubr.bf16.mxu0 0
      %9404 = vmatmul.mubr.bf16.gmra.mxu0 %v9286
      %v9405 = vpop.f32.mrf.mxu0
      %v9406 = vadd.f32 0.0, %v9405
      %v9407 = vpop.f32.mrf.mxu0
      %v9408 = vpop.f32.mrf.mxu0
      %v9409 = vadd.f32 0.0, %v9408
      %v9410 = vpop.f32.mrf.mxu0
      %9411 = vmatprep.mubr.bf16.mxu0 0
      %9412 = vmatmul.mubr.bf16.gmra.mxu0 %v9289
      %v9413 = vpop.f32.mrf.mxu0
      %v9414 = vadd.f32 0.0, %v9413
      %v9415 = vpop.f32.mrf.mxu0
      %v9416 = vpop.f32.mrf.mxu0
      %v9417 = vadd.f32 0.0, %v9416
      %v9418 = vpop.f32.mrf.mxu0
      %9419 = vmatprep.mubr.bf16.mxu0 0
      %9420 = vmatmul.mubr.bf16.gmra.mxu0 %v9292
      %v9421 = vpop.f32.mrf.mxu0
      %v9422 = vadd.f32 0.0, %v9421
      %v9423 = vpop.f32.mrf.mxu0
      %v9424 = vpop.f32.mrf.mxu0
      %v9425 = vadd.f32 0.0, %v9424
      %v9426 = vpop.f32.mrf.mxu0
      %9427 = vmatprep.mubr.bf16.mxu0 0
      %9428 = vmatmul.mubr.bf16.gmra.mxu0 %v9295
      %v9429 = vpop.f32.mrf.mxu0
      %v9430 = vadd.f32 0.0, %v9429
      %v9431 = vpop.f32.mrf.mxu0
      %v9432 = vpop.f32.mrf.mxu0
      %v9433 = vadd.f32 0.0, %v9432
      %v9434 = vpop.f32.mrf.mxu0
      %9435 = vmatprep.mubr.bf16.mxu0 0
      %9436 = vmatmul.mubr.bf16.gmra.mxu0 %v9298
      %v9437 = vpop.f32.mrf.mxu0
      %v9438 = vadd.f32 0.0, %v9437
      %v9439 = vpop.f32.mrf.mxu0
      %v9440 = vpop.f32.mrf.mxu0
      %v9441 = vadd.f32 0.0, %v9440
      %v9442 = vpop.f32.mrf.mxu0
      %9443 = vmatprep.mubr.bf16.mxu0 0
      %9444 = vmatmul.mubr.bf16.gmra.mxu0 %v9301
      %v9445 = vpop.f32.mrf.mxu0
      %v9446 = vadd.f32 0.0, %v9445
      %v9447 = vpop.f32.mrf.mxu0
      %v9448 = vpop.f32.mrf.mxu0
      %v9449 = vadd.f32 0.0, %v9448
      %v9450 = vpop.f32.mrf.mxu0
      %9451 = vmatprep.mubr.bf16.mxu0 0
      %9452 = vmatmul.mubr.bf16.gmra.mxu0 %v9304
      %v9453 = vpop.f32.mrf.mxu0
      %v9454 = vadd.f32 0.0, %v9453
      %v9455 = vpop.f32.mrf.mxu0
      %v9456 = vpop.f32.mrf.mxu0
      %v9457 = vadd.f32 0.0, %v9456
      %v9458 = vpop.f32.mrf.mxu0
      %9459 = vmatprep.mubr.bf16.mxu0 0
      %9460 = vmatmul.mubr.bf16.gmra.mxu0 %v9307
      %v9461 = vpop.f32.mrf.mxu0
      %v9462 = vadd.f32 0.0, %v9461
      %v9463 = vpop.f32.mrf.mxu0
      %v9464 = vpop.f32.mrf.mxu0
      %v9465 = vadd.f32 0.0, %v9464
      %v9466 = vpop.f32.mrf.mxu0
      %9467 = vmatprep.mubr.bf16.mxu0 0
      %9468 = vmatmul.mubr.bf16.gmra.mxu0 %v9310
      %v9469 = vpop.f32.mrf.mxu0
      %v9470 = vadd.f32 0.0, %v9469
      %v9471 = vpop.f32.mrf.mxu0
      %v9472 = vpop.f32.mrf.mxu0
      %v9473 = vadd.f32 0.0, %v9472
      %v9474 = vpop.f32.mrf.mxu0
      %9475 = vdwg.mxu0
      %v9476 = vld [vmem:[%s273] sm:$0xf]
      %v9477 = vld [vmem:[%s273 + $0x4] sm:$0xf]
      %v9478 = vld [vmem:[%s273 + $0x8] sm:$0xf]
      %v9479 = vld [vmem:[%s273 + $0xc] sm:$0xf]
      %v9480 = vld [vmem:[%s273 + $0x10] sm:$0xf]
      %v9481 = vld [vmem:[%s273 + $0x14] sm:$0xf]
      %v9482 = vld [vmem:[%s273 + $0x18] sm:$0xf]
      %v9483 = vld [vmem:[%s273 + $0x1c] sm:$0xf]
      %v9484 = vld [vmem:[%s273 + $0x20] sm:$0xf]
      %v9485 = vld [vmem:[%s273 + $0x24] sm:$0xf]
      %v9486 = vld [vmem:[%s273 + $0x28] sm:$0xf]
      %v9487 = vld [vmem:[%s273 + $0x2c] sm:$0xf]
      %v9488 = vld [vmem:[%s273 + $0x30] sm:$0xf]
      %v9489 = vld [vmem:[%s273 + $0x34] sm:$0xf]
      %v9490 = vld [vmem:[%s273 + $0x38] sm:$0xf]
      %v9491 = vld [vmem:[%s273 + $0x3c] sm:$0xf]
      %v9492 = vld [vmem:[%s273 + $0x40] sm:$0xf]
      %v9493 = vld [vmem:[%s273 + $0x44] sm:$0xf]
      %v9494 = vld [vmem:[%s273 + $0x48] sm:$0xf]
      %v9495 = vld [vmem:[%s273 + $0x4c] sm:$0xf]
      %v9496 = vld [vmem:[%s273 + $0x50] sm:$0xf]
      %v9497 = vld [vmem:[%s273 + $0x54] sm:$0xf]
      %v9498 = vld [vmem:[%s273 + $0x58] sm:$0xf]
      %v9499 = vld [vmem:[%s273 + $0x5c] sm:$0xf]
      %v9500 = vld [vmem:[%s273 + $0x60] sm:$0xf]
      %v9501 = vld [vmem:[%s273 + $0x64] sm:$0xf]
      %v9502 = vld [vmem:[%s273 + $0x68] sm:$0xf]
      %v9503 = vld [vmem:[%s273 + $0x6c] sm:$0xf]
      %v9504 = vld [vmem:[%s273 + $0x70] sm:$0xf]
      %v9505 = vld [vmem:[%s273 + $0x74] sm:$0xf]
      %v9506 = vld [vmem:[%s273 + $0x78] sm:$0xf]
      %v9507 = vld [vmem:[%s273 + $0x7c] sm:$0xf]
      %v9508 = vunpack.c.l.bf16 %v9476
      %v9509 = vunpack.c.l.bf16 %v9477
      %v9510 = vunpack.c.l.bf16 %v9478
      %v9511 = vunpack.c.l.bf16 %v9479
      %v9512 = vunpack.c.l.bf16 %v9480
      %v9513 = vunpack.c.l.bf16 %v9481
      %v9514 = vunpack.c.l.bf16 %v9482
      %v9515 = vunpack.c.l.bf16 %v9483
      %v9516 = vunpack.c.l.bf16 %v9484
      %v9517 = vunpack.c.l.bf16 %v9485
      %v9518 = vunpack.c.l.bf16 %v9486
      %v9519 = vunpack.c.l.bf16 %v9487
      %v9520 = vunpack.c.l.bf16 %v9488
      %v9521 = vunpack.c.l.bf16 %v9489
      %v9522 = vunpack.c.l.bf16 %v9490
      %v9523 = vunpack.c.l.bf16 %v9491
      %v9524 = vunpack.c.l.bf16 %v9492
      %v9525 = vunpack.c.l.bf16 %v9493
      %v9526 = vunpack.c.l.bf16 %v9494
      %v9527 = vunpack.c.l.bf16 %v9495
      %v9528 = vunpack.c.l.bf16 %v9496
      %v9529 = vunpack.c.l.bf16 %v9497
      %v9530 = vunpack.c.l.bf16 %v9498
      %v9531 = vunpack.c.l.bf16 %v9499
      %v9532 = vunpack.c.l.bf16 %v9500
      %v9533 = vunpack.c.l.bf16 %v9501
      %v9534 = vunpack.c.l.bf16 %v9502
      %v9535 = vunpack.c.l.bf16 %v9503
      %v9536 = vunpack.c.l.bf16 %v9504
      %v9537 = vunpack.c.l.bf16 %v9505
      %v9538 = vunpack.c.l.bf16 %v9506
      %v9539 = vunpack.c.l.bf16 %v9507
      %v9540 = vld [vmem:[%s5] sm:$0x1]
      %v9542 = vlaneseq
      %v9543 = vshrl.u32 %v9542, 7
      %v9544 = vsub.s32 0, %v9543
      %v9545 = vrot.slane %v9540, %v9544
      %v9547 = vmul.f32 %v9350, %v9545
      %v9548 = vmul.f32 %v9353, %v9545
      %v9549 = vmul.f32 %v9358, %v9545
      %v9550 = vmul.f32 %v9361, %v9545
      %v9551 = vmul.f32 %v9366, %v9545
      %v9552 = vmul.f32 %v9369, %v9545
      %v9553 = vmul.f32 %v9374, %v9545
      %v9554 = vmul.f32 %v9377, %v9545
      %v9555 = vmul.f32 %v9382, %v9545
      %v9556 = vmul.f32 %v9385, %v9545
      %v9557 = vmul.f32 %v9390, %v9545
      %v9558 = vmul.f32 %v9393, %v9545
      %v9559 = vmul.f32 %v9398, %v9545
      %v9560 = vmul.f32 %v9401, %v9545
      %v9561 = vmul.f32 %v9406, %v9545
      %v9562 = vmul.f32 %v9409, %v9545
      %v9563 = vmul.f32 %v9414, %v9545
      %v9564 = vmul.f32 %v9417, %v9545
      %v9565 = vmul.f32 %v9422, %v9545
      %v9566 = vmul.f32 %v9425, %v9545
      %v9567 = vmul.f32 %v9430, %v9545
      %v9568 = vmul.f32 %v9433, %v9545
      %v9569 = vmul.f32 %v9438, %v9545
      %v9570 = vmul.f32 %v9441, %v9545
      %v9571 = vmul.f32 %v9446, %v9545
      %v9572 = vmul.f32 %v9449, %v9545
      %v9573 = vmul.f32 %v9454, %v9545
      %v9574 = vmul.f32 %v9457, %v9545
      %v9575 = vmul.f32 %v9462, %v9545
      %v9576 = vmul.f32 %v9465, %v9545
      %v9577 = vmul.f32 %v9470, %v9545
      %v9578 = vmul.f32 %v9473, %v9545
      %v9579 = vld [vmem:[%s6] sm:$0x1]
      %v9581 = vlaneseq
      %v9582 = vshrl.u32 %v9581, 7
      %v9583 = vsub.s32 0, %v9582
      %v9584 = vrot.slane %v9579, %v9583
      %v9586 = vadd.f32 %v9547, %v9584
      %v9587 = vadd.f32 %v9548, %v9584
      %v9588 = vadd.f32 %v9549, %v9584
      %v9589 = vadd.f32 %v9550, %v9584
      %v9590 = vadd.f32 %v9551, %v9584
      %v9591 = vadd.f32 %v9552, %v9584
      %v9592 = vadd.f32 %v9553, %v9584
      %v9593 = vadd.f32 %v9554, %v9584
      %v9594 = vadd.f32 %v9555, %v9584
      %v9595 = vadd.f32 %v9556, %v9584
      %v9596 = vadd.f32 %v9557, %v9584
      %v9597 = vadd.f32 %v9558, %v9584
      %v9598 = vadd.f32 %v9559, %v9584
      %v9599 = vadd.f32 %v9560, %v9584
      %v9600 = vadd.f32 %v9561, %v9584
      %v9601 = vadd.f32 %v9562, %v9584
      %v9602 = vadd.f32 %v9563, %v9584
      %v9603 = vadd.f32 %v9564, %v9584
      %v9604 = vadd.f32 %v9565, %v9584
      %v9605 = vadd.f32 %v9566, %v9584
      %v9606 = vadd.f32 %v9567, %v9584
      %v9607 = vadd.f32 %v9568, %v9584
      %v9608 = vadd.f32 %v9569, %v9584
      %v9609 = vadd.f32 %v9570, %v9584
      %v9610 = vadd.f32 %v9571, %v9584
      %v9611 = vadd.f32 %v9572, %v9584
      %v9612 = vadd.f32 %v9573, %v9584
      %v9613 = vadd.f32 %v9574, %v9584
      %v9614 = vadd.f32 %v9575, %v9584
      %v9615 = vadd.f32 %v9576, %v9584
      %v9616 = vadd.f32 %v9577, %v9584
      %v9617 = vadd.f32 %v9578, %v9584
      %v9618 = vadd.f32 %v9586, %v9508
      %v9619 = vadd.f32 %v9587, %v9509
      %v9620 = vadd.f32 %v9588, %v9510
      %v9621 = vadd.f32 %v9589, %v9511
      %v9622 = vadd.f32 %v9590, %v9512
      %v9623 = vadd.f32 %v9591, %v9513
      %v9624 = vadd.f32 %v9592, %v9514
      %v9625 = vadd.f32 %v9593, %v9515
      %v9626 = vadd.f32 %v9594, %v9516
      %v9627 = vadd.f32 %v9595, %v9517
      %v9628 = vadd.f32 %v9596, %v9518
      %v9629 = vadd.f32 %v9597, %v9519
      %v9630 = vadd.f32 %v9598, %v9520
      %v9631 = vadd.f32 %v9599, %v9521
      %v9632 = vadd.f32 %v9600, %v9522
      %v9633 = vadd.f32 %v9601, %v9523
      %v9634 = vadd.f32 %v9602, %v9524
      %v9635 = vadd.f32 %v9603, %v9525
      %v9636 = vadd.f32 %v9604, %v9526
      %v9637 = vadd.f32 %v9605, %v9527
      %v9638 = vadd.f32 %v9606, %v9528
      %v9639 = vadd.f32 %v9607, %v9529
      %v9640 = vadd.f32 %v9608, %v9530
      %v9641 = vadd.f32 %v9609, %v9531
      %v9642 = vadd.f32 %v9610, %v9532
      %v9643 = vadd.f32 %v9611, %v9533
      %v9644 = vadd.f32 %v9612, %v9534
      %v9645 = vadd.f32 %v9613, %v9535
      %v9646 = vadd.f32 %v9614, %v9536
      %v9647 = vadd.f32 %v9615, %v9537
      %v9648 = vadd.f32 %v9616, %v9538
      %v9649 = vadd.f32 %v9617, %v9539
      %v9650 = vmax.f32 %v9618, 0.0
      %v9651 = vmax.f32 %v9619, 0.0
      %v9652 = vmax.f32 %v9620, 0.0
      %v9653 = vmax.f32 %v9621, 0.0
      %v9654 = vmax.f32 %v9622, 0.0
      %v9655 = vmax.f32 %v9623, 0.0
      %v9656 = vmax.f32 %v9624, 0.0
      %v9657 = vmax.f32 %v9625, 0.0
      %v9658 = vmax.f32 %v9626, 0.0
      %v9659 = vmax.f32 %v9627, 0.0
      %v9660 = vmax.f32 %v9628, 0.0
      %v9661 = vmax.f32 %v9629, 0.0
      %v9662 = vmax.f32 %v9630, 0.0
      %v9663 = vmax.f32 %v9631, 0.0
      %v9664 = vmax.f32 %v9632, 0.0
      %v9665 = vmax.f32 %v9633, 0.0
      %v9666 = vmax.f32 %v9634, 0.0
      %v9667 = vmax.f32 %v9635, 0.0
      %v9668 = vmax.f32 %v9636, 0.0
      %v9669 = vmax.f32 %v9637, 0.0
      %v9670 = vmax.f32 %v9638, 0.0
      %v9671 = vmax.f32 %v9639, 0.0
      %v9672 = vmax.f32 %v9640, 0.0
      %v9673 = vmax.f32 %v9641, 0.0
      %v9674 = vmax.f32 %v9642, 0.0
      %v9675 = vmax.f32 %v9643, 0.0
      %v9676 = vmax.f32 %v9644, 0.0
      %v9677 = vmax.f32 %v9645, 0.0
      %v9678 = vmax.f32 %v9646, 0.0
      %v9679 = vmax.f32 %v9647, 0.0
      %v9680 = vmax.f32 %v9648, 0.0
      %v9681 = vmax.f32 %v9649, 0.0
      %v9682 = vpack.c.bf16 %v9651, %v9650
      %v9683 = vpack.c.bf16 %v9653, %v9652
      %v9684 = vpack.c.bf16 %v9655, %v9654
      %v9685 = vpack.c.bf16 %v9657, %v9656
      %v9686 = vpack.c.bf16 %v9659, %v9658
      %v9687 = vpack.c.bf16 %v9661, %v9660
      %v9688 = vpack.c.bf16 %v9663, %v9662
      %v9689 = vpack.c.bf16 %v9665, %v9664
      %v9690 = vpack.c.bf16 %v9667, %v9666
      %v9691 = vpack.c.bf16 %v9669, %v9668
      %v9692 = vpack.c.bf16 %v9671, %v9670
      %v9693 = vpack.c.bf16 %v9673, %v9672
      %v9694 = vpack.c.bf16 %v9675, %v9674
      %v9695 = vpack.c.bf16 %v9677, %v9676
      %v9696 = vpack.c.bf16 %v9679, %v9678
      %v9697 = vpack.c.bf16 %v9681, %v9680
      %v9714 = vunpack.c.l.b16 %v9682
      %v9715 = vunpack.c.h.b16 %v9682
      %v9716 = vunpack.c.l.b16 %v9683
      %v9717 = vunpack.c.h.b16 %v9683
      %v9718 = vunpack.c.l.b16 %v9684
      %v9719 = vunpack.c.h.b16 %v9684
      %v9720 = vunpack.c.l.b16 %v9685
      %v9721 = vunpack.c.h.b16 %v9685
      %v9722 = vunpack.c.l.b16 %v9686
      %v9723 = vunpack.c.h.b16 %v9686
      %v9724 = vunpack.c.l.b16 %v9687
      %v9725 = vunpack.c.h.b16 %v9687
      %v9726 = vunpack.c.l.b16 %v9688
      %v9727 = vunpack.c.h.b16 %v9688
      %v9728 = vunpack.c.l.b16 %v9689
      %v9729 = vunpack.c.h.b16 %v9689
      %v9730 = vunpack.c.l.b16 %v9690
      %v9731 = vunpack.c.h.b16 %v9690
      %v9732 = vunpack.c.l.b16 %v9691
      %v9733 = vunpack.c.h.b16 %v9691
      %v9734 = vunpack.c.l.b16 %v9692
      %v9735 = vunpack.c.h.b16 %v9692
      %v9736 = vunpack.c.l.b16 %v9693
      %v9737 = vunpack.c.h.b16 %v9693
      %v9738 = vunpack.c.l.b16 %v9694
      %v9739 = vunpack.c.h.b16 %v9694
      %v9740 = vunpack.c.l.b16 %v9695
      %v9741 = vunpack.c.h.b16 %v9695
      %v9742 = vunpack.c.l.b16 %v9696
      %v9743 = vunpack.c.h.b16 %v9696
      %v9744 = vunpack.c.l.b16 %v9697
      %v9745 = vunpack.c.h.b16 %v9697
      %v9746 = vpack.c.b16 %v9714, %v9714
      %v9747 = vpack.c.b16 %v9715, %v9715
      %v9748 = vpack.c.b16 %v9716, %v9716
      %v9749 = vpack.c.b16 %v9717, %v9717
      %v9750 = vpack.c.b16 %v9718, %v9718
      %v9751 = vpack.c.b16 %v9719, %v9719
      %v9752 = vpack.c.b16 %v9720, %v9720
      %v9753 = vpack.c.b16 %v9721, %v9721
      %v9754 = vpack.c.b16 %v9722, %v9722
      %v9755 = vpack.c.b16 %v9723, %v9723
      %v9756 = vpack.c.b16 %v9724, %v9724
      %v9757 = vpack.c.b16 %v9725, %v9725
      %v9758 = vpack.c.b16 %v9726, %v9726
      %v9759 = vpack.c.b16 %v9727, %v9727
      %v9760 = vpack.c.b16 %v9728, %v9728
      %v9761 = vpack.c.b16 %v9729, %v9729
      %v9762 = vpack.c.b16 %v9730, %v9730
      %v9763 = vpack.c.b16 %v9731, %v9731
      %v9764 = vpack.c.b16 %v9732, %v9732
      %v9765 = vpack.c.b16 %v9733, %v9733
      %v9766 = vpack.c.b16 %v9734, %v9734
      %v9767 = vpack.c.b16 %v9735, %v9735
      %v9768 = vpack.c.b16 %v9736, %v9736
      %v9769 = vpack.c.b16 %v9737, %v9737
      %v9770 = vpack.c.b16 %v9738, %v9738
      %v9771 = vpack.c.b16 %v9739, %v9739
      %v9772 = vpack.c.b16 %v9740, %v9740
      %v9773 = vpack.c.b16 %v9741, %v9741
      %v9774 = vpack.c.b16 %v9742, %v9742
      %v9775 = vpack.c.b16 %v9743, %v9743
      %v9776 = vpack.c.b16 %v9744, %v9744
      %v9777 = vpack.c.b16 %v9745, %v9745
      %9810 = vst.msk [vmem:[%s278] sm:$0xf] %vm280, %v9746
      %9811 = vst.msk [vmem:[%s278 + $0x4] sm:$0xf] %vm280, %v9747
      %9812 = vst.msk [vmem:[%s278 + $0x8] sm:$0xf] %vm280, %v9748
      %9813 = vst.msk [vmem:[%s278 + $0xc] sm:$0xf] %vm280, %v9749
      %9814 = vst.msk [vmem:[%s278 + $0x10] sm:$0xf] %vm280, %v9750
      %9815 = vst.msk [vmem:[%s278 + $0x14] sm:$0xf] %vm280, %v9751
      %9816 = vst.msk [vmem:[%s278 + $0x18] sm:$0xf] %vm280, %v9752
      %9817 = vst.msk [vmem:[%s278 + $0x1c] sm:$0xf] %vm280, %v9753
      %9818 = vst.msk [vmem:[%s278 + $0x20] sm:$0xf] %vm280, %v9754
      %9819 = vst.msk [vmem:[%s278 + $0x24] sm:$0xf] %vm280, %v9755
      %9820 = vst.msk [vmem:[%s278 + $0x28] sm:$0xf] %vm280, %v9756
      %9821 = vst.msk [vmem:[%s278 + $0x2c] sm:$0xf] %vm280, %v9757
      %9822 = vst.msk [vmem:[%s278 + $0x30] sm:$0xf] %vm280, %v9758
      %9823 = vst.msk [vmem:[%s278 + $0x34] sm:$0xf] %vm280, %v9759
      %9824 = vst.msk [vmem:[%s278 + $0x38] sm:$0xf] %vm280, %v9760
      %9825 = vst.msk [vmem:[%s278 + $0x3c] sm:$0xf] %vm280, %v9761
      %9826 = vst.msk [vmem:[%s278 + $0x40] sm:$0xf] %vm280, %v9762
      %9827 = vst.msk [vmem:[%s278 + $0x44] sm:$0xf] %vm280, %v9763
      %9828 = vst.msk [vmem:[%s278 + $0x48] sm:$0xf] %vm280, %v9764
      %9829 = vst.msk [vmem:[%s278 + $0x4c] sm:$0xf] %vm280, %v9765
      %9830 = vst.msk [vmem:[%s278 + $0x50] sm:$0xf] %vm280, %v9766
      %9831 = vst.msk [vmem:[%s278 + $0x54] sm:$0xf] %vm280, %v9767
      %9832 = vst.msk [vmem:[%s278 + $0x58] sm:$0xf] %vm280, %v9768
      %9833 = vst.msk [vmem:[%s278 + $0x5c] sm:$0xf] %vm280, %v9769
      %9834 = vst.msk [vmem:[%s278 + $0x60] sm:$0xf] %vm280, %v9770
      %9835 = vst.msk [vmem:[%s278 + $0x64] sm:$0xf] %vm280, %v9771
      %9836 = vst.msk [vmem:[%s278 + $0x68] sm:$0xf] %vm280, %v9772
      %9837 = vst.msk [vmem:[%s278 + $0x6c] sm:$0xf] %vm280, %v9773
      %9838 = vst.msk [vmem:[%s278 + $0x70] sm:$0xf] %vm280, %v9774
      %9839 = vst.msk [vmem:[%s278 + $0x74] sm:$0xf] %vm280, %v9775
      %9840 = vst.msk [vmem:[%s278 + $0x78] sm:$0xf] %vm280, %v9776
      %9841 = vst.msk [vmem:[%s278 + $0x7c] sm:$0xf] %vm280, %v9777
      %p9842 = scmp.lt.s32.totalorder %s18, 1
      %s9843 = scalar_select %p9842, %s18, 1
      %s9844 = smul.addr %s9843, 32
      %s9845 = smul.addr %s9844, 4
      %s9846 = scalar_lea.vmem %s7, %s9845
      // Predicated region
      $region49: #{tpu_custom_call.1} parent=47 // pred_check
        %p9847 = pneg %p188
      $region50: #{tpu_custom_call.1} parent=47 // pred_check_branch
        %9849 = sbr.rel (%p9847) target = $region52
      $region51: #{tpu_custom_call.1} parent=47 // pred_region
        _
      $region52: #{tpu_custom_call.1} parent=47 // pred_fallthru
        _
    $region48: #{tpu_custom_call.1} parent=5 // pred_fallthru
      _
    %p9850 = scmp.le.s32.totalorder 2, %s13
    // Predicated region
    $region53: #{tpu_custom_call.1} parent=5 // pred_check
      %p9851 = pneg %p9850
    $region54: #{tpu_custom_call.1} parent=5 // pred_check_branch
      %9853 = sbr.rel (%p9851) target = $region56
    $region55: #{tpu_custom_call.1} parent=5 // pred_region
      %s9854 = ssub.s32 %s13, 2
      // Predicated region
      $region57: #{tpu_custom_call.1} parent=55 // pred_check
        %p9855 = pneg %p194
      $region58: #{tpu_custom_call.1} parent=55 // pred_check_branch
        %9857 = sbr.rel (%p9855) target = $region60
      $region59: #{tpu_custom_call.1} parent=55 // pred_region
        %p9858 = scmp.lt.s32.totalorder %s19, 1
        %s9859 = scalar_select %p9858, %s19, 1
        %s9860 = smul.addr %s9859, 32
        %s9861 = smul.addr %s9860, 4
        %s9862 = scalar_lea.vmem %s7, %s9861
      $region60: #{tpu_custom_call.1} parent=55 // pred_fallthru
        _
    $region56: #{tpu_custom_call.1} parent=5 // pred_fallthru
      _
  $region6: #{tpu_custom_call.1} parent=0 // loop_footer
    %s17 = sadd.s32 1, %s13
  $region7: #{tpu_custom_call.1} parent=0 // loop_footer_branch
    %12 = sbr.rel target = $region3
  $region8: #{tpu_custom_call.1} parent=0 // loop_exit
    _

</llo_original>
